<compile_context>
chip_gen: v6e
topology: v6e:2x2x1
jax: 0.10.0
libtpu: 0.0.40
codegen_flags: <defaults>
</compile_context>

<pallas_src>
import jax
import jax.numpy as jnp
from jax.experimental import pallas as pl
from jax.experimental.pallas import tpu as pltpu

EPS = 1e-5


def _conv3x3_bn(pad_ref, w_flat, gamma, beta, N, H, W):
    """3x3 conv (stride 1) on a zero-padded VMEM scratch, fused with
    training-mode BatchNorm.

    pad_ref: (N, H+2, W+2, Cin) f32 VMEM scratch (zero border, interior set)
    w_flat:  (9*Cin, Cout) in the MXU operand dtype (bf16 or f32)
    gamma, beta: (1, Cout) f32
    returns: (N*H*W, Cout) f32, BN-normalized.
    """
    Cin = pad_ref.shape[-1]
    NHW = N * H * W

    # Cast the small padded buffer once; im2col slices/concat stay in the
    # (possibly half-width) MXU operand dtype.
    xpad = pad_ref[...].astype(w_flat.dtype)         # (N, H+2, W+2, Cin)

    # im2col: 9 shifted views concatenated along the lane (channel) axis
    # -> a single K = 9*Cin MXU matmul instead of nine K = Cin dots.
    cols = [xpad[:, dy:dy + H, dx:dx + W, :].reshape(NHW, Cin)
            for dy in range(3) for dx in range(3)]
    patches = jnp.concatenate(cols, axis=1)          # (NHW, 9*Cin)
    acc = jnp.dot(patches, w_flat, preferred_element_type=jnp.float32)

    # Training-mode BatchNorm statistics over (N, H, W), single pass:
    # per-channel sum and sum-of-squares as (1, NHW) @ (NHW, Cout) matmuls
    # (an axis-0 XLU reduction would use Cin/128 lanes; the MXU slot is idle).
    ones = jnp.ones((1, NHW), jnp.float32)
    s1 = jnp.dot(ones, acc, preferred_element_type=jnp.float32)
    s2 = jnp.dot(ones, acc * acc, preferred_element_type=jnp.float32)
    inv_n = jnp.float32(1.0 / NHW)
    mean = s1 * inv_n
    var = s2 * inv_n - mean * mean                   # biased var (PyTorch train)

    # Fold normalization into a single per-channel scale/bias.
    scale = gamma * jax.lax.rsqrt(var + EPS)         # (1, Cout)
    bias = beta - mean * scale                       # (1, Cout)
    return acc * scale + bias


def basic_block_kernel(x_ref, w1_ref, g1_ref, b1_ref, w2_ref, g2_ref, b2_ref,
                       out_ref, pad_ref):
    """Fused BasicBlock forward: out = relu(bn2(conv2(relu(bn1(conv1(x))))) + x)."""
    N, H, W, C = x_ref.shape
    NHW = N * H * W

    x = x_ref[...]                                   # (N, H, W, C) f32

    # --- conv1 + bn1 + relu: zero-padded input built in VMEM (no HBM pad) ---
    pad_ref[...] = jnp.zeros_like(pad_ref)
    pad_ref[:, 1:H + 1, 1:W + 1, :] = x
    y1 = jnp.maximum(
        _conv3x3_bn(pad_ref, w1_ref[...], g1_ref[...], b1_ref[...], N, H, W),
        0.0)                                         # (NHW, C) f32

    # --- conv2 + bn2 + residual + relu; scratch reused (border still zero) ---
    pad_ref[:, 1:H + 1, 1:W + 1, :] = y1.reshape(N, H, W, C)
    z = _conv3x3_bn(pad_ref, w2_ref[...], g2_ref[...], b2_ref[...], N, H, W)
    z = z + x.reshape(NHW, C)                        # residual (Cin == planes)
    out_ref[...] = jnp.maximum(z, 0.0).astype(out_ref.dtype)


def prepare_params(params, matmul_dtype=jnp.bfloat16):
    """One-time layout/dtype prep, hoisted out of the per-forward path.

    params (PyTorch layout): w1, w2: (Cout, Cin, 3, 3) OIHW; g*, b*: (C,).
    Conv weights are flattened to (9*Cin, Cout) in im2col tap order and cast
    to the MXU operand dtype; gamma/beta stay f32 (elementwise math is f32).
    """
    def flat_w(w):
        co, ci, kh, kw = w.shape
        return (jnp.transpose(w, (2, 3, 1, 0))       # (kh, kw, Cin, Cout)
                .reshape(kh * kw * ci, co)
                .astype(matmul_dtype))

    P = params["w1"].shape[0]
    f32 = jnp.float32
    return {
        "w1": flat_w(params["w1"]), "w2": flat_w(params["w2"]),
        "g1": params["g1"].reshape(1, P).astype(f32),
        "b1": params["b1"].reshape(1, P).astype(f32),
        "g2": params["g2"].reshape(1, P).astype(f32),
        "b2": params["b2"].reshape(1, P).astype(f32),
    }


@jax.jit
def basic_block_forward(x_nchw, prep):
    """BasicBlock forward (stride=1, downsample=None). x_nchw: (N, C, H, W)."""
    # TODO(synk): stride != 1 and the optional `downsample` branch are not
    # exercised by the default constructor args and are not implemented.
    x = jnp.transpose(x_nchw, (0, 2, 3, 1)).astype(jnp.float32)  # NCHW -> NHWC
    N, H, W, Cin = x.shape
    P = prep["g1"].shape[-1]
    assert Cin == P, "stride=1 BasicBlock without downsample needs inplanes == planes"

    vmem = pl.BlockSpec(memory_space=pltpu.MemorySpace.VMEM)
    # TODO(synk): for real ResNet shapes (e.g. 32x56x56x64) and for v7x's two
    # TensorCores, tile over batch/row blocks with a parallel grid plus a
    # cross-tile BN reduction instead of whole-array VMEM blocks.
    out_flat = pl.pallas_call(
        basic_block_kernel,
        out_shape=jax.ShapeDtypeStruct((N * H * W, P), jnp.float32),
        in_specs=[vmem] * 7,
        out_specs=vmem,
        scratch_shapes=[
            pltpu.VMEM((N, H + 2, W + 2, Cin), jnp.float32),  # shared padded buf
        ],
    )(x, prep["w1"], prep["g1"], prep["b1"], prep["w2"], prep["g2"], prep["b2"])

    return jnp.transpose(out_flat.reshape(N, H, W, P), (0, 3, 1, 2))  # -> NCHW


def ref_basic_block(x, w1, g1, b1, w2, g2, b2):
    """Pure-JAX f32 reference (NCHW / OIHW, training-mode BatchNorm)."""
    def conv(a, w):
        return jax.lax.conv_general_dilated(
            a, w, (1, 1), ((1, 1), (1, 1)),
            dimension_numbers=("NCHW", "OIHW", "NCHW"))

    def bn(a, g, b):
        mean = jnp.mean(a, axis=(0, 2, 3), keepdims=True)
        var = jnp.mean(jnp.square(a - mean), axis=(0, 2, 3), keepdims=True)
        return ((a - mean) * jax.lax.rsqrt(var + EPS)
                * g.reshape(1, -1, 1, 1) + b.reshape(1, -1, 1, 1))

    out = jax.nn.relu(bn(conv(x, w1), g1, b1))
    out = bn(conv(out, w2), g2, b2) + x
    return jax.nn.relu(out)


if __name__ == "__main__":
    key = jax.random.PRNGKey(0)
    kx, k1, k2, k3, k4, k5, k6 = jax.random.split(key, 7)

    N, C, H, W = 2, 4, 16, 16                 # inplanes = planes = 4, stride = 1
    x = jax.random.normal(kx, (N, C, H, W), jnp.float32)

    params = {
        "w1": jax.random.normal(k1, (C, C, 3, 3), jnp.float32) * 0.1,  # OIHW
        "g1": 1.0 + 0.1 * jax.random.normal(k2, (C,), jnp.float32),
        "b1": 0.1 * jax.random.normal(k3, (C,), jnp.float32),
        "w2": jax.random.normal(k4, (C, C, 3, 3), jnp.float32) * 0.1,  # OIHW
        "g2": 1.0 + 0.1 * jax.random.normal(k5, (C,), jnp.float32),
        "b2": 0.1 * jax.random.normal(k6, (C,), jnp.float32),
    }

    ref = ref_basic_block(x, params["w1"], params["g1"], params["b1"],
                          params["w2"], params["g2"], params["b2"])
    ref = jax.block_until_ready(ref)

    # 1) f32 MXU operands: tight parity with the f32 reference.
    prep_f32 = prepare_params(params, matmul_dtype=jnp.float32)
    out_f32 = jax.block_until_ready(basic_block_forward(x, prep_f32))
    assert out_f32.shape == (N, C, H, W)
    assert jnp.allclose(out_f32, ref, atol=1e-4, rtol=1e-4), (
        float(jnp.max(jnp.abs(out_f32 - ref))))

    # 2) bf16 MXU operands (perf path on v5e/v6e/v7x): f32 accumulation keeps
    #    BN statistics stable; operand rounding gives ~1e-2-level deltas.
    prep_bf16 = prepare_params(params, matmul_dtype=jnp.bfloat16)
    out_bf16 = jax.block_until_ready(basic_block_forward(x, prep_bf16))
    assert out_bf16.shape == (N, C, H, W)
    assert jnp.allclose(out_bf16, ref, atol=5e-2, rtol=5e-2), (
        float(jnp.max(jnp.abs(out_bf16 - ref))))

    print("KERNEL_OK")
</pallas_src>

<mosaic_0001>
module attributes {stable_mosaic.version = 11 : i64} {
  func.func @basic_block_kernel(%arg0: memref<2x16x16x4xf32, #tpu.memory_space<vmem>>, %arg1: memref<36x4xf32, #tpu.memory_space<vmem>>, %arg2: memref<1x4xf32, #tpu.memory_space<vmem>>, %arg3: memref<1x4xf32, #tpu.memory_space<vmem>>, %arg4: memref<36x4xf32, #tpu.memory_space<vmem>>, %arg5: memref<1x4xf32, #tpu.memory_space<vmem>>, %arg6: memref<1x4xf32, #tpu.memory_space<vmem>>, %arg7: memref<512x4xf32, #tpu.memory_space<vmem>>, %arg8: memref<2x18x18x4xf32, #tpu.memory_space<vmem>>) attributes {dimension_semantics = [], scalar_prefetch = 0 : i64, scratch_operands = 1 : i64, tpu.core_type = #tpu.core_type<tc>} {
    %c0 = arith.constant 0 : index
    %c0_0 = arith.constant 0 : index
    %c0_1 = arith.constant 0 : index
    %c0_2 = arith.constant 0 : index
    %0 = vector.load %arg0[%c0, %c0_0, %c0_1, %c0_2] : memref<2x16x16x4xf32, #tpu.memory_space<vmem>>, vector<2x16x16x4xf32>
    %cst = arith.constant 0.000000e+00 : f32
    %1 = vector.broadcast %cst : f32 to vector<2x18x18x4xf32>
    %c0_3 = arith.constant 0 : index
    %c0_4 = arith.constant 0 : index
    %c0_5 = arith.constant 0 : index
    %c0_6 = arith.constant 0 : index
    %2 = vector.load %arg8[%c0_3, %c0_4, %c0_5, %c0_6] : memref<2x18x18x4xf32, #tpu.memory_space<vmem>>, vector<2x18x18x4xf32>
    tpu.vector_store %arg8[%c0_3, %c0_4, %c0_5, %c0_6], %1 {strides = array<i32>} : memref<2x18x18x4xf32, #tpu.memory_space<vmem>>, vector<2x18x18x4xf32>,
    %c0_7 = arith.constant 0 : index
    %c1 = arith.constant 1 : index
    %c1_8 = arith.constant 1 : index
    %c0_9 = arith.constant 0 : index
    %3 = vector.load %arg8[%c0_7, %c1, %c1_8, %c0_9] : memref<2x18x18x4xf32, #tpu.memory_space<vmem>>, vector<2x16x16x4xf32>
    tpu.vector_store %arg8[%c0_7, %c1, %c1_8, %c0_9], %0 {strides = array<i32>} : memref<2x18x18x4xf32, #tpu.memory_space<vmem>>, vector<2x16x16x4xf32>,
    %c0_10 = arith.constant 0 : index
    %c0_11 = arith.constant 0 : index
    %4 = vector.load %arg1[%c0_10, %c0_11] : memref<36x4xf32, #tpu.memory_space<vmem>>, vector<36x4xf32>
    %c0_12 = arith.constant 0 : index
    %c0_13 = arith.constant 0 : index
    %5 = vector.load %arg2[%c0_12, %c0_13] : memref<1x4xf32, #tpu.memory_space<vmem>>, vector<1x4xf32>
    %c0_14 = arith.constant 0 : index
    %c0_15 = arith.constant 0 : index
    %6 = vector.load %arg3[%c0_14, %c0_15] : memref<1x4xf32, #tpu.memory_space<vmem>>, vector<1x4xf32>
    %c0_16 = arith.constant 0 : index
    %c0_17 = arith.constant 0 : index
    %c0_18 = arith.constant 0 : index
    %c0_19 = arith.constant 0 : index
    %7 = vector.load %arg8[%c0_16, %c0_17, %c0_18, %c0_19] : memref<2x18x18x4xf32, #tpu.memory_space<vmem>>, vector<2x18x18x4xf32>
    %8 = vector.extract_strided_slice %7 {offsets = [0, 0, 0, 0], sizes = [2, 16, 16, 4], strides = [1, 1, 1, 1]} : vector<2x18x18x4xf32> to vector<2x16x16x4xf32>
    %9 = vector.shape_cast %8 : vector<2x16x16x4xf32> to vector<512x4xf32>
    %10 = vector.extract_strided_slice %7 {offsets = [0, 0, 1, 0], sizes = [2, 16, 16, 4], strides = [1, 1, 1, 1]} : vector<2x18x18x4xf32> to vector<2x16x16x4xf32>
    %11 = vector.shape_cast %10 : vector<2x16x16x4xf32> to vector<512x4xf32>
    %12 = vector.extract_strided_slice %7 {offsets = [0, 0, 2, 0], sizes = [2, 16, 16, 4], strides = [1, 1, 1, 1]} : vector<2x18x18x4xf32> to vector<2x16x16x4xf32>
    %13 = vector.shape_cast %12 : vector<2x16x16x4xf32> to vector<512x4xf32>
    %14 = vector.extract_strided_slice %7 {offsets = [0, 1, 0, 0], sizes = [2, 16, 16, 4], strides = [1, 1, 1, 1]} : vector<2x18x18x4xf32> to vector<2x16x16x4xf32>
    %15 = vector.shape_cast %14 : vector<2x16x16x4xf32> to vector<512x4xf32>
    %16 = vector.extract_strided_slice %7 {offsets = [0, 1, 1, 0], sizes = [2, 16, 16, 4], strides = [1, 1, 1, 1]} : vector<2x18x18x4xf32> to vector<2x16x16x4xf32>
    %17 = vector.shape_cast %16 : vector<2x16x16x4xf32> to vector<512x4xf32>
    %18 = vector.extract_strided_slice %7 {offsets = [0, 1, 2, 0], sizes = [2, 16, 16, 4], strides = [1, 1, 1, 1]} : vector<2x18x18x4xf32> to vector<2x16x16x4xf32>
    %19 = vector.shape_cast %18 : vector<2x16x16x4xf32> to vector<512x4xf32>
    %20 = vector.extract_strided_slice %7 {offsets = [0, 2, 0, 0], sizes = [2, 16, 16, 4], strides = [1, 1, 1, 1]} : vector<2x18x18x4xf32> to vector<2x16x16x4xf32>
    %21 = vector.shape_cast %20 : vector<2x16x16x4xf32> to vector<512x4xf32>
    %22 = vector.extract_strided_slice %7 {offsets = [0, 2, 1, 0], sizes = [2, 16, 16, 4], strides = [1, 1, 1, 1]} : vector<2x18x18x4xf32> to vector<2x16x16x4xf32>
    %23 = vector.shape_cast %22 : vector<2x16x16x4xf32> to vector<512x4xf32>
    %24 = vector.extract_strided_slice %7 {offsets = [0, 2, 2, 0], sizes = [2, 16, 16, 4], strides = [1, 1, 1, 1]} : vector<2x18x18x4xf32> to vector<2x16x16x4xf32>
    %25 = vector.shape_cast %24 : vector<2x16x16x4xf32> to vector<512x4xf32>
    %26 = tpu.concatenate %9, %11, %13, %15, %17, %19, %21, %23, %25 in 1 : vector<512x4xf32>, vector<512x4xf32>, vector<512x4xf32>, vector<512x4xf32>, vector<512x4xf32>, vector<512x4xf32>, vector<512x4xf32>, vector<512x4xf32>, vector<512x4xf32> -> vector<512x36xf32>
    %cst_20 = arith.constant dense<0.000000e+00> : vector<512x4xf32>
    %27 = tpu.matmul %26, %4, %cst_20 {dimension_numbers = #tpu.dot_dimension_numbers<[1], [0], [0], [1], [0, 0, 1, 1], [], []>} : vector<512x36xf32>, vector<36x4xf32>, vector<512x4xf32> -> vector<512x4xf32>
    %cst_21 = arith.constant 1.000000e+00 : f32
    %28 = vector.broadcast %cst_21 : f32 to vector<1x512xf32>
    %cst_22 = arith.constant dense<0.000000e+00> : vector<1x4xf32>
    %29 = tpu.matmul %28, %27, %cst_22 {dimension_numbers = #tpu.dot_dimension_numbers<[1], [0], [0], [1], [0, 0, 1, 1], [], []>} : vector<1x512xf32>, vector<512x4xf32>, vector<1x4xf32> -> vector<1x4xf32>
    %30 = arith.mulf %27, %27 : vector<512x4xf32>
    %cst_23 = arith.constant dense<0.000000e+00> : vector<1x4xf32>
    %31 = tpu.matmul %28, %30, %cst_23 {dimension_numbers = #tpu.dot_dimension_numbers<[1], [0], [0], [1], [0, 0, 1, 1], [], []>} : vector<1x512xf32>, vector<512x4xf32>, vector<1x4xf32> -> vector<1x4xf32>
    %cst_24 = arith.constant 0.001953125 : f32
    %32 = vector.broadcast %cst_24 : f32 to vector<1x4xf32>
    %33 = arith.mulf %29, %32 : vector<1x4xf32>
    %cst_25 = arith.constant 0.001953125 : f32
    %34 = vector.broadcast %cst_25 : f32 to vector<1x4xf32>
    %35 = arith.mulf %31, %34 : vector<1x4xf32>
    %36 = arith.mulf %33, %33 : vector<1x4xf32>
    %37 = arith.subf %35, %36 : vector<1x4xf32>
    %cst_26 = arith.constant 9.99999974E-6 : f32
    %38 = vector.broadcast %cst_26 : f32 to vector<1x4xf32>
    %39 = arith.addf %37, %38 : vector<1x4xf32>
    %40 = math.rsqrt %39 : vector<1x4xf32>
    %41 = arith.mulf %5, %40 : vector<1x4xf32>
    %42 = arith.mulf %33, %41 : vector<1x4xf32>
    %43 = arith.subf %6, %42 : vector<1x4xf32>
    %44 = vector.broadcast %41 : vector<1x4xf32> to vector<512x4xf32>
    %45 = arith.mulf %27, %44 : vector<512x4xf32>
    %46 = vector.broadcast %43 : vector<1x4xf32> to vector<512x4xf32>
    %47 = arith.addf %45, %46 : vector<512x4xf32>
    %cst_27 = arith.constant 0.000000e+00 : f32
    %48 = vector.broadcast %cst_27 : f32 to vector<512x4xf32>
    %49 = arith.maximumf %47, %48 : vector<512x4xf32>
    %50 = vector.shape_cast %49 : vector<512x4xf32> to vector<2x16x16x4xf32>
    %c0_28 = arith.constant 0 : index
    %c1_29 = arith.constant 1 : index
    %c1_30 = arith.constant 1 : index
    %c0_31 = arith.constant 0 : index
    %51 = vector.load %arg8[%c0_28, %c1_29, %c1_30, %c0_31] : memref<2x18x18x4xf32, #tpu.memory_space<vmem>>, vector<2x16x16x4xf32>
    tpu.vector_store %arg8[%c0_28, %c1_29, %c1_30, %c0_31], %50 {strides = array<i32>} : memref<2x18x18x4xf32, #tpu.memory_space<vmem>>, vector<2x16x16x4xf32>,
    %c0_32 = arith.constant 0 : index
    %c0_33 = arith.constant 0 : index
    %52 = vector.load %arg4[%c0_32, %c0_33] : memref<36x4xf32, #tpu.memory_space<vmem>>, vector<36x4xf32>
    %c0_34 = arith.constant 0 : index
    %c0_35 = arith.constant 0 : index
    %53 = vector.load %arg5[%c0_34, %c0_35] : memref<1x4xf32, #tpu.memory_space<vmem>>, vector<1x4xf32>
    %c0_36 = arith.constant 0 : index
    %c0_37 = arith.constant 0 : index
    %54 = vector.load %arg6[%c0_36, %c0_37] : memref<1x4xf32, #tpu.memory_space<vmem>>, vector<1x4xf32>
    %c0_38 = arith.constant 0 : index
    %c0_39 = arith.constant 0 : index
    %c0_40 = arith.constant 0 : index
    %c0_41 = arith.constant 0 : index
    %55 = vector.load %arg8[%c0_38, %c0_39, %c0_40, %c0_41] : memref<2x18x18x4xf32, #tpu.memory_space<vmem>>, vector<2x18x18x4xf32>
    %56 = vector.extract_strided_slice %55 {offsets = [0, 0, 0, 0], sizes = [2, 16, 16, 4], strides = [1, 1, 1, 1]} : vector<2x18x18x4xf32> to vector<2x16x16x4xf32>
    %57 = vector.shape_cast %56 : vector<2x16x16x4xf32> to vector<512x4xf32>
    %58 = vector.extract_strided_slice %55 {offsets = [0, 0, 1, 0], sizes = [2, 16, 16, 4], strides = [1, 1, 1, 1]} : vector<2x18x18x4xf32> to vector<2x16x16x4xf32>
    %59 = vector.shape_cast %58 : vector<2x16x16x4xf32> to vector<512x4xf32>
    %60 = vector.extract_strided_slice %55 {offsets = [0, 0, 2, 0], sizes = [2, 16, 16, 4], strides = [1, 1, 1, 1]} : vector<2x18x18x4xf32> to vector<2x16x16x4xf32>
    %61 = vector.shape_cast %60 : vector<2x16x16x4xf32> to vector<512x4xf32>
    %62 = vector.extract_strided_slice %55 {offsets = [0, 1, 0, 0], sizes = [2, 16, 16, 4], strides = [1, 1, 1, 1]} : vector<2x18x18x4xf32> to vector<2x16x16x4xf32>
    %63 = vector.shape_cast %62 : vector<2x16x16x4xf32> to vector<512x4xf32>
    %64 = vector.extract_strided_slice %55 {offsets = [0, 1, 1, 0], sizes = [2, 16, 16, 4], strides = [1, 1, 1, 1]} : vector<2x18x18x4xf32> to vector<2x16x16x4xf32>
    %65 = vector.shape_cast %64 : vector<2x16x16x4xf32> to vector<512x4xf32>
    %66 = vector.extract_strided_slice %55 {offsets = [0, 1, 2, 0], sizes = [2, 16, 16, 4], strides = [1, 1, 1, 1]} : vector<2x18x18x4xf32> to vector<2x16x16x4xf32>
    %67 = vector.shape_cast %66 : vector<2x16x16x4xf32> to vector<512x4xf32>
    %68 = vector.extract_strided_slice %55 {offsets = [0, 2, 0, 0], sizes = [2, 16, 16, 4], strides = [1, 1, 1, 1]} : vector<2x18x18x4xf32> to vector<2x16x16x4xf32>
    %69 = vector.shape_cast %68 : vector<2x16x16x4xf32> to vector<512x4xf32>
    %70 = vector.extract_strided_slice %55 {offsets = [0, 2, 1, 0], sizes = [2, 16, 16, 4], strides = [1, 1, 1, 1]} : vector<2x18x18x4xf32> to vector<2x16x16x4xf32>
    %71 = vector.shape_cast %70 : vector<2x16x16x4xf32> to vector<512x4xf32>
    %72 = vector.extract_strided_slice %55 {offsets = [0, 2, 2, 0], sizes = [2, 16, 16, 4], strides = [1, 1, 1, 1]} : vector<2x18x18x4xf32> to vector<2x16x16x4xf32>
    %73 = vector.shape_cast %72 : vector<2x16x16x4xf32> to vector<512x4xf32>
    %74 = tpu.concatenate %57, %59, %61, %63, %65, %67, %69, %71, %73 in 1 : vector<512x4xf32>, vector<512x4xf32>, vector<512x4xf32>, vector<512x4xf32>, vector<512x4xf32>, vector<512x4xf32>, vector<512x4xf32>, vector<512x4xf32>, vector<512x4xf32> -> vector<512x36xf32>
    %cst_42 = arith.constant dense<0.000000e+00> : vector<512x4xf32>
    %75 = tpu.matmul %74, %52, %cst_42 {dimension_numbers = #tpu.dot_dimension_numbers<[1], [0], [0], [1], [0, 0, 1, 1], [], []>} : vector<512x36xf32>, vector<36x4xf32>, vector<512x4xf32> -> vector<512x4xf32>
    %cst_43 = arith.constant 1.000000e+00 : f32
    %76 = vector.broadcast %cst_43 : f32 to vector<1x512xf32>
    %cst_44 = arith.constant dense<0.000000e+00> : vector<1x4xf32>
    %77 = tpu.matmul %76, %75, %cst_44 {dimension_numbers = #tpu.dot_dimension_numbers<[1], [0], [0], [1], [0, 0, 1, 1], [], []>} : vector<1x512xf32>, vector<512x4xf32>, vector<1x4xf32> -> vector<1x4xf32>
    %78 = arith.mulf %75, %75 : vector<512x4xf32>
    %cst_45 = arith.constant dense<0.000000e+00> : vector<1x4xf32>
    %79 = tpu.matmul %76, %78, %cst_45 {dimension_numbers = #tpu.dot_dimension_numbers<[1], [0], [0], [1], [0, 0, 1, 1], [], []>} : vector<1x512xf32>, vector<512x4xf32>, vector<1x4xf32> -> vector<1x4xf32>
    %cst_46 = arith.constant 0.001953125 : f32
    %80 = vector.broadcast %cst_46 : f32 to vector<1x4xf32>
    %81 = arith.mulf %77, %80 : vector<1x4xf32>
    %cst_47 = arith.constant 0.001953125 : f32
    %82 = vector.broadcast %cst_47 : f32 to vector<1x4xf32>
    %83 = arith.mulf %79, %82 : vector<1x4xf32>
    %84 = arith.mulf %81, %81 : vector<1x4xf32>
    %85 = arith.subf %83, %84 : vector<1x4xf32>
    %cst_48 = arith.constant 9.99999974E-6 : f32
    %86 = vector.broadcast %cst_48 : f32 to vector<1x4xf32>
    %87 = arith.addf %85, %86 : vector<1x4xf32>
    %88 = math.rsqrt %87 : vector<1x4xf32>
    %89 = arith.mulf %53, %88 : vector<1x4xf32>
    %90 = arith.mulf %81, %89 : vector<1x4xf32>
    %91 = arith.subf %54, %90 : vector<1x4xf32>
    %92 = vector.broadcast %89 : vector<1x4xf32> to vector<512x4xf32>
    %93 = arith.mulf %75, %92 : vector<512x4xf32>
    %94 = vector.broadcast %91 : vector<1x4xf32> to vector<512x4xf32>
    %95 = arith.addf %93, %94 : vector<512x4xf32>
    %96 = vector.shape_cast %0 : vector<2x16x16x4xf32> to vector<512x4xf32>
    %97 = arith.addf %95, %96 : vector<512x4xf32>
    %cst_49 = arith.constant 0.000000e+00 : f32
    %98 = vector.broadcast %cst_49 : f32 to vector<512x4xf32>
    %99 = arith.maximumf %97, %98 : vector<512x4xf32>
    %c0_50 = arith.constant 0 : index
    %c0_51 = arith.constant 0 : index
    %100 = vector.load %arg7[%c0_50, %c0_51] : memref<512x4xf32, #tpu.memory_space<vmem>>, vector<512x4xf32>
    tpu.vector_store %arg7[%c0_50, %c0_51], %99 {strides = array<i32>} : memref<512x4xf32, #tpu.memory_space<vmem>>, vector<512x4xf32>,
    return
  }
}

</mosaic_0001>

<llo_original>
// kernel: basic_block_forward.1
$region0: #{basic_block_forward.1}
  #allocation0 [shape = 'u32[]', space=smem, size = 0x4, offset = 0x4, fixed_abs, tag = 'smem constant byte address 0x4 - core index']
  #allocation1 [shape = 'u32[144,128]{1,0:T(1,128)}', space=vmem, size = 0x12000, scoped, tag = 'internal scratch']
  #allocation2 [shape = 'f32[2,18,18,4]{3,2,1,0:T(8,128)}', space=vmem, size = 0x6c000, scoped, tag = 'scratch operand']
  %s0 = inlined_call_operand.vmem [shape: f32[2,16,16,4], index: 0, kind: input, shape index: {}]
  %s1 = inlined_call_operand.vmem [shape: f32[36,4], index: 1, kind: input, shape index: {}]
  %s2 = inlined_call_operand.vmem [shape: f32[1,4], index: 2, kind: input, shape index: {}]
  %s3 = inlined_call_operand.vmem [shape: f32[1,4], index: 3, kind: input, shape index: {}]
  %s4 = inlined_call_operand.vmem [shape: f32[36,4], index: 4, kind: input, shape index: {}]
  %s5 = inlined_call_operand.vmem [shape: f32[1,4], index: 5, kind: input, shape index: {}]
  %s6 = inlined_call_operand.vmem [shape: f32[1,4], index: 6, kind: input, shape index: {}]
  %s7 = inlined_call_operand.vmem [shape: f32[512,4], index: 7, kind: output, shape index: {}]
  %s8 = sld [smem:[#allocation0]]
  $region38: #{basic_block_forward.1} parent=0
    _
  %s10 = ssub.s32 1, %s8
  %s11 = scalar_select 0, %s10, %s8
  // Predicated region
  $region2: #{basic_block_forward.1} parent=0 // pred_check
    _
  $region3: #{basic_block_forward.1} parent=0 // pred_check_branch
    %13 = sbr.rel (0) target = $region5
  $region4: #{basic_block_forward.1} parent=0 // pred_region
    _
  $region5: #{basic_block_forward.1} parent=0 // pred_fallthru
    _
  // Predicated region
  $region6: #{basic_block_forward.1} parent=0 // pred_check
    _
  $region7: #{basic_block_forward.1} parent=0 // pred_check_branch
    %15 = sbr.rel (0) target = $region9
  $region8: #{basic_block_forward.1} parent=0 // pred_region
    _
  $region9: #{basic_block_forward.1} parent=0 // pred_fallthru
    _
  // Predicated region
  $region10: #{basic_block_forward.1} parent=0 // pred_check
    _
  $region11: #{basic_block_forward.1} parent=0 // pred_check_branch
    %17 = sbr.rel (0) target = $region13
  $region12: #{basic_block_forward.1} parent=0 // pred_region
    _
  $region13: #{basic_block_forward.1} parent=0 // pred_fallthru
    _
  // Predicated region
  $region14: #{basic_block_forward.1} parent=0 // pred_check
    _
  $region15: #{basic_block_forward.1} parent=0 // pred_check_branch
    %19 = sbr.rel (0) target = $region17
  $region16: #{basic_block_forward.1} parent=0 // pred_region
    _
  $region17: #{basic_block_forward.1} parent=0 // pred_fallthru
    _
  // Predicated region
  $region18: #{basic_block_forward.1} parent=0 // pred_check
    _
  $region19: #{basic_block_forward.1} parent=0 // pred_check_branch
    %21 = sbr.rel (0) target = $region21
  $region20: #{basic_block_forward.1} parent=0 // pred_region
    _
  $region21: #{basic_block_forward.1} parent=0 // pred_fallthru
    _
  // Predicated region
  $region22: #{basic_block_forward.1} parent=0 // pred_check
    _
  $region23: #{basic_block_forward.1} parent=0 // pred_check_branch
    %23 = sbr.rel (0) target = $region25
  $region24: #{basic_block_forward.1} parent=0 // pred_region
    _
  $region25: #{basic_block_forward.1} parent=0 // pred_fallthru
    _
  // Predicated region
  $region26: #{basic_block_forward.1} parent=0 // pred_check
    _
  $region27: #{basic_block_forward.1} parent=0 // pred_check_branch
    %25 = sbr.rel (0) target = $region29
  $region28: #{basic_block_forward.1} parent=0 // pred_region
    _
  $region29: #{basic_block_forward.1} parent=0 // pred_fallthru
    _
  %v26 = vld [vmem:[%s0] sm:$0xff]
  %v27 = vld [vmem:[%s0 + $0x8] sm:$0xff]
  %v28 = vld [vmem:[%s0 + $0x10] sm:$0xff]
  %v29 = vld [vmem:[%s0 + $0x18] sm:$0xff]
  %v30 = vld [vmem:[%s0 + $0x20] sm:$0xff]
  %v31 = vld [vmem:[%s0 + $0x28] sm:$0xff]
  %v32 = vld [vmem:[%s0 + $0x30] sm:$0xff]
  %v33 = vld [vmem:[%s0 + $0x38] sm:$0xff]
  %v34 = vld [vmem:[%s0 + $0x40] sm:$0xff]
  %v35 = vld [vmem:[%s0 + $0x48] sm:$0xff]
  %v36 = vld [vmem:[%s0 + $0x50] sm:$0xff]
  %v37 = vld [vmem:[%s0 + $0x58] sm:$0xff]
  %v38 = vld [vmem:[%s0 + $0x60] sm:$0xff]
  %v39 = vld [vmem:[%s0 + $0x68] sm:$0xff]
  %v40 = vld [vmem:[%s0 + $0x70] sm:$0xff]
  %v41 = vld [vmem:[%s0 + $0x78] sm:$0xff]
  %v42 = vld [vmem:[%s0 + $0x80] sm:$0xff]
  %v43 = vld [vmem:[%s0 + $0x88] sm:$0xff]
  %v44 = vld [vmem:[%s0 + $0x90] sm:$0xff]
  %v45 = vld [vmem:[%s0 + $0x98] sm:$0xff]
  %v46 = vld [vmem:[%s0 + $0xa0] sm:$0xff]
  %v47 = vld [vmem:[%s0 + $0xa8] sm:$0xff]
  %v48 = vld [vmem:[%s0 + $0xb0] sm:$0xff]
  %v49 = vld [vmem:[%s0 + $0xb8] sm:$0xff]
  %v50 = vld [vmem:[%s0 + $0xc0] sm:$0xff]
  %v51 = vld [vmem:[%s0 + $0xc8] sm:$0xff]
  %v52 = vld [vmem:[%s0 + $0xd0] sm:$0xff]
  %v53 = vld [vmem:[%s0 + $0xd8] sm:$0xff]
  %v54 = vld [vmem:[%s0 + $0xe0] sm:$0xff]
  %v55 = vld [vmem:[%s0 + $0xe8] sm:$0xff]
  %v56 = vld [vmem:[%s0 + $0xf0] sm:$0xff]
  %v57 = vld [vmem:[%s0 + $0xf8] sm:$0xff]
  %v58 = vld [vmem:[%s0 + $0x100] sm:$0xff]
  %v59 = vld [vmem:[%s0 + $0x108] sm:$0xff]
  %v60 = vld [vmem:[%s0 + $0x110] sm:$0xff]
  %v61 = vld [vmem:[%s0 + $0x118] sm:$0xff]
  %v62 = vld [vmem:[%s0 + $0x120] sm:$0xff]
  %v63 = vld [vmem:[%s0 + $0x128] sm:$0xff]
  %v64 = vld [vmem:[%s0 + $0x130] sm:$0xff]
  %v65 = vld [vmem:[%s0 + $0x138] sm:$0xff]
  %v66 = vld [vmem:[%s0 + $0x140] sm:$0xff]
  %v67 = vld [vmem:[%s0 + $0x148] sm:$0xff]
  %v68 = vld [vmem:[%s0 + $0x150] sm:$0xff]
  %v69 = vld [vmem:[%s0 + $0x158] sm:$0xff]
  %v70 = vld [vmem:[%s0 + $0x160] sm:$0xff]
  %v71 = vld [vmem:[%s0 + $0x168] sm:$0xff]
  %v72 = vld [vmem:[%s0 + $0x170] sm:$0xff]
  %v73 = vld [vmem:[%s0 + $0x178] sm:$0xff]
  %v74 = vld [vmem:[%s0 + $0x180] sm:$0xff]
  %v75 = vld [vmem:[%s0 + $0x188] sm:$0xff]
  %v76 = vld [vmem:[%s0 + $0x190] sm:$0xff]
  %v77 = vld [vmem:[%s0 + $0x198] sm:$0xff]
  %v78 = vld [vmem:[%s0 + $0x1a0] sm:$0xff]
  %v79 = vld [vmem:[%s0 + $0x1a8] sm:$0xff]
  %v80 = vld [vmem:[%s0 + $0x1b0] sm:$0xff]
  %v81 = vld [vmem:[%s0 + $0x1b8] sm:$0xff]
  %v82 = vld [vmem:[%s0 + $0x1c0] sm:$0xff]
  %v83 = vld [vmem:[%s0 + $0x1c8] sm:$0xff]
  %v84 = vld [vmem:[%s0 + $0x1d0] sm:$0xff]
  %v85 = vld [vmem:[%s0 + $0x1d8] sm:$0xff]
  %v86 = vld [vmem:[%s0 + $0x1e0] sm:$0xff]
  %v87 = vld [vmem:[%s0 + $0x1e8] sm:$0xff]
  %v88 = vld [vmem:[%s0 + $0x1f0] sm:$0xff]
  %v89 = vld [vmem:[%s0 + $0x1f8] sm:$0xff]
  %vm90 = vcmask 31744
  %91 = vst.msk [vmem:[#allocation2] sm:$0xff] %vm90, 0.0
  %92 = vst.msk [vmem:[#allocation2 + $0x8] sm:$0xff] %vm90, 0.0
  %vm93 = vcmask 25600
  %94 = vst.msk [vmem:[#allocation2 + $0x10] sm:$0x3] %vm93, 0.0
  %95 = vst.msk [vmem:[#allocation2 + $0x18] sm:$0xff] %vm90, 0.0
  %96 = vst.msk [vmem:[#allocation2 + $0x20] sm:$0xff] %vm90, 0.0
  %97 = vst.msk [vmem:[#allocation2 + $0x28] sm:$0x3] %vm93, 0.0
  %98 = vst.msk [vmem:[#allocation2 + $0x30] sm:$0xff] %vm90, 0.0
  %99 = vst.msk [vmem:[#allocation2 + $0x38] sm:$0xff] %vm90, 0.0
  %100 = vst.msk [vmem:[#allocation2 + $0x40] sm:$0x3] %vm93, 0.0
  %101 = vst.msk [vmem:[#allocation2 + $0x48] sm:$0xff] %vm90, 0.0
  %102 = vst.msk [vmem:[#allocation2 + $0x50] sm:$0xff] %vm90, 0.0
  %103 = vst.msk [vmem:[#allocation2 + $0x58] sm:$0x3] %vm93, 0.0
  %104 = vst.msk [vmem:[#allocation2 + $0x60] sm:$0xff] %vm90, 0.0
  %105 = vst.msk [vmem:[#allocation2 + $0x68] sm:$0xff] %vm90, 0.0
  %106 = vst.msk [vmem:[#allocation2 + $0x70] sm:$0x3] %vm93, 0.0
  %107 = vst.msk [vmem:[#allocation2 + $0x78] sm:$0xff] %vm90, 0.0
  %108 = vst.msk [vmem:[#allocation2 + $0x80] sm:$0xff] %vm90, 0.0
  %109 = vst.msk [vmem:[#allocation2 + $0x88] sm:$0x3] %vm93, 0.0
  %110 = vst.msk [vmem:[#allocation2 + $0x90] sm:$0xff] %vm90, 0.0
  %111 = vst.msk [vmem:[#allocation2 + $0x98] sm:$0xff] %vm90, 0.0
  %112 = vst.msk [vmem:[#allocation2 + $0xa0] sm:$0x3] %vm93, 0.0
  %113 = vst.msk [vmem:[#allocation2 + $0xa8] sm:$0xff] %vm90, 0.0
  %114 = vst.msk [vmem:[#allocation2 + $0xb0] sm:$0xff] %vm90, 0.0
  %115 = vst.msk [vmem:[#allocation2 + $0xb8] sm:$0x3] %vm93, 0.0
  %116 = vst.msk [vmem:[#allocation2 + $0xc0] sm:$0xff] %vm90, 0.0
  %117 = vst.msk [vmem:[#allocation2 + $0xc8] sm:$0xff] %vm90, 0.0
  %118 = vst.msk [vmem:[#allocation2 + $0xd0] sm:$0x3] %vm93, 0.0
  %119 = vst.msk [vmem:[#allocation2 + $0xd8] sm:$0xff] %vm90, 0.0
  %120 = vst.msk [vmem:[#allocation2 + $0xe0] sm:$0xff] %vm90, 0.0
  %121 = vst.msk [vmem:[#allocation2 + $0xe8] sm:$0x3] %vm93, 0.0
  %122 = vst.msk [vmem:[#allocation2 + $0xf0] sm:$0xff] %vm90, 0.0
  %123 = vst.msk [vmem:[#allocation2 + $0xf8] sm:$0xff] %vm90, 0.0
  %124 = vst.msk [vmem:[#allocation2 + $0x100] sm:$0x3] %vm93, 0.0
  %125 = vst.msk [vmem:[#allocation2 + $0x108] sm:$0xff] %vm90, 0.0
  %126 = vst.msk [vmem:[#allocation2 + $0x110] sm:$0xff] %vm90, 0.0
  %127 = vst.msk [vmem:[#allocation2 + $0x118] sm:$0x3] %vm93, 0.0
  %128 = vst.msk [vmem:[#allocation2 + $0x120] sm:$0xff] %vm90, 0.0
  %129 = vst.msk [vmem:[#allocation2 + $0x128] sm:$0xff] %vm90, 0.0
  %130 = vst.msk [vmem:[#allocation2 + $0x130] sm:$0x3] %vm93, 0.0
  %131 = vst.msk [vmem:[#allocation2 + $0x138] sm:$0xff] %vm90, 0.0
  %132 = vst.msk [vmem:[#allocation2 + $0x140] sm:$0xff] %vm90, 0.0
  %133 = vst.msk [vmem:[#allocation2 + $0x148] sm:$0x3] %vm93, 0.0
  %134 = vst.msk [vmem:[#allocation2 + $0x150] sm:$0xff] %vm90, 0.0
  %135 = vst.msk [vmem:[#allocation2 + $0x158] sm:$0xff] %vm90, 0.0
  %136 = vst.msk [vmem:[#allocation2 + $0x160] sm:$0x3] %vm93, 0.0
  %137 = vst.msk [vmem:[#allocation2 + $0x168] sm:$0xff] %vm90, 0.0
  %138 = vst.msk [vmem:[#allocation2 + $0x170] sm:$0xff] %vm90, 0.0
  %139 = vst.msk [vmem:[#allocation2 + $0x178] sm:$0x3] %vm93, 0.0
  %140 = vst.msk [vmem:[#allocation2 + $0x180] sm:$0xff] %vm90, 0.0
  %141 = vst.msk [vmem:[#allocation2 + $0x188] sm:$0xff] %vm90, 0.0
  %142 = vst.msk [vmem:[#allocation2 + $0x190] sm:$0x3] %vm93, 0.0
  %143 = vst.msk [vmem:[#allocation2 + $0x198] sm:$0xff] %vm90, 0.0
  %144 = vst.msk [vmem:[#allocation2 + $0x1a0] sm:$0xff] %vm90, 0.0
  %145 = vst.msk [vmem:[#allocation2 + $0x1a8] sm:$0x3] %vm93, 0.0
  %146 = vst.msk [vmem:[#allocation2 + $0x1b0] sm:$0xff] %vm90, 0.0
  %147 = vst.msk [vmem:[#allocation2 + $0x1b8] sm:$0xff] %vm90, 0.0
  %148 = vst.msk [vmem:[#allocation2 + $0x1c0] sm:$0x3] %vm93, 0.0
  %149 = vst.msk [vmem:[#allocation2 + $0x1c8] sm:$0xff] %vm90, 0.0
  %150 = vst.msk [vmem:[#allocation2 + $0x1d0] sm:$0xff] %vm90, 0.0
  %151 = vst.msk [vmem:[#allocation2 + $0x1d8] sm:$0x3] %vm93, 0.0
  %152 = vst.msk [vmem:[#allocation2 + $0x1e0] sm:$0xff] %vm90, 0.0
  %153 = vst.msk [vmem:[#allocation2 + $0x1e8] sm:$0xff] %vm90, 0.0
  %154 = vst.msk [vmem:[#allocation2 + $0x1f0] sm:$0x3] %vm93, 0.0
  %155 = vst.msk [vmem:[#allocation2 + $0x1f8] sm:$0xff] %vm90, 0.0
  %156 = vst.msk [vmem:[#allocation2 + $0x200] sm:$0xff] %vm90, 0.0
  %157 = vst.msk [vmem:[#allocation2 + $0x208] sm:$0x3] %vm93, 0.0
  %158 = vst.msk [vmem:[#allocation2 + $0x210] sm:$0xff] %vm90, 0.0
  %159 = vst.msk [vmem:[#allocation2 + $0x218] sm:$0xff] %vm90, 0.0
  %160 = vst.msk [vmem:[#allocation2 + $0x220] sm:$0x3] %vm93, 0.0
  %161 = vst.msk [vmem:[#allocation2 + $0x228] sm:$0xff] %vm90, 0.0
  %162 = vst.msk [vmem:[#allocation2 + $0x230] sm:$0xff] %vm90, 0.0
  %163 = vst.msk [vmem:[#allocation2 + $0x238] sm:$0x3] %vm93, 0.0
  %164 = vst.msk [vmem:[#allocation2 + $0x240] sm:$0xff] %vm90, 0.0
  %165 = vst.msk [vmem:[#allocation2 + $0x248] sm:$0xff] %vm90, 0.0
  %166 = vst.msk [vmem:[#allocation2 + $0x250] sm:$0x3] %vm93, 0.0
  %167 = vst.msk [vmem:[#allocation2 + $0x258] sm:$0xff] %vm90, 0.0
  %168 = vst.msk [vmem:[#allocation2 + $0x260] sm:$0xff] %vm90, 0.0
  %169 = vst.msk [vmem:[#allocation2 + $0x268] sm:$0x3] %vm93, 0.0
  %170 = vst.msk [vmem:[#allocation2 + $0x270] sm:$0xff] %vm90, 0.0
  %171 = vst.msk [vmem:[#allocation2 + $0x278] sm:$0xff] %vm90, 0.0
  %172 = vst.msk [vmem:[#allocation2 + $0x280] sm:$0x3] %vm93, 0.0
  %173 = vst.msk [vmem:[#allocation2 + $0x288] sm:$0xff] %vm90, 0.0
  %174 = vst.msk [vmem:[#allocation2 + $0x290] sm:$0xff] %vm90, 0.0
  %175 = vst.msk [vmem:[#allocation2 + $0x298] sm:$0x3] %vm93, 0.0
  %176 = vst.msk [vmem:[#allocation2 + $0x2a0] sm:$0xff] %vm90, 0.0
  %177 = vst.msk [vmem:[#allocation2 + $0x2a8] sm:$0xff] %vm90, 0.0
  %178 = vst.msk [vmem:[#allocation2 + $0x2b0] sm:$0x3] %vm93, 0.0
  %179 = vst.msk [vmem:[#allocation2 + $0x2b8] sm:$0xff] %vm90, 0.0
  %180 = vst.msk [vmem:[#allocation2 + $0x2c0] sm:$0xff] %vm90, 0.0
  %181 = vst.msk [vmem:[#allocation2 + $0x2c8] sm:$0x3] %vm93, 0.0
  %182 = vst.msk [vmem:[#allocation2 + $0x2d0] sm:$0xff] %vm90, 0.0
  %183 = vst.msk [vmem:[#allocation2 + $0x2d8] sm:$0xff] %vm90, 0.0
  %184 = vst.msk [vmem:[#allocation2 + $0x2e0] sm:$0x3] %vm93, 0.0
  %185 = vst.msk [vmem:[#allocation2 + $0x2e8] sm:$0xff] %vm90, 0.0
  %186 = vst.msk [vmem:[#allocation2 + $0x2f0] sm:$0xff] %vm90, 0.0
  %187 = vst.msk [vmem:[#allocation2 + $0x2f8] sm:$0x3] %vm93, 0.0
  %188 = vst.msk [vmem:[#allocation2 + $0x300] sm:$0xff] %vm90, 0.0
  %189 = vst.msk [vmem:[#allocation2 + $0x308] sm:$0xff] %vm90, 0.0
  %190 = vst.msk [vmem:[#allocation2 + $0x310] sm:$0x3] %vm93, 0.0
  %191 = vst.msk [vmem:[#allocation2 + $0x318] sm:$0xff] %vm90, 0.0
  %192 = vst.msk [vmem:[#allocation2 + $0x320] sm:$0xff] %vm90, 0.0
  %193 = vst.msk [vmem:[#allocation2 + $0x328] sm:$0x3] %vm93, 0.0
  %194 = vst.msk [vmem:[#allocation2 + $0x330] sm:$0xff] %vm90, 0.0
  %195 = vst.msk [vmem:[#allocation2 + $0x338] sm:$0xff] %vm90, 0.0
  %196 = vst.msk [vmem:[#allocation2 + $0x340] sm:$0x3] %vm93, 0.0
  %197 = vst.msk [vmem:[#allocation2 + $0x348] sm:$0xff] %vm90, 0.0
  %198 = vst.msk [vmem:[#allocation2 + $0x350] sm:$0xff] %vm90, 0.0
  %199 = vst.msk [vmem:[#allocation2 + $0x358] sm:$0x3] %vm93, 0.0
  %s200 = scalar_lea.vmem [#allocation2], 24
  %201 = vst.msk [vmem:[%s200 + $0x1] sm:$0xff] %vm90, %v26
  %202 = vst.msk [vmem:[%s200 + $0x9] sm:$0xff] %vm90, %v27
  %203 = vst.msk [vmem:[%s200 + $0x19] sm:$0xff] %vm90, %v28
  %204 = vst.msk [vmem:[%s200 + $0x21] sm:$0xff] %vm90, %v29
  %205 = vst.msk [vmem:[%s200 + $0x31] sm:$0xff] %vm90, %v30
  %206 = vst.msk [vmem:[%s200 + $0x39] sm:$0xff] %vm90, %v31
  %207 = vst.msk [vmem:[%s200 + $0x49] sm:$0xff] %vm90, %v32
  %208 = vst.msk [vmem:[%s200 + $0x51] sm:$0xff] %vm90, %v33
  %209 = vst.msk [vmem:[%s200 + $0x61] sm:$0xff] %vm90, %v34
  %210 = vst.msk [vmem:[%s200 + $0x69] sm:$0xff] %vm90, %v35
  %211 = vst.msk [vmem:[%s200 + $0x79] sm:$0xff] %vm90, %v36
  %212 = vst.msk [vmem:[%s200 + $0x81] sm:$0xff] %vm90, %v37
  %213 = vst.msk [vmem:[%s200 + $0x91] sm:$0xff] %vm90, %v38
  %214 = vst.msk [vmem:[%s200 + $0x99] sm:$0xff] %vm90, %v39
  %215 = vst.msk [vmem:[%s200 + $0xa9] sm:$0xff] %vm90, %v40
  %216 = vst.msk [vmem:[%s200 + $0xb1] sm:$0xff] %vm90, %v41
  %217 = vst.msk [vmem:[%s200 + $0xc1] sm:$0xff] %vm90, %v42
  %218 = vst.msk [vmem:[%s200 + $0xc9] sm:$0xff] %vm90, %v43
  %219 = vst.msk [vmem:[%s200 + $0xd9] sm:$0xff] %vm90, %v44
  %220 = vst.msk [vmem:[%s200 + $0xe1] sm:$0xff] %vm90, %v45
  %221 = vst.msk [vmem:[%s200 + $0xf1] sm:$0xff] %vm90, %v46
  %222 = vst.msk [vmem:[%s200 + $0xf9] sm:$0xff] %vm90, %v47
  %223 = vst.msk [vmem:[%s200 + $0x109] sm:$0xff] %vm90, %v48
  %224 = vst.msk [vmem:[%s200 + $0x111] sm:$0xff] %vm90, %v49
  %225 = vst.msk [vmem:[%s200 + $0x121] sm:$0xff] %vm90, %v50
  %226 = vst.msk [vmem:[%s200 + $0x129] sm:$0xff] %vm90, %v51
  %227 = vst.msk [vmem:[%s200 + $0x139] sm:$0xff] %vm90, %v52
  %228 = vst.msk [vmem:[%s200 + $0x141] sm:$0xff] %vm90, %v53
  %229 = vst.msk [vmem:[%s200 + $0x151] sm:$0xff] %vm90, %v54
  %230 = vst.msk [vmem:[%s200 + $0x159] sm:$0xff] %vm90, %v55
  %231 = vst.msk [vmem:[%s200 + $0x169] sm:$0xff] %vm90, %v56
  %232 = vst.msk [vmem:[%s200 + $0x171] sm:$0xff] %vm90, %v57
  %233 = vst.msk [vmem:[%s200 + $0x1b1] sm:$0xff] %vm90, %v58
  %234 = vst.msk [vmem:[%s200 + $0x1b9] sm:$0xff] %vm90, %v59
  %235 = vst.msk [vmem:[%s200 + $0x1c9] sm:$0xff] %vm90, %v60
  %236 = vst.msk [vmem:[%s200 + $0x1d1] sm:$0xff] %vm90, %v61
  %237 = vst.msk [vmem:[%s200 + $0x1e1] sm:$0xff] %vm90, %v62
  %238 = vst.msk [vmem:[%s200 + $0x1e9] sm:$0xff] %vm90, %v63
  %239 = vst.msk [vmem:[%s200 + $0x1f9] sm:$0xff] %vm90, %v64
  %240 = vst.msk [vmem:[%s200 + $0x201] sm:$0xff] %vm90, %v65
  %241 = vst.msk [vmem:[%s200 + $0x211] sm:$0xff] %vm90, %v66
  %242 = vst.msk [vmem:[%s200 + $0x219] sm:$0xff] %vm90, %v67
  %243 = vst.msk [vmem:[%s200 + $0x229] sm:$0xff] %vm90, %v68
  %244 = vst.msk [vmem:[%s200 + $0x231] sm:$0xff] %vm90, %v69
  %245 = vst.msk [vmem:[%s200 + $0x241] sm:$0xff] %vm90, %v70
  %246 = vst.msk [vmem:[%s200 + $0x249] sm:$0xff] %vm90, %v71
  %247 = vst.msk [vmem:[%s200 + $0x259] sm:$0xff] %vm90, %v72
  %248 = vst.msk [vmem:[%s200 + $0x261] sm:$0xff] %vm90, %v73
  %249 = vst.msk [vmem:[%s200 + $0x271] sm:$0xff] %vm90, %v74
  %250 = vst.msk [vmem:[%s200 + $0x279] sm:$0xff] %vm90, %v75
  %251 = vst.msk [vmem:[%s200 + $0x289] sm:$0xff] %vm90, %v76
  %252 = vst.msk [vmem:[%s200 + $0x291] sm:$0xff] %vm90, %v77
  %253 = vst.msk [vmem:[%s200 + $0x2a1] sm:$0xff] %vm90, %v78
  %254 = vst.msk [vmem:[%s200 + $0x2a9] sm:$0xff] %vm90, %v79
  %255 = vst.msk [vmem:[%s200 + $0x2b9] sm:$0xff] %vm90, %v80
  %256 = vst.msk [vmem:[%s200 + $0x2c1] sm:$0xff] %vm90, %v81
  %257 = vst.msk [vmem:[%s200 + $0x2d1] sm:$0xff] %vm90, %v82
  %258 = vst.msk [vmem:[%s200 + $0x2d9] sm:$0xff] %vm90, %v83
  %259 = vst.msk [vmem:[%s200 + $0x2e9] sm:$0xff] %vm90, %v84
  %260 = vst.msk [vmem:[%s200 + $0x2f1] sm:$0xff] %vm90, %v85
  %261 = vst.msk [vmem:[%s200 + $0x301] sm:$0xff] %vm90, %v86
  %262 = vst.msk [vmem:[%s200 + $0x309] sm:$0xff] %vm90, %v87
  %263 = vst.msk [vmem:[%s200 + $0x319] sm:$0xff] %vm90, %v88
  %264 = vst.msk [vmem:[%s200 + $0x321] sm:$0xff] %vm90, %v89
  %v265 = vld [vmem:[%s1] sm:$0xff]
  %v266 = vld [vmem:[%s1 + $0x8] sm:$0xff]
  %v267 = vld [vmem:[%s1 + $0x10] sm:$0xff]
  %v268 = vld [vmem:[%s1 + $0x18] sm:$0xff]
  %v269 = vld [vmem:[%s1 + $0x20] sm:$0xf]
  %v270 = vld [vmem:[%s2] sm:$0x1]
  %v271 = vld [vmem:[%s3] sm:$0x1]
  %v272 = vld [vmem:[#allocation2] sm:$0xff]
  %v273 = vld [vmem:[#allocation2 + $0x8] sm:$0xff]
  %v274 = vld [vmem:[#allocation2 + $0x10] sm:$0x3]
  %v275 = vld [vmem:[#allocation2 + $0x18] sm:$0xff]
  %v276 = vld [vmem:[#allocation2 + $0x20] sm:$0xff]
  %v277 = vld [vmem:[#allocation2 + $0x28] sm:$0x3]
  %v278 = vld [vmem:[#allocation2 + $0x30] sm:$0xff]
  %v279 = vld [vmem:[#allocation2 + $0x38] sm:$0xff]
  %v280 = vld [vmem:[#allocation2 + $0x40] sm:$0x3]
  %v281 = vld [vmem:[#allocation2 + $0x48] sm:$0xff]
  %v282 = vld [vmem:[#allocation2 + $0x50] sm:$0xff]
  %v283 = vld [vmem:[#allocation2 + $0x58] sm:$0x3]
  %v284 = vld [vmem:[#allocation2 + $0x60] sm:$0xff]
  %v285 = vld [vmem:[#allocation2 + $0x68] sm:$0xff]
  %v286 = vld [vmem:[#allocation2 + $0x70] sm:$0x3]
  %v287 = vld [vmem:[#allocation2 + $0x78] sm:$0xff]
  %v288 = vld [vmem:[#allocation2 + $0x80] sm:$0xff]
  %v289 = vld [vmem:[#allocation2 + $0x88] sm:$0x3]
  %v290 = vld [vmem:[#allocation2 + $0x90] sm:$0xff]
  %v291 = vld [vmem:[#allocation2 + $0x98] sm:$0xff]
  %v292 = vld [vmem:[#allocation2 + $0xa0] sm:$0x3]
  %v293 = vld [vmem:[#allocation2 + $0xa8] sm:$0xff]
  %v294 = vld [vmem:[#allocation2 + $0xb0] sm:$0xff]
  %v295 = vld [vmem:[#allocation2 + $0xb8] sm:$0x3]
  %v296 = vld [vmem:[#allocation2 + $0xc0] sm:$0xff]
  %v297 = vld [vmem:[#allocation2 + $0xc8] sm:$0xff]
  %v298 = vld [vmem:[#allocation2 + $0xd0] sm:$0x3]
  %v299 = vld [vmem:[#allocation2 + $0xd8] sm:$0xff]
  %v300 = vld [vmem:[#allocation2 + $0xe0] sm:$0xff]
  %v301 = vld [vmem:[#allocation2 + $0xe8] sm:$0x3]
  %v302 = vld [vmem:[#allocation2 + $0xf0] sm:$0xff]
  %v303 = vld [vmem:[#allocation2 + $0xf8] sm:$0xff]
  %v304 = vld [vmem:[#allocation2 + $0x100] sm:$0x3]
  %v305 = vld [vmem:[#allocation2 + $0x108] sm:$0xff]
  %v306 = vld [vmem:[#allocation2 + $0x110] sm:$0xff]
  %v307 = vld [vmem:[#allocation2 + $0x118] sm:$0x3]
  %v308 = vld [vmem:[#allocation2 + $0x120] sm:$0xff]
  %v309 = vld [vmem:[#allocation2 + $0x128] sm:$0xff]
  %v310 = vld [vmem:[#allocation2 + $0x130] sm:$0x3]
  %v311 = vld [vmem:[#allocation2 + $0x138] sm:$0xff]
  %v312 = vld [vmem:[#allocation2 + $0x140] sm:$0xff]
  %v313 = vld [vmem:[#allocation2 + $0x148] sm:$0x3]
  %v314 = vld [vmem:[#allocation2 + $0x150] sm:$0xff]
  %v315 = vld [vmem:[#allocation2 + $0x158] sm:$0xff]
  %v316 = vld [vmem:[#allocation2 + $0x160] sm:$0x3]
  %v317 = vld [vmem:[#allocation2 + $0x168] sm:$0xff]
  %v318 = vld [vmem:[#allocation2 + $0x170] sm:$0xff]
  %v319 = vld [vmem:[#allocation2 + $0x178] sm:$0x3]
  %v320 = vld [vmem:[#allocation2 + $0x180] sm:$0xff]
  %v321 = vld [vmem:[#allocation2 + $0x188] sm:$0xff]
  %v322 = vld [vmem:[#allocation2 + $0x190] sm:$0x3]
  %v323 = vld [vmem:[#allocation2 + $0x198] sm:$0xff]
  %v324 = vld [vmem:[#allocation2 + $0x1a0] sm:$0xff]
  %v325 = vld [vmem:[#allocation2 + $0x1a8] sm:$0x3]
  %v326 = vld [vmem:[#allocation2 + $0x1b0] sm:$0xff]
  %v327 = vld [vmem:[#allocation2 + $0x1b8] sm:$0xff]
  %v328 = vld [vmem:[#allocation2 + $0x1c0] sm:$0x3]
  %v329 = vld [vmem:[#allocation2 + $0x1c8] sm:$0xff]
  %v330 = vld [vmem:[#allocation2 + $0x1d0] sm:$0xff]
  %v331 = vld [vmem:[#allocation2 + $0x1d8] sm:$0x3]
  %v332 = vld [vmem:[#allocation2 + $0x1e0] sm:$0xff]
  %v333 = vld [vmem:[#allocation2 + $0x1e8] sm:$0xff]
  %v334 = vld [vmem:[#allocation2 + $0x1f0] sm:$0x3]
  %v335 = vld [vmem:[#allocation2 + $0x1f8] sm:$0xff]
  %v336 = vld [vmem:[#allocation2 + $0x200] sm:$0xff]
  %v337 = vld [vmem:[#allocation2 + $0x208] sm:$0x3]
  %v338 = vld [vmem:[#allocation2 + $0x210] sm:$0xff]
  %v339 = vld [vmem:[#allocation2 + $0x218] sm:$0xff]
  %v340 = vld [vmem:[#allocation2 + $0x220] sm:$0x3]
  %v341 = vld [vmem:[#allocation2 + $0x228] sm:$0xff]
  %v342 = vld [vmem:[#allocation2 + $0x230] sm:$0xff]
  %v343 = vld [vmem:[#allocation2 + $0x238] sm:$0x3]
  %v344 = vld [vmem:[#allocation2 + $0x240] sm:$0xff]
  %v345 = vld [vmem:[#allocation2 + $0x248] sm:$0xff]
  %v346 = vld [vmem:[#allocation2 + $0x250] sm:$0x3]
  %v347 = vld [vmem:[#allocation2 + $0x258] sm:$0xff]
  %v348 = vld [vmem:[#allocation2 + $0x260] sm:$0xff]
  %v349 = vld [vmem:[#allocation2 + $0x268] sm:$0x3]
  %v350 = vld [vmem:[#allocation2 + $0x270] sm:$0xff]
  %v351 = vld [vmem:[#allocation2 + $0x278] sm:$0xff]
  %v352 = vld [vmem:[#allocation2 + $0x280] sm:$0x3]
  %v353 = vld [vmem:[#allocation2 + $0x288] sm:$0xff]
  %v354 = vld [vmem:[#allocation2 + $0x290] sm:$0xff]
  %v355 = vld [vmem:[#allocation2 + $0x298] sm:$0x3]
  %v356 = vld [vmem:[#allocation2 + $0x2a0] sm:$0xff]
  %v357 = vld [vmem:[#allocation2 + $0x2a8] sm:$0xff]
  %v358 = vld [vmem:[#allocation2 + $0x2b0] sm:$0x3]
  %v359 = vld [vmem:[#allocation2 + $0x2b8] sm:$0xff]
  %v360 = vld [vmem:[#allocation2 + $0x2c0] sm:$0xff]
  %v361 = vld [vmem:[#allocation2 + $0x2c8] sm:$0x3]
  %v362 = vld [vmem:[#allocation2 + $0x2d0] sm:$0xff]
  %v363 = vld [vmem:[#allocation2 + $0x2d8] sm:$0xff]
  %v364 = vld [vmem:[#allocation2 + $0x2e0] sm:$0x3]
  %v365 = vld [vmem:[#allocation2 + $0x2e8] sm:$0xff]
  %v366 = vld [vmem:[#allocation2 + $0x2f0] sm:$0xff]
  %v367 = vld [vmem:[#allocation2 + $0x2f8] sm:$0x3]
  %v368 = vld [vmem:[#allocation2 + $0x300] sm:$0xff]
  %v369 = vld [vmem:[#allocation2 + $0x308] sm:$0xff]
  %v370 = vld [vmem:[#allocation2 + $0x310] sm:$0x3]
  %v371 = vld [vmem:[#allocation2 + $0x318] sm:$0xff]
  %v372 = vld [vmem:[#allocation2 + $0x320] sm:$0xff]
  %v373 = vld [vmem:[#allocation2 + $0x328] sm:$0x3]
  %v374 = vld [vmem:[#allocation2 + $0x330] sm:$0xff]
  %v375 = vld [vmem:[#allocation2 + $0x338] sm:$0xff]
  %v376 = vld [vmem:[#allocation2 + $0x340] sm:$0x3]
  %v377 = vld [vmem:[#allocation2 + $0x348] sm:$0xff]
  %v378 = vld [vmem:[#allocation2 + $0x350] sm:$0xff]
  %v379 = vld [vmem:[#allocation2 + $0x358] sm:$0x3]
  %vm476 = vcmask 1046528
  %v477 = vrot.slane %v272, 1
  %v478 = vrot.slane %v273, 1
  %v479 = vsel %vm476, %v477, %v478
  %v480 = vrot.slane %v274, 1
  %v481 = vsel %vm476, %v478, %v480
  %v482 = vrot.slane %v275, 1
  %v483 = vrot.slane %v276, 1
  %v484 = vsel %vm476, %v482, %v483
  %v485 = vrot.slane %v277, 1
  %v486 = vsel %vm476, %v483, %v485
  %v487 = vrot.slane %v278, 1
  %v488 = vrot.slane %v279, 1
  %v489 = vsel %vm476, %v487, %v488
  %v490 = vrot.slane %v280, 1
  %v491 = vsel %vm476, %v488, %v490
  %v492 = vrot.slane %v281, 1
  %v493 = vrot.slane %v282, 1
  %v494 = vsel %vm476, %v492, %v493
  %v495 = vrot.slane %v283, 1
  %v496 = vsel %vm476, %v493, %v495
  %v497 = vrot.slane %v284, 1
  %v498 = vrot.slane %v285, 1
  %v499 = vsel %vm476, %v497, %v498
  %v500 = vrot.slane %v286, 1
  %v501 = vsel %vm476, %v498, %v500
  %v502 = vrot.slane %v287, 1
  %v503 = vrot.slane %v288, 1
  %v504 = vsel %vm476, %v502, %v503
  %v505 = vrot.slane %v289, 1
  %v506 = vsel %vm476, %v503, %v505
  %v507 = vrot.slane %v290, 1
  %v508 = vrot.slane %v291, 1
  %v509 = vsel %vm476, %v507, %v508
  %v510 = vrot.slane %v292, 1
  %v511 = vsel %vm476, %v508, %v510
  %v512 = vrot.slane %v293, 1
  %v513 = vrot.slane %v294, 1
  %v514 = vsel %vm476, %v512, %v513
  %v515 = vrot.slane %v295, 1
  %v516 = vsel %vm476, %v513, %v515
  %v517 = vrot.slane %v296, 1
  %v518 = vrot.slane %v297, 1
  %v519 = vsel %vm476, %v517, %v518
  %v520 = vrot.slane %v298, 1
  %v521 = vsel %vm476, %v518, %v520
  %v522 = vrot.slane %v299, 1
  %v523 = vrot.slane %v300, 1
  %v524 = vsel %vm476, %v522, %v523
  %v525 = vrot.slane %v301, 1
  %v526 = vsel %vm476, %v523, %v525
  %v527 = vrot.slane %v302, 1
  %v528 = vrot.slane %v303, 1
  %v529 = vsel %vm476, %v527, %v528
  %v530 = vrot.slane %v304, 1
  %v531 = vsel %vm476, %v528, %v530
  %v532 = vrot.slane %v305, 1
  %v533 = vrot.slane %v306, 1
  %v534 = vsel %vm476, %v532, %v533
  %v535 = vrot.slane %v307, 1
  %v536 = vsel %vm476, %v533, %v535
  %v537 = vrot.slane %v308, 1
  %v538 = vrot.slane %v309, 1
  %v539 = vsel %vm476, %v537, %v538
  %v540 = vrot.slane %v310, 1
  %v541 = vsel %vm476, %v538, %v540
  %v542 = vrot.slane %v311, 1
  %v543 = vrot.slane %v312, 1
  %v544 = vsel %vm476, %v542, %v543
  %v545 = vrot.slane %v313, 1
  %v546 = vsel %vm476, %v543, %v545
  %v547 = vrot.slane %v314, 1
  %v548 = vrot.slane %v315, 1
  %v549 = vsel %vm476, %v547, %v548
  %v550 = vrot.slane %v316, 1
  %v551 = vsel %vm476, %v548, %v550
  %v552 = vrot.slane %v317, 1
  %v553 = vrot.slane %v318, 1
  %v554 = vsel %vm476, %v552, %v553
  %v555 = vrot.slane %v319, 1
  %v556 = vsel %vm476, %v553, %v555
  %v557 = vrot.slane %v326, 1
  %v558 = vrot.slane %v327, 1
  %v559 = vsel %vm476, %v557, %v558
  %v560 = vrot.slane %v328, 1
  %v561 = vsel %vm476, %v558, %v560
  %v562 = vrot.slane %v329, 1
  %v563 = vrot.slane %v330, 1
  %v564 = vsel %vm476, %v562, %v563
  %v565 = vrot.slane %v331, 1
  %v566 = vsel %vm476, %v563, %v565
  %v567 = vrot.slane %v332, 1
  %v568 = vrot.slane %v333, 1
  %v569 = vsel %vm476, %v567, %v568
  %v570 = vrot.slane %v334, 1
  %v571 = vsel %vm476, %v568, %v570
  %v572 = vrot.slane %v335, 1
  %v573 = vrot.slane %v336, 1
  %v574 = vsel %vm476, %v572, %v573
  %v575 = vrot.slane %v337, 1
  %v576 = vsel %vm476, %v573, %v575
  %v577 = vrot.slane %v338, 1
  %v578 = vrot.slane %v339, 1
  %v579 = vsel %vm476, %v577, %v578
  %v580 = vrot.slane %v340, 1
  %v581 = vsel %vm476, %v578, %v580
  %v582 = vrot.slane %v341, 1
  %v583 = vrot.slane %v342, 1
  %v584 = vsel %vm476, %v582, %v583
  %v585 = vrot.slane %v343, 1
  %v586 = vsel %vm476, %v583, %v585
  %v587 = vrot.slane %v344, 1
  %v588 = vrot.slane %v345, 1
  %v589 = vsel %vm476, %v587, %v588
  %v590 = vrot.slane %v346, 1
  %v591 = vsel %vm476, %v588, %v590
  %v592 = vrot.slane %v347, 1
  %v593 = vrot.slane %v348, 1
  %v594 = vsel %vm476, %v592, %v593
  %v595 = vrot.slane %v349, 1
  %v596 = vsel %vm476, %v593, %v595
  %v597 = vrot.slane %v350, 1
  %v598 = vrot.slane %v351, 1
  %v599 = vsel %vm476, %v597, %v598
  %v600 = vrot.slane %v352, 1
  %v601 = vsel %vm476, %v598, %v600
  %v602 = vrot.slane %v353, 1
  %v603 = vrot.slane %v354, 1
  %v604 = vsel %vm476, %v602, %v603
  %v605 = vrot.slane %v355, 1
  %v606 = vsel %vm476, %v603, %v605
  %v607 = vrot.slane %v356, 1
  %v608 = vrot.slane %v357, 1
  %v609 = vsel %vm476, %v607, %v608
  %v610 = vrot.slane %v358, 1
  %v611 = vsel %vm476, %v608, %v610
  %v612 = vrot.slane %v359, 1
  %v613 = vrot.slane %v360, 1
  %v614 = vsel %vm476, %v612, %v613
  %v615 = vrot.slane %v361, 1
  %v616 = vsel %vm476, %v613, %v615
  %v617 = vrot.slane %v362, 1
  %v618 = vrot.slane %v363, 1
  %v619 = vsel %vm476, %v617, %v618
  %v620 = vrot.slane %v364, 1
  %v621 = vsel %vm476, %v618, %v620
  %v622 = vrot.slane %v365, 1
  %v623 = vrot.slane %v366, 1
  %v624 = vsel %vm476, %v622, %v623
  %v625 = vrot.slane %v367, 1
  %v626 = vsel %vm476, %v623, %v625
  %v627 = vrot.slane %v368, 1
  %v628 = vrot.slane %v369, 1
  %v629 = vsel %vm476, %v627, %v628
  %v630 = vrot.slane %v370, 1
  %v631 = vsel %vm476, %v628, %v630
  %v632 = vrot.slane %v371, 1
  %v633 = vrot.slane %v372, 1
  %v634 = vsel %vm476, %v632, %v633
  %v635 = vrot.slane %v373, 1
  %v636 = vsel %vm476, %v633, %v635
  %vm637 = vcmask 1045504
  %v638 = vrot.slane %v272, 2
  %v639 = vrot.slane %v273, 2
  %v640 = vsel %vm637, %v638, %v639
  %v641 = vrot.slane %v274, 2
  %v642 = vsel %vm637, %v639, %v641
  %v643 = vrot.slane %v275, 2
  %v644 = vrot.slane %v276, 2
  %v645 = vsel %vm637, %v643, %v644
  %v646 = vrot.slane %v277, 2
  %v647 = vsel %vm637, %v644, %v646
  %v648 = vrot.slane %v278, 2
  %v649 = vrot.slane %v279, 2
  %v650 = vsel %vm637, %v648, %v649
  %v651 = vrot.slane %v280, 2
  %v652 = vsel %vm637, %v649, %v651
  %v653 = vrot.slane %v281, 2
  %v654 = vrot.slane %v282, 2
  %v655 = vsel %vm637, %v653, %v654
  %v656 = vrot.slane %v283, 2
  %v657 = vsel %vm637, %v654, %v656
  %v658 = vrot.slane %v284, 2
  %v659 = vrot.slane %v285, 2
  %v660 = vsel %vm637, %v658, %v659
  %v661 = vrot.slane %v286, 2
  %v662 = vsel %vm637, %v659, %v661
  %v663 = vrot.slane %v287, 2
  %v664 = vrot.slane %v288, 2
  %v665 = vsel %vm637, %v663, %v664
  %v666 = vrot.slane %v289, 2
  %v667 = vsel %vm637, %v664, %v666
  %v668 = vrot.slane %v290, 2
  %v669 = vrot.slane %v291, 2
  %v670 = vsel %vm637, %v668, %v669
  %v671 = vrot.slane %v292, 2
  %v672 = vsel %vm637, %v669, %v671
  %v673 = vrot.slane %v293, 2
  %v674 = vrot.slane %v294, 2
  %v675 = vsel %vm637, %v673, %v674
  %v676 = vrot.slane %v295, 2
  %v677 = vsel %vm637, %v674, %v676
  %v678 = vrot.slane %v296, 2
  %v679 = vrot.slane %v297, 2
  %v680 = vsel %vm637, %v678, %v679
  %v681 = vrot.slane %v298, 2
  %v682 = vsel %vm637, %v679, %v681
  %v683 = vrot.slane %v299, 2
  %v684 = vrot.slane %v300, 2
  %v685 = vsel %vm637, %v683, %v684
  %v686 = vrot.slane %v301, 2
  %v687 = vsel %vm637, %v684, %v686
  %v688 = vrot.slane %v302, 2
  %v689 = vrot.slane %v303, 2
  %v690 = vsel %vm637, %v688, %v689
  %v691 = vrot.slane %v304, 2
  %v692 = vsel %vm637, %v689, %v691
  %v693 = vrot.slane %v305, 2
  %v694 = vrot.slane %v306, 2
  %v695 = vsel %vm637, %v693, %v694
  %v696 = vrot.slane %v307, 2
  %v697 = vsel %vm637, %v694, %v696
  %v698 = vrot.slane %v308, 2
  %v699 = vrot.slane %v309, 2
  %v700 = vsel %vm637, %v698, %v699
  %v701 = vrot.slane %v310, 2
  %v702 = vsel %vm637, %v699, %v701
  %v703 = vrot.slane %v311, 2
  %v704 = vrot.slane %v312, 2
  %v705 = vsel %vm637, %v703, %v704
  %v706 = vrot.slane %v313, 2
  %v707 = vsel %vm637, %v704, %v706
  %v708 = vrot.slane %v314, 2
  %v709 = vrot.slane %v315, 2
  %v710 = vsel %vm637, %v708, %v709
  %v711 = vrot.slane %v316, 2
  %v712 = vsel %vm637, %v709, %v711
  %v713 = vrot.slane %v317, 2
  %v714 = vrot.slane %v318, 2
  %v715 = vsel %vm637, %v713, %v714
  %v716 = vrot.slane %v319, 2
  %v717 = vsel %vm637, %v714, %v716
  %v718 = vrot.slane %v326, 2
  %v719 = vrot.slane %v327, 2
  %v720 = vsel %vm637, %v718, %v719
  %v721 = vrot.slane %v328, 2
  %v722 = vsel %vm637, %v719, %v721
  %v723 = vrot.slane %v329, 2
  %v724 = vrot.slane %v330, 2
  %v725 = vsel %vm637, %v723, %v724
  %v726 = vrot.slane %v331, 2
  %v727 = vsel %vm637, %v724, %v726
  %v728 = vrot.slane %v332, 2
  %v729 = vrot.slane %v333, 2
  %v730 = vsel %vm637, %v728, %v729
  %v731 = vrot.slane %v334, 2
  %v732 = vsel %vm637, %v729, %v731
  %v733 = vrot.slane %v335, 2
  %v734 = vrot.slane %v336, 2
  %v735 = vsel %vm637, %v733, %v734
  %v736 = vrot.slane %v337, 2
  %v737 = vsel %vm637, %v734, %v736
  %v738 = vrot.slane %v338, 2
  %v739 = vrot.slane %v339, 2
  %v740 = vsel %vm637, %v738, %v739
  %v741 = vrot.slane %v340, 2
  %v742 = vsel %vm637, %v739, %v741
  %v743 = vrot.slane %v341, 2
  %v744 = vrot.slane %v342, 2
  %v745 = vsel %vm637, %v743, %v744
  %v746 = vrot.slane %v343, 2
  %v747 = vsel %vm637, %v744, %v746
  %v748 = vrot.slane %v344, 2
  %v749 = vrot.slane %v345, 2
  %v750 = vsel %vm637, %v748, %v749
  %v751 = vrot.slane %v346, 2
  %v752 = vsel %vm637, %v749, %v751
  %v753 = vrot.slane %v347, 2
  %v754 = vrot.slane %v348, 2
  %v755 = vsel %vm637, %v753, %v754
  %v756 = vrot.slane %v349, 2
  %v757 = vsel %vm637, %v754, %v756
  %v758 = vrot.slane %v350, 2
  %v759 = vrot.slane %v351, 2
  %v760 = vsel %vm637, %v758, %v759
  %v761 = vrot.slane %v352, 2
  %v762 = vsel %vm637, %v759, %v761
  %v763 = vrot.slane %v353, 2
  %v764 = vrot.slane %v354, 2
  %v765 = vsel %vm637, %v763, %v764
  %v766 = vrot.slane %v355, 2
  %v767 = vsel %vm637, %v764, %v766
  %v768 = vrot.slane %v356, 2
  %v769 = vrot.slane %v357, 2
  %v770 = vsel %vm637, %v768, %v769
  %v771 = vrot.slane %v358, 2
  %v772 = vsel %vm637, %v769, %v771
  %v773 = vrot.slane %v359, 2
  %v774 = vrot.slane %v360, 2
  %v775 = vsel %vm637, %v773, %v774
  %v776 = vrot.slane %v361, 2
  %v777 = vsel %vm637, %v774, %v776
  %v778 = vrot.slane %v362, 2
  %v779 = vrot.slane %v363, 2
  %v780 = vsel %vm637, %v778, %v779
  %v781 = vrot.slane %v364, 2
  %v782 = vsel %vm637, %v779, %v781
  %v783 = vrot.slane %v365, 2
  %v784 = vrot.slane %v366, 2
  %v785 = vsel %vm637, %v783, %v784
  %v786 = vrot.slane %v367, 2
  %v787 = vsel %vm637, %v784, %v786
  %v788 = vrot.slane %v368, 2
  %v789 = vrot.slane %v369, 2
  %v790 = vsel %vm637, %v788, %v789
  %v791 = vrot.slane %v370, 2
  %v792 = vsel %vm637, %v789, %v791
  %v793 = vrot.slane %v371, 2
  %v794 = vrot.slane %v372, 2
  %v795 = vsel %vm637, %v793, %v794
  %v796 = vrot.slane %v373, 2
  %v797 = vsel %vm637, %v794, %v796
  %v804 = vrot.slane %v320, 1
  %v805 = vrot.slane %v321, 1
  %v806 = vsel %vm476, %v804, %v805
  %v807 = vrot.slane %v322, 1
  %v808 = vsel %vm476, %v805, %v807
  %v809 = vrot.slane %v374, 1
  %v810 = vrot.slane %v375, 1
  %v811 = vsel %vm476, %v809, %v810
  %v812 = vrot.slane %v376, 1
  %v813 = vsel %vm476, %v810, %v812
  %v814 = vrot.slane %v320, 2
  %v815 = vrot.slane %v321, 2
  %v816 = vsel %vm637, %v814, %v815
  %v817 = vrot.slane %v322, 2
  %v818 = vsel %vm637, %v815, %v817
  %v819 = vrot.slane %v374, 2
  %v820 = vrot.slane %v375, 2
  %v821 = vsel %vm637, %v819, %v820
  %v822 = vrot.slane %v376, 2
  %v823 = vsel %vm637, %v820, %v822
  %v830 = vrot.slane %v323, 1
  %v831 = vrot.slane %v324, 1
  %v832 = vsel %vm476, %v830, %v831
  %v833 = vrot.slane %v325, 1
  %v834 = vsel %vm476, %v831, %v833
  %v835 = vrot.slane %v377, 1
  %v836 = vrot.slane %v378, 1
  %v837 = vsel %vm476, %v835, %v836
  %v838 = vrot.slane %v379, 1
  %v839 = vsel %vm476, %v836, %v838
  %v840 = vrot.slane %v323, 2
  %v841 = vrot.slane %v324, 2
  %v842 = vsel %vm637, %v840, %v841
  %v843 = vrot.slane %v325, 2
  %v844 = vsel %vm637, %v841, %v843
  %v845 = vrot.slane %v377, 2
  %v846 = vrot.slane %v378, 2
  %v847 = vsel %vm637, %v845, %v846
  %v848 = vrot.slane %v379, 2
  %v849 = vsel %vm637, %v846, %v848
  %850 = vrot.lane.b32.xlu0 %v479, 4
  %v851 = vpop.permute.xlu0 %850
  %852 = vrot.lane.b32.xlu0 %v481, 4
  %v853 = vpop.permute.xlu0 %852
  %854 = vrot.lane.b32.xlu0 %v484, 4
  %v855 = vpop.permute.xlu0 %854
  %856 = vrot.lane.b32.xlu0 %v486, 4
  %v857 = vpop.permute.xlu0 %856
  %858 = vrot.lane.b32.xlu0 %v489, 4
  %v859 = vpop.permute.xlu0 %858
  %860 = vrot.lane.b32.xlu0 %v491, 4
  %v861 = vpop.permute.xlu0 %860
  %862 = vrot.lane.b32.xlu0 %v494, 4
  %v863 = vpop.permute.xlu0 %862
  %864 = vrot.lane.b32.xlu0 %v496, 4
  %v865 = vpop.permute.xlu0 %864
  %866 = vrot.lane.b32.xlu0 %v499, 4
  %v867 = vpop.permute.xlu0 %866
  %868 = vrot.lane.b32.xlu0 %v501, 4
  %v869 = vpop.permute.xlu0 %868
  %870 = vrot.lane.b32.xlu0 %v504, 4
  %v871 = vpop.permute.xlu0 %870
  %872 = vrot.lane.b32.xlu0 %v506, 4
  %v873 = vpop.permute.xlu0 %872
  %874 = vrot.lane.b32.xlu0 %v509, 4
  %v875 = vpop.permute.xlu0 %874
  %876 = vrot.lane.b32.xlu0 %v511, 4
  %v877 = vpop.permute.xlu0 %876
  %878 = vrot.lane.b32.xlu0 %v514, 4
  %v879 = vpop.permute.xlu0 %878
  %880 = vrot.lane.b32.xlu0 %v516, 4
  %v881 = vpop.permute.xlu0 %880
  %882 = vrot.lane.b32.xlu0 %v519, 4
  %v883 = vpop.permute.xlu0 %882
  %884 = vrot.lane.b32.xlu0 %v521, 4
  %v885 = vpop.permute.xlu0 %884
  %886 = vrot.lane.b32.xlu0 %v524, 4
  %v887 = vpop.permute.xlu0 %886
  %888 = vrot.lane.b32.xlu0 %v526, 4
  %v889 = vpop.permute.xlu0 %888
  %890 = vrot.lane.b32.xlu0 %v529, 4
  %v891 = vpop.permute.xlu0 %890
  %892 = vrot.lane.b32.xlu0 %v531, 4
  %v893 = vpop.permute.xlu0 %892
  %894 = vrot.lane.b32.xlu0 %v534, 4
  %v895 = vpop.permute.xlu0 %894
  %896 = vrot.lane.b32.xlu0 %v536, 4
  %v897 = vpop.permute.xlu0 %896
  %898 = vrot.lane.b32.xlu0 %v539, 4
  %v899 = vpop.permute.xlu0 %898
  %900 = vrot.lane.b32.xlu0 %v541, 4
  %v901 = vpop.permute.xlu0 %900
  %902 = vrot.lane.b32.xlu0 %v544, 4
  %v903 = vpop.permute.xlu0 %902
  %904 = vrot.lane.b32.xlu0 %v546, 4
  %v905 = vpop.permute.xlu0 %904
  %906 = vrot.lane.b32.xlu0 %v549, 4
  %v907 = vpop.permute.xlu0 %906
  %908 = vrot.lane.b32.xlu0 %v551, 4
  %v909 = vpop.permute.xlu0 %908
  %910 = vrot.lane.b32.xlu0 %v554, 4
  %v911 = vpop.permute.xlu0 %910
  %912 = vrot.lane.b32.xlu0 %v556, 4
  %v913 = vpop.permute.xlu0 %912
  %914 = vrot.lane.b32.xlu0 %v559, 4
  %v915 = vpop.permute.xlu0 %914
  %916 = vrot.lane.b32.xlu0 %v561, 4
  %v917 = vpop.permute.xlu0 %916
  %918 = vrot.lane.b32.xlu0 %v564, 4
  %v919 = vpop.permute.xlu0 %918
  %920 = vrot.lane.b32.xlu0 %v566, 4
  %v921 = vpop.permute.xlu0 %920
  %922 = vrot.lane.b32.xlu0 %v569, 4
  %v923 = vpop.permute.xlu0 %922
  %924 = vrot.lane.b32.xlu0 %v571, 4
  %v925 = vpop.permute.xlu0 %924
  %926 = vrot.lane.b32.xlu0 %v574, 4
  %v927 = vpop.permute.xlu0 %926
  %928 = vrot.lane.b32.xlu0 %v576, 4
  %v929 = vpop.permute.xlu0 %928
  %930 = vrot.lane.b32.xlu0 %v579, 4
  %v931 = vpop.permute.xlu0 %930
  %932 = vrot.lane.b32.xlu0 %v581, 4
  %v933 = vpop.permute.xlu0 %932
  %934 = vrot.lane.b32.xlu0 %v584, 4
  %v935 = vpop.permute.xlu0 %934
  %936 = vrot.lane.b32.xlu0 %v586, 4
  %v937 = vpop.permute.xlu0 %936
  %938 = vrot.lane.b32.xlu0 %v589, 4
  %v939 = vpop.permute.xlu0 %938
  %940 = vrot.lane.b32.xlu0 %v591, 4
  %v941 = vpop.permute.xlu0 %940
  %942 = vrot.lane.b32.xlu0 %v594, 4
  %v943 = vpop.permute.xlu0 %942
  %944 = vrot.lane.b32.xlu0 %v596, 4
  %v945 = vpop.permute.xlu0 %944
  %946 = vrot.lane.b32.xlu0 %v599, 4
  %v947 = vpop.permute.xlu0 %946
  %948 = vrot.lane.b32.xlu0 %v601, 4
  %v949 = vpop.permute.xlu0 %948
  %950 = vrot.lane.b32.xlu0 %v604, 4
  %v951 = vpop.permute.xlu0 %950
  %952 = vrot.lane.b32.xlu0 %v606, 4
  %v953 = vpop.permute.xlu0 %952
  %954 = vrot.lane.b32.xlu0 %v609, 4
  %v955 = vpop.permute.xlu0 %954
  %956 = vrot.lane.b32.xlu0 %v611, 4
  %v957 = vpop.permute.xlu0 %956
  %958 = vrot.lane.b32.xlu0 %v614, 4
  %v959 = vpop.permute.xlu0 %958
  %960 = vrot.lane.b32.xlu0 %v616, 4
  %v961 = vpop.permute.xlu0 %960
  %962 = vrot.lane.b32.xlu0 %v619, 4
  %v963 = vpop.permute.xlu0 %962
  %964 = vrot.lane.b32.xlu0 %v621, 4
  %v965 = vpop.permute.xlu0 %964
  %966 = vrot.lane.b32.xlu0 %v624, 4
  %v967 = vpop.permute.xlu0 %966
  %968 = vrot.lane.b32.xlu0 %v626, 4
  %v969 = vpop.permute.xlu0 %968
  %970 = vrot.lane.b32.xlu0 %v629, 4
  %v971 = vpop.permute.xlu0 %970
  %972 = vrot.lane.b32.xlu0 %v631, 4
  %v973 = vpop.permute.xlu0 %972
  %974 = vrot.lane.b32.xlu0 %v634, 4
  %v975 = vpop.permute.xlu0 %974
  %976 = vrot.lane.b32.xlu0 %v636, 4
  %v977 = vpop.permute.xlu0 %976
  %1042 = vrot.lane.b32.xlu0 %v640, 8
  %v1043 = vpop.permute.xlu0 %1042
  %1044 = vrot.lane.b32.xlu0 %v642, 8
  %v1045 = vpop.permute.xlu0 %1044
  %1046 = vrot.lane.b32.xlu0 %v645, 8
  %v1047 = vpop.permute.xlu0 %1046
  %1048 = vrot.lane.b32.xlu0 %v647, 8
  %v1049 = vpop.permute.xlu0 %1048
  %1050 = vrot.lane.b32.xlu0 %v650, 8
  %v1051 = vpop.permute.xlu0 %1050
  %1052 = vrot.lane.b32.xlu0 %v652, 8
  %v1053 = vpop.permute.xlu0 %1052
  %1054 = vrot.lane.b32.xlu0 %v655, 8
  %v1055 = vpop.permute.xlu0 %1054
  %1056 = vrot.lane.b32.xlu0 %v657, 8
  %v1057 = vpop.permute.xlu0 %1056
  %1058 = vrot.lane.b32.xlu0 %v660, 8
  %v1059 = vpop.permute.xlu0 %1058
  %1060 = vrot.lane.b32.xlu0 %v662, 8
  %v1061 = vpop.permute.xlu0 %1060
  %1062 = vrot.lane.b32.xlu0 %v665, 8
  %v1063 = vpop.permute.xlu0 %1062
  %1064 = vrot.lane.b32.xlu0 %v667, 8
  %v1065 = vpop.permute.xlu0 %1064
  %1066 = vrot.lane.b32.xlu0 %v670, 8
  %v1067 = vpop.permute.xlu0 %1066
  %1068 = vrot.lane.b32.xlu0 %v672, 8
  %v1069 = vpop.permute.xlu0 %1068
  %1070 = vrot.lane.b32.xlu0 %v675, 8
  %v1071 = vpop.permute.xlu0 %1070
  %1072 = vrot.lane.b32.xlu0 %v677, 8
  %v1073 = vpop.permute.xlu0 %1072
  %1074 = vrot.lane.b32.xlu0 %v680, 8
  %v1075 = vpop.permute.xlu0 %1074
  %1076 = vrot.lane.b32.xlu0 %v682, 8
  %v1077 = vpop.permute.xlu0 %1076
  %1078 = vrot.lane.b32.xlu0 %v685, 8
  %v1079 = vpop.permute.xlu0 %1078
  %1080 = vrot.lane.b32.xlu0 %v687, 8
  %v1081 = vpop.permute.xlu0 %1080
  %1082 = vrot.lane.b32.xlu0 %v690, 8
  %v1083 = vpop.permute.xlu0 %1082
  %1084 = vrot.lane.b32.xlu0 %v692, 8
  %v1085 = vpop.permute.xlu0 %1084
  %1086 = vrot.lane.b32.xlu0 %v695, 8
  %v1087 = vpop.permute.xlu0 %1086
  %1088 = vrot.lane.b32.xlu0 %v697, 8
  %v1089 = vpop.permute.xlu0 %1088
  %1090 = vrot.lane.b32.xlu0 %v700, 8
  %v1091 = vpop.permute.xlu0 %1090
  %1092 = vrot.lane.b32.xlu0 %v702, 8
  %v1093 = vpop.permute.xlu0 %1092
  %1094 = vrot.lane.b32.xlu0 %v705, 8
  %v1095 = vpop.permute.xlu0 %1094
  %1096 = vrot.lane.b32.xlu0 %v707, 8
  %v1097 = vpop.permute.xlu0 %1096
  %1098 = vrot.lane.b32.xlu0 %v710, 8
  %v1099 = vpop.permute.xlu0 %1098
  %1100 = vrot.lane.b32.xlu0 %v712, 8
  %v1101 = vpop.permute.xlu0 %1100
  %1102 = vrot.lane.b32.xlu0 %v715, 8
  %v1103 = vpop.permute.xlu0 %1102
  %1104 = vrot.lane.b32.xlu0 %v717, 8
  %v1105 = vpop.permute.xlu0 %1104
  %1106 = vrot.lane.b32.xlu0 %v720, 8
  %v1107 = vpop.permute.xlu0 %1106
  %1108 = vrot.lane.b32.xlu0 %v722, 8
  %v1109 = vpop.permute.xlu0 %1108
  %1110 = vrot.lane.b32.xlu0 %v725, 8
  %v1111 = vpop.permute.xlu0 %1110
  %1112 = vrot.lane.b32.xlu0 %v727, 8
  %v1113 = vpop.permute.xlu0 %1112
  %1114 = vrot.lane.b32.xlu0 %v730, 8
  %v1115 = vpop.permute.xlu0 %1114
  %1116 = vrot.lane.b32.xlu0 %v732, 8
  %v1117 = vpop.permute.xlu0 %1116
  %1118 = vrot.lane.b32.xlu0 %v735, 8
  %v1119 = vpop.permute.xlu0 %1118
  %1120 = vrot.lane.b32.xlu0 %v737, 8
  %v1121 = vpop.permute.xlu0 %1120
  %1122 = vrot.lane.b32.xlu0 %v740, 8
  %v1123 = vpop.permute.xlu0 %1122
  %1124 = vrot.lane.b32.xlu0 %v742, 8
  %v1125 = vpop.permute.xlu0 %1124
  %1126 = vrot.lane.b32.xlu0 %v745, 8
  %v1127 = vpop.permute.xlu0 %1126
  %1128 = vrot.lane.b32.xlu0 %v747, 8
  %v1129 = vpop.permute.xlu0 %1128
  %1130 = vrot.lane.b32.xlu0 %v750, 8
  %v1131 = vpop.permute.xlu0 %1130
  %1132 = vrot.lane.b32.xlu0 %v752, 8
  %v1133 = vpop.permute.xlu0 %1132
  %1134 = vrot.lane.b32.xlu0 %v755, 8
  %v1135 = vpop.permute.xlu0 %1134
  %1136 = vrot.lane.b32.xlu0 %v757, 8
  %v1137 = vpop.permute.xlu0 %1136
  %1138 = vrot.lane.b32.xlu0 %v760, 8
  %v1139 = vpop.permute.xlu0 %1138
  %1140 = vrot.lane.b32.xlu0 %v762, 8
  %v1141 = vpop.permute.xlu0 %1140
  %1142 = vrot.lane.b32.xlu0 %v765, 8
  %v1143 = vpop.permute.xlu0 %1142
  %1144 = vrot.lane.b32.xlu0 %v767, 8
  %v1145 = vpop.permute.xlu0 %1144
  %1146 = vrot.lane.b32.xlu0 %v770, 8
  %v1147 = vpop.permute.xlu0 %1146
  %1148 = vrot.lane.b32.xlu0 %v772, 8
  %v1149 = vpop.permute.xlu0 %1148
  %1150 = vrot.lane.b32.xlu0 %v775, 8
  %v1151 = vpop.permute.xlu0 %1150
  %1152 = vrot.lane.b32.xlu0 %v777, 8
  %v1153 = vpop.permute.xlu0 %1152
  %1154 = vrot.lane.b32.xlu0 %v780, 8
  %v1155 = vpop.permute.xlu0 %1154
  %1156 = vrot.lane.b32.xlu0 %v782, 8
  %v1157 = vpop.permute.xlu0 %1156
  %1158 = vrot.lane.b32.xlu0 %v785, 8
  %v1159 = vpop.permute.xlu0 %1158
  %1160 = vrot.lane.b32.xlu0 %v787, 8
  %v1161 = vpop.permute.xlu0 %1160
  %1162 = vrot.lane.b32.xlu0 %v790, 8
  %v1163 = vpop.permute.xlu0 %1162
  %1164 = vrot.lane.b32.xlu0 %v792, 8
  %v1165 = vpop.permute.xlu0 %1164
  %1166 = vrot.lane.b32.xlu0 %v795, 8
  %v1167 = vpop.permute.xlu0 %1166
  %1168 = vrot.lane.b32.xlu0 %v797, 8
  %v1169 = vpop.permute.xlu0 %1168
  %1234 = vrot.lane.b32.xlu0 %v275, 12
  %v1235 = vpop.permute.xlu0 %1234
  %1236 = vrot.lane.b32.xlu0 %v276, 12
  %v1237 = vpop.permute.xlu0 %1236
  %1238 = vrot.lane.b32.xlu0 %v278, 12
  %v1239 = vpop.permute.xlu0 %1238
  %1240 = vrot.lane.b32.xlu0 %v279, 12
  %v1241 = vpop.permute.xlu0 %1240
  %1242 = vrot.lane.b32.xlu0 %v281, 12
  %v1243 = vpop.permute.xlu0 %1242
  %1244 = vrot.lane.b32.xlu0 %v282, 12
  %v1245 = vpop.permute.xlu0 %1244
  %1246 = vrot.lane.b32.xlu0 %v284, 12
  %v1247 = vpop.permute.xlu0 %1246
  %1248 = vrot.lane.b32.xlu0 %v285, 12
  %v1249 = vpop.permute.xlu0 %1248
  %1250 = vrot.lane.b32.xlu0 %v287, 12
  %v1251 = vpop.permute.xlu0 %1250
  %1252 = vrot.lane.b32.xlu0 %v288, 12
  %v1253 = vpop.permute.xlu0 %1252
  %1254 = vrot.lane.b32.xlu0 %v290, 12
  %v1255 = vpop.permute.xlu0 %1254
  %1256 = vrot.lane.b32.xlu0 %v291, 12
  %v1257 = vpop.permute.xlu0 %1256
  %1258 = vrot.lane.b32.xlu0 %v293, 12
  %v1259 = vpop.permute.xlu0 %1258
  %1260 = vrot.lane.b32.xlu0 %v294, 12
  %v1261 = vpop.permute.xlu0 %1260
  %1262 = vrot.lane.b32.xlu0 %v296, 12
  %v1263 = vpop.permute.xlu0 %1262
  %1264 = vrot.lane.b32.xlu0 %v297, 12
  %v1265 = vpop.permute.xlu0 %1264
  %1266 = vrot.lane.b32.xlu0 %v299, 12
  %v1267 = vpop.permute.xlu0 %1266
  %1268 = vrot.lane.b32.xlu0 %v300, 12
  %v1269 = vpop.permute.xlu0 %1268
  %1270 = vrot.lane.b32.xlu0 %v302, 12
  %v1271 = vpop.permute.xlu0 %1270
  %1272 = vrot.lane.b32.xlu0 %v303, 12
  %v1273 = vpop.permute.xlu0 %1272
  %1274 = vrot.lane.b32.xlu0 %v305, 12
  %v1275 = vpop.permute.xlu0 %1274
  %1276 = vrot.lane.b32.xlu0 %v306, 12
  %v1277 = vpop.permute.xlu0 %1276
  %1278 = vrot.lane.b32.xlu0 %v308, 12
  %v1279 = vpop.permute.xlu0 %1278
  %1280 = vrot.lane.b32.xlu0 %v309, 12
  %v1281 = vpop.permute.xlu0 %1280
  %1282 = vrot.lane.b32.xlu0 %v311, 12
  %v1283 = vpop.permute.xlu0 %1282
  %1284 = vrot.lane.b32.xlu0 %v312, 12
  %v1285 = vpop.permute.xlu0 %1284
  %1286 = vrot.lane.b32.xlu0 %v314, 12
  %v1287 = vpop.permute.xlu0 %1286
  %1288 = vrot.lane.b32.xlu0 %v315, 12
  %v1289 = vpop.permute.xlu0 %1288
  %1290 = vrot.lane.b32.xlu0 %v317, 12
  %v1291 = vpop.permute.xlu0 %1290
  %1292 = vrot.lane.b32.xlu0 %v318, 12
  %v1293 = vpop.permute.xlu0 %1292
  %1294 = vrot.lane.b32.xlu0 %v320, 12
  %v1295 = vpop.permute.xlu0 %1294
  %1296 = vrot.lane.b32.xlu0 %v321, 12
  %v1297 = vpop.permute.xlu0 %1296
  %1298 = vrot.lane.b32.xlu0 %v329, 12
  %v1299 = vpop.permute.xlu0 %1298
  %1300 = vrot.lane.b32.xlu0 %v330, 12
  %v1301 = vpop.permute.xlu0 %1300
  %1302 = vrot.lane.b32.xlu0 %v332, 12
  %v1303 = vpop.permute.xlu0 %1302
  %1304 = vrot.lane.b32.xlu0 %v333, 12
  %v1305 = vpop.permute.xlu0 %1304
  %1306 = vrot.lane.b32.xlu0 %v335, 12
  %v1307 = vpop.permute.xlu0 %1306
  %1308 = vrot.lane.b32.xlu0 %v336, 12
  %v1309 = vpop.permute.xlu0 %1308
  %1310 = vrot.lane.b32.xlu0 %v338, 12
  %v1311 = vpop.permute.xlu0 %1310
  %1312 = vrot.lane.b32.xlu0 %v339, 12
  %v1313 = vpop.permute.xlu0 %1312
  %1314 = vrot.lane.b32.xlu0 %v341, 12
  %v1315 = vpop.permute.xlu0 %1314
  %1316 = vrot.lane.b32.xlu0 %v342, 12
  %v1317 = vpop.permute.xlu0 %1316
  %1318 = vrot.lane.b32.xlu0 %v344, 12
  %v1319 = vpop.permute.xlu0 %1318
  %1320 = vrot.lane.b32.xlu0 %v345, 12
  %v1321 = vpop.permute.xlu0 %1320
  %1322 = vrot.lane.b32.xlu0 %v347, 12
  %v1323 = vpop.permute.xlu0 %1322
  %1324 = vrot.lane.b32.xlu0 %v348, 12
  %v1325 = vpop.permute.xlu0 %1324
  %1326 = vrot.lane.b32.xlu0 %v350, 12
  %v1327 = vpop.permute.xlu0 %1326
  %1328 = vrot.lane.b32.xlu0 %v351, 12
  %v1329 = vpop.permute.xlu0 %1328
  %1330 = vrot.lane.b32.xlu0 %v353, 12
  %v1331 = vpop.permute.xlu0 %1330
  %1332 = vrot.lane.b32.xlu0 %v354, 12
  %v1333 = vpop.permute.xlu0 %1332
  %1334 = vrot.lane.b32.xlu0 %v356, 12
  %v1335 = vpop.permute.xlu0 %1334
  %1336 = vrot.lane.b32.xlu0 %v357, 12
  %v1337 = vpop.permute.xlu0 %1336
  %1338 = vrot.lane.b32.xlu0 %v359, 12
  %v1339 = vpop.permute.xlu0 %1338
  %1340 = vrot.lane.b32.xlu0 %v360, 12
  %v1341 = vpop.permute.xlu0 %1340
  %1342 = vrot.lane.b32.xlu0 %v362, 12
  %v1343 = vpop.permute.xlu0 %1342
  %1344 = vrot.lane.b32.xlu0 %v363, 12
  %v1345 = vpop.permute.xlu0 %1344
  %1346 = vrot.lane.b32.xlu0 %v365, 12
  %v1347 = vpop.permute.xlu0 %1346
  %1348 = vrot.lane.b32.xlu0 %v366, 12
  %v1349 = vpop.permute.xlu0 %1348
  %1350 = vrot.lane.b32.xlu0 %v368, 12
  %v1351 = vpop.permute.xlu0 %1350
  %1352 = vrot.lane.b32.xlu0 %v369, 12
  %v1353 = vpop.permute.xlu0 %1352
  %1354 = vrot.lane.b32.xlu0 %v371, 12
  %v1355 = vpop.permute.xlu0 %1354
  %1356 = vrot.lane.b32.xlu0 %v372, 12
  %v1357 = vpop.permute.xlu0 %1356
  %1358 = vrot.lane.b32.xlu0 %v374, 12
  %v1359 = vpop.permute.xlu0 %1358
  %1360 = vrot.lane.b32.xlu0 %v375, 12
  %v1361 = vpop.permute.xlu0 %1360
  %1426 = vrot.lane.b32.xlu0 %v484, 16
  %v1427 = vpop.permute.xlu0 %1426
  %1428 = vrot.lane.b32.xlu0 %v486, 16
  %v1429 = vpop.permute.xlu0 %1428
  %1430 = vrot.lane.b32.xlu0 %v489, 16
  %v1431 = vpop.permute.xlu0 %1430
  %1432 = vrot.lane.b32.xlu0 %v491, 16
  %v1433 = vpop.permute.xlu0 %1432
  %1434 = vrot.lane.b32.xlu0 %v494, 16
  %v1435 = vpop.permute.xlu0 %1434
  %1436 = vrot.lane.b32.xlu0 %v496, 16
  %v1437 = vpop.permute.xlu0 %1436
  %1438 = vrot.lane.b32.xlu0 %v499, 16
  %v1439 = vpop.permute.xlu0 %1438
  %1440 = vrot.lane.b32.xlu0 %v501, 16
  %v1441 = vpop.permute.xlu0 %1440
  %1442 = vrot.lane.b32.xlu0 %v504, 16
  %v1443 = vpop.permute.xlu0 %1442
  %1444 = vrot.lane.b32.xlu0 %v506, 16
  %v1445 = vpop.permute.xlu0 %1444
  %1446 = vrot.lane.b32.xlu0 %v509, 16
  %v1447 = vpop.permute.xlu0 %1446
  %1448 = vrot.lane.b32.xlu0 %v511, 16
  %v1449 = vpop.permute.xlu0 %1448
  %1450 = vrot.lane.b32.xlu0 %v514, 16
  %v1451 = vpop.permute.xlu0 %1450
  %1452 = vrot.lane.b32.xlu0 %v516, 16
  %v1453 = vpop.permute.xlu0 %1452
  %1454 = vrot.lane.b32.xlu0 %v519, 16
  %v1455 = vpop.permute.xlu0 %1454
  %1456 = vrot.lane.b32.xlu0 %v521, 16
  %v1457 = vpop.permute.xlu0 %1456
  %1458 = vrot.lane.b32.xlu0 %v524, 16
  %v1459 = vpop.permute.xlu0 %1458
  %1460 = vrot.lane.b32.xlu0 %v526, 16
  %v1461 = vpop.permute.xlu0 %1460
  %1462 = vrot.lane.b32.xlu0 %v529, 16
  %v1463 = vpop.permute.xlu0 %1462
  %1464 = vrot.lane.b32.xlu0 %v531, 16
  %v1465 = vpop.permute.xlu0 %1464
  %1466 = vrot.lane.b32.xlu0 %v534, 16
  %v1467 = vpop.permute.xlu0 %1466
  %1468 = vrot.lane.b32.xlu0 %v536, 16
  %v1469 = vpop.permute.xlu0 %1468
  %1470 = vrot.lane.b32.xlu0 %v539, 16
  %v1471 = vpop.permute.xlu0 %1470
  %1472 = vrot.lane.b32.xlu0 %v541, 16
  %v1473 = vpop.permute.xlu0 %1472
  %1474 = vrot.lane.b32.xlu0 %v544, 16
  %v1475 = vpop.permute.xlu0 %1474
  %1476 = vrot.lane.b32.xlu0 %v546, 16
  %v1477 = vpop.permute.xlu0 %1476
  %1478 = vrot.lane.b32.xlu0 %v549, 16
  %v1479 = vpop.permute.xlu0 %1478
  %1480 = vrot.lane.b32.xlu0 %v551, 16
  %v1481 = vpop.permute.xlu0 %1480
  %1482 = vrot.lane.b32.xlu0 %v554, 16
  %v1483 = vpop.permute.xlu0 %1482
  %1484 = vrot.lane.b32.xlu0 %v556, 16
  %v1485 = vpop.permute.xlu0 %1484
  %1486 = vrot.lane.b32.xlu0 %v806, 16
  %v1487 = vpop.permute.xlu0 %1486
  %1488 = vrot.lane.b32.xlu0 %v808, 16
  %v1489 = vpop.permute.xlu0 %1488
  %1490 = vrot.lane.b32.xlu0 %v564, 16
  %v1491 = vpop.permute.xlu0 %1490
  %1492 = vrot.lane.b32.xlu0 %v566, 16
  %v1493 = vpop.permute.xlu0 %1492
  %1494 = vrot.lane.b32.xlu0 %v569, 16
  %v1495 = vpop.permute.xlu0 %1494
  %1496 = vrot.lane.b32.xlu0 %v571, 16
  %v1497 = vpop.permute.xlu0 %1496
  %1498 = vrot.lane.b32.xlu0 %v574, 16
  %v1499 = vpop.permute.xlu0 %1498
  %1500 = vrot.lane.b32.xlu0 %v576, 16
  %v1501 = vpop.permute.xlu0 %1500
  %1502 = vrot.lane.b32.xlu0 %v579, 16
  %v1503 = vpop.permute.xlu0 %1502
  %1504 = vrot.lane.b32.xlu0 %v581, 16
  %v1505 = vpop.permute.xlu0 %1504
  %1506 = vrot.lane.b32.xlu0 %v584, 16
  %v1507 = vpop.permute.xlu0 %1506
  %1508 = vrot.lane.b32.xlu0 %v586, 16
  %v1509 = vpop.permute.xlu0 %1508
  %1510 = vrot.lane.b32.xlu0 %v589, 16
  %v1511 = vpop.permute.xlu0 %1510
  %1512 = vrot.lane.b32.xlu0 %v591, 16
  %v1513 = vpop.permute.xlu0 %1512
  %1514 = vrot.lane.b32.xlu0 %v594, 16
  %v1515 = vpop.permute.xlu0 %1514
  %1516 = vrot.lane.b32.xlu0 %v596, 16
  %v1517 = vpop.permute.xlu0 %1516
  %1518 = vrot.lane.b32.xlu0 %v599, 16
  %v1519 = vpop.permute.xlu0 %1518
  %1520 = vrot.lane.b32.xlu0 %v601, 16
  %v1521 = vpop.permute.xlu0 %1520
  %1522 = vrot.lane.b32.xlu0 %v604, 16
  %v1523 = vpop.permute.xlu0 %1522
  %1524 = vrot.lane.b32.xlu0 %v606, 16
  %v1525 = vpop.permute.xlu0 %1524
  %1526 = vrot.lane.b32.xlu0 %v609, 16
  %v1527 = vpop.permute.xlu0 %1526
  %1528 = vrot.lane.b32.xlu0 %v611, 16
  %v1529 = vpop.permute.xlu0 %1528
  %1530 = vrot.lane.b32.xlu0 %v614, 16
  %v1531 = vpop.permute.xlu0 %1530
  %1532 = vrot.lane.b32.xlu0 %v616, 16
  %v1533 = vpop.permute.xlu0 %1532
  %1534 = vrot.lane.b32.xlu0 %v619, 16
  %v1535 = vpop.permute.xlu0 %1534
  %1536 = vrot.lane.b32.xlu0 %v621, 16
  %v1537 = vpop.permute.xlu0 %1536
  %1538 = vrot.lane.b32.xlu0 %v624, 16
  %v1539 = vpop.permute.xlu0 %1538
  %1540 = vrot.lane.b32.xlu0 %v626, 16
  %v1541 = vpop.permute.xlu0 %1540
  %1542 = vrot.lane.b32.xlu0 %v629, 16
  %v1543 = vpop.permute.xlu0 %1542
  %1544 = vrot.lane.b32.xlu0 %v631, 16
  %v1545 = vpop.permute.xlu0 %1544
  %1546 = vrot.lane.b32.xlu0 %v634, 16
  %v1547 = vpop.permute.xlu0 %1546
  %1548 = vrot.lane.b32.xlu0 %v636, 16
  %v1549 = vpop.permute.xlu0 %1548
  %1550 = vrot.lane.b32.xlu0 %v811, 16
  %v1551 = vpop.permute.xlu0 %1550
  %1552 = vrot.lane.b32.xlu0 %v813, 16
  %v1553 = vpop.permute.xlu0 %1552
  %1618 = vrot.lane.b32.xlu0 %v645, 20
  %v1619 = vpop.permute.xlu0 %1618
  %1620 = vrot.lane.b32.xlu0 %v647, 20
  %v1621 = vpop.permute.xlu0 %1620
  %1622 = vrot.lane.b32.xlu0 %v650, 20
  %v1623 = vpop.permute.xlu0 %1622
  %1624 = vrot.lane.b32.xlu0 %v652, 20
  %v1625 = vpop.permute.xlu0 %1624
  %1626 = vrot.lane.b32.xlu0 %v655, 20
  %v1627 = vpop.permute.xlu0 %1626
  %1628 = vrot.lane.b32.xlu0 %v657, 20
  %v1629 = vpop.permute.xlu0 %1628
  %1630 = vrot.lane.b32.xlu0 %v660, 20
  %v1631 = vpop.permute.xlu0 %1630
  %1632 = vrot.lane.b32.xlu0 %v662, 20
  %v1633 = vpop.permute.xlu0 %1632
  %1634 = vrot.lane.b32.xlu0 %v665, 20
  %v1635 = vpop.permute.xlu0 %1634
  %1636 = vrot.lane.b32.xlu0 %v667, 20
  %v1637 = vpop.permute.xlu0 %1636
  %1638 = vrot.lane.b32.xlu0 %v670, 20
  %v1639 = vpop.permute.xlu0 %1638
  %1640 = vrot.lane.b32.xlu0 %v672, 20
  %v1641 = vpop.permute.xlu0 %1640
  %1642 = vrot.lane.b32.xlu0 %v675, 20
  %v1643 = vpop.permute.xlu0 %1642
  %1644 = vrot.lane.b32.xlu0 %v677, 20
  %v1645 = vpop.permute.xlu0 %1644
  %1646 = vrot.lane.b32.xlu0 %v680, 20
  %v1647 = vpop.permute.xlu0 %1646
  %1648 = vrot.lane.b32.xlu0 %v682, 20
  %v1649 = vpop.permute.xlu0 %1648
  %1650 = vrot.lane.b32.xlu0 %v685, 20
  %v1651 = vpop.permute.xlu0 %1650
  %1652 = vrot.lane.b32.xlu0 %v687, 20
  %v1653 = vpop.permute.xlu0 %1652
  %1654 = vrot.lane.b32.xlu0 %v690, 20
  %v1655 = vpop.permute.xlu0 %1654
  %1656 = vrot.lane.b32.xlu0 %v692, 20
  %v1657 = vpop.permute.xlu0 %1656
  %1658 = vrot.lane.b32.xlu0 %v695, 20
  %v1659 = vpop.permute.xlu0 %1658
  %1660 = vrot.lane.b32.xlu0 %v697, 20
  %v1661 = vpop.permute.xlu0 %1660
  %1662 = vrot.lane.b32.xlu0 %v700, 20
  %v1663 = vpop.permute.xlu0 %1662
  %1664 = vrot.lane.b32.xlu0 %v702, 20
  %v1665 = vpop.permute.xlu0 %1664
  %1666 = vrot.lane.b32.xlu0 %v705, 20
  %v1667 = vpop.permute.xlu0 %1666
  %1668 = vrot.lane.b32.xlu0 %v707, 20
  %v1669 = vpop.permute.xlu0 %1668
  %1670 = vrot.lane.b32.xlu0 %v710, 20
  %v1671 = vpop.permute.xlu0 %1670
  %1672 = vrot.lane.b32.xlu0 %v712, 20
  %v1673 = vpop.permute.xlu0 %1672
  %1674 = vrot.lane.b32.xlu0 %v715, 20
  %v1675 = vpop.permute.xlu0 %1674
  %1676 = vrot.lane.b32.xlu0 %v717, 20
  %v1677 = vpop.permute.xlu0 %1676
  %1678 = vrot.lane.b32.xlu0 %v816, 20
  %v1679 = vpop.permute.xlu0 %1678
  %1680 = vrot.lane.b32.xlu0 %v818, 20
  %v1681 = vpop.permute.xlu0 %1680
  %1682 = vrot.lane.b32.xlu0 %v725, 20
  %v1683 = vpop.permute.xlu0 %1682
  %1684 = vrot.lane.b32.xlu0 %v727, 20
  %v1685 = vpop.permute.xlu0 %1684
  %1686 = vrot.lane.b32.xlu0 %v730, 20
  %v1687 = vpop.permute.xlu0 %1686
  %1688 = vrot.lane.b32.xlu0 %v732, 20
  %v1689 = vpop.permute.xlu0 %1688
  %1690 = vrot.lane.b32.xlu0 %v735, 20
  %v1691 = vpop.permute.xlu0 %1690
  %1692 = vrot.lane.b32.xlu0 %v737, 20
  %v1693 = vpop.permute.xlu0 %1692
  %1694 = vrot.lane.b32.xlu0 %v740, 20
  %v1695 = vpop.permute.xlu0 %1694
  %1696 = vrot.lane.b32.xlu0 %v742, 20
  %v1697 = vpop.permute.xlu0 %1696
  %1698 = vrot.lane.b32.xlu0 %v745, 20
  %v1699 = vpop.permute.xlu0 %1698
  %1700 = vrot.lane.b32.xlu0 %v747, 20
  %v1701 = vpop.permute.xlu0 %1700
  %1702 = vrot.lane.b32.xlu0 %v750, 20
  %v1703 = vpop.permute.xlu0 %1702
  %1704 = vrot.lane.b32.xlu0 %v752, 20
  %v1705 = vpop.permute.xlu0 %1704
  %1706 = vrot.lane.b32.xlu0 %v755, 20
  %v1707 = vpop.permute.xlu0 %1706
  %1708 = vrot.lane.b32.xlu0 %v757, 20
  %v1709 = vpop.permute.xlu0 %1708
  %1710 = vrot.lane.b32.xlu0 %v760, 20
  %v1711 = vpop.permute.xlu0 %1710
  %1712 = vrot.lane.b32.xlu0 %v762, 20
  %v1713 = vpop.permute.xlu0 %1712
  %1714 = vrot.lane.b32.xlu0 %v765, 20
  %v1715 = vpop.permute.xlu0 %1714
  %1716 = vrot.lane.b32.xlu0 %v767, 20
  %v1717 = vpop.permute.xlu0 %1716
  %1718 = vrot.lane.b32.xlu0 %v770, 20
  %v1719 = vpop.permute.xlu0 %1718
  %1720 = vrot.lane.b32.xlu0 %v772, 20
  %v1721 = vpop.permute.xlu0 %1720
  %1722 = vrot.lane.b32.xlu0 %v775, 20
  %v1723 = vpop.permute.xlu0 %1722
  %1724 = vrot.lane.b32.xlu0 %v777, 20
  %v1725 = vpop.permute.xlu0 %1724
  %1726 = vrot.lane.b32.xlu0 %v780, 20
  %v1727 = vpop.permute.xlu0 %1726
  %1728 = vrot.lane.b32.xlu0 %v782, 20
  %v1729 = vpop.permute.xlu0 %1728
  %1730 = vrot.lane.b32.xlu0 %v785, 20
  %v1731 = vpop.permute.xlu0 %1730
  %1732 = vrot.lane.b32.xlu0 %v787, 20
  %v1733 = vpop.permute.xlu0 %1732
  %1734 = vrot.lane.b32.xlu0 %v790, 20
  %v1735 = vpop.permute.xlu0 %1734
  %1736 = vrot.lane.b32.xlu0 %v792, 20
  %v1737 = vpop.permute.xlu0 %1736
  %1738 = vrot.lane.b32.xlu0 %v795, 20
  %v1739 = vpop.permute.xlu0 %1738
  %1740 = vrot.lane.b32.xlu0 %v797, 20
  %v1741 = vpop.permute.xlu0 %1740
  %1742 = vrot.lane.b32.xlu0 %v821, 20
  %v1743 = vpop.permute.xlu0 %1742
  %1744 = vrot.lane.b32.xlu0 %v823, 20
  %v1745 = vpop.permute.xlu0 %1744
  %1810 = vrot.lane.b32.xlu0 %v278, 24
  %v1811 = vpop.permute.xlu0 %1810
  %1812 = vrot.lane.b32.xlu0 %v279, 24
  %v1813 = vpop.permute.xlu0 %1812
  %1814 = vrot.lane.b32.xlu0 %v281, 24
  %v1815 = vpop.permute.xlu0 %1814
  %1816 = vrot.lane.b32.xlu0 %v282, 24
  %v1817 = vpop.permute.xlu0 %1816
  %1818 = vrot.lane.b32.xlu0 %v284, 24
  %v1819 = vpop.permute.xlu0 %1818
  %1820 = vrot.lane.b32.xlu0 %v285, 24
  %v1821 = vpop.permute.xlu0 %1820
  %1822 = vrot.lane.b32.xlu0 %v287, 24
  %v1823 = vpop.permute.xlu0 %1822
  %1824 = vrot.lane.b32.xlu0 %v288, 24
  %v1825 = vpop.permute.xlu0 %1824
  %1826 = vrot.lane.b32.xlu0 %v290, 24
  %v1827 = vpop.permute.xlu0 %1826
  %1828 = vrot.lane.b32.xlu0 %v291, 24
  %v1829 = vpop.permute.xlu0 %1828
  %1830 = vrot.lane.b32.xlu0 %v293, 24
  %v1831 = vpop.permute.xlu0 %1830
  %1832 = vrot.lane.b32.xlu0 %v294, 24
  %v1833 = vpop.permute.xlu0 %1832
  %1834 = vrot.lane.b32.xlu0 %v296, 24
  %v1835 = vpop.permute.xlu0 %1834
  %1836 = vrot.lane.b32.xlu0 %v297, 24
  %v1837 = vpop.permute.xlu0 %1836
  %1838 = vrot.lane.b32.xlu0 %v299, 24
  %v1839 = vpop.permute.xlu0 %1838
  %1840 = vrot.lane.b32.xlu0 %v300, 24
  %v1841 = vpop.permute.xlu0 %1840
  %1842 = vrot.lane.b32.xlu0 %v302, 24
  %v1843 = vpop.permute.xlu0 %1842
  %1844 = vrot.lane.b32.xlu0 %v303, 24
  %v1845 = vpop.permute.xlu0 %1844
  %1846 = vrot.lane.b32.xlu0 %v305, 24
  %v1847 = vpop.permute.xlu0 %1846
  %1848 = vrot.lane.b32.xlu0 %v306, 24
  %v1849 = vpop.permute.xlu0 %1848
  %1850 = vrot.lane.b32.xlu0 %v308, 24
  %v1851 = vpop.permute.xlu0 %1850
  %1852 = vrot.lane.b32.xlu0 %v309, 24
  %v1853 = vpop.permute.xlu0 %1852
  %1854 = vrot.lane.b32.xlu0 %v311, 24
  %v1855 = vpop.permute.xlu0 %1854
  %1856 = vrot.lane.b32.xlu0 %v312, 24
  %v1857 = vpop.permute.xlu0 %1856
  %1858 = vrot.lane.b32.xlu0 %v314, 24
  %v1859 = vpop.permute.xlu0 %1858
  %1860 = vrot.lane.b32.xlu0 %v315, 24
  %v1861 = vpop.permute.xlu0 %1860
  %1862 = vrot.lane.b32.xlu0 %v317, 24
  %v1863 = vpop.permute.xlu0 %1862
  %1864 = vrot.lane.b32.xlu0 %v318, 24
  %v1865 = vpop.permute.xlu0 %1864
  %1866 = vrot.lane.b32.xlu0 %v320, 24
  %v1867 = vpop.permute.xlu0 %1866
  %1868 = vrot.lane.b32.xlu0 %v321, 24
  %v1869 = vpop.permute.xlu0 %1868
  %1870 = vrot.lane.b32.xlu0 %v323, 24
  %v1871 = vpop.permute.xlu0 %1870
  %1872 = vrot.lane.b32.xlu0 %v324, 24
  %v1873 = vpop.permute.xlu0 %1872
  %1874 = vrot.lane.b32.xlu0 %v332, 24
  %v1875 = vpop.permute.xlu0 %1874
  %1876 = vrot.lane.b32.xlu0 %v333, 24
  %v1877 = vpop.permute.xlu0 %1876
  %1878 = vrot.lane.b32.xlu0 %v335, 24
  %v1879 = vpop.permute.xlu0 %1878
  %1880 = vrot.lane.b32.xlu0 %v336, 24
  %v1881 = vpop.permute.xlu0 %1880
  %1882 = vrot.lane.b32.xlu0 %v338, 24
  %v1883 = vpop.permute.xlu0 %1882
  %1884 = vrot.lane.b32.xlu0 %v339, 24
  %v1885 = vpop.permute.xlu0 %1884
  %1886 = vrot.lane.b32.xlu0 %v341, 24
  %v1887 = vpop.permute.xlu0 %1886
  %1888 = vrot.lane.b32.xlu0 %v342, 24
  %v1889 = vpop.permute.xlu0 %1888
  %1890 = vrot.lane.b32.xlu0 %v344, 24
  %v1891 = vpop.permute.xlu0 %1890
  %1892 = vrot.lane.b32.xlu0 %v345, 24
  %v1893 = vpop.permute.xlu0 %1892
  %1894 = vrot.lane.b32.xlu0 %v347, 24
  %v1895 = vpop.permute.xlu0 %1894
  %1896 = vrot.lane.b32.xlu0 %v348, 24
  %v1897 = vpop.permute.xlu0 %1896
  %1898 = vrot.lane.b32.xlu0 %v350, 24
  %v1899 = vpop.permute.xlu0 %1898
  %1900 = vrot.lane.b32.xlu0 %v351, 24
  %v1901 = vpop.permute.xlu0 %1900
  %1902 = vrot.lane.b32.xlu0 %v353, 24
  %v1903 = vpop.permute.xlu0 %1902
  %1904 = vrot.lane.b32.xlu0 %v354, 24
  %v1905 = vpop.permute.xlu0 %1904
  %1906 = vrot.lane.b32.xlu0 %v356, 24
  %v1907 = vpop.permute.xlu0 %1906
  %1908 = vrot.lane.b32.xlu0 %v357, 24
  %v1909 = vpop.permute.xlu0 %1908
  %1910 = vrot.lane.b32.xlu0 %v359, 24
  %v1911 = vpop.permute.xlu0 %1910
  %1912 = vrot.lane.b32.xlu0 %v360, 24
  %v1913 = vpop.permute.xlu0 %1912
  %1914 = vrot.lane.b32.xlu0 %v362, 24
  %v1915 = vpop.permute.xlu0 %1914
  %1916 = vrot.lane.b32.xlu0 %v363, 24
  %v1917 = vpop.permute.xlu0 %1916
  %1918 = vrot.lane.b32.xlu0 %v365, 24
  %v1919 = vpop.permute.xlu0 %1918
  %1920 = vrot.lane.b32.xlu0 %v366, 24
  %v1921 = vpop.permute.xlu0 %1920
  %1922 = vrot.lane.b32.xlu0 %v368, 24
  %v1923 = vpop.permute.xlu0 %1922
  %1924 = vrot.lane.b32.xlu0 %v369, 24
  %v1925 = vpop.permute.xlu0 %1924
  %1926 = vrot.lane.b32.xlu0 %v371, 24
  %v1927 = vpop.permute.xlu0 %1926
  %1928 = vrot.lane.b32.xlu0 %v372, 24
  %v1929 = vpop.permute.xlu0 %1928
  %1930 = vrot.lane.b32.xlu0 %v374, 24
  %v1931 = vpop.permute.xlu0 %1930
  %1932 = vrot.lane.b32.xlu0 %v375, 24
  %v1933 = vpop.permute.xlu0 %1932
  %1934 = vrot.lane.b32.xlu0 %v377, 24
  %v1935 = vpop.permute.xlu0 %1934
  %1936 = vrot.lane.b32.xlu0 %v378, 24
  %v1937 = vpop.permute.xlu0 %1936
  %2002 = vrot.lane.b32.xlu0 %v489, 28
  %v2003 = vpop.permute.xlu0 %2002
  %2004 = vrot.lane.b32.xlu0 %v491, 28
  %v2005 = vpop.permute.xlu0 %2004
  %2006 = vrot.lane.b32.xlu0 %v494, 28
  %v2007 = vpop.permute.xlu0 %2006
  %2008 = vrot.lane.b32.xlu0 %v496, 28
  %v2009 = vpop.permute.xlu0 %2008
  %2010 = vrot.lane.b32.xlu0 %v499, 28
  %v2011 = vpop.permute.xlu0 %2010
  %2012 = vrot.lane.b32.xlu0 %v501, 28
  %v2013 = vpop.permute.xlu0 %2012
  %2014 = vrot.lane.b32.xlu0 %v504, 28
  %v2015 = vpop.permute.xlu0 %2014
  %2016 = vrot.lane.b32.xlu0 %v506, 28
  %v2017 = vpop.permute.xlu0 %2016
  %2018 = vrot.lane.b32.xlu0 %v509, 28
  %v2019 = vpop.permute.xlu0 %2018
  %2020 = vrot.lane.b32.xlu0 %v511, 28
  %v2021 = vpop.permute.xlu0 %2020
  %2022 = vrot.lane.b32.xlu0 %v514, 28
  %v2023 = vpop.permute.xlu0 %2022
  %2024 = vrot.lane.b32.xlu0 %v516, 28
  %v2025 = vpop.permute.xlu0 %2024
  %2026 = vrot.lane.b32.xlu0 %v519, 28
  %v2027 = vpop.permute.xlu0 %2026
  %2028 = vrot.lane.b32.xlu0 %v521, 28
  %v2029 = vpop.permute.xlu0 %2028
  %2030 = vrot.lane.b32.xlu0 %v524, 28
  %v2031 = vpop.permute.xlu0 %2030
  %2032 = vrot.lane.b32.xlu0 %v526, 28
  %v2033 = vpop.permute.xlu0 %2032
  %2034 = vrot.lane.b32.xlu0 %v529, 28
  %v2035 = vpop.permute.xlu0 %2034
  %2036 = vrot.lane.b32.xlu0 %v531, 28
  %v2037 = vpop.permute.xlu0 %2036
  %2038 = vrot.lane.b32.xlu0 %v534, 28
  %v2039 = vpop.permute.xlu0 %2038
  %2040 = vrot.lane.b32.xlu0 %v536, 28
  %v2041 = vpop.permute.xlu0 %2040
  %2042 = vrot.lane.b32.xlu0 %v539, 28
  %v2043 = vpop.permute.xlu0 %2042
  %2044 = vrot.lane.b32.xlu0 %v541, 28
  %v2045 = vpop.permute.xlu0 %2044
  %2046 = vrot.lane.b32.xlu0 %v544, 28
  %v2047 = vpop.permute.xlu0 %2046
  %2048 = vrot.lane.b32.xlu0 %v546, 28
  %v2049 = vpop.permute.xlu0 %2048
  %2050 = vrot.lane.b32.xlu0 %v549, 28
  %v2051 = vpop.permute.xlu0 %2050
  %2052 = vrot.lane.b32.xlu0 %v551, 28
  %v2053 = vpop.permute.xlu0 %2052
  %2054 = vrot.lane.b32.xlu0 %v554, 28
  %v2055 = vpop.permute.xlu0 %2054
  %2056 = vrot.lane.b32.xlu0 %v556, 28
  %v2057 = vpop.permute.xlu0 %2056
  %2058 = vrot.lane.b32.xlu0 %v806, 28
  %v2059 = vpop.permute.xlu0 %2058
  %2060 = vrot.lane.b32.xlu0 %v808, 28
  %v2061 = vpop.permute.xlu0 %2060
  %2062 = vrot.lane.b32.xlu0 %v832, 28
  %v2063 = vpop.permute.xlu0 %2062
  %2064 = vrot.lane.b32.xlu0 %v834, 28
  %v2065 = vpop.permute.xlu0 %2064
  %2066 = vrot.lane.b32.xlu0 %v569, 28
  %v2067 = vpop.permute.xlu0 %2066
  %2068 = vrot.lane.b32.xlu0 %v571, 28
  %v2069 = vpop.permute.xlu0 %2068
  %2070 = vrot.lane.b32.xlu0 %v574, 28
  %v2071 = vpop.permute.xlu0 %2070
  %2072 = vrot.lane.b32.xlu0 %v576, 28
  %v2073 = vpop.permute.xlu0 %2072
  %2074 = vrot.lane.b32.xlu0 %v579, 28
  %v2075 = vpop.permute.xlu0 %2074
  %2076 = vrot.lane.b32.xlu0 %v581, 28
  %v2077 = vpop.permute.xlu0 %2076
  %2078 = vrot.lane.b32.xlu0 %v584, 28
  %v2079 = vpop.permute.xlu0 %2078
  %2080 = vrot.lane.b32.xlu0 %v586, 28
  %v2081 = vpop.permute.xlu0 %2080
  %2082 = vrot.lane.b32.xlu0 %v589, 28
  %v2083 = vpop.permute.xlu0 %2082
  %2084 = vrot.lane.b32.xlu0 %v591, 28
  %v2085 = vpop.permute.xlu0 %2084
  %2086 = vrot.lane.b32.xlu0 %v594, 28
  %v2087 = vpop.permute.xlu0 %2086
  %2088 = vrot.lane.b32.xlu0 %v596, 28
  %v2089 = vpop.permute.xlu0 %2088
  %2090 = vrot.lane.b32.xlu0 %v599, 28
  %v2091 = vpop.permute.xlu0 %2090
  %2092 = vrot.lane.b32.xlu0 %v601, 28
  %v2093 = vpop.permute.xlu0 %2092
  %2094 = vrot.lane.b32.xlu0 %v604, 28
  %v2095 = vpop.permute.xlu0 %2094
  %2096 = vrot.lane.b32.xlu0 %v606, 28
  %v2097 = vpop.permute.xlu0 %2096
  %2098 = vrot.lane.b32.xlu0 %v609, 28
  %v2099 = vpop.permute.xlu0 %2098
  %2100 = vrot.lane.b32.xlu0 %v611, 28
  %v2101 = vpop.permute.xlu0 %2100
  %2102 = vrot.lane.b32.xlu0 %v614, 28
  %v2103 = vpop.permute.xlu0 %2102
  %2104 = vrot.lane.b32.xlu0 %v616, 28
  %v2105 = vpop.permute.xlu0 %2104
  %2106 = vrot.lane.b32.xlu0 %v619, 28
  %v2107 = vpop.permute.xlu0 %2106
  %2108 = vrot.lane.b32.xlu0 %v621, 28
  %v2109 = vpop.permute.xlu0 %2108
  %2110 = vrot.lane.b32.xlu0 %v624, 28
  %v2111 = vpop.permute.xlu0 %2110
  %2112 = vrot.lane.b32.xlu0 %v626, 28
  %v2113 = vpop.permute.xlu0 %2112
  %2114 = vrot.lane.b32.xlu0 %v629, 28
  %v2115 = vpop.permute.xlu0 %2114
  %2116 = vrot.lane.b32.xlu0 %v631, 28
  %v2117 = vpop.permute.xlu0 %2116
  %2118 = vrot.lane.b32.xlu0 %v634, 28
  %v2119 = vpop.permute.xlu0 %2118
  %2120 = vrot.lane.b32.xlu0 %v636, 28
  %v2121 = vpop.permute.xlu0 %2120
  %2122 = vrot.lane.b32.xlu0 %v811, 28
  %v2123 = vpop.permute.xlu0 %2122
  %2124 = vrot.lane.b32.xlu0 %v813, 28
  %v2125 = vpop.permute.xlu0 %2124
  %2126 = vrot.lane.b32.xlu0 %v837, 28
  %v2127 = vpop.permute.xlu0 %2126
  %2128 = vrot.lane.b32.xlu0 %v839, 28
  %v2129 = vpop.permute.xlu0 %2128
  %2194 = vrot.lane.b32.xlu0 %v650, 32
  %v2195 = vpop.permute.xlu0 %2194
  %2196 = vrot.lane.b32.xlu0 %v652, 32
  %v2197 = vpop.permute.xlu0 %2196
  %2198 = vrot.lane.b32.xlu0 %v655, 32
  %v2199 = vpop.permute.xlu0 %2198
  %2200 = vrot.lane.b32.xlu0 %v657, 32
  %v2201 = vpop.permute.xlu0 %2200
  %2202 = vrot.lane.b32.xlu0 %v660, 32
  %v2203 = vpop.permute.xlu0 %2202
  %2204 = vrot.lane.b32.xlu0 %v662, 32
  %v2205 = vpop.permute.xlu0 %2204
  %2206 = vrot.lane.b32.xlu0 %v665, 32
  %v2207 = vpop.permute.xlu0 %2206
  %2208 = vrot.lane.b32.xlu0 %v667, 32
  %v2209 = vpop.permute.xlu0 %2208
  %2210 = vrot.lane.b32.xlu0 %v670, 32
  %v2211 = vpop.permute.xlu0 %2210
  %2212 = vrot.lane.b32.xlu0 %v672, 32
  %v2213 = vpop.permute.xlu0 %2212
  %2214 = vrot.lane.b32.xlu0 %v675, 32
  %v2215 = vpop.permute.xlu0 %2214
  %2216 = vrot.lane.b32.xlu0 %v677, 32
  %v2217 = vpop.permute.xlu0 %2216
  %2218 = vrot.lane.b32.xlu0 %v680, 32
  %v2219 = vpop.permute.xlu0 %2218
  %2220 = vrot.lane.b32.xlu0 %v682, 32
  %v2221 = vpop.permute.xlu0 %2220
  %2222 = vrot.lane.b32.xlu0 %v685, 32
  %v2223 = vpop.permute.xlu0 %2222
  %2224 = vrot.lane.b32.xlu0 %v687, 32
  %v2225 = vpop.permute.xlu0 %2224
  %2226 = vrot.lane.b32.xlu0 %v690, 32
  %v2227 = vpop.permute.xlu0 %2226
  %2228 = vrot.lane.b32.xlu0 %v692, 32
  %v2229 = vpop.permute.xlu0 %2228
  %2230 = vrot.lane.b32.xlu0 %v695, 32
  %v2231 = vpop.permute.xlu0 %2230
  %2232 = vrot.lane.b32.xlu0 %v697, 32
  %v2233 = vpop.permute.xlu0 %2232
  %2234 = vrot.lane.b32.xlu0 %v700, 32
  %v2235 = vpop.permute.xlu0 %2234
  %2236 = vrot.lane.b32.xlu0 %v702, 32
  %v2237 = vpop.permute.xlu0 %2236
  %2238 = vrot.lane.b32.xlu0 %v705, 32
  %v2239 = vpop.permute.xlu0 %2238
  %2240 = vrot.lane.b32.xlu0 %v707, 32
  %v2241 = vpop.permute.xlu0 %2240
  %2242 = vrot.lane.b32.xlu0 %v710, 32
  %v2243 = vpop.permute.xlu0 %2242
  %2244 = vrot.lane.b32.xlu0 %v712, 32
  %v2245 = vpop.permute.xlu0 %2244
  %2246 = vrot.lane.b32.xlu0 %v715, 32
  %v2247 = vpop.permute.xlu0 %2246
  %2248 = vrot.lane.b32.xlu0 %v717, 32
  %v2249 = vpop.permute.xlu0 %2248
  %2250 = vrot.lane.b32.xlu0 %v816, 32
  %v2251 = vpop.permute.xlu0 %2250
  %2252 = vrot.lane.b32.xlu0 %v818, 32
  %v2253 = vpop.permute.xlu0 %2252
  %2254 = vrot.lane.b32.xlu0 %v842, 32
  %v2255 = vpop.permute.xlu0 %2254
  %2256 = vrot.lane.b32.xlu0 %v844, 32
  %v2257 = vpop.permute.xlu0 %2256
  %2258 = vrot.lane.b32.xlu0 %v730, 32
  %v2259 = vpop.permute.xlu0 %2258
  %2260 = vrot.lane.b32.xlu0 %v732, 32
  %v2261 = vpop.permute.xlu0 %2260
  %2262 = vrot.lane.b32.xlu0 %v735, 32
  %v2263 = vpop.permute.xlu0 %2262
  %2264 = vrot.lane.b32.xlu0 %v737, 32
  %v2265 = vpop.permute.xlu0 %2264
  %2266 = vrot.lane.b32.xlu0 %v740, 32
  %v2267 = vpop.permute.xlu0 %2266
  %2268 = vrot.lane.b32.xlu0 %v742, 32
  %v2269 = vpop.permute.xlu0 %2268
  %2270 = vrot.lane.b32.xlu0 %v745, 32
  %v2271 = vpop.permute.xlu0 %2270
  %2272 = vrot.lane.b32.xlu0 %v747, 32
  %v2273 = vpop.permute.xlu0 %2272
  %2274 = vrot.lane.b32.xlu0 %v750, 32
  %v2275 = vpop.permute.xlu0 %2274
  %2276 = vrot.lane.b32.xlu0 %v752, 32
  %v2277 = vpop.permute.xlu0 %2276
  %2278 = vrot.lane.b32.xlu0 %v755, 32
  %v2279 = vpop.permute.xlu0 %2278
  %2280 = vrot.lane.b32.xlu0 %v757, 32
  %v2281 = vpop.permute.xlu0 %2280
  %2282 = vrot.lane.b32.xlu0 %v760, 32
  %v2283 = vpop.permute.xlu0 %2282
  %2284 = vrot.lane.b32.xlu0 %v762, 32
  %v2285 = vpop.permute.xlu0 %2284
  %2286 = vrot.lane.b32.xlu0 %v765, 32
  %v2287 = vpop.permute.xlu0 %2286
  %2288 = vrot.lane.b32.xlu0 %v767, 32
  %v2289 = vpop.permute.xlu0 %2288
  %2290 = vrot.lane.b32.xlu0 %v770, 32
  %v2291 = vpop.permute.xlu0 %2290
  %2292 = vrot.lane.b32.xlu0 %v772, 32
  %v2293 = vpop.permute.xlu0 %2292
  %2294 = vrot.lane.b32.xlu0 %v775, 32
  %v2295 = vpop.permute.xlu0 %2294
  %2296 = vrot.lane.b32.xlu0 %v777, 32
  %v2297 = vpop.permute.xlu0 %2296
  %2298 = vrot.lane.b32.xlu0 %v780, 32
  %v2299 = vpop.permute.xlu0 %2298
  %2300 = vrot.lane.b32.xlu0 %v782, 32
  %v2301 = vpop.permute.xlu0 %2300
  %2302 = vrot.lane.b32.xlu0 %v785, 32
  %v2303 = vpop.permute.xlu0 %2302
  %2304 = vrot.lane.b32.xlu0 %v787, 32
  %v2305 = vpop.permute.xlu0 %2304
  %2306 = vrot.lane.b32.xlu0 %v790, 32
  %v2307 = vpop.permute.xlu0 %2306
  %2308 = vrot.lane.b32.xlu0 %v792, 32
  %v2309 = vpop.permute.xlu0 %2308
  %2310 = vrot.lane.b32.xlu0 %v795, 32
  %v2311 = vpop.permute.xlu0 %2310
  %2312 = vrot.lane.b32.xlu0 %v797, 32
  %v2313 = vpop.permute.xlu0 %2312
  %2314 = vrot.lane.b32.xlu0 %v821, 32
  %v2315 = vpop.permute.xlu0 %2314
  %2316 = vrot.lane.b32.xlu0 %v823, 32
  %v2317 = vpop.permute.xlu0 %2316
  %2318 = vrot.lane.b32.xlu0 %v847, 32
  %v2319 = vpop.permute.xlu0 %2318
  %2320 = vrot.lane.b32.xlu0 %v849, 32
  %v2321 = vpop.permute.xlu0 %2320
  %v2386 = vsel %vm90, %v272, %v851
  %v2387 = vsel %vm90, %v273, %v853
  %v2388 = vsel %vm90, %v275, %v855
  %v2389 = vsel %vm90, %v276, %v857
  %v2390 = vsel %vm90, %v278, %v859
  %v2391 = vsel %vm90, %v279, %v861
  %v2392 = vsel %vm90, %v281, %v863
  %v2393 = vsel %vm90, %v282, %v865
  %v2394 = vsel %vm90, %v284, %v867
  %v2395 = vsel %vm90, %v285, %v869
  %v2396 = vsel %vm90, %v287, %v871
  %v2397 = vsel %vm90, %v288, %v873
  %v2398 = vsel %vm90, %v290, %v875
  %v2399 = vsel %vm90, %v291, %v877
  %v2400 = vsel %vm90, %v293, %v879
  %v2401 = vsel %vm90, %v294, %v881
  %v2402 = vsel %vm90, %v296, %v883
  %v2403 = vsel %vm90, %v297, %v885
  %v2404 = vsel %vm90, %v299, %v887
  %v2405 = vsel %vm90, %v300, %v889
  %v2406 = vsel %vm90, %v302, %v891
  %v2407 = vsel %vm90, %v303, %v893
  %v2408 = vsel %vm90, %v305, %v895
  %v2409 = vsel %vm90, %v306, %v897
  %v2410 = vsel %vm90, %v308, %v899
  %v2411 = vsel %vm90, %v309, %v901
  %v2412 = vsel %vm90, %v311, %v903
  %v2413 = vsel %vm90, %v312, %v905
  %v2414 = vsel %vm90, %v314, %v907
  %v2415 = vsel %vm90, %v315, %v909
  %v2416 = vsel %vm90, %v317, %v911
  %v2417 = vsel %vm90, %v318, %v913
  %v2418 = vsel %vm90, %v326, %v915
  %v2419 = vsel %vm90, %v327, %v917
  %v2420 = vsel %vm90, %v329, %v919
  %v2421 = vsel %vm90, %v330, %v921
  %v2422 = vsel %vm90, %v332, %v923
  %v2423 = vsel %vm90, %v333, %v925
  %v2424 = vsel %vm90, %v335, %v927
  %v2425 = vsel %vm90, %v336, %v929
  %v2426 = vsel %vm90, %v338, %v931
  %v2427 = vsel %vm90, %v339, %v933
  %v2428 = vsel %vm90, %v341, %v935
  %v2429 = vsel %vm90, %v342, %v937
  %v2430 = vsel %vm90, %v344, %v939
  %v2431 = vsel %vm90, %v345, %v941
  %v2432 = vsel %vm90, %v347, %v943
  %v2433 = vsel %vm90, %v348, %v945
  %v2434 = vsel %vm90, %v350, %v947
  %v2435 = vsel %vm90, %v351, %v949
  %v2436 = vsel %vm90, %v353, %v951
  %v2437 = vsel %vm90, %v354, %v953
  %v2438 = vsel %vm90, %v356, %v955
  %v2439 = vsel %vm90, %v357, %v957
  %v2440 = vsel %vm90, %v359, %v959
  %v2441 = vsel %vm90, %v360, %v961
  %v2442 = vsel %vm90, %v362, %v963
  %v2443 = vsel %vm90, %v363, %v965
  %v2444 = vsel %vm90, %v365, %v967
  %v2445 = vsel %vm90, %v366, %v969
  %v2446 = vsel %vm90, %v368, %v971
  %v2447 = vsel %vm90, %v369, %v973
  %v2448 = vsel %vm90, %v371, %v975
  %v2449 = vsel %vm90, %v372, %v977
  %vm2450 = vcmask 64512
  %v2451 = vsel %vm2450, %v2386, %v1043
  %v2452 = vsel %vm2450, %v2387, %v1045
  %v2453 = vsel %vm2450, %v2388, %v1047
  %v2454 = vsel %vm2450, %v2389, %v1049
  %v2455 = vsel %vm2450, %v2390, %v1051
  %v2456 = vsel %vm2450, %v2391, %v1053
  %v2457 = vsel %vm2450, %v2392, %v1055
  %v2458 = vsel %vm2450, %v2393, %v1057
  %v2459 = vsel %vm2450, %v2394, %v1059
  %v2460 = vsel %vm2450, %v2395, %v1061
  %v2461 = vsel %vm2450, %v2396, %v1063
  %v2462 = vsel %vm2450, %v2397, %v1065
  %v2463 = vsel %vm2450, %v2398, %v1067
  %v2464 = vsel %vm2450, %v2399, %v1069
  %v2465 = vsel %vm2450, %v2400, %v1071
  %v2466 = vsel %vm2450, %v2401, %v1073
  %v2467 = vsel %vm2450, %v2402, %v1075
  %v2468 = vsel %vm2450, %v2403, %v1077
  %v2469 = vsel %vm2450, %v2404, %v1079
  %v2470 = vsel %vm2450, %v2405, %v1081
  %v2471 = vsel %vm2450, %v2406, %v1083
  %v2472 = vsel %vm2450, %v2407, %v1085
  %v2473 = vsel %vm2450, %v2408, %v1087
  %v2474 = vsel %vm2450, %v2409, %v1089
  %v2475 = vsel %vm2450, %v2410, %v1091
  %v2476 = vsel %vm2450, %v2411, %v1093
  %v2477 = vsel %vm2450, %v2412, %v1095
  %v2478 = vsel %vm2450, %v2413, %v1097
  %v2479 = vsel %vm2450, %v2414, %v1099
  %v2480 = vsel %vm2450, %v2415, %v1101
  %v2481 = vsel %vm2450, %v2416, %v1103
  %v2482 = vsel %vm2450, %v2417, %v1105
  %v2483 = vsel %vm2450, %v2418, %v1107
  %v2484 = vsel %vm2450, %v2419, %v1109
  %v2485 = vsel %vm2450, %v2420, %v1111
  %v2486 = vsel %vm2450, %v2421, %v1113
  %v2487 = vsel %vm2450, %v2422, %v1115
  %v2488 = vsel %vm2450, %v2423, %v1117
  %v2489 = vsel %vm2450, %v2424, %v1119
  %v2490 = vsel %vm2450, %v2425, %v1121
  %v2491 = vsel %vm2450, %v2426, %v1123
  %v2492 = vsel %vm2450, %v2427, %v1125
  %v2493 = vsel %vm2450, %v2428, %v1127
  %v2494 = vsel %vm2450, %v2429, %v1129
  %v2495 = vsel %vm2450, %v2430, %v1131
  %v2496 = vsel %vm2450, %v2431, %v1133
  %v2497 = vsel %vm2450, %v2432, %v1135
  %v2498 = vsel %vm2450, %v2433, %v1137
  %v2499 = vsel %vm2450, %v2434, %v1139
  %v2500 = vsel %vm2450, %v2435, %v1141
  %v2501 = vsel %vm2450, %v2436, %v1143
  %v2502 = vsel %vm2450, %v2437, %v1145
  %v2503 = vsel %vm2450, %v2438, %v1147
  %v2504 = vsel %vm2450, %v2439, %v1149
  %v2505 = vsel %vm2450, %v2440, %v1151
  %v2506 = vsel %vm2450, %v2441, %v1153
  %v2507 = vsel %vm2450, %v2442, %v1155
  %v2508 = vsel %vm2450, %v2443, %v1157
  %v2509 = vsel %vm2450, %v2444, %v1159
  %v2510 = vsel %vm2450, %v2445, %v1161
  %v2511 = vsel %vm2450, %v2446, %v1163
  %v2512 = vsel %vm2450, %v2447, %v1165
  %v2513 = vsel %vm2450, %v2448, %v1167
  %v2514 = vsel %vm2450, %v2449, %v1169
  %vm2515 = vcmask 97280
  %v2516 = vsel %vm2515, %v2451, %v1235
  %v2517 = vsel %vm2515, %v2452, %v1237
  %v2518 = vsel %vm2515, %v2453, %v1239
  %v2519 = vsel %vm2515, %v2454, %v1241
  %v2520 = vsel %vm2515, %v2455, %v1243
  %v2521 = vsel %vm2515, %v2456, %v1245
  %v2522 = vsel %vm2515, %v2457, %v1247
  %v2523 = vsel %vm2515, %v2458, %v1249
  %v2524 = vsel %vm2515, %v2459, %v1251
  %v2525 = vsel %vm2515, %v2460, %v1253
  %v2526 = vsel %vm2515, %v2461, %v1255
  %v2527 = vsel %vm2515, %v2462, %v1257
  %v2528 = vsel %vm2515, %v2463, %v1259
  %v2529 = vsel %vm2515, %v2464, %v1261
  %v2530 = vsel %vm2515, %v2465, %v1263
  %v2531 = vsel %vm2515, %v2466, %v1265
  %v2532 = vsel %vm2515, %v2467, %v1267
  %v2533 = vsel %vm2515, %v2468, %v1269
  %v2534 = vsel %vm2515, %v2469, %v1271
  %v2535 = vsel %vm2515, %v2470, %v1273
  %v2536 = vsel %vm2515, %v2471, %v1275
  %v2537 = vsel %vm2515, %v2472, %v1277
  %v2538 = vsel %vm2515, %v2473, %v1279
  %v2539 = vsel %vm2515, %v2474, %v1281
  %v2540 = vsel %vm2515, %v2475, %v1283
  %v2541 = vsel %vm2515, %v2476, %v1285
  %v2542 = vsel %vm2515, %v2477, %v1287
  %v2543 = vsel %vm2515, %v2478, %v1289
  %v2544 = vsel %vm2515, %v2479, %v1291
  %v2545 = vsel %vm2515, %v2480, %v1293
  %v2546 = vsel %vm2515, %v2481, %v1295
  %v2547 = vsel %vm2515, %v2482, %v1297
  %v2548 = vsel %vm2515, %v2483, %v1299
  %v2549 = vsel %vm2515, %v2484, %v1301
  %v2550 = vsel %vm2515, %v2485, %v1303
  %v2551 = vsel %vm2515, %v2486, %v1305
  %v2552 = vsel %vm2515, %v2487, %v1307
  %v2553 = vsel %vm2515, %v2488, %v1309
  %v2554 = vsel %vm2515, %v2489, %v1311
  %v2555 = vsel %vm2515, %v2490, %v1313
  %v2556 = vsel %vm2515, %v2491, %v1315
  %v2557 = vsel %vm2515, %v2492, %v1317
  %v2558 = vsel %vm2515, %v2493, %v1319
  %v2559 = vsel %vm2515, %v2494, %v1321
  %v2560 = vsel %vm2515, %v2495, %v1323
  %v2561 = vsel %vm2515, %v2496, %v1325
  %v2562 = vsel %vm2515, %v2497, %v1327
  %v2563 = vsel %vm2515, %v2498, %v1329
  %v2564 = vsel %vm2515, %v2499, %v1331
  %v2565 = vsel %vm2515, %v2500, %v1333
  %v2566 = vsel %vm2515, %v2501, %v1335
  %v2567 = vsel %vm2515, %v2502, %v1337
  %v2568 = vsel %vm2515, %v2503, %v1339
  %v2569 = vsel %vm2515, %v2504, %v1341
  %v2570 = vsel %vm2515, %v2505, %v1343
  %v2571 = vsel %vm2515, %v2506, %v1345
  %v2572 = vsel %vm2515, %v2507, %v1347
  %v2573 = vsel %vm2515, %v2508, %v1349
  %v2574 = vsel %vm2515, %v2509, %v1351
  %v2575 = vsel %vm2515, %v2510, %v1353
  %v2576 = vsel %vm2515, %v2511, %v1355
  %v2577 = vsel %vm2515, %v2512, %v1357
  %v2578 = vsel %vm2515, %v2513, %v1359
  %v2579 = vsel %vm2515, %v2514, %v1361
  %vm2580 = vcmask 130048
  %v2581 = vsel %vm2580, %v2516, %v1427
  %v2582 = vsel %vm2580, %v2517, %v1429
  %v2583 = vsel %vm2580, %v2518, %v1431
  %v2584 = vsel %vm2580, %v2519, %v1433
  %v2585 = vsel %vm2580, %v2520, %v1435
  %v2586 = vsel %vm2580, %v2521, %v1437
  %v2587 = vsel %vm2580, %v2522, %v1439
  %v2588 = vsel %vm2580, %v2523, %v1441
  %v2589 = vsel %vm2580, %v2524, %v1443
  %v2590 = vsel %vm2580, %v2525, %v1445
  %v2591 = vsel %vm2580, %v2526, %v1447
  %v2592 = vsel %vm2580, %v2527, %v1449
  %v2593 = vsel %vm2580, %v2528, %v1451
  %v2594 = vsel %vm2580, %v2529, %v1453
  %v2595 = vsel %vm2580, %v2530, %v1455
  %v2596 = vsel %vm2580, %v2531, %v1457
  %v2597 = vsel %vm2580, %v2532, %v1459
  %v2598 = vsel %vm2580, %v2533, %v1461
  %v2599 = vsel %vm2580, %v2534, %v1463
  %v2600 = vsel %vm2580, %v2535, %v1465
  %v2601 = vsel %vm2580, %v2536, %v1467
  %v2602 = vsel %vm2580, %v2537, %v1469
  %v2603 = vsel %vm2580, %v2538, %v1471
  %v2604 = vsel %vm2580, %v2539, %v1473
  %v2605 = vsel %vm2580, %v2540, %v1475
  %v2606 = vsel %vm2580, %v2541, %v1477
  %v2607 = vsel %vm2580, %v2542, %v1479
  %v2608 = vsel %vm2580, %v2543, %v1481
  %v2609 = vsel %vm2580, %v2544, %v1483
  %v2610 = vsel %vm2580, %v2545, %v1485
  %v2611 = vsel %vm2580, %v2546, %v1487
  %v2612 = vsel %vm2580, %v2547, %v1489
  %v2613 = vsel %vm2580, %v2548, %v1491
  %v2614 = vsel %vm2580, %v2549, %v1493
  %v2615 = vsel %vm2580, %v2550, %v1495
  %v2616 = vsel %vm2580, %v2551, %v1497
  %v2617 = vsel %vm2580, %v2552, %v1499
  %v2618 = vsel %vm2580, %v2553, %v1501
  %v2619 = vsel %vm2580, %v2554, %v1503
  %v2620 = vsel %vm2580, %v2555, %v1505
  %v2621 = vsel %vm2580, %v2556, %v1507
  %v2622 = vsel %vm2580, %v2557, %v1509
  %v2623 = vsel %vm2580, %v2558, %v1511
  %v2624 = vsel %vm2580, %v2559, %v1513
  %v2625 = vsel %vm2580, %v2560, %v1515
  %v2626 = vsel %vm2580, %v2561, %v1517
  %v2627 = vsel %vm2580, %v2562, %v1519
  %v2628 = vsel %vm2580, %v2563, %v1521
  %v2629 = vsel %vm2580, %v2564, %v1523
  %v2630 = vsel %vm2580, %v2565, %v1525
  %v2631 = vsel %vm2580, %v2566, %v1527
  %v2632 = vsel %vm2580, %v2567, %v1529
  %v2633 = vsel %vm2580, %v2568, %v1531
  %v2634 = vsel %vm2580, %v2569, %v1533
  %v2635 = vsel %vm2580, %v2570, %v1535
  %v2636 = vsel %vm2580, %v2571, %v1537
  %v2637 = vsel %vm2580, %v2572, %v1539
  %v2638 = vsel %vm2580, %v2573, %v1541
  %v2639 = vsel %vm2580, %v2574, %v1543
  %v2640 = vsel %vm2580, %v2575, %v1545
  %v2641 = vsel %vm2580, %v2576, %v1547
  %v2642 = vsel %vm2580, %v2577, %v1549
  %v2643 = vsel %vm2580, %v2578, %v1551
  %v2644 = vsel %vm2580, %v2579, %v1553
  %vm2645 = vcmask 162816
  %v2646 = vsel %vm2645, %v2581, %v1619
  %v2647 = vsel %vm2645, %v2582, %v1621
  %v2648 = vsel %vm2645, %v2583, %v1623
  %v2649 = vsel %vm2645, %v2584, %v1625
  %v2650 = vsel %vm2645, %v2585, %v1627
  %v2651 = vsel %vm2645, %v2586, %v1629
  %v2652 = vsel %vm2645, %v2587, %v1631
  %v2653 = vsel %vm2645, %v2588, %v1633
  %v2654 = vsel %vm2645, %v2589, %v1635
  %v2655 = vsel %vm2645, %v2590, %v1637
  %v2656 = vsel %vm2645, %v2591, %v1639
  %v2657 = vsel %vm2645, %v2592, %v1641
  %v2658 = vsel %vm2645, %v2593, %v1643
  %v2659 = vsel %vm2645, %v2594, %v1645
  %v2660 = vsel %vm2645, %v2595, %v1647
  %v2661 = vsel %vm2645, %v2596, %v1649
  %v2662 = vsel %vm2645, %v2597, %v1651
  %v2663 = vsel %vm2645, %v2598, %v1653
  %v2664 = vsel %vm2645, %v2599, %v1655
  %v2665 = vsel %vm2645, %v2600, %v1657
  %v2666 = vsel %vm2645, %v2601, %v1659
  %v2667 = vsel %vm2645, %v2602, %v1661
  %v2668 = vsel %vm2645, %v2603, %v1663
  %v2669 = vsel %vm2645, %v2604, %v1665
  %v2670 = vsel %vm2645, %v2605, %v1667
  %v2671 = vsel %vm2645, %v2606, %v1669
  %v2672 = vsel %vm2645, %v2607, %v1671
  %v2673 = vsel %vm2645, %v2608, %v1673
  %v2674 = vsel %vm2645, %v2609, %v1675
  %v2675 = vsel %vm2645, %v2610, %v1677
  %v2676 = vsel %vm2645, %v2611, %v1679
  %v2677 = vsel %vm2645, %v2612, %v1681
  %v2678 = vsel %vm2645, %v2613, %v1683
  %v2679 = vsel %vm2645, %v2614, %v1685
  %v2680 = vsel %vm2645, %v2615, %v1687
  %v2681 = vsel %vm2645, %v2616, %v1689
  %v2682 = vsel %vm2645, %v2617, %v1691
  %v2683 = vsel %vm2645, %v2618, %v1693
  %v2684 = vsel %vm2645, %v2619, %v1695
  %v2685 = vsel %vm2645, %v2620, %v1697
  %v2686 = vsel %vm2645, %v2621, %v1699
  %v2687 = vsel %vm2645, %v2622, %v1701
  %v2688 = vsel %vm2645, %v2623, %v1703
  %v2689 = vsel %vm2645, %v2624, %v1705
  %v2690 = vsel %vm2645, %v2625, %v1707
  %v2691 = vsel %vm2645, %v2626, %v1709
  %v2692 = vsel %vm2645, %v2627, %v1711
  %v2693 = vsel %vm2645, %v2628, %v1713
  %v2694 = vsel %vm2645, %v2629, %v1715
  %v2695 = vsel %vm2645, %v2630, %v1717
  %v2696 = vsel %vm2645, %v2631, %v1719
  %v2697 = vsel %vm2645, %v2632, %v1721
  %v2698 = vsel %vm2645, %v2633, %v1723
  %v2699 = vsel %vm2645, %v2634, %v1725
  %v2700 = vsel %vm2645, %v2635, %v1727
  %v2701 = vsel %vm2645, %v2636, %v1729
  %v2702 = vsel %vm2645, %v2637, %v1731
  %v2703 = vsel %vm2645, %v2638, %v1733
  %v2704 = vsel %vm2645, %v2639, %v1735
  %v2705 = vsel %vm2645, %v2640, %v1737
  %v2706 = vsel %vm2645, %v2641, %v1739
  %v2707 = vsel %vm2645, %v2642, %v1741
  %v2708 = vsel %vm2645, %v2643, %v1743
  %v2709 = vsel %vm2645, %v2644, %v1745
  %vm2710 = vcmask 195584
  %v2711 = vsel %vm2710, %v2646, %v1811
  %v2712 = vsel %vm2710, %v2647, %v1813
  %v2713 = vsel %vm2710, %v2648, %v1815
  %v2714 = vsel %vm2710, %v2649, %v1817
  %v2715 = vsel %vm2710, %v2650, %v1819
  %v2716 = vsel %vm2710, %v2651, %v1821
  %v2717 = vsel %vm2710, %v2652, %v1823
  %v2718 = vsel %vm2710, %v2653, %v1825
  %v2719 = vsel %vm2710, %v2654, %v1827
  %v2720 = vsel %vm2710, %v2655, %v1829
  %v2721 = vsel %vm2710, %v2656, %v1831
  %v2722 = vsel %vm2710, %v2657, %v1833
  %v2723 = vsel %vm2710, %v2658, %v1835
  %v2724 = vsel %vm2710, %v2659, %v1837
  %v2725 = vsel %vm2710, %v2660, %v1839
  %v2726 = vsel %vm2710, %v2661, %v1841
  %v2727 = vsel %vm2710, %v2662, %v1843
  %v2728 = vsel %vm2710, %v2663, %v1845
  %v2729 = vsel %vm2710, %v2664, %v1847
  %v2730 = vsel %vm2710, %v2665, %v1849
  %v2731 = vsel %vm2710, %v2666, %v1851
  %v2732 = vsel %vm2710, %v2667, %v1853
  %v2733 = vsel %vm2710, %v2668, %v1855
  %v2734 = vsel %vm2710, %v2669, %v1857
  %v2735 = vsel %vm2710, %v2670, %v1859
  %v2736 = vsel %vm2710, %v2671, %v1861
  %v2737 = vsel %vm2710, %v2672, %v1863
  %v2738 = vsel %vm2710, %v2673, %v1865
  %v2739 = vsel %vm2710, %v2674, %v1867
  %v2740 = vsel %vm2710, %v2675, %v1869
  %v2741 = vsel %vm2710, %v2676, %v1871
  %v2742 = vsel %vm2710, %v2677, %v1873
  %v2743 = vsel %vm2710, %v2678, %v1875
  %v2744 = vsel %vm2710, %v2679, %v1877
  %v2745 = vsel %vm2710, %v2680, %v1879
  %v2746 = vsel %vm2710, %v2681, %v1881
  %v2747 = vsel %vm2710, %v2682, %v1883
  %v2748 = vsel %vm2710, %v2683, %v1885
  %v2749 = vsel %vm2710, %v2684, %v1887
  %v2750 = vsel %vm2710, %v2685, %v1889
  %v2751 = vsel %vm2710, %v2686, %v1891
  %v2752 = vsel %vm2710, %v2687, %v1893
  %v2753 = vsel %vm2710, %v2688, %v1895
  %v2754 = vsel %vm2710, %v2689, %v1897
  %v2755 = vsel %vm2710, %v2690, %v1899
  %v2756 = vsel %vm2710, %v2691, %v1901
  %v2757 = vsel %vm2710, %v2692, %v1903
  %v2758 = vsel %vm2710, %v2693, %v1905
  %v2759 = vsel %vm2710, %v2694, %v1907
  %v2760 = vsel %vm2710, %v2695, %v1909
  %v2761 = vsel %vm2710, %v2696, %v1911
  %v2762 = vsel %vm2710, %v2697, %v1913
  %v2763 = vsel %vm2710, %v2698, %v1915
  %v2764 = vsel %vm2710, %v2699, %v1917
  %v2765 = vsel %vm2710, %v2700, %v1919
  %v2766 = vsel %vm2710, %v2701, %v1921
  %v2767 = vsel %vm2710, %v2702, %v1923
  %v2768 = vsel %vm2710, %v2703, %v1925
  %v2769 = vsel %vm2710, %v2704, %v1927
  %v2770 = vsel %vm2710, %v2705, %v1929
  %v2771 = vsel %vm2710, %v2706, %v1931
  %v2772 = vsel %vm2710, %v2707, %v1933
  %v2773 = vsel %vm2710, %v2708, %v1935
  %v2774 = vsel %vm2710, %v2709, %v1937
  %vm2775 = vcmask 228352
  %v2776 = vsel %vm2775, %v2711, %v2003
  %v2777 = vsel %vm2775, %v2712, %v2005
  %v2778 = vsel %vm2775, %v2713, %v2007
  %v2779 = vsel %vm2775, %v2714, %v2009
  %v2780 = vsel %vm2775, %v2715, %v2011
  %v2781 = vsel %vm2775, %v2716, %v2013
  %v2782 = vsel %vm2775, %v2717, %v2015
  %v2783 = vsel %vm2775, %v2718, %v2017
  %v2784 = vsel %vm2775, %v2719, %v2019
  %v2785 = vsel %vm2775, %v2720, %v2021
  %v2786 = vsel %vm2775, %v2721, %v2023
  %v2787 = vsel %vm2775, %v2722, %v2025
  %v2788 = vsel %vm2775, %v2723, %v2027
  %v2789 = vsel %vm2775, %v2724, %v2029
  %v2790 = vsel %vm2775, %v2725, %v2031
  %v2791 = vsel %vm2775, %v2726, %v2033
  %v2792 = vsel %vm2775, %v2727, %v2035
  %v2793 = vsel %vm2775, %v2728, %v2037
  %v2794 = vsel %vm2775, %v2729, %v2039
  %v2795 = vsel %vm2775, %v2730, %v2041
  %v2796 = vsel %vm2775, %v2731, %v2043
  %v2797 = vsel %vm2775, %v2732, %v2045
  %v2798 = vsel %vm2775, %v2733, %v2047
  %v2799 = vsel %vm2775, %v2734, %v2049
  %v2800 = vsel %vm2775, %v2735, %v2051
  %v2801 = vsel %vm2775, %v2736, %v2053
  %v2802 = vsel %vm2775, %v2737, %v2055
  %v2803 = vsel %vm2775, %v2738, %v2057
  %v2804 = vsel %vm2775, %v2739, %v2059
  %v2805 = vsel %vm2775, %v2740, %v2061
  %v2806 = vsel %vm2775, %v2741, %v2063
  %v2807 = vsel %vm2775, %v2742, %v2065
  %v2808 = vsel %vm2775, %v2743, %v2067
  %v2809 = vsel %vm2775, %v2744, %v2069
  %v2810 = vsel %vm2775, %v2745, %v2071
  %v2811 = vsel %vm2775, %v2746, %v2073
  %v2812 = vsel %vm2775, %v2747, %v2075
  %v2813 = vsel %vm2775, %v2748, %v2077
  %v2814 = vsel %vm2775, %v2749, %v2079
  %v2815 = vsel %vm2775, %v2750, %v2081
  %v2816 = vsel %vm2775, %v2751, %v2083
  %v2817 = vsel %vm2775, %v2752, %v2085
  %v2818 = vsel %vm2775, %v2753, %v2087
  %v2819 = vsel %vm2775, %v2754, %v2089
  %v2820 = vsel %vm2775, %v2755, %v2091
  %v2821 = vsel %vm2775, %v2756, %v2093
  %v2822 = vsel %vm2775, %v2757, %v2095
  %v2823 = vsel %vm2775, %v2758, %v2097
  %v2824 = vsel %vm2775, %v2759, %v2099
  %v2825 = vsel %vm2775, %v2760, %v2101
  %v2826 = vsel %vm2775, %v2761, %v2103
  %v2827 = vsel %vm2775, %v2762, %v2105
  %v2828 = vsel %vm2775, %v2763, %v2107
  %v2829 = vsel %vm2775, %v2764, %v2109
  %v2830 = vsel %vm2775, %v2765, %v2111
  %v2831 = vsel %vm2775, %v2766, %v2113
  %v2832 = vsel %vm2775, %v2767, %v2115
  %v2833 = vsel %vm2775, %v2768, %v2117
  %v2834 = vsel %vm2775, %v2769, %v2119
  %v2835 = vsel %vm2775, %v2770, %v2121
  %v2836 = vsel %vm2775, %v2771, %v2123
  %v2837 = vsel %vm2775, %v2772, %v2125
  %v2838 = vsel %vm2775, %v2773, %v2127
  %v2839 = vsel %vm2775, %v2774, %v2129
  %vm2840 = vcmask 261120
  %v2841 = vsel %vm2840, %v2776, %v2195
  %v2842 = vsel %vm2840, %v2777, %v2197
  %v2843 = vsel %vm2840, %v2778, %v2199
  %v2844 = vsel %vm2840, %v2779, %v2201
  %v2845 = vsel %vm2840, %v2780, %v2203
  %v2846 = vsel %vm2840, %v2781, %v2205
  %v2847 = vsel %vm2840, %v2782, %v2207
  %v2848 = vsel %vm2840, %v2783, %v2209
  %v2849 = vsel %vm2840, %v2784, %v2211
  %v2850 = vsel %vm2840, %v2785, %v2213
  %v2851 = vsel %vm2840, %v2786, %v2215
  %v2852 = vsel %vm2840, %v2787, %v2217
  %v2853 = vsel %vm2840, %v2788, %v2219
  %v2854 = vsel %vm2840, %v2789, %v2221
  %v2855 = vsel %vm2840, %v2790, %v2223
  %v2856 = vsel %vm2840, %v2791, %v2225
  %v2857 = vsel %vm2840, %v2792, %v2227
  %v2858 = vsel %vm2840, %v2793, %v2229
  %v2859 = vsel %vm2840, %v2794, %v2231
  %v2860 = vsel %vm2840, %v2795, %v2233
  %v2861 = vsel %vm2840, %v2796, %v2235
  %v2862 = vsel %vm2840, %v2797, %v2237
  %v2863 = vsel %vm2840, %v2798, %v2239
  %v2864 = vsel %vm2840, %v2799, %v2241
  %v2865 = vsel %vm2840, %v2800, %v2243
  %v2866 = vsel %vm2840, %v2801, %v2245
  %v2867 = vsel %vm2840, %v2802, %v2247
  %v2868 = vsel %vm2840, %v2803, %v2249
  %v2869 = vsel %vm2840, %v2804, %v2251
  %v2870 = vsel %vm2840, %v2805, %v2253
  %v2871 = vsel %vm2840, %v2806, %v2255
  %v2872 = vsel %vm2840, %v2807, %v2257
  %v2873 = vsel %vm2840, %v2808, %v2259
  %v2874 = vsel %vm2840, %v2809, %v2261
  %v2875 = vsel %vm2840, %v2810, %v2263
  %v2876 = vsel %vm2840, %v2811, %v2265
  %v2877 = vsel %vm2840, %v2812, %v2267
  %v2878 = vsel %vm2840, %v2813, %v2269
  %v2879 = vsel %vm2840, %v2814, %v2271
  %v2880 = vsel %vm2840, %v2815, %v2273
  %v2881 = vsel %vm2840, %v2816, %v2275
  %v2882 = vsel %vm2840, %v2817, %v2277
  %v2883 = vsel %vm2840, %v2818, %v2279
  %v2884 = vsel %vm2840, %v2819, %v2281
  %v2885 = vsel %vm2840, %v2820, %v2283
  %v2886 = vsel %vm2840, %v2821, %v2285
  %v2887 = vsel %vm2840, %v2822, %v2287
  %v2888 = vsel %vm2840, %v2823, %v2289
  %v2889 = vsel %vm2840, %v2824, %v2291
  %v2890 = vsel %vm2840, %v2825, %v2293
  %v2891 = vsel %vm2840, %v2826, %v2295
  %v2892 = vsel %vm2840, %v2827, %v2297
  %v2893 = vsel %vm2840, %v2828, %v2299
  %v2894 = vsel %vm2840, %v2829, %v2301
  %v2895 = vsel %vm2840, %v2830, %v2303
  %v2896 = vsel %vm2840, %v2831, %v2305
  %v2897 = vsel %vm2840, %v2832, %v2307
  %v2898 = vsel %vm2840, %v2833, %v2309
  %v2899 = vsel %vm2840, %v2834, %v2311
  %v2900 = vsel %vm2840, %v2835, %v2313
  %v2901 = vsel %vm2840, %v2836, %v2315
  %v2902 = vsel %vm2840, %v2837, %v2317
  %v2903 = vsel %vm2840, %v2838, %v2319
  %v2904 = vsel %vm2840, %v2839, %v2321
  %vm2905 = vcmask 293888
  %v2907 = vsel %vm2905, %v2841, 0
  %v2910 = vsel %vm2905, %v2842, 0
  %v2913 = vsel %vm2905, %v2843, 0
  %v2916 = vsel %vm2905, %v2844, 0
  %v2919 = vsel %vm2905, %v2845, 0
  %v2922 = vsel %vm2905, %v2846, 0
  %v2925 = vsel %vm2905, %v2847, 0
  %v2928 = vsel %vm2905, %v2848, 0
  %v2931 = vsel %vm2905, %v2849, 0
  %v2934 = vsel %vm2905, %v2850, 0
  %v2937 = vsel %vm2905, %v2851, 0
  %v2940 = vsel %vm2905, %v2852, 0
  %v2943 = vsel %vm2905, %v2853, 0
  %v2946 = vsel %vm2905, %v2854, 0
  %v2949 = vsel %vm2905, %v2855, 0
  %v2952 = vsel %vm2905, %v2856, 0
  %v2955 = vsel %vm2905, %v2857, 0
  %v2958 = vsel %vm2905, %v2858, 0
  %v2961 = vsel %vm2905, %v2859, 0
  %v2964 = vsel %vm2905, %v2860, 0
  %v2967 = vsel %vm2905, %v2861, 0
  %v2970 = vsel %vm2905, %v2862, 0
  %v2973 = vsel %vm2905, %v2863, 0
  %v2976 = vsel %vm2905, %v2864, 0
  %v2979 = vsel %vm2905, %v2865, 0
  %v2982 = vsel %vm2905, %v2866, 0
  %v2985 = vsel %vm2905, %v2867, 0
  %v2988 = vsel %vm2905, %v2868, 0
  %v2991 = vsel %vm2905, %v2869, 0
  %v2994 = vsel %vm2905, %v2870, 0
  %v2997 = vsel %vm2905, %v2871, 0
  %v3000 = vsel %vm2905, %v2872, 0
  %v3003 = vsel %vm2905, %v2873, 0
  %v3006 = vsel %vm2905, %v2874, 0
  %v3009 = vsel %vm2905, %v2875, 0
  %v3012 = vsel %vm2905, %v2876, 0
  %v3015 = vsel %vm2905, %v2877, 0
  %v3018 = vsel %vm2905, %v2878, 0
  %v3021 = vsel %vm2905, %v2879, 0
  %v3024 = vsel %vm2905, %v2880, 0
  %v3027 = vsel %vm2905, %v2881, 0
  %v3030 = vsel %vm2905, %v2882, 0
  %v3033 = vsel %vm2905, %v2883, 0
  %v3036 = vsel %vm2905, %v2884, 0
  %v3039 = vsel %vm2905, %v2885, 0
  %v3042 = vsel %vm2905, %v2886, 0
  %v3045 = vsel %vm2905, %v2887, 0
  %v3048 = vsel %vm2905, %v2888, 0
  %v3051 = vsel %vm2905, %v2889, 0
  %v3054 = vsel %vm2905, %v2890, 0
  %v3057 = vsel %vm2905, %v2891, 0
  %v3060 = vsel %vm2905, %v2892, 0
  %v3063 = vsel %vm2905, %v2893, 0
  %v3066 = vsel %vm2905, %v2894, 0
  %v3069 = vsel %vm2905, %v2895, 0
  %v3072 = vsel %vm2905, %v2896, 0
  %v3075 = vsel %vm2905, %v2897, 0
  %v3078 = vsel %vm2905, %v2898, 0
  %v3081 = vsel %vm2905, %v2899, 0
  %v3084 = vsel %vm2905, %v2900, 0
  %v3087 = vsel %vm2905, %v2901, 0
  %v3090 = vsel %vm2905, %v2902, 0
  %v3093 = vsel %vm2905, %v2903, 0
  %v3096 = vsel %vm2905, %v2904, 0
  %vm3098 = vcmask 1043456
  %v3100 = vsel %vm3098, %v269, 0
  %3102 = vmatprep.subr.mxu0 0.0
  %3103 = vmatpush1.msra.mxu0 0.0
  %3104 = vmatprep.subr.mxu0 0.0
  %3105 = vmatpush1.msra.mxu0 0.0
  %3106 = vmatprep.subr.mxu0 0.0
  %3107 = vmatpush1.msra.mxu0 0.0
  %3108 = vmatprep.subr.mxu0 0.0
  %3109 = vmatpush1.msra.mxu0 0.0
  %3110 = vmatprep.subr.mxu0 0.0
  %3111 = vmatpush1.msra.mxu0 0.0
  %3112 = vmatprep.subr.mxu0 0.0
  %3113 = vmatpush1.msra.mxu0 0.0
  %3114 = vmatprep.subr.mxu0 0.0
  %3115 = vmatpush1.msra.mxu0 0.0
  %3116 = vmatprep.subr.mxu0 0.0
  %3117 = vmatpush1.msra.mxu0 0.0
  %3118 = vmatprep.subr.mxu0 0.0
  %3119 = vmatpush1.msra.mxu0 0.0
  %3120 = vmatprep.subr.mxu0 0.0
  %3121 = vmatpush1.msra.mxu0 0.0
  %3122 = vmatprep.subr.mxu0 0.0
  %3123 = vmatpush1.msra.mxu0 0.0
  %3124 = vmatprep.subr.mxu0 0.0
  %3125 = vmatpush1.msra.mxu0 %v3100
  %3126 = vmatprep.subr.mxu0 0.0
  %3127 = vmatpush1.msra.mxu0 %v268
  %3128 = vmatprep.subr.mxu0 0.0
  %3129 = vmatpush1.msra.mxu0 %v267
  %3130 = vmatprep.subr.mxu0 0.0
  %3131 = vmatpush1.msra.mxu0 %v266
  %3132 = vmatprep.subr.mxu0 0.0
  %3133 = vmatpush1.msra.mxu0 %v265
  %3134 = vmatprep.subr.mxu0 0.0
  %3135 = vmatpush2.msra.mxu0 0.0
  %3136 = vmatprep.subr.mxu0 0.0
  %3137 = vmatpush2.msra.mxu0 0.0
  %3138 = vmatprep.subr.mxu0 0.0
  %3139 = vmatpush2.msra.mxu0 0.0
  %3140 = vmatprep.subr.mxu0 0.0
  %3141 = vmatpush2.msra.mxu0 0.0
  %3142 = vmatprep.subr.mxu0 0.0
  %3143 = vmatpush2.msra.mxu0 0.0
  %3144 = vmatprep.subr.mxu0 0.0
  %3145 = vmatpush2.msra.mxu0 0.0
  %3146 = vmatprep.subr.mxu0 0.0
  %3147 = vmatpush2.msra.mxu0 0.0
  %3148 = vmatprep.subr.mxu0 0.0
  %3149 = vmatpush2.msra.mxu0 0.0
  %3150 = vmatprep.subr.mxu0 0.0
  %3151 = vmatpush2.msra.mxu0 0.0
  %3152 = vmatprep.subr.mxu0 0.0
  %3153 = vmatpush2.msra.mxu0 0.0
  %3154 = vmatprep.subr.mxu0 0.0
  %3155 = vmatpush2.msra.mxu0 0.0
  %3156 = vmatprep.subr.mxu0 0.0
  %3157 = vmatpush2.msra.mxu0 0.0
  %3158 = vmatprep.subr.mxu0 0.0
  %3159 = vmatpush2.msra.mxu0 0.0
  %3160 = vmatprep.subr.mxu0 0.0
  %3161 = vmatpush2.msra.mxu0 0.0
  %3162 = vmatprep.subr.mxu0 0.0
  %3163 = vmatpush2.msra.mxu0 0.0
  %3164 = vmatprep.subr.mxu0 0.0
  %3165 = vmatpush2.msra.mxu0 0.0
  %3166 = vmatprep.mubr.f32.mxu0 0.0
  %3167 = vmatmul.mubr.f32.gmra.mxu0 %v2907
  %v3168 = vpop.f32.mrf.mxu0
  %v3169 = vadd.f32 0.0, %v3168
  %v3170 = vpop.f32.mrf.mxu0
  %3171 = vmatprep.mubr.f32.mxu0 0.0
  %3172 = vmatmul.mubr.f32.gmra.mxu0 %v2910
  %v3173 = vpop.f32.mrf.mxu0
  %v3174 = vadd.f32 0.0, %v3173
  %v3175 = vpop.f32.mrf.mxu0
  %3176 = vmatprep.mubr.f32.mxu0 0.0
  %3177 = vmatmul.mubr.f32.gmra.mxu0 %v2913
  %v3178 = vpop.f32.mrf.mxu0
  %v3179 = vadd.f32 0.0, %v3178
  %v3180 = vpop.f32.mrf.mxu0
  %3181 = vmatprep.mubr.f32.mxu0 0.0
  %3182 = vmatmul.mubr.f32.gmra.mxu0 %v2916
  %v3183 = vpop.f32.mrf.mxu0
  %v3184 = vadd.f32 0.0, %v3183
  %v3185 = vpop.f32.mrf.mxu0
  %3186 = vmatprep.mubr.f32.mxu0 0.0
  %3187 = vmatmul.mubr.f32.gmra.mxu0 %v2919
  %v3188 = vpop.f32.mrf.mxu0
  %v3189 = vadd.f32 0.0, %v3188
  %v3190 = vpop.f32.mrf.mxu0
  %3191 = vmatprep.mubr.f32.mxu0 0.0
  %3192 = vmatmul.mubr.f32.gmra.mxu0 %v2922
  %v3193 = vpop.f32.mrf.mxu0
  %v3194 = vadd.f32 0.0, %v3193
  %v3195 = vpop.f32.mrf.mxu0
  %3196 = vmatprep.mubr.f32.mxu0 0.0
  %3197 = vmatmul.mubr.f32.gmra.mxu0 %v2925
  %v3198 = vpop.f32.mrf.mxu0
  %v3199 = vadd.f32 0.0, %v3198
  %v3200 = vpop.f32.mrf.mxu0
  %3201 = vmatprep.mubr.f32.mxu0 0.0
  %3202 = vmatmul.mubr.f32.gmra.mxu0 %v2928
  %v3203 = vpop.f32.mrf.mxu0
  %v3204 = vadd.f32 0.0, %v3203
  %v3205 = vpop.f32.mrf.mxu0
  %3206 = vmatprep.mubr.f32.mxu0 0.0
  %3207 = vmatmul.mubr.f32.gmra.mxu0 %v2931
  %v3208 = vpop.f32.mrf.mxu0
  %v3209 = vadd.f32 0.0, %v3208
  %v3210 = vpop.f32.mrf.mxu0
  %3211 = vmatprep.mubr.f32.mxu0 0.0
  %3212 = vmatmul.mubr.f32.gmra.mxu0 %v2934
  %v3213 = vpop.f32.mrf.mxu0
  %v3214 = vadd.f32 0.0, %v3213
  %v3215 = vpop.f32.mrf.mxu0
  %3216 = vmatprep.mubr.f32.mxu0 0.0
  %3217 = vmatmul.mubr.f32.gmra.mxu0 %v2937
  %v3218 = vpop.f32.mrf.mxu0
  %v3219 = vadd.f32 0.0, %v3218
  %v3220 = vpop.f32.mrf.mxu0
  %3221 = vmatprep.mubr.f32.mxu0 0.0
  %3222 = vmatmul.mubr.f32.gmra.mxu0 %v2940
  %v3223 = vpop.f32.mrf.mxu0
  %v3224 = vadd.f32 0.0, %v3223
  %v3225 = vpop.f32.mrf.mxu0
  %3226 = vmatprep.mubr.f32.mxu0 0.0
  %3227 = vmatmul.mubr.f32.gmra.mxu0 %v2943
  %v3228 = vpop.f32.mrf.mxu0
  %v3229 = vadd.f32 0.0, %v3228
  %v3230 = vpop.f32.mrf.mxu0
  %3231 = vmatprep.mubr.f32.mxu0 0.0
  %3232 = vmatmul.mubr.f32.gmra.mxu0 %v2946
  %v3233 = vpop.f32.mrf.mxu0
  %v3234 = vadd.f32 0.0, %v3233
  %v3235 = vpop.f32.mrf.mxu0
  %3236 = vmatprep.mubr.f32.mxu0 0.0
  %3237 = vmatmul.mubr.f32.gmra.mxu0 %v2949
  %v3238 = vpop.f32.mrf.mxu0
  %v3239 = vadd.f32 0.0, %v3238
  %v3240 = vpop.f32.mrf.mxu0
  %3241 = vmatprep.mubr.f32.mxu0 0.0
  %3242 = vmatmul.mubr.f32.gmra.mxu0 %v2952
  %v3243 = vpop.f32.mrf.mxu0
  %v3244 = vadd.f32 0.0, %v3243
  %v3245 = vpop.f32.mrf.mxu0
  %3246 = vmatprep.mubr.f32.mxu0 0.0
  %3247 = vmatmul.mubr.f32.gmra.mxu0 %v2955
  %v3248 = vpop.f32.mrf.mxu0
  %v3249 = vadd.f32 0.0, %v3248
  %v3250 = vpop.f32.mrf.mxu0
  %3251 = vmatprep.mubr.f32.mxu0 0.0
  %3252 = vmatmul.mubr.f32.gmra.mxu0 %v2958
  %v3253 = vpop.f32.mrf.mxu0
  %v3254 = vadd.f32 0.0, %v3253
  %v3255 = vpop.f32.mrf.mxu0
  %3256 = vmatprep.mubr.f32.mxu0 0.0
  %3257 = vmatmul.mubr.f32.gmra.mxu0 %v2961
  %v3258 = vpop.f32.mrf.mxu0
  %v3259 = vadd.f32 0.0, %v3258
  %v3260 = vpop.f32.mrf.mxu0
  %3261 = vmatprep.mubr.f32.mxu0 0.0
  %3262 = vmatmul.mubr.f32.gmra.mxu0 %v2964
  %v3263 = vpop.f32.mrf.mxu0
  %v3264 = vadd.f32 0.0, %v3263
  %v3265 = vpop.f32.mrf.mxu0
  %3266 = vmatprep.mubr.f32.mxu0 0.0
  %3267 = vmatmul.mubr.f32.gmra.mxu0 %v2967
  %v3268 = vpop.f32.mrf.mxu0
  %v3269 = vadd.f32 0.0, %v3268
  %v3270 = vpop.f32.mrf.mxu0
  %3271 = vmatprep.mubr.f32.mxu0 0.0
  %3272 = vmatmul.mubr.f32.gmra.mxu0 %v2970
  %v3273 = vpop.f32.mrf.mxu0
  %v3274 = vadd.f32 0.0, %v3273
  %v3275 = vpop.f32.mrf.mxu0
  %3276 = vmatprep.mubr.f32.mxu0 0.0
  %3277 = vmatmul.mubr.f32.gmra.mxu0 %v2973
  %v3278 = vpop.f32.mrf.mxu0
  %v3279 = vadd.f32 0.0, %v3278
  %v3280 = vpop.f32.mrf.mxu0
  %3281 = vmatprep.mubr.f32.mxu0 0.0
  %3282 = vmatmul.mubr.f32.gmra.mxu0 %v2976
  %v3283 = vpop.f32.mrf.mxu0
  %v3284 = vadd.f32 0.0, %v3283
  %v3285 = vpop.f32.mrf.mxu0
  %3286 = vmatprep.mubr.f32.mxu0 0.0
  %3287 = vmatmul.mubr.f32.gmra.mxu0 %v2979
  %v3288 = vpop.f32.mrf.mxu0
  %v3289 = vadd.f32 0.0, %v3288
  %v3290 = vpop.f32.mrf.mxu0
  %3291 = vmatprep.mubr.f32.mxu0 0.0
  %3292 = vmatmul.mubr.f32.gmra.mxu0 %v2982
  %v3293 = vpop.f32.mrf.mxu0
  %v3294 = vadd.f32 0.0, %v3293
  %v3295 = vpop.f32.mrf.mxu0
  %3296 = vmatprep.mubr.f32.mxu0 0.0
  %3297 = vmatmul.mubr.f32.gmra.mxu0 %v2985
  %v3298 = vpop.f32.mrf.mxu0
  %v3299 = vadd.f32 0.0, %v3298
  %v3300 = vpop.f32.mrf.mxu0
  %3301 = vmatprep.mubr.f32.mxu0 0.0
  %3302 = vmatmul.mubr.f32.gmra.mxu0 %v2988
  %v3303 = vpop.f32.mrf.mxu0
  %v3304 = vadd.f32 0.0, %v3303
  %v3305 = vpop.f32.mrf.mxu0
  %3306 = vmatprep.mubr.f32.mxu0 0.0
  %3307 = vmatmul.mubr.f32.gmra.mxu0 %v2991
  %v3308 = vpop.f32.mrf.mxu0
  %v3309 = vadd.f32 0.0, %v3308
  %v3310 = vpop.f32.mrf.mxu0
  %3311 = vmatprep.mubr.f32.mxu0 0.0
  %3312 = vmatmul.mubr.f32.gmra.mxu0 %v2994
  %v3313 = vpop.f32.mrf.mxu0
  %v3314 = vadd.f32 0.0, %v3313
  %v3315 = vpop.f32.mrf.mxu0
  %3316 = vmatprep.mubr.f32.mxu0 0.0
  %3317 = vmatmul.mubr.f32.gmra.mxu0 %v2997
  %v3318 = vpop.f32.mrf.mxu0
  %v3319 = vadd.f32 0.0, %v3318
  %v3320 = vpop.f32.mrf.mxu0
  %3321 = vmatprep.mubr.f32.mxu0 0.0
  %3322 = vmatmul.mubr.f32.gmra.mxu0 %v3000
  %v3323 = vpop.f32.mrf.mxu0
  %v3324 = vadd.f32 0.0, %v3323
  %v3325 = vpop.f32.mrf.mxu0
  %3326 = vmatprep.mubr.f32.mxu0 0.0
  %3327 = vmatmul.mubr.f32.gmra.mxu0 %v3003
  %v3328 = vpop.f32.mrf.mxu0
  %v3329 = vadd.f32 0.0, %v3328
  %v3330 = vpop.f32.mrf.mxu0
  %3331 = vmatprep.mubr.f32.mxu0 0.0
  %3332 = vmatmul.mubr.f32.gmra.mxu0 %v3006
  %v3333 = vpop.f32.mrf.mxu0
  %v3334 = vadd.f32 0.0, %v3333
  %v3335 = vpop.f32.mrf.mxu0
  %3336 = vmatprep.mubr.f32.mxu0 0.0
  %3337 = vmatmul.mubr.f32.gmra.mxu0 %v3009
  %v3338 = vpop.f32.mrf.mxu0
  %v3339 = vadd.f32 0.0, %v3338
  %v3340 = vpop.f32.mrf.mxu0
  %3341 = vmatprep.mubr.f32.mxu0 0.0
  %3342 = vmatmul.mubr.f32.gmra.mxu0 %v3012
  %v3343 = vpop.f32.mrf.mxu0
  %v3344 = vadd.f32 0.0, %v3343
  %v3345 = vpop.f32.mrf.mxu0
  %3346 = vmatprep.mubr.f32.mxu0 0.0
  %3347 = vmatmul.mubr.f32.gmra.mxu0 %v3015
  %v3348 = vpop.f32.mrf.mxu0
  %v3349 = vadd.f32 0.0, %v3348
  %v3350 = vpop.f32.mrf.mxu0
  %3351 = vmatprep.mubr.f32.mxu0 0.0
  %3352 = vmatmul.mubr.f32.gmra.mxu0 %v3018
  %v3353 = vpop.f32.mrf.mxu0
  %v3354 = vadd.f32 0.0, %v3353
  %v3355 = vpop.f32.mrf.mxu0
  %3356 = vmatprep.mubr.f32.mxu0 0.0
  %3357 = vmatmul.mubr.f32.gmra.mxu0 %v3021
  %v3358 = vpop.f32.mrf.mxu0
  %v3359 = vadd.f32 0.0, %v3358
  %v3360 = vpop.f32.mrf.mxu0
  %3361 = vmatprep.mubr.f32.mxu0 0.0
  %3362 = vmatmul.mubr.f32.gmra.mxu0 %v3024
  %v3363 = vpop.f32.mrf.mxu0
  %v3364 = vadd.f32 0.0, %v3363
  %v3365 = vpop.f32.mrf.mxu0
  %3366 = vmatprep.mubr.f32.mxu0 0.0
  %3367 = vmatmul.mubr.f32.gmra.mxu0 %v3027
  %v3368 = vpop.f32.mrf.mxu0
  %v3369 = vadd.f32 0.0, %v3368
  %v3370 = vpop.f32.mrf.mxu0
  %3371 = vmatprep.mubr.f32.mxu0 0.0
  %3372 = vmatmul.mubr.f32.gmra.mxu0 %v3030
  %v3373 = vpop.f32.mrf.mxu0
  %v3374 = vadd.f32 0.0, %v3373
  %v3375 = vpop.f32.mrf.mxu0
  %3376 = vmatprep.mubr.f32.mxu0 0.0
  %3377 = vmatmul.mubr.f32.gmra.mxu0 %v3033
  %v3378 = vpop.f32.mrf.mxu0
  %v3379 = vadd.f32 0.0, %v3378
  %v3380 = vpop.f32.mrf.mxu0
  %3381 = vmatprep.mubr.f32.mxu0 0.0
  %3382 = vmatmul.mubr.f32.gmra.mxu0 %v3036
  %v3383 = vpop.f32.mrf.mxu0
  %v3384 = vadd.f32 0.0, %v3383
  %v3385 = vpop.f32.mrf.mxu0
  %3386 = vmatprep.mubr.f32.mxu0 0.0
  %3387 = vmatmul.mubr.f32.gmra.mxu0 %v3039
  %v3388 = vpop.f32.mrf.mxu0
  %v3389 = vadd.f32 0.0, %v3388
  %v3390 = vpop.f32.mrf.mxu0
  %3391 = vmatprep.mubr.f32.mxu0 0.0
  %3392 = vmatmul.mubr.f32.gmra.mxu0 %v3042
  %v3393 = vpop.f32.mrf.mxu0
  %v3394 = vadd.f32 0.0, %v3393
  %v3395 = vpop.f32.mrf.mxu0
  %3396 = vmatprep.mubr.f32.mxu0 0.0
  %3397 = vmatmul.mubr.f32.gmra.mxu0 %v3045
  %v3398 = vpop.f32.mrf.mxu0
  %v3399 = vadd.f32 0.0, %v3398
  %v3400 = vpop.f32.mrf.mxu0
  %3401 = vmatprep.mubr.f32.mxu0 0.0
  %3402 = vmatmul.mubr.f32.gmra.mxu0 %v3048
  %v3403 = vpop.f32.mrf.mxu0
  %v3404 = vadd.f32 0.0, %v3403
  %v3405 = vpop.f32.mrf.mxu0
  %3406 = vmatprep.mubr.f32.mxu0 0.0
  %3407 = vmatmul.mubr.f32.gmra.mxu0 %v3051
  %v3408 = vpop.f32.mrf.mxu0
  %v3409 = vadd.f32 0.0, %v3408
  %v3410 = vpop.f32.mrf.mxu0
  %3411 = vmatprep.mubr.f32.mxu0 0.0
  %3412 = vmatmul.mubr.f32.gmra.mxu0 %v3054
  %v3413 = vpop.f32.mrf.mxu0
  %v3414 = vadd.f32 0.0, %v3413
  %v3415 = vpop.f32.mrf.mxu0
  %3416 = vmatprep.mubr.f32.mxu0 0.0
  %3417 = vmatmul.mubr.f32.gmra.mxu0 %v3057
  %v3418 = vpop.f32.mrf.mxu0
  %v3419 = vadd.f32 0.0, %v3418
  %v3420 = vpop.f32.mrf.mxu0
  %3421 = vmatprep.mubr.f32.mxu0 0.0
  %3422 = vmatmul.mubr.f32.gmra.mxu0 %v3060
  %v3423 = vpop.f32.mrf.mxu0
  %v3424 = vadd.f32 0.0, %v3423
  %v3425 = vpop.f32.mrf.mxu0
  %3426 = vmatprep.mubr.f32.mxu0 0.0
  %3427 = vmatmul.mubr.f32.gmra.mxu0 %v3063
  %v3428 = vpop.f32.mrf.mxu0
  %v3429 = vadd.f32 0.0, %v3428
  %v3430 = vpop.f32.mrf.mxu0
  %3431 = vmatprep.mubr.f32.mxu0 0.0
  %3432 = vmatmul.mubr.f32.gmra.mxu0 %v3066
  %v3433 = vpop.f32.mrf.mxu0
  %v3434 = vadd.f32 0.0, %v3433
  %v3435 = vpop.f32.mrf.mxu0
  %3436 = vmatprep.mubr.f32.mxu0 0.0
  %3437 = vmatmul.mubr.f32.gmra.mxu0 %v3069
  %v3438 = vpop.f32.mrf.mxu0
  %v3439 = vadd.f32 0.0, %v3438
  %v3440 = vpop.f32.mrf.mxu0
  %3441 = vmatprep.mubr.f32.mxu0 0.0
  %3442 = vmatmul.mubr.f32.gmra.mxu0 %v3072
  %v3443 = vpop.f32.mrf.mxu0
  %v3444 = vadd.f32 0.0, %v3443
  %v3445 = vpop.f32.mrf.mxu0
  %3446 = vmatprep.mubr.f32.mxu0 0.0
  %3447 = vmatmul.mubr.f32.gmra.mxu0 %v3075
  %v3448 = vpop.f32.mrf.mxu0
  %v3449 = vadd.f32 0.0, %v3448
  %v3450 = vpop.f32.mrf.mxu0
  %3451 = vmatprep.mubr.f32.mxu0 0.0
  %3452 = vmatmul.mubr.f32.gmra.mxu0 %v3078
  %v3453 = vpop.f32.mrf.mxu0
  %v3454 = vadd.f32 0.0, %v3453
  %v3455 = vpop.f32.mrf.mxu0
  %3456 = vmatprep.mubr.f32.mxu0 0.0
  %3457 = vmatmul.mubr.f32.gmra.mxu0 %v3081
  %v3458 = vpop.f32.mrf.mxu0
  %v3459 = vadd.f32 0.0, %v3458
  %v3460 = vpop.f32.mrf.mxu0
  %3461 = vmatprep.mubr.f32.mxu0 0.0
  %3462 = vmatmul.mubr.f32.gmra.mxu0 %v3084
  %v3463 = vpop.f32.mrf.mxu0
  %v3464 = vadd.f32 0.0, %v3463
  %v3465 = vpop.f32.mrf.mxu0
  %3466 = vmatprep.mubr.f32.mxu0 0.0
  %3467 = vmatmul.mubr.f32.gmra.mxu0 %v3087
  %v3468 = vpop.f32.mrf.mxu0
  %v3469 = vadd.f32 0.0, %v3468
  %v3470 = vpop.f32.mrf.mxu0
  %3471 = vmatprep.mubr.f32.mxu0 0.0
  %3472 = vmatmul.mubr.f32.gmra.mxu0 %v3090
  %v3473 = vpop.f32.mrf.mxu0
  %v3474 = vadd.f32 0.0, %v3473
  %v3475 = vpop.f32.mrf.mxu0
  %3476 = vmatprep.mubr.f32.mxu0 0.0
  %3477 = vmatmul.mubr.f32.gmra.mxu0 %v3093
  %v3478 = vpop.f32.mrf.mxu0
  %v3479 = vadd.f32 0.0, %v3478
  %v3480 = vpop.f32.mrf.mxu0
  %3481 = vmatprep.mubr.f32.mxu0 0.0
  %3482 = vmatmul.mubr.f32.gmra.mxu0 %v3096
  %v3483 = vpop.f32.mrf.mxu0
  %v3484 = vadd.f32 0.0, %v3483
  %v3485 = vpop.f32.mrf.mxu0
  %3486 = vdwg.mxu0
  %3487 = vmatprep.subr.mxu0 0.0
  %3488 = vmatpush1.msra.mxu0 %v3244
  %3489 = vmatprep.subr.mxu0 0.0
  %3490 = vmatpush1.msra.mxu0 %v3239
  %3491 = vmatprep.subr.mxu0 0.0
  %3492 = vmatpush1.msra.mxu0 %v3234
  %3493 = vmatprep.subr.mxu0 0.0
  %3494 = vmatpush1.msra.mxu0 %v3229
  %3495 = vmatprep.subr.mxu0 0.0
  %3496 = vmatpush1.msra.mxu0 %v3224
  %3497 = vmatprep.subr.mxu0 0.0
  %3498 = vmatpush1.msra.mxu0 %v3219
  %3499 = vmatprep.subr.mxu0 0.0
  %3500 = vmatpush1.msra.mxu0 %v3214
  %3501 = vmatprep.subr.mxu0 0.0
  %3502 = vmatpush1.msra.mxu0 %v3209
  %3503 = vmatprep.subr.mxu0 0.0
  %3504 = vmatpush1.msra.mxu0 %v3204
  %3505 = vmatprep.subr.mxu0 0.0
  %3506 = vmatpush1.msra.mxu0 %v3199
  %3507 = vmatprep.subr.mxu0 0.0
  %3508 = vmatpush1.msra.mxu0 %v3194
  %3509 = vmatprep.subr.mxu0 0.0
  %3510 = vmatpush1.msra.mxu0 %v3189
  %3511 = vmatprep.subr.mxu0 0.0
  %3512 = vmatpush1.msra.mxu0 %v3184
  %3513 = vmatprep.subr.mxu0 0.0
  %3514 = vmatpush1.msra.mxu0 %v3179
  %3515 = vmatprep.subr.mxu0 0.0
  %3516 = vmatpush1.msra.mxu0 %v3174
  %3517 = vmatprep.subr.mxu0 0.0
  %3518 = vmatpush1.msra.mxu0 %v3169
  %3519 = vmatprep.subr.mxu0 0.0
  %3520 = vmatpush2.msra.mxu0 %v3324
  %3521 = vmatprep.subr.mxu0 0.0
  %3522 = vmatpush2.msra.mxu0 %v3319
  %3523 = vmatprep.subr.mxu0 0.0
  %3524 = vmatpush2.msra.mxu0 %v3314
  %3525 = vmatprep.subr.mxu0 0.0
  %3526 = vmatpush2.msra.mxu0 %v3309
  %3527 = vmatprep.subr.mxu0 0.0
  %3528 = vmatpush2.msra.mxu0 %v3304
  %3529 = vmatprep.subr.mxu0 0.0
  %3530 = vmatpush2.msra.mxu0 %v3299
  %3531 = vmatprep.subr.mxu0 0.0
  %3532 = vmatpush2.msra.mxu0 %v3294
  %3533 = vmatprep.subr.mxu0 0.0
  %3534 = vmatpush2.msra.mxu0 %v3289
  %3535 = vmatprep.subr.mxu0 0.0
  %3536 = vmatpush2.msra.mxu0 %v3284
  %3537 = vmatprep.subr.mxu0 0.0
  %3538 = vmatpush2.msra.mxu0 %v3279
  %3539 = vmatprep.subr.mxu0 0.0
  %3540 = vmatpush2.msra.mxu0 %v3274
  %3541 = vmatprep.subr.mxu0 0.0
  %3542 = vmatpush2.msra.mxu0 %v3269
  %3543 = vmatprep.subr.mxu0 0.0
  %3544 = vmatpush2.msra.mxu0 %v3264
  %3545 = vmatprep.subr.mxu0 0.0
  %3546 = vmatpush2.msra.mxu0 %v3259
  %3547 = vmatprep.subr.mxu0 0.0
  %3548 = vmatpush2.msra.mxu0 %v3254
  %3549 = vmatprep.subr.mxu0 0.0
  %3550 = vmatpush2.msra.mxu0 %v3249
  %3551 = vmatprep.mubr.f32.mxu0 1.0
  %3552 = vmatmul.mubr.f32.gmra.mxu0 1.0
  %v3553 = vpop.f32.mrf.mxu0
  %v3554 = vadd.f32 0.0, %v3553
  %v3555 = vpop.f32.mrf.mxu0
  %3556 = vdwg.mxu0
  %3557 = vmatprep.subr.mxu0 0.0
  %3558 = vmatpush1.msra.mxu0 %v3404
  %3559 = vmatprep.subr.mxu0 0.0
  %3560 = vmatpush1.msra.mxu0 %v3399
  %3561 = vmatprep.subr.mxu0 0.0
  %3562 = vmatpush1.msra.mxu0 %v3394
  %3563 = vmatprep.subr.mxu0 0.0
  %3564 = vmatpush1.msra.mxu0 %v3389
  %3565 = vmatprep.subr.mxu0 0.0
  %3566 = vmatpush1.msra.mxu0 %v3384
  %3567 = vmatprep.subr.mxu0 0.0
  %3568 = vmatpush1.msra.mxu0 %v3379
  %3569 = vmatprep.subr.mxu0 0.0
  %3570 = vmatpush1.msra.mxu0 %v3374
  %3571 = vmatprep.subr.mxu0 0.0
  %3572 = vmatpush1.msra.mxu0 %v3369
  %3573 = vmatprep.subr.mxu0 0.0
  %3574 = vmatpush1.msra.mxu0 %v3364
  %3575 = vmatprep.subr.mxu0 0.0
  %3576 = vmatpush1.msra.mxu0 %v3359
  %3577 = vmatprep.subr.mxu0 0.0
  %3578 = vmatpush1.msra.mxu0 %v3354
  %3579 = vmatprep.subr.mxu0 0.0
  %3580 = vmatpush1.msra.mxu0 %v3349
  %3581 = vmatprep.subr.mxu0 0.0
  %3582 = vmatpush1.msra.mxu0 %v3344
  %3583 = vmatprep.subr.mxu0 0.0
  %3584 = vmatpush1.msra.mxu0 %v3339
  %3585 = vmatprep.subr.mxu0 0.0
  %3586 = vmatpush1.msra.mxu0 %v3334
  %3587 = vmatprep.subr.mxu0 0.0
  %3588 = vmatpush1.msra.mxu0 %v3329
  %3589 = vmatprep.subr.mxu0 0.0
  %3590 = vmatpush2.msra.mxu0 %v3484
  %3591 = vmatprep.subr.mxu0 0.0
  %3592 = vmatpush2.msra.mxu0 %v3479
  %3593 = vmatprep.subr.mxu0 0.0
  %3594 = vmatpush2.msra.mxu0 %v3474
  %3595 = vmatprep.subr.mxu0 0.0
  %3596 = vmatpush2.msra.mxu0 %v3469
  %3597 = vmatprep.subr.mxu0 0.0
  %3598 = vmatpush2.msra.mxu0 %v3464
  %3599 = vmatprep.subr.mxu0 0.0
  %3600 = vmatpush2.msra.mxu0 %v3459
  %3601 = vmatprep.subr.mxu0 0.0
  %3602 = vmatpush2.msra.mxu0 %v3454
  %3603 = vmatprep.subr.mxu0 0.0
  %3604 = vmatpush2.msra.mxu0 %v3449
  %3605 = vmatprep.subr.mxu0 0.0
  %3606 = vmatpush2.msra.mxu0 %v3444
  %3607 = vmatprep.subr.mxu0 0.0
  %3608 = vmatpush2.msra.mxu0 %v3439
  %3609 = vmatprep.subr.mxu0 0.0
  %3610 = vmatpush2.msra.mxu0 %v3434
  %3611 = vmatprep.subr.mxu0 0.0
  %3612 = vmatpush2.msra.mxu0 %v3429
  %3613 = vmatprep.subr.mxu0 0.0
  %3614 = vmatpush2.msra.mxu0 %v3424
  %3615 = vmatprep.subr.mxu0 0.0
  %3616 = vmatpush2.msra.mxu0 %v3419
  %3617 = vmatprep.subr.mxu0 0.0
  %3618 = vmatpush2.msra.mxu0 %v3414
  %3619 = vmatprep.subr.mxu0 0.0
  %3620 = vmatpush2.msra.mxu0 %v3409
  %3621 = vmatprep.mubr.f32.mxu0 1.0
  %3622 = vmatmul.mubr.f32.gmra.mxu0 1.0
  %v3623 = vpop.f32.mrf.mxu0
  %v3624 = vadd.f32 %v3554, %v3623
  %v3625 = vpop.f32.mrf.mxu0
  %3626 = vdwg.mxu0
  %v3627 = vmul.f32 %v3169, %v3169
  %v3628 = vmul.f32 %v3174, %v3174
  %v3629 = vmul.f32 %v3179, %v3179
  %v3630 = vmul.f32 %v3184, %v3184
  %v3631 = vmul.f32 %v3189, %v3189
  %v3632 = vmul.f32 %v3194, %v3194
  %v3633 = vmul.f32 %v3199, %v3199
  %v3634 = vmul.f32 %v3204, %v3204
  %v3635 = vmul.f32 %v3209, %v3209
  %v3636 = vmul.f32 %v3214, %v3214
  %v3637 = vmul.f32 %v3219, %v3219
  %v3638 = vmul.f32 %v3224, %v3224
  %v3639 = vmul.f32 %v3229, %v3229
  %v3640 = vmul.f32 %v3234, %v3234
  %v3641 = vmul.f32 %v3239, %v3239
  %v3642 = vmul.f32 %v3244, %v3244
  %v3643 = vmul.f32 %v3249, %v3249
  %v3644 = vmul.f32 %v3254, %v3254
  %v3645 = vmul.f32 %v3259, %v3259
  %v3646 = vmul.f32 %v3264, %v3264
  %v3647 = vmul.f32 %v3269, %v3269
  %v3648 = vmul.f32 %v3274, %v3274
  %v3649 = vmul.f32 %v3279, %v3279
  %v3650 = vmul.f32 %v3284, %v3284
  %v3651 = vmul.f32 %v3289, %v3289
  %v3652 = vmul.f32 %v3294, %v3294
  %v3653 = vmul.f32 %v3299, %v3299
  %v3654 = vmul.f32 %v3304, %v3304
  %v3655 = vmul.f32 %v3309, %v3309
  %v3656 = vmul.f32 %v3314, %v3314
  %v3657 = vmul.f32 %v3319, %v3319
  %v3658 = vmul.f32 %v3324, %v3324
  %v3659 = vmul.f32 %v3329, %v3329
  %v3660 = vmul.f32 %v3334, %v3334
  %v3661 = vmul.f32 %v3339, %v3339
  %v3662 = vmul.f32 %v3344, %v3344
  %v3663 = vmul.f32 %v3349, %v3349
  %v3664 = vmul.f32 %v3354, %v3354
  %v3665 = vmul.f32 %v3359, %v3359
  %v3666 = vmul.f32 %v3364, %v3364
  %v3667 = vmul.f32 %v3369, %v3369
  %v3668 = vmul.f32 %v3374, %v3374
  %v3669 = vmul.f32 %v3379, %v3379
  %v3670 = vmul.f32 %v3384, %v3384
  %v3671 = vmul.f32 %v3389, %v3389
  %v3672 = vmul.f32 %v3394, %v3394
  %v3673 = vmul.f32 %v3399, %v3399
  %v3674 = vmul.f32 %v3404, %v3404
  %v3675 = vmul.f32 %v3409, %v3409
  %v3676 = vmul.f32 %v3414, %v3414
  %v3677 = vmul.f32 %v3419, %v3419
  %v3678 = vmul.f32 %v3424, %v3424
  %v3679 = vmul.f32 %v3429, %v3429
  %v3680 = vmul.f32 %v3434, %v3434
  %v3681 = vmul.f32 %v3439, %v3439
  %v3682 = vmul.f32 %v3444, %v3444
  %v3683 = vmul.f32 %v3449, %v3449
  %v3684 = vmul.f32 %v3454, %v3454
  %v3685 = vmul.f32 %v3459, %v3459
  %v3686 = vmul.f32 %v3464, %v3464
  %v3687 = vmul.f32 %v3469, %v3469
  %v3688 = vmul.f32 %v3474, %v3474
  %v3689 = vmul.f32 %v3479, %v3479
  %v3690 = vmul.f32 %v3484, %v3484
  %3691 = vmatprep.subr.mxu0 0.0
  %3692 = vmatpush1.msra.mxu0 %v3642
  %3693 = vmatprep.subr.mxu0 0.0
  %3694 = vmatpush1.msra.mxu0 %v3641
  %3695 = vmatprep.subr.mxu0 0.0
  %3696 = vmatpush1.msra.mxu0 %v3640
  %3697 = vmatprep.subr.mxu0 0.0
  %3698 = vmatpush1.msra.mxu0 %v3639
  %3699 = vmatprep.subr.mxu0 0.0
  %3700 = vmatpush1.msra.mxu0 %v3638
  %3701 = vmatprep.subr.mxu0 0.0
  %3702 = vmatpush1.msra.mxu0 %v3637
  %3703 = vmatprep.subr.mxu0 0.0
  %3704 = vmatpush1.msra.mxu0 %v3636
  %3705 = vmatprep.subr.mxu0 0.0
  %3706 = vmatpush1.msra.mxu0 %v3635
  %3707 = vmatprep.subr.mxu0 0.0
  %3708 = vmatpush1.msra.mxu0 %v3634
  %3709 = vmatprep.subr.mxu0 0.0
  %3710 = vmatpush1.msra.mxu0 %v3633
  %3711 = vmatprep.subr.mxu0 0.0
  %3712 = vmatpush1.msra.mxu0 %v3632
  %3713 = vmatprep.subr.mxu0 0.0
  %3714 = vmatpush1.msra.mxu0 %v3631
  %3715 = vmatprep.subr.mxu0 0.0
  %3716 = vmatpush1.msra.mxu0 %v3630
  %3717 = vmatprep.subr.mxu0 0.0
  %3718 = vmatpush1.msra.mxu0 %v3629
  %3719 = vmatprep.subr.mxu0 0.0
  %3720 = vmatpush1.msra.mxu0 %v3628
  %3721 = vmatprep.subr.mxu0 0.0
  %3722 = vmatpush1.msra.mxu0 %v3627
  %3723 = vmatprep.subr.mxu0 0.0
  %3724 = vmatpush2.msra.mxu0 %v3658
  %3725 = vmatprep.subr.mxu0 0.0
  %3726 = vmatpush2.msra.mxu0 %v3657
  %3727 = vmatprep.subr.mxu0 0.0
  %3728 = vmatpush2.msra.mxu0 %v3656
  %3729 = vmatprep.subr.mxu0 0.0
  %3730 = vmatpush2.msra.mxu0 %v3655
  %3731 = vmatprep.subr.mxu0 0.0
  %3732 = vmatpush2.msra.mxu0 %v3654
  %3733 = vmatprep.subr.mxu0 0.0
  %3734 = vmatpush2.msra.mxu0 %v3653
  %3735 = vmatprep.subr.mxu0 0.0
  %3736 = vmatpush2.msra.mxu0 %v3652
  %3737 = vmatprep.subr.mxu0 0.0
  %3738 = vmatpush2.msra.mxu0 %v3651
  %3739 = vmatprep.subr.mxu0 0.0
  %3740 = vmatpush2.msra.mxu0 %v3650
  %3741 = vmatprep.subr.mxu0 0.0
  %3742 = vmatpush2.msra.mxu0 %v3649
  %3743 = vmatprep.subr.mxu0 0.0
  %3744 = vmatpush2.msra.mxu0 %v3648
  %3745 = vmatprep.subr.mxu0 0.0
  %3746 = vmatpush2.msra.mxu0 %v3647
  %3747 = vmatprep.subr.mxu0 0.0
  %3748 = vmatpush2.msra.mxu0 %v3646
  %3749 = vmatprep.subr.mxu0 0.0
  %3750 = vmatpush2.msra.mxu0 %v3645
  %3751 = vmatprep.subr.mxu0 0.0
  %3752 = vmatpush2.msra.mxu0 %v3644
  %3753 = vmatprep.subr.mxu0 0.0
  %3754 = vmatpush2.msra.mxu0 %v3643
  %3755 = vmatprep.mubr.f32.mxu0 1.0
  %3756 = vmatmul.mubr.f32.gmra.mxu0 1.0
  %v3757 = vpop.f32.mrf.mxu0
  %v3758 = vadd.f32 0.0, %v3757
  %v3759 = vpop.f32.mrf.mxu0
  %3760 = vdwg.mxu0
  %3761 = vmatprep.subr.mxu0 0.0
  %3762 = vmatpush1.msra.mxu0 %v3674
  %3763 = vmatprep.subr.mxu0 0.0
  %3764 = vmatpush1.msra.mxu0 %v3673
  %3765 = vmatprep.subr.mxu0 0.0
  %3766 = vmatpush1.msra.mxu0 %v3672
  %3767 = vmatprep.subr.mxu0 0.0
  %3768 = vmatpush1.msra.mxu0 %v3671
  %3769 = vmatprep.subr.mxu0 0.0
  %3770 = vmatpush1.msra.mxu0 %v3670
  %3771 = vmatprep.subr.mxu0 0.0
  %3772 = vmatpush1.msra.mxu0 %v3669
  %3773 = vmatprep.subr.mxu0 0.0
  %3774 = vmatpush1.msra.mxu0 %v3668
  %3775 = vmatprep.subr.mxu0 0.0
  %3776 = vmatpush1.msra.mxu0 %v3667
  %3777 = vmatprep.subr.mxu0 0.0
  %3778 = vmatpush1.msra.mxu0 %v3666
  %3779 = vmatprep.subr.mxu0 0.0
  %3780 = vmatpush1.msra.mxu0 %v3665
  %3781 = vmatprep.subr.mxu0 0.0
  %3782 = vmatpush1.msra.mxu0 %v3664
  %3783 = vmatprep.subr.mxu0 0.0
  %3784 = vmatpush1.msra.mxu0 %v3663
  %3785 = vmatprep.subr.mxu0 0.0
  %3786 = vmatpush1.msra.mxu0 %v3662
  %3787 = vmatprep.subr.mxu0 0.0
  %3788 = vmatpush1.msra.mxu0 %v3661
  %3789 = vmatprep.subr.mxu0 0.0
  %3790 = vmatpush1.msra.mxu0 %v3660
  %3791 = vmatprep.subr.mxu0 0.0
  %3792 = vmatpush1.msra.mxu0 %v3659
  %3793 = vmatprep.subr.mxu0 0.0
  %3794 = vmatpush2.msra.mxu0 %v3690
  %3795 = vmatprep.subr.mxu0 0.0
  %3796 = vmatpush2.msra.mxu0 %v3689
  %3797 = vmatprep.subr.mxu0 0.0
  %3798 = vmatpush2.msra.mxu0 %v3688
  %3799 = vmatprep.subr.mxu0 0.0
  %3800 = vmatpush2.msra.mxu0 %v3687
  %3801 = vmatprep.subr.mxu0 0.0
  %3802 = vmatpush2.msra.mxu0 %v3686
  %3803 = vmatprep.subr.mxu0 0.0
  %3804 = vmatpush2.msra.mxu0 %v3685
  %3805 = vmatprep.subr.mxu0 0.0
  %3806 = vmatpush2.msra.mxu0 %v3684
  %3807 = vmatprep.subr.mxu0 0.0
  %3808 = vmatpush2.msra.mxu0 %v3683
  %3809 = vmatprep.subr.mxu0 0.0
  %3810 = vmatpush2.msra.mxu0 %v3682
  %3811 = vmatprep.subr.mxu0 0.0
  %3812 = vmatpush2.msra.mxu0 %v3681
  %3813 = vmatprep.subr.mxu0 0.0
  %3814 = vmatpush2.msra.mxu0 %v3680
  %3815 = vmatprep.subr.mxu0 0.0
  %3816 = vmatpush2.msra.mxu0 %v3679
  %3817 = vmatprep.subr.mxu0 0.0
  %3818 = vmatpush2.msra.mxu0 %v3678
  %3819 = vmatprep.subr.mxu0 0.0
  %3820 = vmatpush2.msra.mxu0 %v3677
  %3821 = vmatprep.subr.mxu0 0.0
  %3822 = vmatpush2.msra.mxu0 %v3676
  %3823 = vmatprep.subr.mxu0 0.0
  %3824 = vmatpush2.msra.mxu0 %v3675
  %3825 = vmatprep.mubr.f32.mxu0 1.0
  %3826 = vmatmul.mubr.f32.gmra.mxu0 1.0
  %v3827 = vpop.f32.mrf.mxu0
  %v3828 = vadd.f32 %v3758, %v3827
  %v3829 = vpop.f32.mrf.mxu0
  %3830 = vdwg.mxu0
  %v3831 = vmul.f32 %v3624, 0.001953125
  %v3832 = vmul.f32 %v3828, 0.001953125
  %v3833 = vmul.f32 %v3831, %v3831
  %v3834 = vsub.f32 %v3832, %v3833
  %v3835 = vadd.f32 %v3834, 1e-05
  %v3836 = vrsqrt.pop %v3835
  %v3837 = vmul.f32 %v270, %v3836
  %v3838 = vmul.f32 %v3831, %v3837
  %v3839 = vsub.f32 %v271, %v3838
  %v3841 = vlaneseq
  %v3842 = vshrl.u32 %v3841, 7
  %v3843 = vsub.s32 0, %v3842
  %v3844 = vrot.slane %v3837, %v3843
  %v3846 = vmul.f32 %v3169, %v3844
  %v3847 = vmul.f32 %v3174, %v3844
  %v3848 = vmul.f32 %v3179, %v3844
  %v3849 = vmul.f32 %v3184, %v3844
  %v3850 = vmul.f32 %v3189, %v3844
  %v3851 = vmul.f32 %v3194, %v3844
  %v3852 = vmul.f32 %v3199, %v3844
  %v3853 = vmul.f32 %v3204, %v3844
  %v3854 = vmul.f32 %v3209, %v3844
  %v3855 = vmul.f32 %v3214, %v3844
  %v3856 = vmul.f32 %v3219, %v3844
  %v3857 = vmul.f32 %v3224, %v3844
  %v3858 = vmul.f32 %v3229, %v3844
  %v3859 = vmul.f32 %v3234, %v3844
  %v3860 = vmul.f32 %v3239, %v3844
  %v3861 = vmul.f32 %v3244, %v3844
  %v3862 = vmul.f32 %v3249, %v3844
  %v3863 = vmul.f32 %v3254, %v3844
  %v3864 = vmul.f32 %v3259, %v3844
  %v3865 = vmul.f32 %v3264, %v3844
  %v3866 = vmul.f32 %v3269, %v3844
  %v3867 = vmul.f32 %v3274, %v3844
  %v3868 = vmul.f32 %v3279, %v3844
  %v3869 = vmul.f32 %v3284, %v3844
  %v3870 = vmul.f32 %v3289, %v3844
  %v3871 = vmul.f32 %v3294, %v3844
  %v3872 = vmul.f32 %v3299, %v3844
  %v3873 = vmul.f32 %v3304, %v3844
  %v3874 = vmul.f32 %v3309, %v3844
  %v3875 = vmul.f32 %v3314, %v3844
  %v3876 = vmul.f32 %v3319, %v3844
  %v3877 = vmul.f32 %v3324, %v3844
  %v3878 = vmul.f32 %v3329, %v3844
  %v3879 = vmul.f32 %v3334, %v3844
  %v3880 = vmul.f32 %v3339, %v3844
  %v3881 = vmul.f32 %v3344, %v3844
  %v3882 = vmul.f32 %v3349, %v3844
  %v3883 = vmul.f32 %v3354, %v3844
  %v3884 = vmul.f32 %v3359, %v3844
  %v3885 = vmul.f32 %v3364, %v3844
  %v3886 = vmul.f32 %v3369, %v3844
  %v3887 = vmul.f32 %v3374, %v3844
  %v3888 = vmul.f32 %v3379, %v3844
  %v3889 = vmul.f32 %v3384, %v3844
  %v3890 = vmul.f32 %v3389, %v3844
  %v3891 = vmul.f32 %v3394, %v3844
  %v3892 = vmul.f32 %v3399, %v3844
  %v3893 = vmul.f32 %v3404, %v3844
  %v3894 = vmul.f32 %v3409, %v3844
  %v3895 = vmul.f32 %v3414, %v3844
  %v3896 = vmul.f32 %v3419, %v3844
  %v3897 = vmul.f32 %v3424, %v3844
  %v3898 = vmul.f32 %v3429, %v3844
  %v3899 = vmul.f32 %v3434, %v3844
  %v3900 = vmul.f32 %v3439, %v3844
  %v3901 = vmul.f32 %v3444, %v3844
  %v3902 = vmul.f32 %v3449, %v3844
  %v3903 = vmul.f32 %v3454, %v3844
  %v3904 = vmul.f32 %v3459, %v3844
  %v3905 = vmul.f32 %v3464, %v3844
  %v3906 = vmul.f32 %v3469, %v3844
  %v3907 = vmul.f32 %v3474, %v3844
  %v3908 = vmul.f32 %v3479, %v3844
  %v3909 = vmul.f32 %v3484, %v3844
  %v3911 = vlaneseq
  %v3912 = vshrl.u32 %v3911, 7
  %v3913 = vsub.s32 0, %v3912
  %v3914 = vrot.slane %v3839, %v3913
  %v3916 = vadd.f32 %v3846, %v3914
  %v3917 = vadd.f32 %v3847, %v3914
  %v3918 = vadd.f32 %v3848, %v3914
  %v3919 = vadd.f32 %v3849, %v3914
  %v3920 = vadd.f32 %v3850, %v3914
  %v3921 = vadd.f32 %v3851, %v3914
  %v3922 = vadd.f32 %v3852, %v3914
  %v3923 = vadd.f32 %v3853, %v3914
  %v3924 = vadd.f32 %v3854, %v3914
  %v3925 = vadd.f32 %v3855, %v3914
  %v3926 = vadd.f32 %v3856, %v3914
  %v3927 = vadd.f32 %v3857, %v3914
  %v3928 = vadd.f32 %v3858, %v3914
  %v3929 = vadd.f32 %v3859, %v3914
  %v3930 = vadd.f32 %v3860, %v3914
  %v3931 = vadd.f32 %v3861, %v3914
  %v3932 = vadd.f32 %v3862, %v3914
  %v3933 = vadd.f32 %v3863, %v3914
  %v3934 = vadd.f32 %v3864, %v3914
  %v3935 = vadd.f32 %v3865, %v3914
  %v3936 = vadd.f32 %v3866, %v3914
  %v3937 = vadd.f32 %v3867, %v3914
  %v3938 = vadd.f32 %v3868, %v3914
  %v3939 = vadd.f32 %v3869, %v3914
  %v3940 = vadd.f32 %v3870, %v3914
  %v3941 = vadd.f32 %v3871, %v3914
  %v3942 = vadd.f32 %v3872, %v3914
  %v3943 = vadd.f32 %v3873, %v3914
  %v3944 = vadd.f32 %v3874, %v3914
  %v3945 = vadd.f32 %v3875, %v3914
  %v3946 = vadd.f32 %v3876, %v3914
  %v3947 = vadd.f32 %v3877, %v3914
  %v3948 = vadd.f32 %v3878, %v3914
  %v3949 = vadd.f32 %v3879, %v3914
  %v3950 = vadd.f32 %v3880, %v3914
  %v3951 = vadd.f32 %v3881, %v3914
  %v3952 = vadd.f32 %v3882, %v3914
  %v3953 = vadd.f32 %v3883, %v3914
  %v3954 = vadd.f32 %v3884, %v3914
  %v3955 = vadd.f32 %v3885, %v3914
  %v3956 = vadd.f32 %v3886, %v3914
  %v3957 = vadd.f32 %v3887, %v3914
  %v3958 = vadd.f32 %v3888, %v3914
  %v3959 = vadd.f32 %v3889, %v3914
  %v3960 = vadd.f32 %v3890, %v3914
  %v3961 = vadd.f32 %v3891, %v3914
  %v3962 = vadd.f32 %v3892, %v3914
  %v3963 = vadd.f32 %v3893, %v3914
  %v3964 = vadd.f32 %v3894, %v3914
  %v3965 = vadd.f32 %v3895, %v3914
  %v3966 = vadd.f32 %v3896, %v3914
  %v3967 = vadd.f32 %v3897, %v3914
  %v3968 = vadd.f32 %v3898, %v3914
  %v3969 = vadd.f32 %v3899, %v3914
  %v3970 = vadd.f32 %v3900, %v3914
  %v3971 = vadd.f32 %v3901, %v3914
  %v3972 = vadd.f32 %v3902, %v3914
  %v3973 = vadd.f32 %v3903, %v3914
  %v3974 = vadd.f32 %v3904, %v3914
  %v3975 = vadd.f32 %v3905, %v3914
  %v3976 = vadd.f32 %v3906, %v3914
  %v3977 = vadd.f32 %v3907, %v3914
  %v3978 = vadd.f32 %v3908, %v3914
  %v3979 = vadd.f32 %v3909, %v3914
  %v3980 = vmax.f32 %v3916, 0.0
  %v3981 = vmax.f32 %v3917, 0.0
  %v3982 = vmax.f32 %v3918, 0.0
  %v3983 = vmax.f32 %v3919, 0.0
  %v3984 = vmax.f32 %v3920, 0.0
  %v3985 = vmax.f32 %v3921, 0.0
  %v3986 = vmax.f32 %v3922, 0.0
  %v3987 = vmax.f32 %v3923, 0.0
  %v3988 = vmax.f32 %v3924, 0.0
  %v3989 = vmax.f32 %v3925, 0.0
  %v3990 = vmax.f32 %v3926, 0.0
  %v3991 = vmax.f32 %v3927, 0.0
  %v3992 = vmax.f32 %v3928, 0.0
  %v3993 = vmax.f32 %v3929, 0.0
  %v3994 = vmax.f32 %v3930, 0.0
  %v3995 = vmax.f32 %v3931, 0.0
  %v3996 = vmax.f32 %v3932, 0.0
  %v3997 = vmax.f32 %v3933, 0.0
  %v3998 = vmax.f32 %v3934, 0.0
  %v3999 = vmax.f32 %v3935, 0.0
  %v4000 = vmax.f32 %v3936, 0.0
  %v4001 = vmax.f32 %v3937, 0.0
  %v4002 = vmax.f32 %v3938, 0.0
  %v4003 = vmax.f32 %v3939, 0.0
  %v4004 = vmax.f32 %v3940, 0.0
  %v4005 = vmax.f32 %v3941, 0.0
  %v4006 = vmax.f32 %v3942, 0.0
  %v4007 = vmax.f32 %v3943, 0.0
  %v4008 = vmax.f32 %v3944, 0.0
  %v4009 = vmax.f32 %v3945, 0.0
  %v4010 = vmax.f32 %v3946, 0.0
  %v4011 = vmax.f32 %v3947, 0.0
  %v4012 = vmax.f32 %v3948, 0.0
  %v4013 = vmax.f32 %v3949, 0.0
  %v4014 = vmax.f32 %v3950, 0.0
  %v4015 = vmax.f32 %v3951, 0.0
  %v4016 = vmax.f32 %v3952, 0.0
  %v4017 = vmax.f32 %v3953, 0.0
  %v4018 = vmax.f32 %v3954, 0.0
  %v4019 = vmax.f32 %v3955, 0.0
  %v4020 = vmax.f32 %v3956, 0.0
  %v4021 = vmax.f32 %v3957, 0.0
  %v4022 = vmax.f32 %v3958, 0.0
  %v4023 = vmax.f32 %v3959, 0.0
  %v4024 = vmax.f32 %v3960, 0.0
  %v4025 = vmax.f32 %v3961, 0.0
  %v4026 = vmax.f32 %v3962, 0.0
  %v4027 = vmax.f32 %v3963, 0.0
  %v4028 = vmax.f32 %v3964, 0.0
  %v4029 = vmax.f32 %v3965, 0.0
  %v4030 = vmax.f32 %v3966, 0.0
  %v4031 = vmax.f32 %v3967, 0.0
  %v4032 = vmax.f32 %v3968, 0.0
  %v4033 = vmax.f32 %v3969, 0.0
  %v4034 = vmax.f32 %v3970, 0.0
  %v4035 = vmax.f32 %v3971, 0.0
  %v4036 = vmax.f32 %v3972, 0.0
  %v4037 = vmax.f32 %v3973, 0.0
  %v4038 = vmax.f32 %v3974, 0.0
  %v4039 = vmax.f32 %v3975, 0.0
  %v4040 = vmax.f32 %v3976, 0.0
  %v4041 = vmax.f32 %v3977, 0.0
  %v4042 = vmax.f32 %v3978, 0.0
  %v4043 = vmax.f32 %v3979, 0.0
  %4044 = vst.msk [vmem:[%s200 + $0x1] sm:$0xff] %vm90, %v3980
  %4045 = vst.msk [vmem:[%s200 + $0x9] sm:$0xff] %vm90, %v3981
  %4046 = vst.msk [vmem:[%s200 + $0x19] sm:$0xff] %vm90, %v3982
  %4047 = vst.msk [vmem:[%s200 + $0x21] sm:$0xff] %vm90, %v3983
  %4048 = vst.msk [vmem:[%s200 + $0x31] sm:$0xff] %vm90, %v3984
  %4049 = vst.msk [vmem:[%s200 + $0x39] sm:$0xff] %vm90, %v3985
  %4050 = vst.msk [vmem:[%s200 + $0x49] sm:$0xff] %vm90, %v3986
  %4051 = vst.msk [vmem:[%s200 + $0x51] sm:$0xff] %vm90, %v3987
  %4052 = vst.msk [vmem:[%s200 + $0x61] sm:$0xff] %vm90, %v3988
  %4053 = vst.msk [vmem:[%s200 + $0x69] sm:$0xff] %vm90, %v3989
  %4054 = vst.msk [vmem:[%s200 + $0x79] sm:$0xff] %vm90, %v3990
  %4055 = vst.msk [vmem:[%s200 + $0x81] sm:$0xff] %vm90, %v3991
  %4056 = vst.msk [vmem:[%s200 + $0x91] sm:$0xff] %vm90, %v3992
  %4057 = vst.msk [vmem:[%s200 + $0x99] sm:$0xff] %vm90, %v3993
  %4058 = vst.msk [vmem:[%s200 + $0xa9] sm:$0xff] %vm90, %v3994
  %4059 = vst.msk [vmem:[%s200 + $0xb1] sm:$0xff] %vm90, %v3995
  %4060 = vst.msk [vmem:[%s200 + $0xc1] sm:$0xff] %vm90, %v3996
  %4061 = vst.msk [vmem:[%s200 + $0xc9] sm:$0xff] %vm90, %v3997
  %4062 = vst.msk [vmem:[%s200 + $0xd9] sm:$0xff] %vm90, %v3998
  %4063 = vst.msk [vmem:[%s200 + $0xe1] sm:$0xff] %vm90, %v3999
  %4064 = vst.msk [vmem:[%s200 + $0xf1] sm:$0xff] %vm90, %v4000
  %4065 = vst.msk [vmem:[%s200 + $0xf9] sm:$0xff] %vm90, %v4001
  %4066 = vst.msk [vmem:[%s200 + $0x109] sm:$0xff] %vm90, %v4002
  %4067 = vst.msk [vmem:[%s200 + $0x111] sm:$0xff] %vm90, %v4003
  %4068 = vst.msk [vmem:[%s200 + $0x121] sm:$0xff] %vm90, %v4004
  %4069 = vst.msk [vmem:[%s200 + $0x129] sm:$0xff] %vm90, %v4005
  %4070 = vst.msk [vmem:[%s200 + $0x139] sm:$0xff] %vm90, %v4006
  %4071 = vst.msk [vmem:[%s200 + $0x141] sm:$0xff] %vm90, %v4007
  %4072 = vst.msk [vmem:[%s200 + $0x151] sm:$0xff] %vm90, %v4008
  %4073 = vst.msk [vmem:[%s200 + $0x159] sm:$0xff] %vm90, %v4009
  %4074 = vst.msk [vmem:[%s200 + $0x169] sm:$0xff] %vm90, %v4010
  %4075 = vst.msk [vmem:[%s200 + $0x171] sm:$0xff] %vm90, %v4011
  %4076 = vst.msk [vmem:[%s200 + $0x1b1] sm:$0xff] %vm90, %v4012
  %4077 = vst.msk [vmem:[%s200 + $0x1b9] sm:$0xff] %vm90, %v4013
  %4078 = vst.msk [vmem:[%s200 + $0x1c9] sm:$0xff] %vm90, %v4014
  %4079 = vst.msk [vmem:[%s200 + $0x1d1] sm:$0xff] %vm90, %v4015
  %4080 = vst.msk [vmem:[%s200 + $0x1e1] sm:$0xff] %vm90, %v4016
  %4081 = vst.msk [vmem:[%s200 + $0x1e9] sm:$0xff] %vm90, %v4017
  %4082 = vst.msk [vmem:[%s200 + $0x1f9] sm:$0xff] %vm90, %v4018
  %4083 = vst.msk [vmem:[%s200 + $0x201] sm:$0xff] %vm90, %v4019
  %4084 = vst.msk [vmem:[%s200 + $0x211] sm:$0xff] %vm90, %v4020
  %4085 = vst.msk [vmem:[%s200 + $0x219] sm:$0xff] %vm90, %v4021
  %4086 = vst.msk [vmem:[%s200 + $0x229] sm:$0xff] %vm90, %v4022
  %4087 = vst.msk [vmem:[%s200 + $0x231] sm:$0xff] %vm90, %v4023
  %4088 = vst.msk [vmem:[%s200 + $0x241] sm:$0xff] %vm90, %v4024
  %4089 = vst.msk [vmem:[%s200 + $0x249] sm:$0xff] %vm90, %v4025
  %4090 = vst.msk [vmem:[%s200 + $0x259] sm:$0xff] %vm90, %v4026
  %4091 = vst.msk [vmem:[%s200 + $0x261] sm:$0xff] %vm90, %v4027
  %4092 = vst.msk [vmem:[%s200 + $0x271] sm:$0xff] %vm90, %v4028
  %4093 = vst.msk [vmem:[%s200 + $0x279] sm:$0xff] %vm90, %v4029
  %4094 = vst.msk [vmem:[%s200 + $0x289] sm:$0xff] %vm90, %v4030
  %4095 = vst.msk [vmem:[%s200 + $0x291] sm:$0xff] %vm90, %v4031
  %4096 = vst.msk [vmem:[%s200 + $0x2a1] sm:$0xff] %vm90, %v4032
  %4097 = vst.msk [vmem:[%s200 + $0x2a9] sm:$0xff] %vm90, %v4033
  %4098 = vst.msk [vmem:[%s200 + $0x2b9] sm:$0xff] %vm90, %v4034
  %4099 = vst.msk [vmem:[%s200 + $0x2c1] sm:$0xff] %vm90, %v4035
  %4100 = vst.msk [vmem:[%s200 + $0x2d1] sm:$0xff] %vm90, %v4036
  %4101 = vst.msk [vmem:[%s200 + $0x2d9] sm:$0xff] %vm90, %v4037
  %4102 = vst.msk [vmem:[%s200 + $0x2e9] sm:$0xff] %vm90, %v4038
  %4103 = vst.msk [vmem:[%s200 + $0x2f1] sm:$0xff] %vm90, %v4039
  %4104 = vst.msk [vmem:[%s200 + $0x301] sm:$0xff] %vm90, %v4040
  %4105 = vst.msk [vmem:[%s200 + $0x309] sm:$0xff] %vm90, %v4041
  %4106 = vst.msk [vmem:[%s200 + $0x319] sm:$0xff] %vm90, %v4042
  %4107 = vst.msk [vmem:[%s200 + $0x321] sm:$0xff] %vm90, %v4043
  %v4108 = vld [vmem:[%s4] sm:$0xff]
  %v4109 = vld [vmem:[%s4 + $0x8] sm:$0xff]
  %v4110 = vld [vmem:[%s4 + $0x10] sm:$0xff]
  %v4111 = vld [vmem:[%s4 + $0x18] sm:$0xff]
  %v4112 = vld [vmem:[%s4 + $0x20] sm:$0xf]
  %v4113 = vld [vmem:[%s5] sm:$0x1]
  %v4114 = vld [vmem:[%s6] sm:$0x1]
  %v4115 = vld [vmem:[#allocation2] sm:$0xff]
  %v4116 = vld [vmem:[#allocation2 + $0x8] sm:$0xff]
  %v4117 = vld [vmem:[#allocation2 + $0x10] sm:$0x3]
  %v4118 = vld [vmem:[#allocation2 + $0x18] sm:$0xff]
  %v4119 = vld [vmem:[#allocation2 + $0x20] sm:$0xff]
  %v4120 = vld [vmem:[#allocation2 + $0x28] sm:$0x3]
  %v4121 = vld [vmem:[#allocation2 + $0x30] sm:$0xff]
  %v4122 = vld [vmem:[#allocation2 + $0x38] sm:$0xff]
  %v4123 = vld [vmem:[#allocation2 + $0x40] sm:$0x3]
  %v4124 = vld [vmem:[#allocation2 + $0x48] sm:$0xff]
  %v4125 = vld [vmem:[#allocation2 + $0x50] sm:$0xff]
  %v4126 = vld [vmem:[#allocation2 + $0x58] sm:$0x3]
  %v4127 = vld [vmem:[#allocation2 + $0x60] sm:$0xff]
  %v4128 = vld [vmem:[#allocation2 + $0x68] sm:$0xff]
  %v4129 = vld [vmem:[#allocation2 + $0x70] sm:$0x3]
  %v4130 = vld [vmem:[#allocation2 + $0x78] sm:$0xff]
  %v4131 = vld [vmem:[#allocation2 + $0x80] sm:$0xff]
  %v4132 = vld [vmem:[#allocation2 + $0x88] sm:$0x3]
  %v4133 = vld [vmem:[#allocation2 + $0x90] sm:$0xff]
  %v4134 = vld [vmem:[#allocation2 + $0x98] sm:$0xff]
  %v4135 = vld [vmem:[#allocation2 + $0xa0] sm:$0x3]
  %v4136 = vld [vmem:[#allocation2 + $0xa8] sm:$0xff]
  %v4137 = vld [vmem:[#allocation2 + $0xb0] sm:$0xff]
  %v4138 = vld [vmem:[#allocation2 + $0xb8] sm:$0x3]
  %v4139 = vld [vmem:[#allocation2 + $0xc0] sm:$0xff]
  %v4140 = vld [vmem:[#allocation2 + $0xc8] sm:$0xff]
  %v4141 = vld [vmem:[#allocation2 + $0xd0] sm:$0x3]
  %v4142 = vld [vmem:[#allocation2 + $0xd8] sm:$0xff]
  %v4143 = vld [vmem:[#allocation2 + $0xe0] sm:$0xff]
  %v4144 = vld [vmem:[#allocation2 + $0xe8] sm:$0x3]
  %v4145 = vld [vmem:[#allocation2 + $0xf0] sm:$0xff]
  %v4146 = vld [vmem:[#allocation2 + $0xf8] sm:$0xff]
  %v4147 = vld [vmem:[#allocation2 + $0x100] sm:$0x3]
  %v4148 = vld [vmem:[#allocation2 + $0x108] sm:$0xff]
  %v4149 = vld [vmem:[#allocation2 + $0x110] sm:$0xff]
  %v4150 = vld [vmem:[#allocation2 + $0x118] sm:$0x3]
  %v4151 = vld [vmem:[#allocation2 + $0x120] sm:$0xff]
  %v4152 = vld [vmem:[#allocation2 + $0x128] sm:$0xff]
  %v4153 = vld [vmem:[#allocation2 + $0x130] sm:$0x3]
  %v4154 = vld [vmem:[#allocation2 + $0x138] sm:$0xff]
  %v4155 = vld [vmem:[#allocation2 + $0x140] sm:$0xff]
  %v4156 = vld [vmem:[#allocation2 + $0x148] sm:$0x3]
  %v4157 = vld [vmem:[#allocation2 + $0x150] sm:$0xff]
  %v4158 = vld [vmem:[#allocation2 + $0x158] sm:$0xff]
  %v4159 = vld [vmem:[#allocation2 + $0x160] sm:$0x3]
  %v4160 = vld [vmem:[#allocation2 + $0x168] sm:$0xff]
  %v4161 = vld [vmem:[#allocation2 + $0x170] sm:$0xff]
  %v4162 = vld [vmem:[#allocation2 + $0x178] sm:$0x3]
  %v4163 = vld [vmem:[#allocation2 + $0x180] sm:$0xff]
  %v4164 = vld [vmem:[#allocation2 + $0x188] sm:$0xff]
  %v4165 = vld [vmem:[#allocation2 + $0x190] sm:$0x3]
  %v4166 = vld [vmem:[#allocation2 + $0x198] sm:$0xff]
  %v4167 = vld [vmem:[#allocation2 + $0x1a0] sm:$0xff]
  %v4168 = vld [vmem:[#allocation2 + $0x1a8] sm:$0x3]
  %v4169 = vld [vmem:[#allocation2 + $0x1b0] sm:$0xff]
  %v4170 = vld [vmem:[#allocation2 + $0x1b8] sm:$0xff]
  %v4171 = vld [vmem:[#allocation2 + $0x1c0] sm:$0x3]
  %v4172 = vld [vmem:[#allocation2 + $0x1c8] sm:$0xff]
  %v4173 = vld [vmem:[#allocation2 + $0x1d0] sm:$0xff]
  %v4174 = vld [vmem:[#allocation2 + $0x1d8] sm:$0x3]
  %v4175 = vld [vmem:[#allocation2 + $0x1e0] sm:$0xff]
  %v4176 = vld [vmem:[#allocation2 + $0x1e8] sm:$0xff]
  %v4177 = vld [vmem:[#allocation2 + $0x1f0] sm:$0x3]
  %v4178 = vld [vmem:[#allocation2 + $0x1f8] sm:$0xff]
  %v4179 = vld [vmem:[#allocation2 + $0x200] sm:$0xff]
  %v4180 = vld [vmem:[#allocation2 + $0x208] sm:$0x3]
  %v4181 = vld [vmem:[#allocation2 + $0x210] sm:$0xff]
  %v4182 = vld [vmem:[#allocation2 + $0x218] sm:$0xff]
  %v4183 = vld [vmem:[#allocation2 + $0x220] sm:$0x3]
  %v4184 = vld [vmem:[#allocation2 + $0x228] sm:$0xff]
  %v4185 = vld [vmem:[#allocation2 + $0x230] sm:$0xff]
  %v4186 = vld [vmem:[#allocation2 + $0x238] sm:$0x3]
  %v4187 = vld [vmem:[#allocation2 + $0x240] sm:$0xff]
  %v4188 = vld [vmem:[#allocation2 + $0x248] sm:$0xff]
  %v4189 = vld [vmem:[#allocation2 + $0x250] sm:$0x3]
  %v4190 = vld [vmem:[#allocation2 + $0x258] sm:$0xff]
  %v4191 = vld [vmem:[#allocation2 + $0x260] sm:$0xff]
  %v4192 = vld [vmem:[#allocation2 + $0x268] sm:$0x3]
  %v4193 = vld [vmem:[#allocation2 + $0x270] sm:$0xff]
  %v4194 = vld [vmem:[#allocation2 + $0x278] sm:$0xff]
  %v4195 = vld [vmem:[#allocation2 + $0x280] sm:$0x3]
  %v4196 = vld [vmem:[#allocation2 + $0x288] sm:$0xff]
  %v4197 = vld [vmem:[#allocation2 + $0x290] sm:$0xff]
  %v4198 = vld [vmem:[#allocation2 + $0x298] sm:$0x3]
  %v4199 = vld [vmem:[#allocation2 + $0x2a0] sm:$0xff]
  %v4200 = vld [vmem:[#allocation2 + $0x2a8] sm:$0xff]
  %v4201 = vld [vmem:[#allocation2 + $0x2b0] sm:$0x3]
  %v4202 = vld [vmem:[#allocation2 + $0x2b8] sm:$0xff]
  %v4203 = vld [vmem:[#allocation2 + $0x2c0] sm:$0xff]
  %v4204 = vld [vmem:[#allocation2 + $0x2c8] sm:$0x3]
  %v4205 = vld [vmem:[#allocation2 + $0x2d0] sm:$0xff]
  %v4206 = vld [vmem:[#allocation2 + $0x2d8] sm:$0xff]
  %v4207 = vld [vmem:[#allocation2 + $0x2e0] sm:$0x3]
  %v4208 = vld [vmem:[#allocation2 + $0x2e8] sm:$0xff]
  %v4209 = vld [vmem:[#allocation2 + $0x2f0] sm:$0xff]
  %v4210 = vld [vmem:[#allocation2 + $0x2f8] sm:$0x3]
  %v4211 = vld [vmem:[#allocation2 + $0x300] sm:$0xff]
  %v4212 = vld [vmem:[#allocation2 + $0x308] sm:$0xff]
  %v4213 = vld [vmem:[#allocation2 + $0x310] sm:$0x3]
  %v4214 = vld [vmem:[#allocation2 + $0x318] sm:$0xff]
  %v4215 = vld [vmem:[#allocation2 + $0x320] sm:$0xff]
  %v4216 = vld [vmem:[#allocation2 + $0x328] sm:$0x3]
  %v4217 = vld [vmem:[#allocation2 + $0x330] sm:$0xff]
  %v4218 = vld [vmem:[#allocation2 + $0x338] sm:$0xff]
  %v4219 = vld [vmem:[#allocation2 + $0x340] sm:$0x3]
  %v4220 = vld [vmem:[#allocation2 + $0x348] sm:$0xff]
  %v4221 = vld [vmem:[#allocation2 + $0x350] sm:$0xff]
  %v4222 = vld [vmem:[#allocation2 + $0x358] sm:$0x3]
  %v4319 = vrot.slane %v4115, 1
  %v4320 = vrot.slane %v4116, 1
  %v4321 = vsel %vm476, %v4319, %v4320
  %v4322 = vrot.slane %v4117, 1
  %v4323 = vsel %vm476, %v4320, %v4322
  %v4324 = vrot.slane %v4118, 1
  %v4325 = vrot.slane %v4119, 1
  %v4326 = vsel %vm476, %v4324, %v4325
  %v4327 = vrot.slane %v4120, 1
  %v4328 = vsel %vm476, %v4325, %v4327
  %v4329 = vrot.slane %v4121, 1
  %v4330 = vrot.slane %v4122, 1
  %v4331 = vsel %vm476, %v4329, %v4330
  %v4332 = vrot.slane %v4123, 1
  %v4333 = vsel %vm476, %v4330, %v4332
  %v4334 = vrot.slane %v4124, 1
  %v4335 = vrot.slane %v4125, 1
  %v4336 = vsel %vm476, %v4334, %v4335
  %v4337 = vrot.slane %v4126, 1
  %v4338 = vsel %vm476, %v4335, %v4337
  %v4339 = vrot.slane %v4127, 1
  %v4340 = vrot.slane %v4128, 1
  %v4341 = vsel %vm476, %v4339, %v4340
  %v4342 = vrot.slane %v4129, 1
  %v4343 = vsel %vm476, %v4340, %v4342
  %v4344 = vrot.slane %v4130, 1
  %v4345 = vrot.slane %v4131, 1
  %v4346 = vsel %vm476, %v4344, %v4345
  %v4347 = vrot.slane %v4132, 1
  %v4348 = vsel %vm476, %v4345, %v4347
  %v4349 = vrot.slane %v4133, 1
  %v4350 = vrot.slane %v4134, 1
  %v4351 = vsel %vm476, %v4349, %v4350
  %v4352 = vrot.slane %v4135, 1
  %v4353 = vsel %vm476, %v4350, %v4352
  %v4354 = vrot.slane %v4136, 1
  %v4355 = vrot.slane %v4137, 1
  %v4356 = vsel %vm476, %v4354, %v4355
  %v4357 = vrot.slane %v4138, 1
  %v4358 = vsel %vm476, %v4355, %v4357
  %v4359 = vrot.slane %v4139, 1
  %v4360 = vrot.slane %v4140, 1
  %v4361 = vsel %vm476, %v4359, %v4360
  %v4362 = vrot.slane %v4141, 1
  %v4363 = vsel %vm476, %v4360, %v4362
  %v4364 = vrot.slane %v4142, 1
  %v4365 = vrot.slane %v4143, 1
  %v4366 = vsel %vm476, %v4364, %v4365
  %v4367 = vrot.slane %v4144, 1
  %v4368 = vsel %vm476, %v4365, %v4367
  %v4369 = vrot.slane %v4145, 1
  %v4370 = vrot.slane %v4146, 1
  %v4371 = vsel %vm476, %v4369, %v4370
  %v4372 = vrot.slane %v4147, 1
  %v4373 = vsel %vm476, %v4370, %v4372
  %v4374 = vrot.slane %v4148, 1
  %v4375 = vrot.slane %v4149, 1
  %v4376 = vsel %vm476, %v4374, %v4375
  %v4377 = vrot.slane %v4150, 1
  %v4378 = vsel %vm476, %v4375, %v4377
  %v4379 = vrot.slane %v4151, 1
  %v4380 = vrot.slane %v4152, 1
  %v4381 = vsel %vm476, %v4379, %v4380
  %v4382 = vrot.slane %v4153, 1
  %v4383 = vsel %vm476, %v4380, %v4382
  %v4384 = vrot.slane %v4154, 1
  %v4385 = vrot.slane %v4155, 1
  %v4386 = vsel %vm476, %v4384, %v4385
  %v4387 = vrot.slane %v4156, 1
  %v4388 = vsel %vm476, %v4385, %v4387
  %v4389 = vrot.slane %v4157, 1
  %v4390 = vrot.slane %v4158, 1
  %v4391 = vsel %vm476, %v4389, %v4390
  %v4392 = vrot.slane %v4159, 1
  %v4393 = vsel %vm476, %v4390, %v4392
  %v4394 = vrot.slane %v4160, 1
  %v4395 = vrot.slane %v4161, 1
  %v4396 = vsel %vm476, %v4394, %v4395
  %v4397 = vrot.slane %v4162, 1
  %v4398 = vsel %vm476, %v4395, %v4397
  %v4399 = vrot.slane %v4169, 1
  %v4400 = vrot.slane %v4170, 1
  %v4401 = vsel %vm476, %v4399, %v4400
  %v4402 = vrot.slane %v4171, 1
  %v4403 = vsel %vm476, %v4400, %v4402
  %v4404 = vrot.slane %v4172, 1
  %v4405 = vrot.slane %v4173, 1
  %v4406 = vsel %vm476, %v4404, %v4405
  %v4407 = vrot.slane %v4174, 1
  %v4408 = vsel %vm476, %v4405, %v4407
  %v4409 = vrot.slane %v4175, 1
  %v4410 = vrot.slane %v4176, 1
  %v4411 = vsel %vm476, %v4409, %v4410
  %v4412 = vrot.slane %v4177, 1
  %v4413 = vsel %vm476, %v4410, %v4412
  %v4414 = vrot.slane %v4178, 1
  %v4415 = vrot.slane %v4179, 1
  %v4416 = vsel %vm476, %v4414, %v4415
  %v4417 = vrot.slane %v4180, 1
  %v4418 = vsel %vm476, %v4415, %v4417
  %v4419 = vrot.slane %v4181, 1
  %v4420 = vrot.slane %v4182, 1
  %v4421 = vsel %vm476, %v4419, %v4420
  %v4422 = vrot.slane %v4183, 1
  %v4423 = vsel %vm476, %v4420, %v4422
  %v4424 = vrot.slane %v4184, 1
  %v4425 = vrot.slane %v4185, 1
  %v4426 = vsel %vm476, %v4424, %v4425
  %v4427 = vrot.slane %v4186, 1
  %v4428 = vsel %vm476, %v4425, %v4427
  %v4429 = vrot.slane %v4187, 1
  %v4430 = vrot.slane %v4188, 1
  %v4431 = vsel %vm476, %v4429, %v4430
  %v4432 = vrot.slane %v4189, 1
  %v4433 = vsel %vm476, %v4430, %v4432
  %v4434 = vrot.slane %v4190, 1
  %v4435 = vrot.slane %v4191, 1
  %v4436 = vsel %vm476, %v4434, %v4435
  %v4437 = vrot.slane %v4192, 1
  %v4438 = vsel %vm476, %v4435, %v4437
  %v4439 = vrot.slane %v4193, 1
  %v4440 = vrot.slane %v4194, 1
  %v4441 = vsel %vm476, %v4439, %v4440
  %v4442 = vrot.slane %v4195, 1
  %v4443 = vsel %vm476, %v4440, %v4442
  %v4444 = vrot.slane %v4196, 1
  %v4445 = vrot.slane %v4197, 1
  %v4446 = vsel %vm476, %v4444, %v4445
  %v4447 = vrot.slane %v4198, 1
  %v4448 = vsel %vm476, %v4445, %v4447
  %v4449 = vrot.slane %v4199, 1
  %v4450 = vrot.slane %v4200, 1
  %v4451 = vsel %vm476, %v4449, %v4450
  %v4452 = vrot.slane %v4201, 1
  %v4453 = vsel %vm476, %v4450, %v4452
  %v4454 = vrot.slane %v4202, 1
  %v4455 = vrot.slane %v4203, 1
  %v4456 = vsel %vm476, %v4454, %v4455
  %v4457 = vrot.slane %v4204, 1
  %v4458 = vsel %vm476, %v4455, %v4457
  %v4459 = vrot.slane %v4205, 1
  %v4460 = vrot.slane %v4206, 1
  %v4461 = vsel %vm476, %v4459, %v4460
  %v4462 = vrot.slane %v4207, 1
  %v4463 = vsel %vm476, %v4460, %v4462
  %v4464 = vrot.slane %v4208, 1
  %v4465 = vrot.slane %v4209, 1
  %v4466 = vsel %vm476, %v4464, %v4465
  %v4467 = vrot.slane %v4210, 1
  %v4468 = vsel %vm476, %v4465, %v4467
  %v4469 = vrot.slane %v4211, 1
  %v4470 = vrot.slane %v4212, 1
  %v4471 = vsel %vm476, %v4469, %v4470
  %v4472 = vrot.slane %v4213, 1
  %v4473 = vsel %vm476, %v4470, %v4472
  %v4474 = vrot.slane %v4214, 1
  %v4475 = vrot.slane %v4215, 1
  %v4476 = vsel %vm476, %v4474, %v4475
  %v4477 = vrot.slane %v4216, 1
  %v4478 = vsel %vm476, %v4475, %v4477
  %v4479 = vrot.slane %v4115, 2
  %v4480 = vrot.slane %v4116, 2
  %v4481 = vsel %vm637, %v4479, %v4480
  %v4482 = vrot.slane %v4117, 2
  %v4483 = vsel %vm637, %v4480, %v4482
  %v4484 = vrot.slane %v4118, 2
  %v4485 = vrot.slane %v4119, 2
  %v4486 = vsel %vm637, %v4484, %v4485
  %v4487 = vrot.slane %v4120, 2
  %v4488 = vsel %vm637, %v4485, %v4487
  %v4489 = vrot.slane %v4121, 2
  %v4490 = vrot.slane %v4122, 2
  %v4491 = vsel %vm637, %v4489, %v4490
  %v4492 = vrot.slane %v4123, 2
  %v4493 = vsel %vm637, %v4490, %v4492
  %v4494 = vrot.slane %v4124, 2
  %v4495 = vrot.slane %v4125, 2
  %v4496 = vsel %vm637, %v4494, %v4495
  %v4497 = vrot.slane %v4126, 2
  %v4498 = vsel %vm637, %v4495, %v4497
  %v4499 = vrot.slane %v4127, 2
  %v4500 = vrot.slane %v4128, 2
  %v4501 = vsel %vm637, %v4499, %v4500
  %v4502 = vrot.slane %v4129, 2
  %v4503 = vsel %vm637, %v4500, %v4502
  %v4504 = vrot.slane %v4130, 2
  %v4505 = vrot.slane %v4131, 2
  %v4506 = vsel %vm637, %v4504, %v4505
  %v4507 = vrot.slane %v4132, 2
  %v4508 = vsel %vm637, %v4505, %v4507
  %v4509 = vrot.slane %v4133, 2
  %v4510 = vrot.slane %v4134, 2
  %v4511 = vsel %vm637, %v4509, %v4510
  %v4512 = vrot.slane %v4135, 2
  %v4513 = vsel %vm637, %v4510, %v4512
  %v4514 = vrot.slane %v4136, 2
  %v4515 = vrot.slane %v4137, 2
  %v4516 = vsel %vm637, %v4514, %v4515
  %v4517 = vrot.slane %v4138, 2
  %v4518 = vsel %vm637, %v4515, %v4517
  %v4519 = vrot.slane %v4139, 2
  %v4520 = vrot.slane %v4140, 2
  %v4521 = vsel %vm637, %v4519, %v4520
  %v4522 = vrot.slane %v4141, 2
  %v4523 = vsel %vm637, %v4520, %v4522
  %v4524 = vrot.slane %v4142, 2
  %v4525 = vrot.slane %v4143, 2
  %v4526 = vsel %vm637, %v4524, %v4525
  %v4527 = vrot.slane %v4144, 2
  %v4528 = vsel %vm637, %v4525, %v4527
  %v4529 = vrot.slane %v4145, 2
  %v4530 = vrot.slane %v4146, 2
  %v4531 = vsel %vm637, %v4529, %v4530
  %v4532 = vrot.slane %v4147, 2
  %v4533 = vsel %vm637, %v4530, %v4532
  %v4534 = vrot.slane %v4148, 2
  %v4535 = vrot.slane %v4149, 2
  %v4536 = vsel %vm637, %v4534, %v4535
  %v4537 = vrot.slane %v4150, 2
  %v4538 = vsel %vm637, %v4535, %v4537
  %v4539 = vrot.slane %v4151, 2
  %v4540 = vrot.slane %v4152, 2
  %v4541 = vsel %vm637, %v4539, %v4540
  %v4542 = vrot.slane %v4153, 2
  %v4543 = vsel %vm637, %v4540, %v4542
  %v4544 = vrot.slane %v4154, 2
  %v4545 = vrot.slane %v4155, 2
  %v4546 = vsel %vm637, %v4544, %v4545
  %v4547 = vrot.slane %v4156, 2
  %v4548 = vsel %vm637, %v4545, %v4547
  %v4549 = vrot.slane %v4157, 2
  %v4550 = vrot.slane %v4158, 2
  %v4551 = vsel %vm637, %v4549, %v4550
  %v4552 = vrot.slane %v4159, 2
  %v4553 = vsel %vm637, %v4550, %v4552
  %v4554 = vrot.slane %v4160, 2
  %v4555 = vrot.slane %v4161, 2
  %v4556 = vsel %vm637, %v4554, %v4555
  %v4557 = vrot.slane %v4162, 2
  %v4558 = vsel %vm637, %v4555, %v4557
  %v4559 = vrot.slane %v4169, 2
  %v4560 = vrot.slane %v4170, 2
  %v4561 = vsel %vm637, %v4559, %v4560
  %v4562 = vrot.slane %v4171, 2
  %v4563 = vsel %vm637, %v4560, %v4562
  %v4564 = vrot.slane %v4172, 2
  %v4565 = vrot.slane %v4173, 2
  %v4566 = vsel %vm637, %v4564, %v4565
  %v4567 = vrot.slane %v4174, 2
  %v4568 = vsel %vm637, %v4565, %v4567
  %v4569 = vrot.slane %v4175, 2
  %v4570 = vrot.slane %v4176, 2
  %v4571 = vsel %vm637, %v4569, %v4570
  %v4572 = vrot.slane %v4177, 2
  %v4573 = vsel %vm637, %v4570, %v4572
  %v4574 = vrot.slane %v4178, 2
  %v4575 = vrot.slane %v4179, 2
  %v4576 = vsel %vm637, %v4574, %v4575
  %v4577 = vrot.slane %v4180, 2
  %v4578 = vsel %vm637, %v4575, %v4577
  %v4579 = vrot.slane %v4181, 2
  %v4580 = vrot.slane %v4182, 2
  %v4581 = vsel %vm637, %v4579, %v4580
  %v4582 = vrot.slane %v4183, 2
  %v4583 = vsel %vm637, %v4580, %v4582
  %v4584 = vrot.slane %v4184, 2
  %v4585 = vrot.slane %v4185, 2
  %v4586 = vsel %vm637, %v4584, %v4585
  %v4587 = vrot.slane %v4186, 2
  %v4588 = vsel %vm637, %v4585, %v4587
  %v4589 = vrot.slane %v4187, 2
  %v4590 = vrot.slane %v4188, 2
  %v4591 = vsel %vm637, %v4589, %v4590
  %v4592 = vrot.slane %v4189, 2
  %v4593 = vsel %vm637, %v4590, %v4592
  %v4594 = vrot.slane %v4190, 2
  %v4595 = vrot.slane %v4191, 2
  %v4596 = vsel %vm637, %v4594, %v4595
  %v4597 = vrot.slane %v4192, 2
  %v4598 = vsel %vm637, %v4595, %v4597
  %v4599 = vrot.slane %v4193, 2
  %v4600 = vrot.slane %v4194, 2
  %v4601 = vsel %vm637, %v4599, %v4600
  %v4602 = vrot.slane %v4195, 2
  %v4603 = vsel %vm637, %v4600, %v4602
  %v4604 = vrot.slane %v4196, 2
  %v4605 = vrot.slane %v4197, 2
  %v4606 = vsel %vm637, %v4604, %v4605
  %v4607 = vrot.slane %v4198, 2
  %v4608 = vsel %vm637, %v4605, %v4607
  %v4609 = vrot.slane %v4199, 2
  %v4610 = vrot.slane %v4200, 2
  %v4611 = vsel %vm637, %v4609, %v4610
  %v4612 = vrot.slane %v4201, 2
  %v4613 = vsel %vm637, %v4610, %v4612
  %v4614 = vrot.slane %v4202, 2
  %v4615 = vrot.slane %v4203, 2
  %v4616 = vsel %vm637, %v4614, %v4615
  %v4617 = vrot.slane %v4204, 2
  %v4618 = vsel %vm637, %v4615, %v4617
  %v4619 = vrot.slane %v4205, 2
  %v4620 = vrot.slane %v4206, 2
  %v4621 = vsel %vm637, %v4619, %v4620
  %v4622 = vrot.slane %v4207, 2
  %v4623 = vsel %vm637, %v4620, %v4622
  %v4624 = vrot.slane %v4208, 2
  %v4625 = vrot.slane %v4209, 2
  %v4626 = vsel %vm637, %v4624, %v4625
  %v4627 = vrot.slane %v4210, 2
  %v4628 = vsel %vm637, %v4625, %v4627
  %v4629 = vrot.slane %v4211, 2
  %v4630 = vrot.slane %v4212, 2
  %v4631 = vsel %vm637, %v4629, %v4630
  %v4632 = vrot.slane %v4213, 2
  %v4633 = vsel %vm637, %v4630, %v4632
  %v4634 = vrot.slane %v4214, 2
  %v4635 = vrot.slane %v4215, 2
  %v4636 = vsel %vm637, %v4634, %v4635
  %v4637 = vrot.slane %v4216, 2
  %v4638 = vsel %vm637, %v4635, %v4637
  %v4645 = vrot.slane %v4163, 1
  %v4646 = vrot.slane %v4164, 1
  %v4647 = vsel %vm476, %v4645, %v4646
  %v4648 = vrot.slane %v4165, 1
  %v4649 = vsel %vm476, %v4646, %v4648
  %v4650 = vrot.slane %v4217, 1
  %v4651 = vrot.slane %v4218, 1
  %v4652 = vsel %vm476, %v4650, %v4651
  %v4653 = vrot.slane %v4219, 1
  %v4654 = vsel %vm476, %v4651, %v4653
  %v4655 = vrot.slane %v4163, 2
  %v4656 = vrot.slane %v4164, 2
  %v4657 = vsel %vm637, %v4655, %v4656
  %v4658 = vrot.slane %v4165, 2
  %v4659 = vsel %vm637, %v4656, %v4658
  %v4660 = vrot.slane %v4217, 2
  %v4661 = vrot.slane %v4218, 2
  %v4662 = vsel %vm637, %v4660, %v4661
  %v4663 = vrot.slane %v4219, 2
  %v4664 = vsel %vm637, %v4661, %v4663
  %v4671 = vrot.slane %v4166, 1
  %v4672 = vrot.slane %v4167, 1
  %v4673 = vsel %vm476, %v4671, %v4672
  %v4674 = vrot.slane %v4168, 1
  %v4675 = vsel %vm476, %v4672, %v4674
  %v4676 = vrot.slane %v4220, 1
  %v4677 = vrot.slane %v4221, 1
  %v4678 = vsel %vm476, %v4676, %v4677
  %v4679 = vrot.slane %v4222, 1
  %v4680 = vsel %vm476, %v4677, %v4679
  %v4681 = vrot.slane %v4166, 2
  %v4682 = vrot.slane %v4167, 2
  %v4683 = vsel %vm637, %v4681, %v4682
  %v4684 = vrot.slane %v4168, 2
  %v4685 = vsel %vm637, %v4682, %v4684
  %v4686 = vrot.slane %v4220, 2
  %v4687 = vrot.slane %v4221, 2
  %v4688 = vsel %vm637, %v4686, %v4687
  %v4689 = vrot.slane %v4222, 2
  %v4690 = vsel %vm637, %v4687, %v4689
  %4691 = vrot.lane.b32.xlu0 %v4321, 4
  %v4692 = vpop.permute.xlu0 %4691
  %4693 = vrot.lane.b32.xlu0 %v4323, 4
  %v4694 = vpop.permute.xlu0 %4693
  %4695 = vrot.lane.b32.xlu0 %v4326, 4
  %v4696 = vpop.permute.xlu0 %4695
  %4697 = vrot.lane.b32.xlu0 %v4328, 4
  %v4698 = vpop.permute.xlu0 %4697
  %4699 = vrot.lane.b32.xlu0 %v4331, 4
  %v4700 = vpop.permute.xlu0 %4699
  %4701 = vrot.lane.b32.xlu0 %v4333, 4
  %v4702 = vpop.permute.xlu0 %4701
  %4703 = vrot.lane.b32.xlu0 %v4336, 4
  %v4704 = vpop.permute.xlu0 %4703
  %4705 = vrot.lane.b32.xlu0 %v4338, 4
  %v4706 = vpop.permute.xlu0 %4705
  %4707 = vrot.lane.b32.xlu0 %v4341, 4
  %v4708 = vpop.permute.xlu0 %4707
  %4709 = vrot.lane.b32.xlu0 %v4343, 4
  %v4710 = vpop.permute.xlu0 %4709
  %4711 = vrot.lane.b32.xlu0 %v4346, 4
  %v4712 = vpop.permute.xlu0 %4711
  %4713 = vrot.lane.b32.xlu0 %v4348, 4
  %v4714 = vpop.permute.xlu0 %4713
  %4715 = vrot.lane.b32.xlu0 %v4351, 4
  %v4716 = vpop.permute.xlu0 %4715
  %4717 = vrot.lane.b32.xlu0 %v4353, 4
  %v4718 = vpop.permute.xlu0 %4717
  %4719 = vrot.lane.b32.xlu0 %v4356, 4
  %v4720 = vpop.permute.xlu0 %4719
  %4721 = vrot.lane.b32.xlu0 %v4358, 4
  %v4722 = vpop.permute.xlu0 %4721
  %4723 = vrot.lane.b32.xlu0 %v4361, 4
  %v4724 = vpop.permute.xlu0 %4723
  %4725 = vrot.lane.b32.xlu0 %v4363, 4
  %v4726 = vpop.permute.xlu0 %4725
  %4727 = vrot.lane.b32.xlu0 %v4366, 4
  %v4728 = vpop.permute.xlu0 %4727
  %4729 = vrot.lane.b32.xlu0 %v4368, 4
  %v4730 = vpop.permute.xlu0 %4729
  %4731 = vrot.lane.b32.xlu0 %v4371, 4
  %v4732 = vpop.permute.xlu0 %4731
  %4733 = vrot.lane.b32.xlu0 %v4373, 4
  %v4734 = vpop.permute.xlu0 %4733
  %4735 = vrot.lane.b32.xlu0 %v4376, 4
  %v4736 = vpop.permute.xlu0 %4735
  %4737 = vrot.lane.b32.xlu0 %v4378, 4
  %v4738 = vpop.permute.xlu0 %4737
  %4739 = vrot.lane.b32.xlu0 %v4381, 4
  %v4740 = vpop.permute.xlu0 %4739
  %4741 = vrot.lane.b32.xlu0 %v4383, 4
  %v4742 = vpop.permute.xlu0 %4741
  %4743 = vrot.lane.b32.xlu0 %v4386, 4
  %v4744 = vpop.permute.xlu0 %4743
  %4745 = vrot.lane.b32.xlu0 %v4388, 4
  %v4746 = vpop.permute.xlu0 %4745
  %4747 = vrot.lane.b32.xlu0 %v4391, 4
  %v4748 = vpop.permute.xlu0 %4747
  %4749 = vrot.lane.b32.xlu0 %v4393, 4
  %v4750 = vpop.permute.xlu0 %4749
  %4751 = vrot.lane.b32.xlu0 %v4396, 4
  %v4752 = vpop.permute.xlu0 %4751
  %4753 = vrot.lane.b32.xlu0 %v4398, 4
  %v4754 = vpop.permute.xlu0 %4753
  %4755 = vrot.lane.b32.xlu0 %v4401, 4
  %v4756 = vpop.permute.xlu0 %4755
  %4757 = vrot.lane.b32.xlu0 %v4403, 4
  %v4758 = vpop.permute.xlu0 %4757
  %4759 = vrot.lane.b32.xlu0 %v4406, 4
  %v4760 = vpop.permute.xlu0 %4759
  %4761 = vrot.lane.b32.xlu0 %v4408, 4
  %v4762 = vpop.permute.xlu0 %4761
  %4763 = vrot.lane.b32.xlu0 %v4411, 4
  %v4764 = vpop.permute.xlu0 %4763
  %4765 = vrot.lane.b32.xlu0 %v4413, 4
  %v4766 = vpop.permute.xlu0 %4765
  %4767 = vrot.lane.b32.xlu0 %v4416, 4
  %v4768 = vpop.permute.xlu0 %4767
  %4769 = vrot.lane.b32.xlu0 %v4418, 4
  %v4770 = vpop.permute.xlu0 %4769
  %4771 = vrot.lane.b32.xlu0 %v4421, 4
  %v4772 = vpop.permute.xlu0 %4771
  %4773 = vrot.lane.b32.xlu0 %v4423, 4
  %v4774 = vpop.permute.xlu0 %4773
  %4775 = vrot.lane.b32.xlu0 %v4426, 4
  %v4776 = vpop.permute.xlu0 %4775
  %4777 = vrot.lane.b32.xlu0 %v4428, 4
  %v4778 = vpop.permute.xlu0 %4777
  %4779 = vrot.lane.b32.xlu0 %v4431, 4
  %v4780 = vpop.permute.xlu0 %4779
  %4781 = vrot.lane.b32.xlu0 %v4433, 4
  %v4782 = vpop.permute.xlu0 %4781
  %4783 = vrot.lane.b32.xlu0 %v4436, 4
  %v4784 = vpop.permute.xlu0 %4783
  %4785 = vrot.lane.b32.xlu0 %v4438, 4
  %v4786 = vpop.permute.xlu0 %4785
  %4787 = vrot.lane.b32.xlu0 %v4441, 4
  %v4788 = vpop.permute.xlu0 %4787
  %4789 = vrot.lane.b32.xlu0 %v4443, 4
  %v4790 = vpop.permute.xlu0 %4789
  %4791 = vrot.lane.b32.xlu0 %v4446, 4
  %v4792 = vpop.permute.xlu0 %4791
  %4793 = vrot.lane.b32.xlu0 %v4448, 4
  %v4794 = vpop.permute.xlu0 %4793
  %4795 = vrot.lane.b32.xlu0 %v4451, 4
  %v4796 = vpop.permute.xlu0 %4795
  %4797 = vrot.lane.b32.xlu0 %v4453, 4
  %v4798 = vpop.permute.xlu0 %4797
  %4799 = vrot.lane.b32.xlu0 %v4456, 4
  %v4800 = vpop.permute.xlu0 %4799
  %4801 = vrot.lane.b32.xlu0 %v4458, 4
  %v4802 = vpop.permute.xlu0 %4801
  %4803 = vrot.lane.b32.xlu0 %v4461, 4
  %v4804 = vpop.permute.xlu0 %4803
  %4805 = vrot.lane.b32.xlu0 %v4463, 4
  %v4806 = vpop.permute.xlu0 %4805
  %4807 = vrot.lane.b32.xlu0 %v4466, 4
  %v4808 = vpop.permute.xlu0 %4807
  %4809 = vrot.lane.b32.xlu0 %v4468, 4
  %v4810 = vpop.permute.xlu0 %4809
  %4811 = vrot.lane.b32.xlu0 %v4471, 4
  %v4812 = vpop.permute.xlu0 %4811
  %4813 = vrot.lane.b32.xlu0 %v4473, 4
  %v4814 = vpop.permute.xlu0 %4813
  %4815 = vrot.lane.b32.xlu0 %v4476, 4
  %v4816 = vpop.permute.xlu0 %4815
  %4817 = vrot.lane.b32.xlu0 %v4478, 4
  %v4818 = vpop.permute.xlu0 %4817
  %4883 = vrot.lane.b32.xlu0 %v4481, 8
  %v4884 = vpop.permute.xlu0 %4883
  %4885 = vrot.lane.b32.xlu0 %v4483, 8
  %v4886 = vpop.permute.xlu0 %4885
  %4887 = vrot.lane.b32.xlu0 %v4486, 8
  %v4888 = vpop.permute.xlu0 %4887
  %4889 = vrot.lane.b32.xlu0 %v4488, 8
  %v4890 = vpop.permute.xlu0 %4889
  %4891 = vrot.lane.b32.xlu0 %v4491, 8
  %v4892 = vpop.permute.xlu0 %4891
  %4893 = vrot.lane.b32.xlu0 %v4493, 8
  %v4894 = vpop.permute.xlu0 %4893
  %4895 = vrot.lane.b32.xlu0 %v4496, 8
  %v4896 = vpop.permute.xlu0 %4895
  %4897 = vrot.lane.b32.xlu0 %v4498, 8
  %v4898 = vpop.permute.xlu0 %4897
  %4899 = vrot.lane.b32.xlu0 %v4501, 8
  %v4900 = vpop.permute.xlu0 %4899
  %4901 = vrot.lane.b32.xlu0 %v4503, 8
  %v4902 = vpop.permute.xlu0 %4901
  %4903 = vrot.lane.b32.xlu0 %v4506, 8
  %v4904 = vpop.permute.xlu0 %4903
  %4905 = vrot.lane.b32.xlu0 %v4508, 8
  %v4906 = vpop.permute.xlu0 %4905
  %4907 = vrot.lane.b32.xlu0 %v4511, 8
  %v4908 = vpop.permute.xlu0 %4907
  %4909 = vrot.lane.b32.xlu0 %v4513, 8
  %v4910 = vpop.permute.xlu0 %4909
  %4911 = vrot.lane.b32.xlu0 %v4516, 8
  %v4912 = vpop.permute.xlu0 %4911
  %4913 = vrot.lane.b32.xlu0 %v4518, 8
  %v4914 = vpop.permute.xlu0 %4913
  %4915 = vrot.lane.b32.xlu0 %v4521, 8
  %v4916 = vpop.permute.xlu0 %4915
  %4917 = vrot.lane.b32.xlu0 %v4523, 8
  %v4918 = vpop.permute.xlu0 %4917
  %4919 = vrot.lane.b32.xlu0 %v4526, 8
  %v4920 = vpop.permute.xlu0 %4919
  %4921 = vrot.lane.b32.xlu0 %v4528, 8
  %v4922 = vpop.permute.xlu0 %4921
  %4923 = vrot.lane.b32.xlu0 %v4531, 8
  %v4924 = vpop.permute.xlu0 %4923
  %4925 = vrot.lane.b32.xlu0 %v4533, 8
  %v4926 = vpop.permute.xlu0 %4925
  %4927 = vrot.lane.b32.xlu0 %v4536, 8
  %v4928 = vpop.permute.xlu0 %4927
  %4929 = vrot.lane.b32.xlu0 %v4538, 8
  %v4930 = vpop.permute.xlu0 %4929
  %4931 = vrot.lane.b32.xlu0 %v4541, 8
  %v4932 = vpop.permute.xlu0 %4931
  %4933 = vrot.lane.b32.xlu0 %v4543, 8
  %v4934 = vpop.permute.xlu0 %4933
  %4935 = vrot.lane.b32.xlu0 %v4546, 8
  %v4936 = vpop.permute.xlu0 %4935
  %4937 = vrot.lane.b32.xlu0 %v4548, 8
  %v4938 = vpop.permute.xlu0 %4937
  %4939 = vrot.lane.b32.xlu0 %v4551, 8
  %v4940 = vpop.permute.xlu0 %4939
  %4941 = vrot.lane.b32.xlu0 %v4553, 8
  %v4942 = vpop.permute.xlu0 %4941
  %4943 = vrot.lane.b32.xlu0 %v4556, 8
  %v4944 = vpop.permute.xlu0 %4943
  %4945 = vrot.lane.b32.xlu0 %v4558, 8
  %v4946 = vpop.permute.xlu0 %4945
  %4947 = vrot.lane.b32.xlu0 %v4561, 8
  %v4948 = vpop.permute.xlu0 %4947
  %4949 = vrot.lane.b32.xlu0 %v4563, 8
  %v4950 = vpop.permute.xlu0 %4949
  %4951 = vrot.lane.b32.xlu0 %v4566, 8
  %v4952 = vpop.permute.xlu0 %4951
  %4953 = vrot.lane.b32.xlu0 %v4568, 8
  %v4954 = vpop.permute.xlu0 %4953
  %4955 = vrot.lane.b32.xlu0 %v4571, 8
  %v4956 = vpop.permute.xlu0 %4955
  %4957 = vrot.lane.b32.xlu0 %v4573, 8
  %v4958 = vpop.permute.xlu0 %4957
  %4959 = vrot.lane.b32.xlu0 %v4576, 8
  %v4960 = vpop.permute.xlu0 %4959
  %4961 = vrot.lane.b32.xlu0 %v4578, 8
  %v4962 = vpop.permute.xlu0 %4961
  %4963 = vrot.lane.b32.xlu0 %v4581, 8
  %v4964 = vpop.permute.xlu0 %4963
  %4965 = vrot.lane.b32.xlu0 %v4583, 8
  %v4966 = vpop.permute.xlu0 %4965
  %4967 = vrot.lane.b32.xlu0 %v4586, 8
  %v4968 = vpop.permute.xlu0 %4967
  %4969 = vrot.lane.b32.xlu0 %v4588, 8
  %v4970 = vpop.permute.xlu0 %4969
  %4971 = vrot.lane.b32.xlu0 %v4591, 8
  %v4972 = vpop.permute.xlu0 %4971
  %4973 = vrot.lane.b32.xlu0 %v4593, 8
  %v4974 = vpop.permute.xlu0 %4973
  %4975 = vrot.lane.b32.xlu0 %v4596, 8
  %v4976 = vpop.permute.xlu0 %4975
  %4977 = vrot.lane.b32.xlu0 %v4598, 8
  %v4978 = vpop.permute.xlu0 %4977
  %4979 = vrot.lane.b32.xlu0 %v4601, 8
  %v4980 = vpop.permute.xlu0 %4979
  %4981 = vrot.lane.b32.xlu0 %v4603, 8
  %v4982 = vpop.permute.xlu0 %4981
  %4983 = vrot.lane.b32.xlu0 %v4606, 8
  %v4984 = vpop.permute.xlu0 %4983
  %4985 = vrot.lane.b32.xlu0 %v4608, 8
  %v4986 = vpop.permute.xlu0 %4985
  %4987 = vrot.lane.b32.xlu0 %v4611, 8
  %v4988 = vpop.permute.xlu0 %4987
  %4989 = vrot.lane.b32.xlu0 %v4613, 8
  %v4990 = vpop.permute.xlu0 %4989
  %4991 = vrot.lane.b32.xlu0 %v4616, 8
  %v4992 = vpop.permute.xlu0 %4991
  %4993 = vrot.lane.b32.xlu0 %v4618, 8
  %v4994 = vpop.permute.xlu0 %4993
  %4995 = vrot.lane.b32.xlu0 %v4621, 8
  %v4996 = vpop.permute.xlu0 %4995
  %4997 = vrot.lane.b32.xlu0 %v4623, 8
  %v4998 = vpop.permute.xlu0 %4997
  %4999 = vrot.lane.b32.xlu0 %v4626, 8
  %v5000 = vpop.permute.xlu0 %4999
  %5001 = vrot.lane.b32.xlu0 %v4628, 8
  %v5002 = vpop.permute.xlu0 %5001
  %5003 = vrot.lane.b32.xlu0 %v4631, 8
  %v5004 = vpop.permute.xlu0 %5003
  %5005 = vrot.lane.b32.xlu0 %v4633, 8
  %v5006 = vpop.permute.xlu0 %5005
  %5007 = vrot.lane.b32.xlu0 %v4636, 8
  %v5008 = vpop.permute.xlu0 %5007
  %5009 = vrot.lane.b32.xlu0 %v4638, 8
  %v5010 = vpop.permute.xlu0 %5009
  %5075 = vrot.lane.b32.xlu0 %v4118, 12
  %v5076 = vpop.permute.xlu0 %5075
  %5077 = vrot.lane.b32.xlu0 %v4119, 12
  %v5078 = vpop.permute.xlu0 %5077
  %5079 = vrot.lane.b32.xlu0 %v4121, 12
  %v5080 = vpop.permute.xlu0 %5079
  %5081 = vrot.lane.b32.xlu0 %v4122, 12
  %v5082 = vpop.permute.xlu0 %5081
  %5083 = vrot.lane.b32.xlu0 %v4124, 12
  %v5084 = vpop.permute.xlu0 %5083
  %5085 = vrot.lane.b32.xlu0 %v4125, 12
  %v5086 = vpop.permute.xlu0 %5085
  %5087 = vrot.lane.b32.xlu0 %v4127, 12
  %v5088 = vpop.permute.xlu0 %5087
  %5089 = vrot.lane.b32.xlu0 %v4128, 12
  %v5090 = vpop.permute.xlu0 %5089
  %5091 = vrot.lane.b32.xlu0 %v4130, 12
  %v5092 = vpop.permute.xlu0 %5091
  %5093 = vrot.lane.b32.xlu0 %v4131, 12
  %v5094 = vpop.permute.xlu0 %5093
  %5095 = vrot.lane.b32.xlu0 %v4133, 12
  %v5096 = vpop.permute.xlu0 %5095
  %5097 = vrot.lane.b32.xlu0 %v4134, 12
  %v5098 = vpop.permute.xlu0 %5097
  %5099 = vrot.lane.b32.xlu0 %v4136, 12
  %v5100 = vpop.permute.xlu0 %5099
  %5101 = vrot.lane.b32.xlu0 %v4137, 12
  %v5102 = vpop.permute.xlu0 %5101
  %5103 = vrot.lane.b32.xlu0 %v4139, 12
  %v5104 = vpop.permute.xlu0 %5103
  %5105 = vrot.lane.b32.xlu0 %v4140, 12
  %v5106 = vpop.permute.xlu0 %5105
  %5107 = vrot.lane.b32.xlu0 %v4142, 12
  %v5108 = vpop.permute.xlu0 %5107
  %5109 = vrot.lane.b32.xlu0 %v4143, 12
  %v5110 = vpop.permute.xlu0 %5109
  %5111 = vrot.lane.b32.xlu0 %v4145, 12
  %v5112 = vpop.permute.xlu0 %5111
  %5113 = vrot.lane.b32.xlu0 %v4146, 12
  %v5114 = vpop.permute.xlu0 %5113
  %5115 = vrot.lane.b32.xlu0 %v4148, 12
  %v5116 = vpop.permute.xlu0 %5115
  %5117 = vrot.lane.b32.xlu0 %v4149, 12
  %v5118 = vpop.permute.xlu0 %5117
  %5119 = vrot.lane.b32.xlu0 %v4151, 12
  %v5120 = vpop.permute.xlu0 %5119
  %5121 = vrot.lane.b32.xlu0 %v4152, 12
  %v5122 = vpop.permute.xlu0 %5121
  %5123 = vrot.lane.b32.xlu0 %v4154, 12
  %v5124 = vpop.permute.xlu0 %5123
  %5125 = vrot.lane.b32.xlu0 %v4155, 12
  %v5126 = vpop.permute.xlu0 %5125
  %5127 = vrot.lane.b32.xlu0 %v4157, 12
  %v5128 = vpop.permute.xlu0 %5127
  %5129 = vrot.lane.b32.xlu0 %v4158, 12
  %v5130 = vpop.permute.xlu0 %5129
  %5131 = vrot.lane.b32.xlu0 %v4160, 12
  %v5132 = vpop.permute.xlu0 %5131
  %5133 = vrot.lane.b32.xlu0 %v4161, 12
  %v5134 = vpop.permute.xlu0 %5133
  %5135 = vrot.lane.b32.xlu0 %v4163, 12
  %v5136 = vpop.permute.xlu0 %5135
  %5137 = vrot.lane.b32.xlu0 %v4164, 12
  %v5138 = vpop.permute.xlu0 %5137
  %5139 = vrot.lane.b32.xlu0 %v4172, 12
  %v5140 = vpop.permute.xlu0 %5139
  %5141 = vrot.lane.b32.xlu0 %v4173, 12
  %v5142 = vpop.permute.xlu0 %5141
  %5143 = vrot.lane.b32.xlu0 %v4175, 12
  %v5144 = vpop.permute.xlu0 %5143
  %5145 = vrot.lane.b32.xlu0 %v4176, 12
  %v5146 = vpop.permute.xlu0 %5145
  %5147 = vrot.lane.b32.xlu0 %v4178, 12
  %v5148 = vpop.permute.xlu0 %5147
  %5149 = vrot.lane.b32.xlu0 %v4179, 12
  %v5150 = vpop.permute.xlu0 %5149
  %5151 = vrot.lane.b32.xlu0 %v4181, 12
  %v5152 = vpop.permute.xlu0 %5151
  %5153 = vrot.lane.b32.xlu0 %v4182, 12
  %v5154 = vpop.permute.xlu0 %5153
  %5155 = vrot.lane.b32.xlu0 %v4184, 12
  %v5156 = vpop.permute.xlu0 %5155
  %5157 = vrot.lane.b32.xlu0 %v4185, 12
  %v5158 = vpop.permute.xlu0 %5157
  %5159 = vrot.lane.b32.xlu0 %v4187, 12
  %v5160 = vpop.permute.xlu0 %5159
  %5161 = vrot.lane.b32.xlu0 %v4188, 12
  %v5162 = vpop.permute.xlu0 %5161
  %5163 = vrot.lane.b32.xlu0 %v4190, 12
  %v5164 = vpop.permute.xlu0 %5163
  %5165 = vrot.lane.b32.xlu0 %v4191, 12
  %v5166 = vpop.permute.xlu0 %5165
  %5167 = vrot.lane.b32.xlu0 %v4193, 12
  %v5168 = vpop.permute.xlu0 %5167
  %5169 = vrot.lane.b32.xlu0 %v4194, 12
  %v5170 = vpop.permute.xlu0 %5169
  %5171 = vrot.lane.b32.xlu0 %v4196, 12
  %v5172 = vpop.permute.xlu0 %5171
  %5173 = vrot.lane.b32.xlu0 %v4197, 12
  %v5174 = vpop.permute.xlu0 %5173
  %5175 = vrot.lane.b32.xlu0 %v4199, 12
  %v5176 = vpop.permute.xlu0 %5175
  %5177 = vrot.lane.b32.xlu0 %v4200, 12
  %v5178 = vpop.permute.xlu0 %5177
  %5179 = vrot.lane.b32.xlu0 %v4202, 12
  %v5180 = vpop.permute.xlu0 %5179
  %5181 = vrot.lane.b32.xlu0 %v4203, 12
  %v5182 = vpop.permute.xlu0 %5181
  %5183 = vrot.lane.b32.xlu0 %v4205, 12
  %v5184 = vpop.permute.xlu0 %5183
  %5185 = vrot.lane.b32.xlu0 %v4206, 12
  %v5186 = vpop.permute.xlu0 %5185
  %5187 = vrot.lane.b32.xlu0 %v4208, 12
  %v5188 = vpop.permute.xlu0 %5187
  %5189 = vrot.lane.b32.xlu0 %v4209, 12
  %v5190 = vpop.permute.xlu0 %5189
  %5191 = vrot.lane.b32.xlu0 %v4211, 12
  %v5192 = vpop.permute.xlu0 %5191
  %5193 = vrot.lane.b32.xlu0 %v4212, 12
  %v5194 = vpop.permute.xlu0 %5193
  %5195 = vrot.lane.b32.xlu0 %v4214, 12
  %v5196 = vpop.permute.xlu0 %5195
  %5197 = vrot.lane.b32.xlu0 %v4215, 12
  %v5198 = vpop.permute.xlu0 %5197
  %5199 = vrot.lane.b32.xlu0 %v4217, 12
  %v5200 = vpop.permute.xlu0 %5199
  %5201 = vrot.lane.b32.xlu0 %v4218, 12
  %v5202 = vpop.permute.xlu0 %5201
  %5267 = vrot.lane.b32.xlu0 %v4326, 16
  %v5268 = vpop.permute.xlu0 %5267
  %5269 = vrot.lane.b32.xlu0 %v4328, 16
  %v5270 = vpop.permute.xlu0 %5269
  %5271 = vrot.lane.b32.xlu0 %v4331, 16
  %v5272 = vpop.permute.xlu0 %5271
  %5273 = vrot.lane.b32.xlu0 %v4333, 16
  %v5274 = vpop.permute.xlu0 %5273
  %5275 = vrot.lane.b32.xlu0 %v4336, 16
  %v5276 = vpop.permute.xlu0 %5275
  %5277 = vrot.lane.b32.xlu0 %v4338, 16
  %v5278 = vpop.permute.xlu0 %5277
  %5279 = vrot.lane.b32.xlu0 %v4341, 16
  %v5280 = vpop.permute.xlu0 %5279
  %5281 = vrot.lane.b32.xlu0 %v4343, 16
  %v5282 = vpop.permute.xlu0 %5281
  %5283 = vrot.lane.b32.xlu0 %v4346, 16
  %v5284 = vpop.permute.xlu0 %5283
  %5285 = vrot.lane.b32.xlu0 %v4348, 16
  %v5286 = vpop.permute.xlu0 %5285
  %5287 = vrot.lane.b32.xlu0 %v4351, 16
  %v5288 = vpop.permute.xlu0 %5287
  %5289 = vrot.lane.b32.xlu0 %v4353, 16
  %v5290 = vpop.permute.xlu0 %5289
  %5291 = vrot.lane.b32.xlu0 %v4356, 16
  %v5292 = vpop.permute.xlu0 %5291
  %5293 = vrot.lane.b32.xlu0 %v4358, 16
  %v5294 = vpop.permute.xlu0 %5293
  %5295 = vrot.lane.b32.xlu0 %v4361, 16
  %v5296 = vpop.permute.xlu0 %5295
  %5297 = vrot.lane.b32.xlu0 %v4363, 16
  %v5298 = vpop.permute.xlu0 %5297
  %5299 = vrot.lane.b32.xlu0 %v4366, 16
  %v5300 = vpop.permute.xlu0 %5299
  %5301 = vrot.lane.b32.xlu0 %v4368, 16
  %v5302 = vpop.permute.xlu0 %5301
  %5303 = vrot.lane.b32.xlu0 %v4371, 16
  %v5304 = vpop.permute.xlu0 %5303
  %5305 = vrot.lane.b32.xlu0 %v4373, 16
  %v5306 = vpop.permute.xlu0 %5305
  %5307 = vrot.lane.b32.xlu0 %v4376, 16
  %v5308 = vpop.permute.xlu0 %5307
  %5309 = vrot.lane.b32.xlu0 %v4378, 16
  %v5310 = vpop.permute.xlu0 %5309
  %5311 = vrot.lane.b32.xlu0 %v4381, 16
  %v5312 = vpop.permute.xlu0 %5311
  %5313 = vrot.lane.b32.xlu0 %v4383, 16
  %v5314 = vpop.permute.xlu0 %5313
  %5315 = vrot.lane.b32.xlu0 %v4386, 16
  %v5316 = vpop.permute.xlu0 %5315
  %5317 = vrot.lane.b32.xlu0 %v4388, 16
  %v5318 = vpop.permute.xlu0 %5317
  %5319 = vrot.lane.b32.xlu0 %v4391, 16
  %v5320 = vpop.permute.xlu0 %5319
  %5321 = vrot.lane.b32.xlu0 %v4393, 16
  %v5322 = vpop.permute.xlu0 %5321
  %5323 = vrot.lane.b32.xlu0 %v4396, 16
  %v5324 = vpop.permute.xlu0 %5323
  %5325 = vrot.lane.b32.xlu0 %v4398, 16
  %v5326 = vpop.permute.xlu0 %5325
  %5327 = vrot.lane.b32.xlu0 %v4647, 16
  %v5328 = vpop.permute.xlu0 %5327
  %5329 = vrot.lane.b32.xlu0 %v4649, 16
  %v5330 = vpop.permute.xlu0 %5329
  %5331 = vrot.lane.b32.xlu0 %v4406, 16
  %v5332 = vpop.permute.xlu0 %5331
  %5333 = vrot.lane.b32.xlu0 %v4408, 16
  %v5334 = vpop.permute.xlu0 %5333
  %5335 = vrot.lane.b32.xlu0 %v4411, 16
  %v5336 = vpop.permute.xlu0 %5335
  %5337 = vrot.lane.b32.xlu0 %v4413, 16
  %v5338 = vpop.permute.xlu0 %5337
  %5339 = vrot.lane.b32.xlu0 %v4416, 16
  %v5340 = vpop.permute.xlu0 %5339
  %5341 = vrot.lane.b32.xlu0 %v4418, 16
  %v5342 = vpop.permute.xlu0 %5341
  %5343 = vrot.lane.b32.xlu0 %v4421, 16
  %v5344 = vpop.permute.xlu0 %5343
  %5345 = vrot.lane.b32.xlu0 %v4423, 16
  %v5346 = vpop.permute.xlu0 %5345
  %5347 = vrot.lane.b32.xlu0 %v4426, 16
  %v5348 = vpop.permute.xlu0 %5347
  %5349 = vrot.lane.b32.xlu0 %v4428, 16
  %v5350 = vpop.permute.xlu0 %5349
  %5351 = vrot.lane.b32.xlu0 %v4431, 16
  %v5352 = vpop.permute.xlu0 %5351
  %5353 = vrot.lane.b32.xlu0 %v4433, 16
  %v5354 = vpop.permute.xlu0 %5353
  %5355 = vrot.lane.b32.xlu0 %v4436, 16
  %v5356 = vpop.permute.xlu0 %5355
  %5357 = vrot.lane.b32.xlu0 %v4438, 16
  %v5358 = vpop.permute.xlu0 %5357
  %5359 = vrot.lane.b32.xlu0 %v4441, 16
  %v5360 = vpop.permute.xlu0 %5359
  %5361 = vrot.lane.b32.xlu0 %v4443, 16
  %v5362 = vpop.permute.xlu0 %5361
  %5363 = vrot.lane.b32.xlu0 %v4446, 16
  %v5364 = vpop.permute.xlu0 %5363
  %5365 = vrot.lane.b32.xlu0 %v4448, 16
  %v5366 = vpop.permute.xlu0 %5365
  %5367 = vrot.lane.b32.xlu0 %v4451, 16
  %v5368 = vpop.permute.xlu0 %5367
  %5369 = vrot.lane.b32.xlu0 %v4453, 16
  %v5370 = vpop.permute.xlu0 %5369
  %5371 = vrot.lane.b32.xlu0 %v4456, 16
  %v5372 = vpop.permute.xlu0 %5371
  %5373 = vrot.lane.b32.xlu0 %v4458, 16
  %v5374 = vpop.permute.xlu0 %5373
  %5375 = vrot.lane.b32.xlu0 %v4461, 16
  %v5376 = vpop.permute.xlu0 %5375
  %5377 = vrot.lane.b32.xlu0 %v4463, 16
  %v5378 = vpop.permute.xlu0 %5377
  %5379 = vrot.lane.b32.xlu0 %v4466, 16
  %v5380 = vpop.permute.xlu0 %5379
  %5381 = vrot.lane.b32.xlu0 %v4468, 16
  %v5382 = vpop.permute.xlu0 %5381
  %5383 = vrot.lane.b32.xlu0 %v4471, 16
  %v5384 = vpop.permute.xlu0 %5383
  %5385 = vrot.lane.b32.xlu0 %v4473, 16
  %v5386 = vpop.permute.xlu0 %5385
  %5387 = vrot.lane.b32.xlu0 %v4476, 16
  %v5388 = vpop.permute.xlu0 %5387
  %5389 = vrot.lane.b32.xlu0 %v4478, 16
  %v5390 = vpop.permute.xlu0 %5389
  %5391 = vrot.lane.b32.xlu0 %v4652, 16
  %v5392 = vpop.permute.xlu0 %5391
  %5393 = vrot.lane.b32.xlu0 %v4654, 16
  %v5394 = vpop.permute.xlu0 %5393
  %5459 = vrot.lane.b32.xlu0 %v4486, 20
  %v5460 = vpop.permute.xlu0 %5459
  %5461 = vrot.lane.b32.xlu0 %v4488, 20
  %v5462 = vpop.permute.xlu0 %5461
  %5463 = vrot.lane.b32.xlu0 %v4491, 20
  %v5464 = vpop.permute.xlu0 %5463
  %5465 = vrot.lane.b32.xlu0 %v4493, 20
  %v5466 = vpop.permute.xlu0 %5465
  %5467 = vrot.lane.b32.xlu0 %v4496, 20
  %v5468 = vpop.permute.xlu0 %5467
  %5469 = vrot.lane.b32.xlu0 %v4498, 20
  %v5470 = vpop.permute.xlu0 %5469
  %5471 = vrot.lane.b32.xlu0 %v4501, 20
  %v5472 = vpop.permute.xlu0 %5471
  %5473 = vrot.lane.b32.xlu0 %v4503, 20
  %v5474 = vpop.permute.xlu0 %5473
  %5475 = vrot.lane.b32.xlu0 %v4506, 20
  %v5476 = vpop.permute.xlu0 %5475
  %5477 = vrot.lane.b32.xlu0 %v4508, 20
  %v5478 = vpop.permute.xlu0 %5477
  %5479 = vrot.lane.b32.xlu0 %v4511, 20
  %v5480 = vpop.permute.xlu0 %5479
  %5481 = vrot.lane.b32.xlu0 %v4513, 20
  %v5482 = vpop.permute.xlu0 %5481
  %5483 = vrot.lane.b32.xlu0 %v4516, 20
  %v5484 = vpop.permute.xlu0 %5483
  %5485 = vrot.lane.b32.xlu0 %v4518, 20
  %v5486 = vpop.permute.xlu0 %5485
  %5487 = vrot.lane.b32.xlu0 %v4521, 20
  %v5488 = vpop.permute.xlu0 %5487
  %5489 = vrot.lane.b32.xlu0 %v4523, 20
  %v5490 = vpop.permute.xlu0 %5489
  %5491 = vrot.lane.b32.xlu0 %v4526, 20
  %v5492 = vpop.permute.xlu0 %5491
  %5493 = vrot.lane.b32.xlu0 %v4528, 20
  %v5494 = vpop.permute.xlu0 %5493
  %5495 = vrot.lane.b32.xlu0 %v4531, 20
  %v5496 = vpop.permute.xlu0 %5495
  %5497 = vrot.lane.b32.xlu0 %v4533, 20
  %v5498 = vpop.permute.xlu0 %5497
  %5499 = vrot.lane.b32.xlu0 %v4536, 20
  %v5500 = vpop.permute.xlu0 %5499
  %5501 = vrot.lane.b32.xlu0 %v4538, 20
  %v5502 = vpop.permute.xlu0 %5501
  %5503 = vrot.lane.b32.xlu0 %v4541, 20
  %v5504 = vpop.permute.xlu0 %5503
  %5505 = vrot.lane.b32.xlu0 %v4543, 20
  %v5506 = vpop.permute.xlu0 %5505
  %5507 = vrot.lane.b32.xlu0 %v4546, 20
  %v5508 = vpop.permute.xlu0 %5507
  %5509 = vrot.lane.b32.xlu0 %v4548, 20
  %v5510 = vpop.permute.xlu0 %5509
  %5511 = vrot.lane.b32.xlu0 %v4551, 20
  %v5512 = vpop.permute.xlu0 %5511
  %5513 = vrot.lane.b32.xlu0 %v4553, 20
  %v5514 = vpop.permute.xlu0 %5513
  %5515 = vrot.lane.b32.xlu0 %v4556, 20
  %v5516 = vpop.permute.xlu0 %5515
  %5517 = vrot.lane.b32.xlu0 %v4558, 20
  %v5518 = vpop.permute.xlu0 %5517
  %5519 = vrot.lane.b32.xlu0 %v4657, 20
  %v5520 = vpop.permute.xlu0 %5519
  %5521 = vrot.lane.b32.xlu0 %v4659, 20
  %v5522 = vpop.permute.xlu0 %5521
  %5523 = vrot.lane.b32.xlu0 %v4566, 20
  %v5524 = vpop.permute.xlu0 %5523
  %5525 = vrot.lane.b32.xlu0 %v4568, 20
  %v5526 = vpop.permute.xlu0 %5525
  %5527 = vrot.lane.b32.xlu0 %v4571, 20
  %v5528 = vpop.permute.xlu0 %5527
  %5529 = vrot.lane.b32.xlu0 %v4573, 20
  %v5530 = vpop.permute.xlu0 %5529
  %5531 = vrot.lane.b32.xlu0 %v4576, 20
  %v5532 = vpop.permute.xlu0 %5531
  %5533 = vrot.lane.b32.xlu0 %v4578, 20
  %v5534 = vpop.permute.xlu0 %5533
  %5535 = vrot.lane.b32.xlu0 %v4581, 20
  %v5536 = vpop.permute.xlu0 %5535
  %5537 = vrot.lane.b32.xlu0 %v4583, 20
  %v5538 = vpop.permute.xlu0 %5537
  %5539 = vrot.lane.b32.xlu0 %v4586, 20
  %v5540 = vpop.permute.xlu0 %5539
  %5541 = vrot.lane.b32.xlu0 %v4588, 20
  %v5542 = vpop.permute.xlu0 %5541
  %5543 = vrot.lane.b32.xlu0 %v4591, 20
  %v5544 = vpop.permute.xlu0 %5543
  %5545 = vrot.lane.b32.xlu0 %v4593, 20
  %v5546 = vpop.permute.xlu0 %5545
  %5547 = vrot.lane.b32.xlu0 %v4596, 20
  %v5548 = vpop.permute.xlu0 %5547
  %5549 = vrot.lane.b32.xlu0 %v4598, 20
  %v5550 = vpop.permute.xlu0 %5549
  %5551 = vrot.lane.b32.xlu0 %v4601, 20
  %v5552 = vpop.permute.xlu0 %5551
  %5553 = vrot.lane.b32.xlu0 %v4603, 20
  %v5554 = vpop.permute.xlu0 %5553
  %5555 = vrot.lane.b32.xlu0 %v4606, 20
  %v5556 = vpop.permute.xlu0 %5555
  %5557 = vrot.lane.b32.xlu0 %v4608, 20
  %v5558 = vpop.permute.xlu0 %5557
  %5559 = vrot.lane.b32.xlu0 %v4611, 20
  %v5560 = vpop.permute.xlu0 %5559
  %5561 = vrot.lane.b32.xlu0 %v4613, 20
  %v5562 = vpop.permute.xlu0 %5561
  %5563 = vrot.lane.b32.xlu0 %v4616, 20
  %v5564 = vpop.permute.xlu0 %5563
  %5565 = vrot.lane.b32.xlu0 %v4618, 20
  %v5566 = vpop.permute.xlu0 %5565
  %5567 = vrot.lane.b32.xlu0 %v4621, 20
  %v5568 = vpop.permute.xlu0 %5567
  %5569 = vrot.lane.b32.xlu0 %v4623, 20
  %v5570 = vpop.permute.xlu0 %5569
  %5571 = vrot.lane.b32.xlu0 %v4626, 20
  %v5572 = vpop.permute.xlu0 %5571
  %5573 = vrot.lane.b32.xlu0 %v4628, 20
  %v5574 = vpop.permute.xlu0 %5573
  %5575 = vrot.lane.b32.xlu0 %v4631, 20
  %v5576 = vpop.permute.xlu0 %5575
  %5577 = vrot.lane.b32.xlu0 %v4633, 20
  %v5578 = vpop.permute.xlu0 %5577
  %5579 = vrot.lane.b32.xlu0 %v4636, 20
  %v5580 = vpop.permute.xlu0 %5579
  %5581 = vrot.lane.b32.xlu0 %v4638, 20
  %v5582 = vpop.permute.xlu0 %5581
  %5583 = vrot.lane.b32.xlu0 %v4662, 20
  %v5584 = vpop.permute.xlu0 %5583
  %5585 = vrot.lane.b32.xlu0 %v4664, 20
  %v5586 = vpop.permute.xlu0 %5585
  %5651 = vrot.lane.b32.xlu0 %v4121, 24
  %v5652 = vpop.permute.xlu0 %5651
  %5653 = vrot.lane.b32.xlu0 %v4122, 24
  %v5654 = vpop.permute.xlu0 %5653
  %5655 = vrot.lane.b32.xlu0 %v4124, 24
  %v5656 = vpop.permute.xlu0 %5655
  %5657 = vrot.lane.b32.xlu0 %v4125, 24
  %v5658 = vpop.permute.xlu0 %5657
  %5659 = vrot.lane.b32.xlu0 %v4127, 24
  %v5660 = vpop.permute.xlu0 %5659
  %5661 = vrot.lane.b32.xlu0 %v4128, 24
  %v5662 = vpop.permute.xlu0 %5661
  %5663 = vrot.lane.b32.xlu0 %v4130, 24
  %v5664 = vpop.permute.xlu0 %5663
  %5665 = vrot.lane.b32.xlu0 %v4131, 24
  %v5666 = vpop.permute.xlu0 %5665
  %5667 = vrot.lane.b32.xlu0 %v4133, 24
  %v5668 = vpop.permute.xlu0 %5667
  %5669 = vrot.lane.b32.xlu0 %v4134, 24
  %v5670 = vpop.permute.xlu0 %5669
  %5671 = vrot.lane.b32.xlu0 %v4136, 24
  %v5672 = vpop.permute.xlu0 %5671
  %5673 = vrot.lane.b32.xlu0 %v4137, 24
  %v5674 = vpop.permute.xlu0 %5673
  %5675 = vrot.lane.b32.xlu0 %v4139, 24
  %v5676 = vpop.permute.xlu0 %5675
  %5677 = vrot.lane.b32.xlu0 %v4140, 24
  %v5678 = vpop.permute.xlu0 %5677
  %5679 = vrot.lane.b32.xlu0 %v4142, 24
  %v5680 = vpop.permute.xlu0 %5679
  %5681 = vrot.lane.b32.xlu0 %v4143, 24
  %v5682 = vpop.permute.xlu0 %5681
  %5683 = vrot.lane.b32.xlu0 %v4145, 24
  %v5684 = vpop.permute.xlu0 %5683
  %5685 = vrot.lane.b32.xlu0 %v4146, 24
  %v5686 = vpop.permute.xlu0 %5685
  %5687 = vrot.lane.b32.xlu0 %v4148, 24
  %v5688 = vpop.permute.xlu0 %5687
  %5689 = vrot.lane.b32.xlu0 %v4149, 24
  %v5690 = vpop.permute.xlu0 %5689
  %5691 = vrot.lane.b32.xlu0 %v4151, 24
  %v5692 = vpop.permute.xlu0 %5691
  %5693 = vrot.lane.b32.xlu0 %v4152, 24
  %v5694 = vpop.permute.xlu0 %5693
  %5695 = vrot.lane.b32.xlu0 %v4154, 24
  %v5696 = vpop.permute.xlu0 %5695
  %5697 = vrot.lane.b32.xlu0 %v4155, 24
  %v5698 = vpop.permute.xlu0 %5697
  %5699 = vrot.lane.b32.xlu0 %v4157, 24
  %v5700 = vpop.permute.xlu0 %5699
  %5701 = vrot.lane.b32.xlu0 %v4158, 24
  %v5702 = vpop.permute.xlu0 %5701
  %5703 = vrot.lane.b32.xlu0 %v4160, 24
  %v5704 = vpop.permute.xlu0 %5703
  %5705 = vrot.lane.b32.xlu0 %v4161, 24
  %v5706 = vpop.permute.xlu0 %5705
  %5707 = vrot.lane.b32.xlu0 %v4163, 24
  %v5708 = vpop.permute.xlu0 %5707
  %5709 = vrot.lane.b32.xlu0 %v4164, 24
  %v5710 = vpop.permute.xlu0 %5709
  %5711 = vrot.lane.b32.xlu0 %v4166, 24
  %v5712 = vpop.permute.xlu0 %5711
  %5713 = vrot.lane.b32.xlu0 %v4167, 24
  %v5714 = vpop.permute.xlu0 %5713
  %5715 = vrot.lane.b32.xlu0 %v4175, 24
  %v5716 = vpop.permute.xlu0 %5715
  %5717 = vrot.lane.b32.xlu0 %v4176, 24
  %v5718 = vpop.permute.xlu0 %5717
  %5719 = vrot.lane.b32.xlu0 %v4178, 24
  %v5720 = vpop.permute.xlu0 %5719
  %5721 = vrot.lane.b32.xlu0 %v4179, 24
  %v5722 = vpop.permute.xlu0 %5721
  %5723 = vrot.lane.b32.xlu0 %v4181, 24
  %v5724 = vpop.permute.xlu0 %5723
  %5725 = vrot.lane.b32.xlu0 %v4182, 24
  %v5726 = vpop.permute.xlu0 %5725
  %5727 = vrot.lane.b32.xlu0 %v4184, 24
  %v5728 = vpop.permute.xlu0 %5727
  %5729 = vrot.lane.b32.xlu0 %v4185, 24
  %v5730 = vpop.permute.xlu0 %5729
  %5731 = vrot.lane.b32.xlu0 %v4187, 24
  %v5732 = vpop.permute.xlu0 %5731
  %5733 = vrot.lane.b32.xlu0 %v4188, 24
  %v5734 = vpop.permute.xlu0 %5733
  %5735 = vrot.lane.b32.xlu0 %v4190, 24
  %v5736 = vpop.permute.xlu0 %5735
  %5737 = vrot.lane.b32.xlu0 %v4191, 24
  %v5738 = vpop.permute.xlu0 %5737
  %5739 = vrot.lane.b32.xlu0 %v4193, 24
  %v5740 = vpop.permute.xlu0 %5739
  %5741 = vrot.lane.b32.xlu0 %v4194, 24
  %v5742 = vpop.permute.xlu0 %5741
  %5743 = vrot.lane.b32.xlu0 %v4196, 24
  %v5744 = vpop.permute.xlu0 %5743
  %5745 = vrot.lane.b32.xlu0 %v4197, 24
  %v5746 = vpop.permute.xlu0 %5745
  %5747 = vrot.lane.b32.xlu0 %v4199, 24
  %v5748 = vpop.permute.xlu0 %5747
  %5749 = vrot.lane.b32.xlu0 %v4200, 24
  %v5750 = vpop.permute.xlu0 %5749
  %5751 = vrot.lane.b32.xlu0 %v4202, 24
  %v5752 = vpop.permute.xlu0 %5751
  %5753 = vrot.lane.b32.xlu0 %v4203, 24
  %v5754 = vpop.permute.xlu0 %5753
  %5755 = vrot.lane.b32.xlu0 %v4205, 24
  %v5756 = vpop.permute.xlu0 %5755
  %5757 = vrot.lane.b32.xlu0 %v4206, 24
  %v5758 = vpop.permute.xlu0 %5757
  %5759 = vrot.lane.b32.xlu0 %v4208, 24
  %v5760 = vpop.permute.xlu0 %5759
  %5761 = vrot.lane.b32.xlu0 %v4209, 24
  %v5762 = vpop.permute.xlu0 %5761
  %5763 = vrot.lane.b32.xlu0 %v4211, 24
  %v5764 = vpop.permute.xlu0 %5763
  %5765 = vrot.lane.b32.xlu0 %v4212, 24
  %v5766 = vpop.permute.xlu0 %5765
  %5767 = vrot.lane.b32.xlu0 %v4214, 24
  %v5768 = vpop.permute.xlu0 %5767
  %5769 = vrot.lane.b32.xlu0 %v4215, 24
  %v5770 = vpop.permute.xlu0 %5769
  %5771 = vrot.lane.b32.xlu0 %v4217, 24
  %v5772 = vpop.permute.xlu0 %5771
  %5773 = vrot.lane.b32.xlu0 %v4218, 24
  %v5774 = vpop.permute.xlu0 %5773
  %5775 = vrot.lane.b32.xlu0 %v4220, 24
  %v5776 = vpop.permute.xlu0 %5775
  %5777 = vrot.lane.b32.xlu0 %v4221, 24
  %v5778 = vpop.permute.xlu0 %5777
  %5843 = vrot.lane.b32.xlu0 %v4331, 28
  %v5844 = vpop.permute.xlu0 %5843
  %5845 = vrot.lane.b32.xlu0 %v4333, 28
  %v5846 = vpop.permute.xlu0 %5845
  %5847 = vrot.lane.b32.xlu0 %v4336, 28
  %v5848 = vpop.permute.xlu0 %5847
  %5849 = vrot.lane.b32.xlu0 %v4338, 28
  %v5850 = vpop.permute.xlu0 %5849
  %5851 = vrot.lane.b32.xlu0 %v4341, 28
  %v5852 = vpop.permute.xlu0 %5851
  %5853 = vrot.lane.b32.xlu0 %v4343, 28
  %v5854 = vpop.permute.xlu0 %5853
  %5855 = vrot.lane.b32.xlu0 %v4346, 28
  %v5856 = vpop.permute.xlu0 %5855
  %5857 = vrot.lane.b32.xlu0 %v4348, 28
  %v5858 = vpop.permute.xlu0 %5857
  %5859 = vrot.lane.b32.xlu0 %v4351, 28
  %v5860 = vpop.permute.xlu0 %5859
  %5861 = vrot.lane.b32.xlu0 %v4353, 28
  %v5862 = vpop.permute.xlu0 %5861
  %5863 = vrot.lane.b32.xlu0 %v4356, 28
  %v5864 = vpop.permute.xlu0 %5863
  %5865 = vrot.lane.b32.xlu0 %v4358, 28
  %v5866 = vpop.permute.xlu0 %5865
  %5867 = vrot.lane.b32.xlu0 %v4361, 28
  %v5868 = vpop.permute.xlu0 %5867
  %5869 = vrot.lane.b32.xlu0 %v4363, 28
  %v5870 = vpop.permute.xlu0 %5869
  %5871 = vrot.lane.b32.xlu0 %v4366, 28
  %v5872 = vpop.permute.xlu0 %5871
  %5873 = vrot.lane.b32.xlu0 %v4368, 28
  %v5874 = vpop.permute.xlu0 %5873
  %5875 = vrot.lane.b32.xlu0 %v4371, 28
  %v5876 = vpop.permute.xlu0 %5875
  %5877 = vrot.lane.b32.xlu0 %v4373, 28
  %v5878 = vpop.permute.xlu0 %5877
  %5879 = vrot.lane.b32.xlu0 %v4376, 28
  %v5880 = vpop.permute.xlu0 %5879
  %5881 = vrot.lane.b32.xlu0 %v4378, 28
  %v5882 = vpop.permute.xlu0 %5881
  %5883 = vrot.lane.b32.xlu0 %v4381, 28
  %v5884 = vpop.permute.xlu0 %5883
  %5885 = vrot.lane.b32.xlu0 %v4383, 28
  %v5886 = vpop.permute.xlu0 %5885
  %5887 = vrot.lane.b32.xlu0 %v4386, 28
  %v5888 = vpop.permute.xlu0 %5887
  %5889 = vrot.lane.b32.xlu0 %v4388, 28
  %v5890 = vpop.permute.xlu0 %5889
  %5891 = vrot.lane.b32.xlu0 %v4391, 28
  %v5892 = vpop.permute.xlu0 %5891
  %5893 = vrot.lane.b32.xlu0 %v4393, 28
  %v5894 = vpop.permute.xlu0 %5893
  %5895 = vrot.lane.b32.xlu0 %v4396, 28
  %v5896 = vpop.permute.xlu0 %5895
  %5897 = vrot.lane.b32.xlu0 %v4398, 28
  %v5898 = vpop.permute.xlu0 %5897
  %5899 = vrot.lane.b32.xlu0 %v4647, 28
  %v5900 = vpop.permute.xlu0 %5899
  %5901 = vrot.lane.b32.xlu0 %v4649, 28
  %v5902 = vpop.permute.xlu0 %5901
  %5903 = vrot.lane.b32.xlu0 %v4673, 28
  %v5904 = vpop.permute.xlu0 %5903
  %5905 = vrot.lane.b32.xlu0 %v4675, 28
  %v5906 = vpop.permute.xlu0 %5905
  %5907 = vrot.lane.b32.xlu0 %v4411, 28
  %v5908 = vpop.permute.xlu0 %5907
  %5909 = vrot.lane.b32.xlu0 %v4413, 28
  %v5910 = vpop.permute.xlu0 %5909
  %5911 = vrot.lane.b32.xlu0 %v4416, 28
  %v5912 = vpop.permute.xlu0 %5911
  %5913 = vrot.lane.b32.xlu0 %v4418, 28
  %v5914 = vpop.permute.xlu0 %5913
  %5915 = vrot.lane.b32.xlu0 %v4421, 28
  %v5916 = vpop.permute.xlu0 %5915
  %5917 = vrot.lane.b32.xlu0 %v4423, 28
  %v5918 = vpop.permute.xlu0 %5917
  %5919 = vrot.lane.b32.xlu0 %v4426, 28
  %v5920 = vpop.permute.xlu0 %5919
  %5921 = vrot.lane.b32.xlu0 %v4428, 28
  %v5922 = vpop.permute.xlu0 %5921
  %5923 = vrot.lane.b32.xlu0 %v4431, 28
  %v5924 = vpop.permute.xlu0 %5923
  %5925 = vrot.lane.b32.xlu0 %v4433, 28
  %v5926 = vpop.permute.xlu0 %5925
  %5927 = vrot.lane.b32.xlu0 %v4436, 28
  %v5928 = vpop.permute.xlu0 %5927
  %5929 = vrot.lane.b32.xlu0 %v4438, 28
  %v5930 = vpop.permute.xlu0 %5929
  %5931 = vrot.lane.b32.xlu0 %v4441, 28
  %v5932 = vpop.permute.xlu0 %5931
  %5933 = vrot.lane.b32.xlu0 %v4443, 28
  %v5934 = vpop.permute.xlu0 %5933
  %5935 = vrot.lane.b32.xlu0 %v4446, 28
  %v5936 = vpop.permute.xlu0 %5935
  %5937 = vrot.lane.b32.xlu0 %v4448, 28
  %v5938 = vpop.permute.xlu0 %5937
  %5939 = vrot.lane.b32.xlu0 %v4451, 28
  %v5940 = vpop.permute.xlu0 %5939
  %5941 = vrot.lane.b32.xlu0 %v4453, 28
  %v5942 = vpop.permute.xlu0 %5941
  %5943 = vrot.lane.b32.xlu0 %v4456, 28
  %v5944 = vpop.permute.xlu0 %5943
  %5945 = vrot.lane.b32.xlu0 %v4458, 28
  %v5946 = vpop.permute.xlu0 %5945
  %5947 = vrot.lane.b32.xlu0 %v4461, 28
  %v5948 = vpop.permute.xlu0 %5947
  %5949 = vrot.lane.b32.xlu0 %v4463, 28
  %v5950 = vpop.permute.xlu0 %5949
  %5951 = vrot.lane.b32.xlu0 %v4466, 28
  %v5952 = vpop.permute.xlu0 %5951
  %5953 = vrot.lane.b32.xlu0 %v4468, 28
  %v5954 = vpop.permute.xlu0 %5953
  %5955 = vrot.lane.b32.xlu0 %v4471, 28
  %v5956 = vpop.permute.xlu0 %5955
  %5957 = vrot.lane.b32.xlu0 %v4473, 28
  %v5958 = vpop.permute.xlu0 %5957
  %5959 = vrot.lane.b32.xlu0 %v4476, 28
  %v5960 = vpop.permute.xlu0 %5959
  %5961 = vrot.lane.b32.xlu0 %v4478, 28
  %v5962 = vpop.permute.xlu0 %5961
  %5963 = vrot.lane.b32.xlu0 %v4652, 28
  %v5964 = vpop.permute.xlu0 %5963
  %5965 = vrot.lane.b32.xlu0 %v4654, 28
  %v5966 = vpop.permute.xlu0 %5965
  %5967 = vrot.lane.b32.xlu0 %v4678, 28
  %v5968 = vpop.permute.xlu0 %5967
  %5969 = vrot.lane.b32.xlu0 %v4680, 28
  %v5970 = vpop.permute.xlu0 %5969
  %6035 = vrot.lane.b32.xlu0 %v4491, 32
  %v6036 = vpop.permute.xlu0 %6035
  %6037 = vrot.lane.b32.xlu0 %v4493, 32
  %v6038 = vpop.permute.xlu0 %6037
  %6039 = vrot.lane.b32.xlu0 %v4496, 32
  %v6040 = vpop.permute.xlu0 %6039
  %6041 = vrot.lane.b32.xlu0 %v4498, 32
  %v6042 = vpop.permute.xlu0 %6041
  %6043 = vrot.lane.b32.xlu0 %v4501, 32
  %v6044 = vpop.permute.xlu0 %6043
  %6045 = vrot.lane.b32.xlu0 %v4503, 32
  %v6046 = vpop.permute.xlu0 %6045
  %6047 = vrot.lane.b32.xlu0 %v4506, 32
  %v6048 = vpop.permute.xlu0 %6047
  %6049 = vrot.lane.b32.xlu0 %v4508, 32
  %v6050 = vpop.permute.xlu0 %6049
  %6051 = vrot.lane.b32.xlu0 %v4511, 32
  %v6052 = vpop.permute.xlu0 %6051
  %6053 = vrot.lane.b32.xlu0 %v4513, 32
  %v6054 = vpop.permute.xlu0 %6053
  %6055 = vrot.lane.b32.xlu0 %v4516, 32
  %v6056 = vpop.permute.xlu0 %6055
  %6057 = vrot.lane.b32.xlu0 %v4518, 32
  %v6058 = vpop.permute.xlu0 %6057
  %6059 = vrot.lane.b32.xlu0 %v4521, 32
  %v6060 = vpop.permute.xlu0 %6059
  %6061 = vrot.lane.b32.xlu0 %v4523, 32
  %v6062 = vpop.permute.xlu0 %6061
  %6063 = vrot.lane.b32.xlu0 %v4526, 32
  %v6064 = vpop.permute.xlu0 %6063
  %6065 = vrot.lane.b32.xlu0 %v4528, 32
  %v6066 = vpop.permute.xlu0 %6065
  %6067 = vrot.lane.b32.xlu0 %v4531, 32
  %v6068 = vpop.permute.xlu0 %6067
  %6069 = vrot.lane.b32.xlu0 %v4533, 32
  %v6070 = vpop.permute.xlu0 %6069
  %6071 = vrot.lane.b32.xlu0 %v4536, 32
  %v6072 = vpop.permute.xlu0 %6071
  %6073 = vrot.lane.b32.xlu0 %v4538, 32
  %v6074 = vpop.permute.xlu0 %6073
  %6075 = vrot.lane.b32.xlu0 %v4541, 32
  %v6076 = vpop.permute.xlu0 %6075
  %6077 = vrot.lane.b32.xlu0 %v4543, 32
  %v6078 = vpop.permute.xlu0 %6077
  %6079 = vrot.lane.b32.xlu0 %v4546, 32
  %v6080 = vpop.permute.xlu0 %6079
  %6081 = vrot.lane.b32.xlu0 %v4548, 32
  %v6082 = vpop.permute.xlu0 %6081
  %6083 = vrot.lane.b32.xlu0 %v4551, 32
  %v6084 = vpop.permute.xlu0 %6083
  %6085 = vrot.lane.b32.xlu0 %v4553, 32
  %v6086 = vpop.permute.xlu0 %6085
  %6087 = vrot.lane.b32.xlu0 %v4556, 32
  %v6088 = vpop.permute.xlu0 %6087
  %6089 = vrot.lane.b32.xlu0 %v4558, 32
  %v6090 = vpop.permute.xlu0 %6089
  %6091 = vrot.lane.b32.xlu0 %v4657, 32
  %v6092 = vpop.permute.xlu0 %6091
  %6093 = vrot.lane.b32.xlu0 %v4659, 32
  %v6094 = vpop.permute.xlu0 %6093
  %6095 = vrot.lane.b32.xlu0 %v4683, 32
  %v6096 = vpop.permute.xlu0 %6095
  %6097 = vrot.lane.b32.xlu0 %v4685, 32
  %v6098 = vpop.permute.xlu0 %6097
  %6099 = vrot.lane.b32.xlu0 %v4571, 32
  %v6100 = vpop.permute.xlu0 %6099
  %6101 = vrot.lane.b32.xlu0 %v4573, 32
  %v6102 = vpop.permute.xlu0 %6101
  %6103 = vrot.lane.b32.xlu0 %v4576, 32
  %v6104 = vpop.permute.xlu0 %6103
  %6105 = vrot.lane.b32.xlu0 %v4578, 32
  %v6106 = vpop.permute.xlu0 %6105
  %6107 = vrot.lane.b32.xlu0 %v4581, 32
  %v6108 = vpop.permute.xlu0 %6107
  %6109 = vrot.lane.b32.xlu0 %v4583, 32
  %v6110 = vpop.permute.xlu0 %6109
  %6111 = vrot.lane.b32.xlu0 %v4586, 32
  %v6112 = vpop.permute.xlu0 %6111
  %6113 = vrot.lane.b32.xlu0 %v4588, 32
  %v6114 = vpop.permute.xlu0 %6113
  %6115 = vrot.lane.b32.xlu0 %v4591, 32
  %v6116 = vpop.permute.xlu0 %6115
  %6117 = vrot.lane.b32.xlu0 %v4593, 32
  %v6118 = vpop.permute.xlu0 %6117
  %6119 = vrot.lane.b32.xlu0 %v4596, 32
  %v6120 = vpop.permute.xlu0 %6119
  %6121 = vrot.lane.b32.xlu0 %v4598, 32
  %v6122 = vpop.permute.xlu0 %6121
  %6123 = vrot.lane.b32.xlu0 %v4601, 32
  %v6124 = vpop.permute.xlu0 %6123
  %6125 = vrot.lane.b32.xlu0 %v4603, 32
  %v6126 = vpop.permute.xlu0 %6125
  %6127 = vrot.lane.b32.xlu0 %v4606, 32
  %v6128 = vpop.permute.xlu0 %6127
  %6129 = vrot.lane.b32.xlu0 %v4608, 32
  %v6130 = vpop.permute.xlu0 %6129
  %6131 = vrot.lane.b32.xlu0 %v4611, 32
  %v6132 = vpop.permute.xlu0 %6131
  %6133 = vrot.lane.b32.xlu0 %v4613, 32
  %v6134 = vpop.permute.xlu0 %6133
  %6135 = vrot.lane.b32.xlu0 %v4616, 32
  %v6136 = vpop.permute.xlu0 %6135
  %6137 = vrot.lane.b32.xlu0 %v4618, 32
  %v6138 = vpop.permute.xlu0 %6137
  %6139 = vrot.lane.b32.xlu0 %v4621, 32
  %v6140 = vpop.permute.xlu0 %6139
  %6141 = vrot.lane.b32.xlu0 %v4623, 32
  %v6142 = vpop.permute.xlu0 %6141
  %6143 = vrot.lane.b32.xlu0 %v4626, 32
  %v6144 = vpop.permute.xlu0 %6143
  %6145 = vrot.lane.b32.xlu0 %v4628, 32
  %v6146 = vpop.permute.xlu0 %6145
  %6147 = vrot.lane.b32.xlu0 %v4631, 32
  %v6148 = vpop.permute.xlu0 %6147
  %6149 = vrot.lane.b32.xlu0 %v4633, 32
  %v6150 = vpop.permute.xlu0 %6149
  %6151 = vrot.lane.b32.xlu0 %v4636, 32
  %v6152 = vpop.permute.xlu0 %6151
  %6153 = vrot.lane.b32.xlu0 %v4638, 32
  %v6154 = vpop.permute.xlu0 %6153
  %6155 = vrot.lane.b32.xlu0 %v4662, 32
  %v6156 = vpop.permute.xlu0 %6155
  %6157 = vrot.lane.b32.xlu0 %v4664, 32
  %v6158 = vpop.permute.xlu0 %6157
  %6159 = vrot.lane.b32.xlu0 %v4688, 32
  %v6160 = vpop.permute.xlu0 %6159
  %6161 = vrot.lane.b32.xlu0 %v4690, 32
  %v6162 = vpop.permute.xlu0 %6161
  %v6227 = vsel %vm90, %v4115, %v4692
  %v6228 = vsel %vm90, %v4116, %v4694
  %v6229 = vsel %vm90, %v4118, %v4696
  %v6230 = vsel %vm90, %v4119, %v4698
  %v6231 = vsel %vm90, %v4121, %v4700
  %v6232 = vsel %vm90, %v4122, %v4702
  %v6233 = vsel %vm90, %v4124, %v4704
  %v6234 = vsel %vm90, %v4125, %v4706
  %v6235 = vsel %vm90, %v4127, %v4708
  %v6236 = vsel %vm90, %v4128, %v4710
  %v6237 = vsel %vm90, %v4130, %v4712
  %v6238 = vsel %vm90, %v4131, %v4714
  %v6239 = vsel %vm90, %v4133, %v4716
  %v6240 = vsel %vm90, %v4134, %v4718
  %v6241 = vsel %vm90, %v4136, %v4720
  %v6242 = vsel %vm90, %v4137, %v4722
  %v6243 = vsel %vm90, %v4139, %v4724
  %v6244 = vsel %vm90, %v4140, %v4726
  %v6245 = vsel %vm90, %v4142, %v4728
  %v6246 = vsel %vm90, %v4143, %v4730
  %v6247 = vsel %vm90, %v4145, %v4732
  %v6248 = vsel %vm90, %v4146, %v4734
  %v6249 = vsel %vm90, %v4148, %v4736
  %v6250 = vsel %vm90, %v4149, %v4738
  %v6251 = vsel %vm90, %v4151, %v4740
  %v6252 = vsel %vm90, %v4152, %v4742
  %v6253 = vsel %vm90, %v4154, %v4744
  %v6254 = vsel %vm90, %v4155, %v4746
  %v6255 = vsel %vm90, %v4157, %v4748
  %v6256 = vsel %vm90, %v4158, %v4750
  %v6257 = vsel %vm90, %v4160, %v4752
  %v6258 = vsel %vm90, %v4161, %v4754
  %v6259 = vsel %vm90, %v4169, %v4756
  %v6260 = vsel %vm90, %v4170, %v4758
  %v6261 = vsel %vm90, %v4172, %v4760
  %v6262 = vsel %vm90, %v4173, %v4762
  %v6263 = vsel %vm90, %v4175, %v4764
  %v6264 = vsel %vm90, %v4176, %v4766
  %v6265 = vsel %vm90, %v4178, %v4768
  %v6266 = vsel %vm90, %v4179, %v4770
  %v6267 = vsel %vm90, %v4181, %v4772
  %v6268 = vsel %vm90, %v4182, %v4774
  %v6269 = vsel %vm90, %v4184, %v4776
  %v6270 = vsel %vm90, %v4185, %v4778
  %v6271 = vsel %vm90, %v4187, %v4780
  %v6272 = vsel %vm90, %v4188, %v4782
  %v6273 = vsel %vm90, %v4190, %v4784
  %v6274 = vsel %vm90, %v4191, %v4786
  %v6275 = vsel %vm90, %v4193, %v4788
  %v6276 = vsel %vm90, %v4194, %v4790
  %v6277 = vsel %vm90, %v4196, %v4792
  %v6278 = vsel %vm90, %v4197, %v4794
  %v6279 = vsel %vm90, %v4199, %v4796
  %v6280 = vsel %vm90, %v4200, %v4798
  %v6281 = vsel %vm90, %v4202, %v4800
  %v6282 = vsel %vm90, %v4203, %v4802
  %v6283 = vsel %vm90, %v4205, %v4804
  %v6284 = vsel %vm90, %v4206, %v4806
  %v6285 = vsel %vm90, %v4208, %v4808
  %v6286 = vsel %vm90, %v4209, %v4810
  %v6287 = vsel %vm90, %v4211, %v4812
  %v6288 = vsel %vm90, %v4212, %v4814
  %v6289 = vsel %vm90, %v4214, %v4816
  %v6290 = vsel %vm90, %v4215, %v4818
  %v6291 = vsel %vm2450, %v6227, %v4884
  %v6292 = vsel %vm2450, %v6228, %v4886
  %v6293 = vsel %vm2450, %v6229, %v4888
  %v6294 = vsel %vm2450, %v6230, %v4890
  %v6295 = vsel %vm2450, %v6231, %v4892
  %v6296 = vsel %vm2450, %v6232, %v4894
  %v6297 = vsel %vm2450, %v6233, %v4896
  %v6298 = vsel %vm2450, %v6234, %v4898
  %v6299 = vsel %vm2450, %v6235, %v4900
  %v6300 = vsel %vm2450, %v6236, %v4902
  %v6301 = vsel %vm2450, %v6237, %v4904
  %v6302 = vsel %vm2450, %v6238, %v4906
  %v6303 = vsel %vm2450, %v6239, %v4908
  %v6304 = vsel %vm2450, %v6240, %v4910
  %v6305 = vsel %vm2450, %v6241, %v4912
  %v6306 = vsel %vm2450, %v6242, %v4914
  %v6307 = vsel %vm2450, %v6243, %v4916
  %v6308 = vsel %vm2450, %v6244, %v4918
  %v6309 = vsel %vm2450, %v6245, %v4920
  %v6310 = vsel %vm2450, %v6246, %v4922
  %v6311 = vsel %vm2450, %v6247, %v4924
  %v6312 = vsel %vm2450, %v6248, %v4926
  %v6313 = vsel %vm2450, %v6249, %v4928
  %v6314 = vsel %vm2450, %v6250, %v4930
  %v6315 = vsel %vm2450, %v6251, %v4932
  %v6316 = vsel %vm2450, %v6252, %v4934
  %v6317 = vsel %vm2450, %v6253, %v4936
  %v6318 = vsel %vm2450, %v6254, %v4938
  %v6319 = vsel %vm2450, %v6255, %v4940
  %v6320 = vsel %vm2450, %v6256, %v4942
  %v6321 = vsel %vm2450, %v6257, %v4944
  %v6322 = vsel %vm2450, %v6258, %v4946
  %v6323 = vsel %vm2450, %v6259, %v4948
  %v6324 = vsel %vm2450, %v6260, %v4950
  %v6325 = vsel %vm2450, %v6261, %v4952
  %v6326 = vsel %vm2450, %v6262, %v4954
  %v6327 = vsel %vm2450, %v6263, %v4956
  %v6328 = vsel %vm2450, %v6264, %v4958
  %v6329 = vsel %vm2450, %v6265, %v4960
  %v6330 = vsel %vm2450, %v6266, %v4962
  %v6331 = vsel %vm2450, %v6267, %v4964
  %v6332 = vsel %vm2450, %v6268, %v4966
  %v6333 = vsel %vm2450, %v6269, %v4968
  %v6334 = vsel %vm2450, %v6270, %v4970
  %v6335 = vsel %vm2450, %v6271, %v4972
  %v6336 = vsel %vm2450, %v6272, %v4974
  %v6337 = vsel %vm2450, %v6273, %v4976
  %v6338 = vsel %vm2450, %v6274, %v4978
  %v6339 = vsel %vm2450, %v6275, %v4980
  %v6340 = vsel %vm2450, %v6276, %v4982
  %v6341 = vsel %vm2450, %v6277, %v4984
  %v6342 = vsel %vm2450, %v6278, %v4986
  %v6343 = vsel %vm2450, %v6279, %v4988
  %v6344 = vsel %vm2450, %v6280, %v4990
  %v6345 = vsel %vm2450, %v6281, %v4992
  %v6346 = vsel %vm2450, %v6282, %v4994
  %v6347 = vsel %vm2450, %v6283, %v4996
  %v6348 = vsel %vm2450, %v6284, %v4998
  %v6349 = vsel %vm2450, %v6285, %v5000
  %v6350 = vsel %vm2450, %v6286, %v5002
  %v6351 = vsel %vm2450, %v6287, %v5004
  %v6352 = vsel %vm2450, %v6288, %v5006
  %v6353 = vsel %vm2450, %v6289, %v5008
  %v6354 = vsel %vm2450, %v6290, %v5010
  %v6355 = vsel %vm2515, %v6291, %v5076
  %v6356 = vsel %vm2515, %v6292, %v5078
  %v6357 = vsel %vm2515, %v6293, %v5080
  %v6358 = vsel %vm2515, %v6294, %v5082
  %v6359 = vsel %vm2515, %v6295, %v5084
  %v6360 = vsel %vm2515, %v6296, %v5086
  %v6361 = vsel %vm2515, %v6297, %v5088
  %v6362 = vsel %vm2515, %v6298, %v5090
  %v6363 = vsel %vm2515, %v6299, %v5092
  %v6364 = vsel %vm2515, %v6300, %v5094
  %v6365 = vsel %vm2515, %v6301, %v5096
  %v6366 = vsel %vm2515, %v6302, %v5098
  %v6367 = vsel %vm2515, %v6303, %v5100
  %v6368 = vsel %vm2515, %v6304, %v5102
  %v6369 = vsel %vm2515, %v6305, %v5104
  %v6370 = vsel %vm2515, %v6306, %v5106
  %v6371 = vsel %vm2515, %v6307, %v5108
  %v6372 = vsel %vm2515, %v6308, %v5110
  %v6373 = vsel %vm2515, %v6309, %v5112
  %v6374 = vsel %vm2515, %v6310, %v5114
  %v6375 = vsel %vm2515, %v6311, %v5116
  %v6376 = vsel %vm2515, %v6312, %v5118
  %v6377 = vsel %vm2515, %v6313, %v5120
  %v6378 = vsel %vm2515, %v6314, %v5122
  %v6379 = vsel %vm2515, %v6315, %v5124
  %v6380 = vsel %vm2515, %v6316, %v5126
  %v6381 = vsel %vm2515, %v6317, %v5128
  %v6382 = vsel %vm2515, %v6318, %v5130
  %v6383 = vsel %vm2515, %v6319, %v5132
  %v6384 = vsel %vm2515, %v6320, %v5134
  %v6385 = vsel %vm2515, %v6321, %v5136
  %v6386 = vsel %vm2515, %v6322, %v5138
  %v6387 = vsel %vm2515, %v6323, %v5140
  %v6388 = vsel %vm2515, %v6324, %v5142
  %v6389 = vsel %vm2515, %v6325, %v5144
  %v6390 = vsel %vm2515, %v6326, %v5146
  %v6391 = vsel %vm2515, %v6327, %v5148
  %v6392 = vsel %vm2515, %v6328, %v5150
  %v6393 = vsel %vm2515, %v6329, %v5152
  %v6394 = vsel %vm2515, %v6330, %v5154
  %v6395 = vsel %vm2515, %v6331, %v5156
  %v6396 = vsel %vm2515, %v6332, %v5158
  %v6397 = vsel %vm2515, %v6333, %v5160
  %v6398 = vsel %vm2515, %v6334, %v5162
  %v6399 = vsel %vm2515, %v6335, %v5164
  %v6400 = vsel %vm2515, %v6336, %v5166
  %v6401 = vsel %vm2515, %v6337, %v5168
  %v6402 = vsel %vm2515, %v6338, %v5170
  %v6403 = vsel %vm2515, %v6339, %v5172
  %v6404 = vsel %vm2515, %v6340, %v5174
  %v6405 = vsel %vm2515, %v6341, %v5176
  %v6406 = vsel %vm2515, %v6342, %v5178
  %v6407 = vsel %vm2515, %v6343, %v5180
  %v6408 = vsel %vm2515, %v6344, %v5182
  %v6409 = vsel %vm2515, %v6345, %v5184
  %v6410 = vsel %vm2515, %v6346, %v5186
  %v6411 = vsel %vm2515, %v6347, %v5188
  %v6412 = vsel %vm2515, %v6348, %v5190
  %v6413 = vsel %vm2515, %v6349, %v5192
  %v6414 = vsel %vm2515, %v6350, %v5194
  %v6415 = vsel %vm2515, %v6351, %v5196
  %v6416 = vsel %vm2515, %v6352, %v5198
  %v6417 = vsel %vm2515, %v6353, %v5200
  %v6418 = vsel %vm2515, %v6354, %v5202
  %v6419 = vsel %vm2580, %v6355, %v5268
  %v6420 = vsel %vm2580, %v6356, %v5270
  %v6421 = vsel %vm2580, %v6357, %v5272
  %v6422 = vsel %vm2580, %v6358, %v5274
  %v6423 = vsel %vm2580, %v6359, %v5276
  %v6424 = vsel %vm2580, %v6360, %v5278
  %v6425 = vsel %vm2580, %v6361, %v5280
  %v6426 = vsel %vm2580, %v6362, %v5282
  %v6427 = vsel %vm2580, %v6363, %v5284
  %v6428 = vsel %vm2580, %v6364, %v5286
  %v6429 = vsel %vm2580, %v6365, %v5288
  %v6430 = vsel %vm2580, %v6366, %v5290
  %v6431 = vsel %vm2580, %v6367, %v5292
  %v6432 = vsel %vm2580, %v6368, %v5294
  %v6433 = vsel %vm2580, %v6369, %v5296
  %v6434 = vsel %vm2580, %v6370, %v5298
  %v6435 = vsel %vm2580, %v6371, %v5300
  %v6436 = vsel %vm2580, %v6372, %v5302
  %v6437 = vsel %vm2580, %v6373, %v5304
  %v6438 = vsel %vm2580, %v6374, %v5306
  %v6439 = vsel %vm2580, %v6375, %v5308
  %v6440 = vsel %vm2580, %v6376, %v5310
  %v6441 = vsel %vm2580, %v6377, %v5312
  %v6442 = vsel %vm2580, %v6378, %v5314
  %v6443 = vsel %vm2580, %v6379, %v5316
  %v6444 = vsel %vm2580, %v6380, %v5318
  %v6445 = vsel %vm2580, %v6381, %v5320
  %v6446 = vsel %vm2580, %v6382, %v5322
  %v6447 = vsel %vm2580, %v6383, %v5324
  %v6448 = vsel %vm2580, %v6384, %v5326
  %v6449 = vsel %vm2580, %v6385, %v5328
  %v6450 = vsel %vm2580, %v6386, %v5330
  %v6451 = vsel %vm2580, %v6387, %v5332
  %v6452 = vsel %vm2580, %v6388, %v5334
  %v6453 = vsel %vm2580, %v6389, %v5336
  %v6454 = vsel %vm2580, %v6390, %v5338
  %v6455 = vsel %vm2580, %v6391, %v5340
  %v6456 = vsel %vm2580, %v6392, %v5342
  %v6457 = vsel %vm2580, %v6393, %v5344
  %v6458 = vsel %vm2580, %v6394, %v5346
  %v6459 = vsel %vm2580, %v6395, %v5348
  %v6460 = vsel %vm2580, %v6396, %v5350
  %v6461 = vsel %vm2580, %v6397, %v5352
  %v6462 = vsel %vm2580, %v6398, %v5354
  %v6463 = vsel %vm2580, %v6399, %v5356
  %v6464 = vsel %vm2580, %v6400, %v5358
  %v6465 = vsel %vm2580, %v6401, %v5360
  %v6466 = vsel %vm2580, %v6402, %v5362
  %v6467 = vsel %vm2580, %v6403, %v5364
  %v6468 = vsel %vm2580, %v6404, %v5366
  %v6469 = vsel %vm2580, %v6405, %v5368
  %v6470 = vsel %vm2580, %v6406, %v5370
  %v6471 = vsel %vm2580, %v6407, %v5372
  %v6472 = vsel %vm2580, %v6408, %v5374
  %v6473 = vsel %vm2580, %v6409, %v5376
  %v6474 = vsel %vm2580, %v6410, %v5378
  %v6475 = vsel %vm2580, %v6411, %v5380
  %v6476 = vsel %vm2580, %v6412, %v5382
  %v6477 = vsel %vm2580, %v6413, %v5384
  %v6478 = vsel %vm2580, %v6414, %v5386
  %v6479 = vsel %vm2580, %v6415, %v5388
  %v6480 = vsel %vm2580, %v6416, %v5390
  %v6481 = vsel %vm2580, %v6417, %v5392
  %v6482 = vsel %vm2580, %v6418, %v5394
  %v6483 = vsel %vm2645, %v6419, %v5460
  %v6484 = vsel %vm2645, %v6420, %v5462
  %v6485 = vsel %vm2645, %v6421, %v5464
  %v6486 = vsel %vm2645, %v6422, %v5466
  %v6487 = vsel %vm2645, %v6423, %v5468
  %v6488 = vsel %vm2645, %v6424, %v5470
  %v6489 = vsel %vm2645, %v6425, %v5472
  %v6490 = vsel %vm2645, %v6426, %v5474
  %v6491 = vsel %vm2645, %v6427, %v5476
  %v6492 = vsel %vm2645, %v6428, %v5478
  %v6493 = vsel %vm2645, %v6429, %v5480
  %v6494 = vsel %vm2645, %v6430, %v5482
  %v6495 = vsel %vm2645, %v6431, %v5484
  %v6496 = vsel %vm2645, %v6432, %v5486
  %v6497 = vsel %vm2645, %v6433, %v5488
  %v6498 = vsel %vm2645, %v6434, %v5490
  %v6499 = vsel %vm2645, %v6435, %v5492
  %v6500 = vsel %vm2645, %v6436, %v5494
  %v6501 = vsel %vm2645, %v6437, %v5496
  %v6502 = vsel %vm2645, %v6438, %v5498
  %v6503 = vsel %vm2645, %v6439, %v5500
  %v6504 = vsel %vm2645, %v6440, %v5502
  %v6505 = vsel %vm2645, %v6441, %v5504
  %v6506 = vsel %vm2645, %v6442, %v5506
  %v6507 = vsel %vm2645, %v6443, %v5508
  %v6508 = vsel %vm2645, %v6444, %v5510
  %v6509 = vsel %vm2645, %v6445, %v5512
  %v6510 = vsel %vm2645, %v6446, %v5514
  %v6511 = vsel %vm2645, %v6447, %v5516
  %v6512 = vsel %vm2645, %v6448, %v5518
  %v6513 = vsel %vm2645, %v6449, %v5520
  %v6514 = vsel %vm2645, %v6450, %v5522
  %v6515 = vsel %vm2645, %v6451, %v5524
  %v6516 = vsel %vm2645, %v6452, %v5526
  %v6517 = vsel %vm2645, %v6453, %v5528
  %v6518 = vsel %vm2645, %v6454, %v5530
  %v6519 = vsel %vm2645, %v6455, %v5532
  %v6520 = vsel %vm2645, %v6456, %v5534
  %v6521 = vsel %vm2645, %v6457, %v5536
  %v6522 = vsel %vm2645, %v6458, %v5538
  %v6523 = vsel %vm2645, %v6459, %v5540
  %v6524 = vsel %vm2645, %v6460, %v5542
  %v6525 = vsel %vm2645, %v6461, %v5544
  %v6526 = vsel %vm2645, %v6462, %v5546
  %v6527 = vsel %vm2645, %v6463, %v5548
  %v6528 = vsel %vm2645, %v6464, %v5550
  %v6529 = vsel %vm2645, %v6465, %v5552
  %v6530 = vsel %vm2645, %v6466, %v5554
  %v6531 = vsel %vm2645, %v6467, %v5556
  %v6532 = vsel %vm2645, %v6468, %v5558
  %v6533 = vsel %vm2645, %v6469, %v5560
  %v6534 = vsel %vm2645, %v6470, %v5562
  %v6535 = vsel %vm2645, %v6471, %v5564
  %v6536 = vsel %vm2645, %v6472, %v5566
  %v6537 = vsel %vm2645, %v6473, %v5568
  %v6538 = vsel %vm2645, %v6474, %v5570
  %v6539 = vsel %vm2645, %v6475, %v5572
  %v6540 = vsel %vm2645, %v6476, %v5574
  %v6541 = vsel %vm2645, %v6477, %v5576
  %v6542 = vsel %vm2645, %v6478, %v5578
  %v6543 = vsel %vm2645, %v6479, %v5580
  %v6544 = vsel %vm2645, %v6480, %v5582
  %v6545 = vsel %vm2645, %v6481, %v5584
  %v6546 = vsel %vm2645, %v6482, %v5586
  %v6547 = vsel %vm2710, %v6483, %v5652
  %v6548 = vsel %vm2710, %v6484, %v5654
  %v6549 = vsel %vm2710, %v6485, %v5656
  %v6550 = vsel %vm2710, %v6486, %v5658
  %v6551 = vsel %vm2710, %v6487, %v5660
  %v6552 = vsel %vm2710, %v6488, %v5662
  %v6553 = vsel %vm2710, %v6489, %v5664
  %v6554 = vsel %vm2710, %v6490, %v5666
  %v6555 = vsel %vm2710, %v6491, %v5668
  %v6556 = vsel %vm2710, %v6492, %v5670
  %v6557 = vsel %vm2710, %v6493, %v5672
  %v6558 = vsel %vm2710, %v6494, %v5674
  %v6559 = vsel %vm2710, %v6495, %v5676
  %v6560 = vsel %vm2710, %v6496, %v5678
  %v6561 = vsel %vm2710, %v6497, %v5680
  %v6562 = vsel %vm2710, %v6498, %v5682
  %v6563 = vsel %vm2710, %v6499, %v5684
  %v6564 = vsel %vm2710, %v6500, %v5686
  %v6565 = vsel %vm2710, %v6501, %v5688
  %v6566 = vsel %vm2710, %v6502, %v5690
  %v6567 = vsel %vm2710, %v6503, %v5692
  %v6568 = vsel %vm2710, %v6504, %v5694
  %v6569 = vsel %vm2710, %v6505, %v5696
  %v6570 = vsel %vm2710, %v6506, %v5698
  %v6571 = vsel %vm2710, %v6507, %v5700
  %v6572 = vsel %vm2710, %v6508, %v5702
  %v6573 = vsel %vm2710, %v6509, %v5704
  %v6574 = vsel %vm2710, %v6510, %v5706
  %v6575 = vsel %vm2710, %v6511, %v5708
  %v6576 = vsel %vm2710, %v6512, %v5710
  %v6577 = vsel %vm2710, %v6513, %v5712
  %v6578 = vsel %vm2710, %v6514, %v5714
  %v6579 = vsel %vm2710, %v6515, %v5716
  %v6580 = vsel %vm2710, %v6516, %v5718
  %v6581 = vsel %vm2710, %v6517, %v5720
  %v6582 = vsel %vm2710, %v6518, %v5722
  %v6583 = vsel %vm2710, %v6519, %v5724
  %v6584 = vsel %vm2710, %v6520, %v5726
  %v6585 = vsel %vm2710, %v6521, %v5728
  %v6586 = vsel %vm2710, %v6522, %v5730
  %v6587 = vsel %vm2710, %v6523, %v5732
  %v6588 = vsel %vm2710, %v6524, %v5734
  %v6589 = vsel %vm2710, %v6525, %v5736
  %v6590 = vsel %vm2710, %v6526, %v5738
  %v6591 = vsel %vm2710, %v6527, %v5740
  %v6592 = vsel %vm2710, %v6528, %v5742
  %v6593 = vsel %vm2710, %v6529, %v5744
  %v6594 = vsel %vm2710, %v6530, %v5746
  %v6595 = vsel %vm2710, %v6531, %v5748
  %v6596 = vsel %vm2710, %v6532, %v5750
  %v6597 = vsel %vm2710, %v6533, %v5752
  %v6598 = vsel %vm2710, %v6534, %v5754
  %v6599 = vsel %vm2710, %v6535, %v5756
  %v6600 = vsel %vm2710, %v6536, %v5758
  %v6601 = vsel %vm2710, %v6537, %v5760
  %v6602 = vsel %vm2710, %v6538, %v5762
  %v6603 = vsel %vm2710, %v6539, %v5764
  %v6604 = vsel %vm2710, %v6540, %v5766
  %v6605 = vsel %vm2710, %v6541, %v5768
  %v6606 = vsel %vm2710, %v6542, %v5770
  %v6607 = vsel %vm2710, %v6543, %v5772
  %v6608 = vsel %vm2710, %v6544, %v5774
  %v6609 = vsel %vm2710, %v6545, %v5776
  %v6610 = vsel %vm2710, %v6546, %v5778
  %v6611 = vsel %vm2775, %v6547, %v5844
  %v6612 = vsel %vm2775, %v6548, %v5846
  %v6613 = vsel %vm2775, %v6549, %v5848
  %v6614 = vsel %vm2775, %v6550, %v5850
  %v6615 = vsel %vm2775, %v6551, %v5852
  %v6616 = vsel %vm2775, %v6552, %v5854
  %v6617 = vsel %vm2775, %v6553, %v5856
  %v6618 = vsel %vm2775, %v6554, %v5858
  %v6619 = vsel %vm2775, %v6555, %v5860
  %v6620 = vsel %vm2775, %v6556, %v5862
  %v6621 = vsel %vm2775, %v6557, %v5864
  %v6622 = vsel %vm2775, %v6558, %v5866
  %v6623 = vsel %vm2775, %v6559, %v5868
  %v6624 = vsel %vm2775, %v6560, %v5870
  %v6625 = vsel %vm2775, %v6561, %v5872
  %v6626 = vsel %vm2775, %v6562, %v5874
  %v6627 = vsel %vm2775, %v6563, %v5876
  %v6628 = vsel %vm2775, %v6564, %v5878
  %v6629 = vsel %vm2775, %v6565, %v5880
  %v6630 = vsel %vm2775, %v6566, %v5882
  %v6631 = vsel %vm2775, %v6567, %v5884
  %v6632 = vsel %vm2775, %v6568, %v5886
  %v6633 = vsel %vm2775, %v6569, %v5888
  %v6634 = vsel %vm2775, %v6570, %v5890
  %v6635 = vsel %vm2775, %v6571, %v5892
  %v6636 = vsel %vm2775, %v6572, %v5894
  %v6637 = vsel %vm2775, %v6573, %v5896
  %v6638 = vsel %vm2775, %v6574, %v5898
  %v6639 = vsel %vm2775, %v6575, %v5900
  %v6640 = vsel %vm2775, %v6576, %v5902
  %v6641 = vsel %vm2775, %v6577, %v5904
  %v6642 = vsel %vm2775, %v6578, %v5906
  %v6643 = vsel %vm2775, %v6579, %v5908
  %v6644 = vsel %vm2775, %v6580, %v5910
  %v6645 = vsel %vm2775, %v6581, %v5912
  %v6646 = vsel %vm2775, %v6582, %v5914
  %v6647 = vsel %vm2775, %v6583, %v5916
  %v6648 = vsel %vm2775, %v6584, %v5918
  %v6649 = vsel %vm2775, %v6585, %v5920
  %v6650 = vsel %vm2775, %v6586, %v5922
  %v6651 = vsel %vm2775, %v6587, %v5924
  %v6652 = vsel %vm2775, %v6588, %v5926
  %v6653 = vsel %vm2775, %v6589, %v5928
  %v6654 = vsel %vm2775, %v6590, %v5930
  %v6655 = vsel %vm2775, %v6591, %v5932
  %v6656 = vsel %vm2775, %v6592, %v5934
  %v6657 = vsel %vm2775, %v6593, %v5936
  %v6658 = vsel %vm2775, %v6594, %v5938
  %v6659 = vsel %vm2775, %v6595, %v5940
  %v6660 = vsel %vm2775, %v6596, %v5942
  %v6661 = vsel %vm2775, %v6597, %v5944
  %v6662 = vsel %vm2775, %v6598, %v5946
  %v6663 = vsel %vm2775, %v6599, %v5948
  %v6664 = vsel %vm2775, %v6600, %v5950
  %v6665 = vsel %vm2775, %v6601, %v5952
  %v6666 = vsel %vm2775, %v6602, %v5954
  %v6667 = vsel %vm2775, %v6603, %v5956
  %v6668 = vsel %vm2775, %v6604, %v5958
  %v6669 = vsel %vm2775, %v6605, %v5960
  %v6670 = vsel %vm2775, %v6606, %v5962
  %v6671 = vsel %vm2775, %v6607, %v5964
  %v6672 = vsel %vm2775, %v6608, %v5966
  %v6673 = vsel %vm2775, %v6609, %v5968
  %v6674 = vsel %vm2775, %v6610, %v5970
  %v6675 = vsel %vm2840, %v6611, %v6036
  %v6676 = vsel %vm2840, %v6612, %v6038
  %v6677 = vsel %vm2840, %v6613, %v6040
  %v6678 = vsel %vm2840, %v6614, %v6042
  %v6679 = vsel %vm2840, %v6615, %v6044
  %v6680 = vsel %vm2840, %v6616, %v6046
  %v6681 = vsel %vm2840, %v6617, %v6048
  %v6682 = vsel %vm2840, %v6618, %v6050
  %v6683 = vsel %vm2840, %v6619, %v6052
  %v6684 = vsel %vm2840, %v6620, %v6054
  %v6685 = vsel %vm2840, %v6621, %v6056
  %v6686 = vsel %vm2840, %v6622, %v6058
  %v6687 = vsel %vm2840, %v6623, %v6060
  %v6688 = vsel %vm2840, %v6624, %v6062
  %v6689 = vsel %vm2840, %v6625, %v6064
  %v6690 = vsel %vm2840, %v6626, %v6066
  %v6691 = vsel %vm2840, %v6627, %v6068
  %v6692 = vsel %vm2840, %v6628, %v6070
  %v6693 = vsel %vm2840, %v6629, %v6072
  %v6694 = vsel %vm2840, %v6630, %v6074
  %v6695 = vsel %vm2840, %v6631, %v6076
  %v6696 = vsel %vm2840, %v6632, %v6078
  %v6697 = vsel %vm2840, %v6633, %v6080
  %v6698 = vsel %vm2840, %v6634, %v6082
  %v6699 = vsel %vm2840, %v6635, %v6084
  %v6700 = vsel %vm2840, %v6636, %v6086
  %v6701 = vsel %vm2840, %v6637, %v6088
  %v6702 = vsel %vm2840, %v6638, %v6090
  %v6703 = vsel %vm2840, %v6639, %v6092
  %v6704 = vsel %vm2840, %v6640, %v6094
  %v6705 = vsel %vm2840, %v6641, %v6096
  %v6706 = vsel %vm2840, %v6642, %v6098
  %v6707 = vsel %vm2840, %v6643, %v6100
  %v6708 = vsel %vm2840, %v6644, %v6102
  %v6709 = vsel %vm2840, %v6645, %v6104
  %v6710 = vsel %vm2840, %v6646, %v6106
  %v6711 = vsel %vm2840, %v6647, %v6108
  %v6712 = vsel %vm2840, %v6648, %v6110
  %v6713 = vsel %vm2840, %v6649, %v6112
  %v6714 = vsel %vm2840, %v6650, %v6114
  %v6715 = vsel %vm2840, %v6651, %v6116
  %v6716 = vsel %vm2840, %v6652, %v6118
  %v6717 = vsel %vm2840, %v6653, %v6120
  %v6718 = vsel %vm2840, %v6654, %v6122
  %v6719 = vsel %vm2840, %v6655, %v6124
  %v6720 = vsel %vm2840, %v6656, %v6126
  %v6721 = vsel %vm2840, %v6657, %v6128
  %v6722 = vsel %vm2840, %v6658, %v6130
  %v6723 = vsel %vm2840, %v6659, %v6132
  %v6724 = vsel %vm2840, %v6660, %v6134
  %v6725 = vsel %vm2840, %v6661, %v6136
  %v6726 = vsel %vm2840, %v6662, %v6138
  %v6727 = vsel %vm2840, %v6663, %v6140
  %v6728 = vsel %vm2840, %v6664, %v6142
  %v6729 = vsel %vm2840, %v6665, %v6144
  %v6730 = vsel %vm2840, %v6666, %v6146
  %v6731 = vsel %vm2840, %v6667, %v6148
  %v6732 = vsel %vm2840, %v6668, %v6150
  %v6733 = vsel %vm2840, %v6669, %v6152
  %v6734 = vsel %vm2840, %v6670, %v6154
  %v6735 = vsel %vm2840, %v6671, %v6156
  %v6736 = vsel %vm2840, %v6672, %v6158
  %v6737 = vsel %vm2840, %v6673, %v6160
  %v6738 = vsel %vm2840, %v6674, %v6162
  %v6740 = vsel %vm2905, %v6675, 0
  %v6743 = vsel %vm2905, %v6676, 0
  %v6746 = vsel %vm2905, %v6677, 0
  %v6749 = vsel %vm2905, %v6678, 0
  %v6752 = vsel %vm2905, %v6679, 0
  %v6755 = vsel %vm2905, %v6680, 0
  %v6758 = vsel %vm2905, %v6681, 0
  %v6761 = vsel %vm2905, %v6682, 0
  %v6764 = vsel %vm2905, %v6683, 0
  %v6767 = vsel %vm2905, %v6684, 0
  %v6770 = vsel %vm2905, %v6685, 0
  %v6773 = vsel %vm2905, %v6686, 0
  %v6776 = vsel %vm2905, %v6687, 0
  %v6779 = vsel %vm2905, %v6688, 0
  %v6782 = vsel %vm2905, %v6689, 0
  %v6785 = vsel %vm2905, %v6690, 0
  %v6788 = vsel %vm2905, %v6691, 0
  %v6791 = vsel %vm2905, %v6692, 0
  %v6794 = vsel %vm2905, %v6693, 0
  %v6797 = vsel %vm2905, %v6694, 0
  %v6800 = vsel %vm2905, %v6695, 0
  %v6803 = vsel %vm2905, %v6696, 0
  %v6806 = vsel %vm2905, %v6697, 0
  %v6809 = vsel %vm2905, %v6698, 0
  %v6812 = vsel %vm2905, %v6699, 0
  %v6815 = vsel %vm2905, %v6700, 0
  %v6818 = vsel %vm2905, %v6701, 0
  %v6821 = vsel %vm2905, %v6702, 0
  %v6824 = vsel %vm2905, %v6703, 0
  %v6827 = vsel %vm2905, %v6704, 0
  %v6830 = vsel %vm2905, %v6705, 0
  %v6833 = vsel %vm2905, %v6706, 0
  %v6836 = vsel %vm2905, %v6707, 0
  %v6839 = vsel %vm2905, %v6708, 0
  %v6842 = vsel %vm2905, %v6709, 0
  %v6845 = vsel %vm2905, %v6710, 0
  %v6848 = vsel %vm2905, %v6711, 0
  %v6851 = vsel %vm2905, %v6712, 0
  %v6854 = vsel %vm2905, %v6713, 0
  %v6857 = vsel %vm2905, %v6714, 0
  %v6860 = vsel %vm2905, %v6715, 0
  %v6863 = vsel %vm2905, %v6716, 0
  %v6866 = vsel %vm2905, %v6717, 0
  %v6869 = vsel %vm2905, %v6718, 0
  %v6872 = vsel %vm2905, %v6719, 0
  %v6875 = vsel %vm2905, %v6720, 0
  %v6878 = vsel %vm2905, %v6721, 0
  %v6881 = vsel %vm2905, %v6722, 0
  %v6884 = vsel %vm2905, %v6723, 0
  %v6887 = vsel %vm2905, %v6724, 0
  %v6890 = vsel %vm2905, %v6725, 0
  %v6893 = vsel %vm2905, %v6726, 0
  %v6896 = vsel %vm2905, %v6727, 0
  %v6899 = vsel %vm2905, %v6728, 0
  %v6902 = vsel %vm2905, %v6729, 0
  %v6905 = vsel %vm2905, %v6730, 0
  %v6908 = vsel %vm2905, %v6731, 0
  %v6911 = vsel %vm2905, %v6732, 0
  %v6914 = vsel %vm2905, %v6733, 0
  %v6917 = vsel %vm2905, %v6734, 0
  %v6920 = vsel %vm2905, %v6735, 0
  %v6923 = vsel %vm2905, %v6736, 0
  %v6926 = vsel %vm2905, %v6737, 0
  %v6929 = vsel %vm2905, %v6738, 0
  %v6932 = vsel %vm3098, %v4112, 0
  %6934 = vmatprep.subr.mxu0 0.0
  %6935 = vmatpush1.msra.mxu0 0.0
  %6936 = vmatprep.subr.mxu0 0.0
  %6937 = vmatpush1.msra.mxu0 0.0
  %6938 = vmatprep.subr.mxu0 0.0
  %6939 = vmatpush1.msra.mxu0 0.0
  %6940 = vmatprep.subr.mxu0 0.0
  %6941 = vmatpush1.msra.mxu0 0.0
  %6942 = vmatprep.subr.mxu0 0.0
  %6943 = vmatpush1.msra.mxu0 0.0
  %6944 = vmatprep.subr.mxu0 0.0
  %6945 = vmatpush1.msra.mxu0 0.0
  %6946 = vmatprep.subr.mxu0 0.0
  %6947 = vmatpush1.msra.mxu0 0.0
  %6948 = vmatprep.subr.mxu0 0.0
  %6949 = vmatpush1.msra.mxu0 0.0
  %6950 = vmatprep.subr.mxu0 0.0
  %6951 = vmatpush1.msra.mxu0 0.0
  %6952 = vmatprep.subr.mxu0 0.0
  %6953 = vmatpush1.msra.mxu0 0.0
  %6954 = vmatprep.subr.mxu0 0.0
  %6955 = vmatpush1.msra.mxu0 0.0
  %6956 = vmatprep.subr.mxu0 0.0
  %6957 = vmatpush1.msra.mxu0 %v6932
  %6958 = vmatprep.subr.mxu0 0.0
  %6959 = vmatpush1.msra.mxu0 %v4111
  %6960 = vmatprep.subr.mxu0 0.0
  %6961 = vmatpush1.msra.mxu0 %v4110
  %6962 = vmatprep.subr.mxu0 0.0
  %6963 = vmatpush1.msra.mxu0 %v4109
  %6964 = vmatprep.subr.mxu0 0.0
  %6965 = vmatpush1.msra.mxu0 %v4108
  %6966 = vmatprep.subr.mxu0 0.0
  %6967 = vmatpush2.msra.mxu0 0.0
  %6968 = vmatprep.subr.mxu0 0.0
  %6969 = vmatpush2.msra.mxu0 0.0
  %6970 = vmatprep.subr.mxu0 0.0
  %6971 = vmatpush2.msra.mxu0 0.0
  %6972 = vmatprep.subr.mxu0 0.0
  %6973 = vmatpush2.msra.mxu0 0.0
  %6974 = vmatprep.subr.mxu0 0.0
  %6975 = vmatpush2.msra.mxu0 0.0
  %6976 = vmatprep.subr.mxu0 0.0
  %6977 = vmatpush2.msra.mxu0 0.0
  %6978 = vmatprep.subr.mxu0 0.0
  %6979 = vmatpush2.msra.mxu0 0.0
  %6980 = vmatprep.subr.mxu0 0.0
  %6981 = vmatpush2.msra.mxu0 0.0
  %6982 = vmatprep.subr.mxu0 0.0
  %6983 = vmatpush2.msra.mxu0 0.0
  %6984 = vmatprep.subr.mxu0 0.0
  %6985 = vmatpush2.msra.mxu0 0.0
  %6986 = vmatprep.subr.mxu0 0.0
  %6987 = vmatpush2.msra.mxu0 0.0
  %6988 = vmatprep.subr.mxu0 0.0
  %6989 = vmatpush2.msra.mxu0 0.0
  %6990 = vmatprep.subr.mxu0 0.0
  %6991 = vmatpush2.msra.mxu0 0.0
  %6992 = vmatprep.subr.mxu0 0.0
  %6993 = vmatpush2.msra.mxu0 0.0
  %6994 = vmatprep.subr.mxu0 0.0
  %6995 = vmatpush2.msra.mxu0 0.0
  %6996 = vmatprep.subr.mxu0 0.0
  %6997 = vmatpush2.msra.mxu0 0.0
  %6998 = vmatprep.mubr.f32.mxu0 0.0
  %6999 = vmatmul.mubr.f32.gmra.mxu0 %v6740
  %v7000 = vpop.f32.mrf.mxu0
  %v7001 = vadd.f32 0.0, %v7000
  %v7002 = vpop.f32.mrf.mxu0
  %7003 = vmatprep.mubr.f32.mxu0 0.0
  %7004 = vmatmul.mubr.f32.gmra.mxu0 %v6743
  %v7005 = vpop.f32.mrf.mxu0
  %v7006 = vadd.f32 0.0, %v7005
  %v7007 = vpop.f32.mrf.mxu0
  %7008 = vmatprep.mubr.f32.mxu0 0.0
  %7009 = vmatmul.mubr.f32.gmra.mxu0 %v6746
  %v7010 = vpop.f32.mrf.mxu0
  %v7011 = vadd.f32 0.0, %v7010
  %v7012 = vpop.f32.mrf.mxu0
  %7013 = vmatprep.mubr.f32.mxu0 0.0
  %7014 = vmatmul.mubr.f32.gmra.mxu0 %v6749
  %v7015 = vpop.f32.mrf.mxu0
  %v7016 = vadd.f32 0.0, %v7015
  %v7017 = vpop.f32.mrf.mxu0
  %7018 = vmatprep.mubr.f32.mxu0 0.0
  %7019 = vmatmul.mubr.f32.gmra.mxu0 %v6752
  %v7020 = vpop.f32.mrf.mxu0
  %v7021 = vadd.f32 0.0, %v7020
  %v7022 = vpop.f32.mrf.mxu0
  %7023 = vmatprep.mubr.f32.mxu0 0.0
  %7024 = vmatmul.mubr.f32.gmra.mxu0 %v6755
  %v7025 = vpop.f32.mrf.mxu0
  %v7026 = vadd.f32 0.0, %v7025
  %v7027 = vpop.f32.mrf.mxu0
  %7028 = vmatprep.mubr.f32.mxu0 0.0
  %7029 = vmatmul.mubr.f32.gmra.mxu0 %v6758
  %v7030 = vpop.f32.mrf.mxu0
  %v7031 = vadd.f32 0.0, %v7030
  %v7032 = vpop.f32.mrf.mxu0
  %7033 = vmatprep.mubr.f32.mxu0 0.0
  %7034 = vmatmul.mubr.f32.gmra.mxu0 %v6761
  %v7035 = vpop.f32.mrf.mxu0
  %v7036 = vadd.f32 0.0, %v7035
  %v7037 = vpop.f32.mrf.mxu0
  %7038 = vmatprep.mubr.f32.mxu0 0.0
  %7039 = vmatmul.mubr.f32.gmra.mxu0 %v6764
  %v7040 = vpop.f32.mrf.mxu0
  %v7041 = vadd.f32 0.0, %v7040
  %v7042 = vpop.f32.mrf.mxu0
  %7043 = vmatprep.mubr.f32.mxu0 0.0
  %7044 = vmatmul.mubr.f32.gmra.mxu0 %v6767
  %v7045 = vpop.f32.mrf.mxu0
  %v7046 = vadd.f32 0.0, %v7045
  %v7047 = vpop.f32.mrf.mxu0
  %7048 = vmatprep.mubr.f32.mxu0 0.0
  %7049 = vmatmul.mubr.f32.gmra.mxu0 %v6770
  %v7050 = vpop.f32.mrf.mxu0
  %v7051 = vadd.f32 0.0, %v7050
  %v7052 = vpop.f32.mrf.mxu0
  %7053 = vmatprep.mubr.f32.mxu0 0.0
  %7054 = vmatmul.mubr.f32.gmra.mxu0 %v6773
  %v7055 = vpop.f32.mrf.mxu0
  %v7056 = vadd.f32 0.0, %v7055
  %v7057 = vpop.f32.mrf.mxu0
  %7058 = vmatprep.mubr.f32.mxu0 0.0
  %7059 = vmatmul.mubr.f32.gmra.mxu0 %v6776
  %v7060 = vpop.f32.mrf.mxu0
  %v7061 = vadd.f32 0.0, %v7060
  %v7062 = vpop.f32.mrf.mxu0
  %7063 = vmatprep.mubr.f32.mxu0 0.0
  %7064 = vmatmul.mubr.f32.gmra.mxu0 %v6779
  %v7065 = vpop.f32.mrf.mxu0
  %v7066 = vadd.f32 0.0, %v7065
  %v7067 = vpop.f32.mrf.mxu0
  %7068 = vmatprep.mubr.f32.mxu0 0.0
  %7069 = vmatmul.mubr.f32.gmra.mxu0 %v6782
  %v7070 = vpop.f32.mrf.mxu0
  %v7071 = vadd.f32 0.0, %v7070
  %v7072 = vpop.f32.mrf.mxu0
  %7073 = vmatprep.mubr.f32.mxu0 0.0
  %7074 = vmatmul.mubr.f32.gmra.mxu0 %v6785
  %v7075 = vpop.f32.mrf.mxu0
  %v7076 = vadd.f32 0.0, %v7075
  %v7077 = vpop.f32.mrf.mxu0
  %7078 = vmatprep.mubr.f32.mxu0 0.0
  %7079 = vmatmul.mubr.f32.gmra.mxu0 %v6788
  %v7080 = vpop.f32.mrf.mxu0
  %v7081 = vadd.f32 0.0, %v7080
  %v7082 = vpop.f32.mrf.mxu0
  %7083 = vmatprep.mubr.f32.mxu0 0.0
  %7084 = vmatmul.mubr.f32.gmra.mxu0 %v6791
  %v7085 = vpop.f32.mrf.mxu0
  %v7086 = vadd.f32 0.0, %v7085
  %v7087 = vpop.f32.mrf.mxu0
  %7088 = vmatprep.mubr.f32.mxu0 0.0
  %7089 = vmatmul.mubr.f32.gmra.mxu0 %v6794
  %v7090 = vpop.f32.mrf.mxu0
  %v7091 = vadd.f32 0.0, %v7090
  %v7092 = vpop.f32.mrf.mxu0
  %7093 = vmatprep.mubr.f32.mxu0 0.0
  %7094 = vmatmul.mubr.f32.gmra.mxu0 %v6797
  %v7095 = vpop.f32.mrf.mxu0
  %v7096 = vadd.f32 0.0, %v7095
  %v7097 = vpop.f32.mrf.mxu0
  %7098 = vmatprep.mubr.f32.mxu0 0.0
  %7099 = vmatmul.mubr.f32.gmra.mxu0 %v6800
  %v7100 = vpop.f32.mrf.mxu0
  %v7101 = vadd.f32 0.0, %v7100
  %v7102 = vpop.f32.mrf.mxu0
  %7103 = vmatprep.mubr.f32.mxu0 0.0
  %7104 = vmatmul.mubr.f32.gmra.mxu0 %v6803
  %v7105 = vpop.f32.mrf.mxu0
  %v7106 = vadd.f32 0.0, %v7105
  %v7107 = vpop.f32.mrf.mxu0
  %7108 = vmatprep.mubr.f32.mxu0 0.0
  %7109 = vmatmul.mubr.f32.gmra.mxu0 %v6806
  %v7110 = vpop.f32.mrf.mxu0
  %v7111 = vadd.f32 0.0, %v7110
  %v7112 = vpop.f32.mrf.mxu0
  %7113 = vmatprep.mubr.f32.mxu0 0.0
  %7114 = vmatmul.mubr.f32.gmra.mxu0 %v6809
  %v7115 = vpop.f32.mrf.mxu0
  %v7116 = vadd.f32 0.0, %v7115
  %v7117 = vpop.f32.mrf.mxu0
  %7118 = vmatprep.mubr.f32.mxu0 0.0
  %7119 = vmatmul.mubr.f32.gmra.mxu0 %v6812
  %v7120 = vpop.f32.mrf.mxu0
  %v7121 = vadd.f32 0.0, %v7120
  %v7122 = vpop.f32.mrf.mxu0
  %7123 = vmatprep.mubr.f32.mxu0 0.0
  %7124 = vmatmul.mubr.f32.gmra.mxu0 %v6815
  %v7125 = vpop.f32.mrf.mxu0
  %v7126 = vadd.f32 0.0, %v7125
  %v7127 = vpop.f32.mrf.mxu0
  %7128 = vmatprep.mubr.f32.mxu0 0.0
  %7129 = vmatmul.mubr.f32.gmra.mxu0 %v6818
  %v7130 = vpop.f32.mrf.mxu0
  %v7131 = vadd.f32 0.0, %v7130
  %v7132 = vpop.f32.mrf.mxu0
  %7133 = vmatprep.mubr.f32.mxu0 0.0
  %7134 = vmatmul.mubr.f32.gmra.mxu0 %v6821
  %v7135 = vpop.f32.mrf.mxu0
  %v7136 = vadd.f32 0.0, %v7135
  %v7137 = vpop.f32.mrf.mxu0
  %7138 = vmatprep.mubr.f32.mxu0 0.0
  %7139 = vmatmul.mubr.f32.gmra.mxu0 %v6824
  %v7140 = vpop.f32.mrf.mxu0
  %v7141 = vadd.f32 0.0, %v7140
  %v7142 = vpop.f32.mrf.mxu0
  %7143 = vmatprep.mubr.f32.mxu0 0.0
  %7144 = vmatmul.mubr.f32.gmra.mxu0 %v6827
  %v7145 = vpop.f32.mrf.mxu0
  %v7146 = vadd.f32 0.0, %v7145
  %v7147 = vpop.f32.mrf.mxu0
  %7148 = vmatprep.mubr.f32.mxu0 0.0
  %7149 = vmatmul.mubr.f32.gmra.mxu0 %v6830
  %v7150 = vpop.f32.mrf.mxu0
  %v7151 = vadd.f32 0.0, %v7150
  %v7152 = vpop.f32.mrf.mxu0
  %7153 = vmatprep.mubr.f32.mxu0 0.0
  %7154 = vmatmul.mubr.f32.gmra.mxu0 %v6833
  %v7155 = vpop.f32.mrf.mxu0
  %v7156 = vadd.f32 0.0, %v7155
  %v7157 = vpop.f32.mrf.mxu0
  %7158 = vmatprep.mubr.f32.mxu0 0.0
  %7159 = vmatmul.mubr.f32.gmra.mxu0 %v6836
  %v7160 = vpop.f32.mrf.mxu0
  %v7161 = vadd.f32 0.0, %v7160
  %v7162 = vpop.f32.mrf.mxu0
  %7163 = vmatprep.mubr.f32.mxu0 0.0
  %7164 = vmatmul.mubr.f32.gmra.mxu0 %v6839
  %v7165 = vpop.f32.mrf.mxu0
  %v7166 = vadd.f32 0.0, %v7165
  %v7167 = vpop.f32.mrf.mxu0
  %7168 = vmatprep.mubr.f32.mxu0 0.0
  %7169 = vmatmul.mubr.f32.gmra.mxu0 %v6842
  %v7170 = vpop.f32.mrf.mxu0
  %v7171 = vadd.f32 0.0, %v7170
  %v7172 = vpop.f32.mrf.mxu0
  %7173 = vmatprep.mubr.f32.mxu0 0.0
  %7174 = vmatmul.mubr.f32.gmra.mxu0 %v6845
  %v7175 = vpop.f32.mrf.mxu0
  %v7176 = vadd.f32 0.0, %v7175
  %v7177 = vpop.f32.mrf.mxu0
  %7178 = vmatprep.mubr.f32.mxu0 0.0
  %7179 = vmatmul.mubr.f32.gmra.mxu0 %v6848
  %v7180 = vpop.f32.mrf.mxu0
  %v7181 = vadd.f32 0.0, %v7180
  %v7182 = vpop.f32.mrf.mxu0
  %7183 = vmatprep.mubr.f32.mxu0 0.0
  %7184 = vmatmul.mubr.f32.gmra.mxu0 %v6851
  %v7185 = vpop.f32.mrf.mxu0
  %v7186 = vadd.f32 0.0, %v7185
  %v7187 = vpop.f32.mrf.mxu0
  %7188 = vmatprep.mubr.f32.mxu0 0.0
  %7189 = vmatmul.mubr.f32.gmra.mxu0 %v6854
  %v7190 = vpop.f32.mrf.mxu0
  %v7191 = vadd.f32 0.0, %v7190
  %v7192 = vpop.f32.mrf.mxu0
  %7193 = vmatprep.mubr.f32.mxu0 0.0
  %7194 = vmatmul.mubr.f32.gmra.mxu0 %v6857
  %v7195 = vpop.f32.mrf.mxu0
  %v7196 = vadd.f32 0.0, %v7195
  %v7197 = vpop.f32.mrf.mxu0
  %7198 = vmatprep.mubr.f32.mxu0 0.0
  %7199 = vmatmul.mubr.f32.gmra.mxu0 %v6860
  %v7200 = vpop.f32.mrf.mxu0
  %v7201 = vadd.f32 0.0, %v7200
  %v7202 = vpop.f32.mrf.mxu0
  %7203 = vmatprep.mubr.f32.mxu0 0.0
  %7204 = vmatmul.mubr.f32.gmra.mxu0 %v6863
  %v7205 = vpop.f32.mrf.mxu0
  %v7206 = vadd.f32 0.0, %v7205
  %v7207 = vpop.f32.mrf.mxu0
  %7208 = vmatprep.mubr.f32.mxu0 0.0
  %7209 = vmatmul.mubr.f32.gmra.mxu0 %v6866
  %v7210 = vpop.f32.mrf.mxu0
  %v7211 = vadd.f32 0.0, %v7210
  %v7212 = vpop.f32.mrf.mxu0
  %7213 = vmatprep.mubr.f32.mxu0 0.0
  %7214 = vmatmul.mubr.f32.gmra.mxu0 %v6869
  %v7215 = vpop.f32.mrf.mxu0
  %v7216 = vadd.f32 0.0, %v7215
  %v7217 = vpop.f32.mrf.mxu0
  %7218 = vmatprep.mubr.f32.mxu0 0.0
  %7219 = vmatmul.mubr.f32.gmra.mxu0 %v6872
  %v7220 = vpop.f32.mrf.mxu0
  %v7221 = vadd.f32 0.0, %v7220
  %v7222 = vpop.f32.mrf.mxu0
  %7223 = vmatprep.mubr.f32.mxu0 0.0
  %7224 = vmatmul.mubr.f32.gmra.mxu0 %v6875
  %v7225 = vpop.f32.mrf.mxu0
  %v7226 = vadd.f32 0.0, %v7225
  %v7227 = vpop.f32.mrf.mxu0
  %7228 = vmatprep.mubr.f32.mxu0 0.0
  %7229 = vmatmul.mubr.f32.gmra.mxu0 %v6878
  %v7230 = vpop.f32.mrf.mxu0
  %v7231 = vadd.f32 0.0, %v7230
  %v7232 = vpop.f32.mrf.mxu0
  %7233 = vmatprep.mubr.f32.mxu0 0.0
  %7234 = vmatmul.mubr.f32.gmra.mxu0 %v6881
  %v7235 = vpop.f32.mrf.mxu0
  %v7236 = vadd.f32 0.0, %v7235
  %v7237 = vpop.f32.mrf.mxu0
  %7238 = vmatprep.mubr.f32.mxu0 0.0
  %7239 = vmatmul.mubr.f32.gmra.mxu0 %v6884
  %v7240 = vpop.f32.mrf.mxu0
  %v7241 = vadd.f32 0.0, %v7240
  %v7242 = vpop.f32.mrf.mxu0
  %7243 = vmatprep.mubr.f32.mxu0 0.0
  %7244 = vmatmul.mubr.f32.gmra.mxu0 %v6887
  %v7245 = vpop.f32.mrf.mxu0
  %v7246 = vadd.f32 0.0, %v7245
  %v7247 = vpop.f32.mrf.mxu0
  %7248 = vmatprep.mubr.f32.mxu0 0.0
  %7249 = vmatmul.mubr.f32.gmra.mxu0 %v6890
  %v7250 = vpop.f32.mrf.mxu0
  %v7251 = vadd.f32 0.0, %v7250
  %v7252 = vpop.f32.mrf.mxu0
  %7253 = vmatprep.mubr.f32.mxu0 0.0
  %7254 = vmatmul.mubr.f32.gmra.mxu0 %v6893
  %v7255 = vpop.f32.mrf.mxu0
  %v7256 = vadd.f32 0.0, %v7255
  %v7257 = vpop.f32.mrf.mxu0
  %7258 = vmatprep.mubr.f32.mxu0 0.0
  %7259 = vmatmul.mubr.f32.gmra.mxu0 %v6896
  %v7260 = vpop.f32.mrf.mxu0
  %v7261 = vadd.f32 0.0, %v7260
  %v7262 = vpop.f32.mrf.mxu0
  %7263 = vmatprep.mubr.f32.mxu0 0.0
  %7264 = vmatmul.mubr.f32.gmra.mxu0 %v6899
  %v7265 = vpop.f32.mrf.mxu0
  %v7266 = vadd.f32 0.0, %v7265
  %v7267 = vpop.f32.mrf.mxu0
  %7268 = vmatprep.mubr.f32.mxu0 0.0
  %7269 = vmatmul.mubr.f32.gmra.mxu0 %v6902
  %v7270 = vpop.f32.mrf.mxu0
  %v7271 = vadd.f32 0.0, %v7270
  %v7272 = vpop.f32.mrf.mxu0
  %7273 = vmatprep.mubr.f32.mxu0 0.0
  %7274 = vmatmul.mubr.f32.gmra.mxu0 %v6905
  %v7275 = vpop.f32.mrf.mxu0
  %v7276 = vadd.f32 0.0, %v7275
  %v7277 = vpop.f32.mrf.mxu0
  %7278 = vmatprep.mubr.f32.mxu0 0.0
  %7279 = vmatmul.mubr.f32.gmra.mxu0 %v6908
  %v7280 = vpop.f32.mrf.mxu0
  %v7281 = vadd.f32 0.0, %v7280
  %v7282 = vpop.f32.mrf.mxu0
  %7283 = vmatprep.mubr.f32.mxu0 0.0
  %7284 = vmatmul.mubr.f32.gmra.mxu0 %v6911
  %v7285 = vpop.f32.mrf.mxu0
  %v7286 = vadd.f32 0.0, %v7285
  %v7287 = vpop.f32.mrf.mxu0
  %7288 = vmatprep.mubr.f32.mxu0 0.0
  %7289 = vmatmul.mubr.f32.gmra.mxu0 %v6914
  %v7290 = vpop.f32.mrf.mxu0
  %v7291 = vadd.f32 0.0, %v7290
  %v7292 = vpop.f32.mrf.mxu0
  %7293 = vmatprep.mubr.f32.mxu0 0.0
  %7294 = vmatmul.mubr.f32.gmra.mxu0 %v6917
  %v7295 = vpop.f32.mrf.mxu0
  %v7296 = vadd.f32 0.0, %v7295
  %v7297 = vpop.f32.mrf.mxu0
  %7298 = vmatprep.mubr.f32.mxu0 0.0
  %7299 = vmatmul.mubr.f32.gmra.mxu0 %v6920
  %v7300 = vpop.f32.mrf.mxu0
  %v7301 = vadd.f32 0.0, %v7300
  %v7302 = vpop.f32.mrf.mxu0
  %7303 = vmatprep.mubr.f32.mxu0 0.0
  %7304 = vmatmul.mubr.f32.gmra.mxu0 %v6923
  %v7305 = vpop.f32.mrf.mxu0
  %v7306 = vadd.f32 0.0, %v7305
  %v7307 = vpop.f32.mrf.mxu0
  %7308 = vmatprep.mubr.f32.mxu0 0.0
  %7309 = vmatmul.mubr.f32.gmra.mxu0 %v6926
  %v7310 = vpop.f32.mrf.mxu0
  %v7311 = vadd.f32 0.0, %v7310
  %v7312 = vpop.f32.mrf.mxu0
  %7313 = vmatprep.mubr.f32.mxu0 0.0
  %7314 = vmatmul.mubr.f32.gmra.mxu0 %v6929
  %v7315 = vpop.f32.mrf.mxu0
  %v7316 = vadd.f32 0.0, %v7315
  %v7317 = vpop.f32.mrf.mxu0
  %7318 = vdwg.mxu0
  %7319 = vmatprep.subr.mxu0 0.0
  %7320 = vmatpush1.msra.mxu0 %v7076
  %7321 = vmatprep.subr.mxu0 0.0
  %7322 = vmatpush1.msra.mxu0 %v7071
  %7323 = vmatprep.subr.mxu0 0.0
  %7324 = vmatpush1.msra.mxu0 %v7066
  %7325 = vmatprep.subr.mxu0 0.0
  %7326 = vmatpush1.msra.mxu0 %v7061
  %7327 = vmatprep.subr.mxu0 0.0
  %7328 = vmatpush1.msra.mxu0 %v7056
  %7329 = vmatprep.subr.mxu0 0.0
  %7330 = vmatpush1.msra.mxu0 %v7051
  %7331 = vmatprep.subr.mxu0 0.0
  %7332 = vmatpush1.msra.mxu0 %v7046
  %7333 = vmatprep.subr.mxu0 0.0
  %7334 = vmatpush1.msra.mxu0 %v7041
  %7335 = vmatprep.subr.mxu0 0.0
  %7336 = vmatpush1.msra.mxu0 %v7036
  %7337 = vmatprep.subr.mxu0 0.0
  %7338 = vmatpush1.msra.mxu0 %v7031
  %7339 = vmatprep.subr.mxu0 0.0
  %7340 = vmatpush1.msra.mxu0 %v7026
  %7341 = vmatprep.subr.mxu0 0.0
  %7342 = vmatpush1.msra.mxu0 %v7021
  %7343 = vmatprep.subr.mxu0 0.0
  %7344 = vmatpush1.msra.mxu0 %v7016
  %7345 = vmatprep.subr.mxu0 0.0
  %7346 = vmatpush1.msra.mxu0 %v7011
  %7347 = vmatprep.subr.mxu0 0.0
  %7348 = vmatpush1.msra.mxu0 %v7006
  %7349 = vmatprep.subr.mxu0 0.0
  %7350 = vmatpush1.msra.mxu0 %v7001
  %7351 = vmatprep.subr.mxu0 0.0
  %7352 = vmatpush2.msra.mxu0 %v7156
  %7353 = vmatprep.subr.mxu0 0.0
  %7354 = vmatpush2.msra.mxu0 %v7151
  %7355 = vmatprep.subr.mxu0 0.0
  %7356 = vmatpush2.msra.mxu0 %v7146
  %7357 = vmatprep.subr.mxu0 0.0
  %7358 = vmatpush2.msra.mxu0 %v7141
  %7359 = vmatprep.subr.mxu0 0.0
  %7360 = vmatpush2.msra.mxu0 %v7136
  %7361 = vmatprep.subr.mxu0 0.0
  %7362 = vmatpush2.msra.mxu0 %v7131
  %7363 = vmatprep.subr.mxu0 0.0
  %7364 = vmatpush2.msra.mxu0 %v7126
  %7365 = vmatprep.subr.mxu0 0.0
  %7366 = vmatpush2.msra.mxu0 %v7121
  %7367 = vmatprep.subr.mxu0 0.0
  %7368 = vmatpush2.msra.mxu0 %v7116
  %7369 = vmatprep.subr.mxu0 0.0
  %7370 = vmatpush2.msra.mxu0 %v7111
  %7371 = vmatprep.subr.mxu0 0.0
  %7372 = vmatpush2.msra.mxu0 %v7106
  %7373 = vmatprep.subr.mxu0 0.0
  %7374 = vmatpush2.msra.mxu0 %v7101
  %7375 = vmatprep.subr.mxu0 0.0
  %7376 = vmatpush2.msra.mxu0 %v7096
  %7377 = vmatprep.subr.mxu0 0.0
  %7378 = vmatpush2.msra.mxu0 %v7091
  %7379 = vmatprep.subr.mxu0 0.0
  %7380 = vmatpush2.msra.mxu0 %v7086
  %7381 = vmatprep.subr.mxu0 0.0
  %7382 = vmatpush2.msra.mxu0 %v7081
  %7383 = vmatprep.mubr.f32.mxu0 1.0
  %7384 = vmatmul.mubr.f32.gmra.mxu0 1.0
  %v7385 = vpop.f32.mrf.mxu0
  %v7386 = vadd.f32 0.0, %v7385
  %v7387 = vpop.f32.mrf.mxu0
  %7388 = vdwg.mxu0
  %7389 = vmatprep.subr.mxu0 0.0
  %7390 = vmatpush1.msra.mxu0 %v7236
  %7391 = vmatprep.subr.mxu0 0.0
  %7392 = vmatpush1.msra.mxu0 %v7231
  %7393 = vmatprep.subr.mxu0 0.0
  %7394 = vmatpush1.msra.mxu0 %v7226
  %7395 = vmatprep.subr.mxu0 0.0
  %7396 = vmatpush1.msra.mxu0 %v7221
  %7397 = vmatprep.subr.mxu0 0.0
  %7398 = vmatpush1.msra.mxu0 %v7216
  %7399 = vmatprep.subr.mxu0 0.0
  %7400 = vmatpush1.msra.mxu0 %v7211
  %7401 = vmatprep.subr.mxu0 0.0
  %7402 = vmatpush1.msra.mxu0 %v7206
  %7403 = vmatprep.subr.mxu0 0.0
  %7404 = vmatpush1.msra.mxu0 %v7201
  %7405 = vmatprep.subr.mxu0 0.0
  %7406 = vmatpush1.msra.mxu0 %v7196
  %7407 = vmatprep.subr.mxu0 0.0
  %7408 = vmatpush1.msra.mxu0 %v7191
  %7409 = vmatprep.subr.mxu0 0.0
  %7410 = vmatpush1.msra.mxu0 %v7186
  %7411 = vmatprep.subr.mxu0 0.0
  %7412 = vmatpush1.msra.mxu0 %v7181
  %7413 = vmatprep.subr.mxu0 0.0
  %7414 = vmatpush1.msra.mxu0 %v7176
  %7415 = vmatprep.subr.mxu0 0.0
  %7416 = vmatpush1.msra.mxu0 %v7171
  %7417 = vmatprep.subr.mxu0 0.0
  %7418 = vmatpush1.msra.mxu0 %v7166
  %7419 = vmatprep.subr.mxu0 0.0
  %7420 = vmatpush1.msra.mxu0 %v7161
  %7421 = vmatprep.subr.mxu0 0.0
  %7422 = vmatpush2.msra.mxu0 %v7316
  %7423 = vmatprep.subr.mxu0 0.0
  %7424 = vmatpush2.msra.mxu0 %v7311
  %7425 = vmatprep.subr.mxu0 0.0
  %7426 = vmatpush2.msra.mxu0 %v7306
  %7427 = vmatprep.subr.mxu0 0.0
  %7428 = vmatpush2.msra.mxu0 %v7301
  %7429 = vmatprep.subr.mxu0 0.0
  %7430 = vmatpush2.msra.mxu0 %v7296
  %7431 = vmatprep.subr.mxu0 0.0
  %7432 = vmatpush2.msra.mxu0 %v7291
  %7433 = vmatprep.subr.mxu0 0.0
  %7434 = vmatpush2.msra.mxu0 %v7286
  %7435 = vmatprep.subr.mxu0 0.0
  %7436 = vmatpush2.msra.mxu0 %v7281
  %7437 = vmatprep.subr.mxu0 0.0
  %7438 = vmatpush2.msra.mxu0 %v7276
  %7439 = vmatprep.subr.mxu0 0.0
  %7440 = vmatpush2.msra.mxu0 %v7271
  %7441 = vmatprep.subr.mxu0 0.0
  %7442 = vmatpush2.msra.mxu0 %v7266
  %7443 = vmatprep.subr.mxu0 0.0
  %7444 = vmatpush2.msra.mxu0 %v7261
  %7445 = vmatprep.subr.mxu0 0.0
  %7446 = vmatpush2.msra.mxu0 %v7256
  %7447 = vmatprep.subr.mxu0 0.0
  %7448 = vmatpush2.msra.mxu0 %v7251
  %7449 = vmatprep.subr.mxu0 0.0
  %7450 = vmatpush2.msra.mxu0 %v7246
  %7451 = vmatprep.subr.mxu0 0.0
  %7452 = vmatpush2.msra.mxu0 %v7241
  %7453 = vmatprep.mubr.f32.mxu0 1.0
  %7454 = vmatmul.mubr.f32.gmra.mxu0 1.0
  %v7455 = vpop.f32.mrf.mxu0
  %v7456 = vadd.f32 %v7386, %v7455
  %v7457 = vpop.f32.mrf.mxu0
  %7458 = vdwg.mxu0
  %v7459 = vmul.f32 %v7001, %v7001
  %v7460 = vmul.f32 %v7006, %v7006
  %v7461 = vmul.f32 %v7011, %v7011
  %v7462 = vmul.f32 %v7016, %v7016
  %v7463 = vmul.f32 %v7021, %v7021
  %v7464 = vmul.f32 %v7026, %v7026
  %v7465 = vmul.f32 %v7031, %v7031
  %v7466 = vmul.f32 %v7036, %v7036
  %v7467 = vmul.f32 %v7041, %v7041
  %v7468 = vmul.f32 %v7046, %v7046
  %v7469 = vmul.f32 %v7051, %v7051
  %v7470 = vmul.f32 %v7056, %v7056
  %v7471 = vmul.f32 %v7061, %v7061
  %v7472 = vmul.f32 %v7066, %v7066
  %v7473 = vmul.f32 %v7071, %v7071
  %v7474 = vmul.f32 %v7076, %v7076
  %v7475 = vmul.f32 %v7081, %v7081
  %v7476 = vmul.f32 %v7086, %v7086
  %v7477 = vmul.f32 %v7091, %v7091
  %v7478 = vmul.f32 %v7096, %v7096
  %v7479 = vmul.f32 %v7101, %v7101
  %v7480 = vmul.f32 %v7106, %v7106
  %v7481 = vmul.f32 %v7111, %v7111
  %v7482 = vmul.f32 %v7116, %v7116
  %v7483 = vmul.f32 %v7121, %v7121
  %v7484 = vmul.f32 %v7126, %v7126
  %v7485 = vmul.f32 %v7131, %v7131
  %v7486 = vmul.f32 %v7136, %v7136
  %v7487 = vmul.f32 %v7141, %v7141
  %v7488 = vmul.f32 %v7146, %v7146
  %v7489 = vmul.f32 %v7151, %v7151
  %v7490 = vmul.f32 %v7156, %v7156
  %v7491 = vmul.f32 %v7161, %v7161
  %v7492 = vmul.f32 %v7166, %v7166
  %v7493 = vmul.f32 %v7171, %v7171
  %v7494 = vmul.f32 %v7176, %v7176
  %v7495 = vmul.f32 %v7181, %v7181
  %v7496 = vmul.f32 %v7186, %v7186
  %v7497 = vmul.f32 %v7191, %v7191
  %v7498 = vmul.f32 %v7196, %v7196
  %v7499 = vmul.f32 %v7201, %v7201
  %v7500 = vmul.f32 %v7206, %v7206
  %v7501 = vmul.f32 %v7211, %v7211
  %v7502 = vmul.f32 %v7216, %v7216
  %v7503 = vmul.f32 %v7221, %v7221
  %v7504 = vmul.f32 %v7226, %v7226
  %v7505 = vmul.f32 %v7231, %v7231
  %v7506 = vmul.f32 %v7236, %v7236
  %v7507 = vmul.f32 %v7241, %v7241
  %v7508 = vmul.f32 %v7246, %v7246
  %v7509 = vmul.f32 %v7251, %v7251
  %v7510 = vmul.f32 %v7256, %v7256
  %v7511 = vmul.f32 %v7261, %v7261
  %v7512 = vmul.f32 %v7266, %v7266
  %v7513 = vmul.f32 %v7271, %v7271
  %v7514 = vmul.f32 %v7276, %v7276
  %v7515 = vmul.f32 %v7281, %v7281
  %v7516 = vmul.f32 %v7286, %v7286
  %v7517 = vmul.f32 %v7291, %v7291
  %v7518 = vmul.f32 %v7296, %v7296
  %v7519 = vmul.f32 %v7301, %v7301
  %v7520 = vmul.f32 %v7306, %v7306
  %v7521 = vmul.f32 %v7311, %v7311
  %v7522 = vmul.f32 %v7316, %v7316
  %7523 = vmatprep.subr.mxu0 0.0
  %7524 = vmatpush1.msra.mxu0 %v7474
  %7525 = vmatprep.subr.mxu0 0.0
  %7526 = vmatpush1.msra.mxu0 %v7473
  %7527 = vmatprep.subr.mxu0 0.0
  %7528 = vmatpush1.msra.mxu0 %v7472
  %7529 = vmatprep.subr.mxu0 0.0
  %7530 = vmatpush1.msra.mxu0 %v7471
  %7531 = vmatprep.subr.mxu0 0.0
  %7532 = vmatpush1.msra.mxu0 %v7470
  %7533 = vmatprep.subr.mxu0 0.0
  %7534 = vmatpush1.msra.mxu0 %v7469
  %7535 = vmatprep.subr.mxu0 0.0
  %7536 = vmatpush1.msra.mxu0 %v7468
  %7537 = vmatprep.subr.mxu0 0.0
  %7538 = vmatpush1.msra.mxu0 %v7467
  %7539 = vmatprep.subr.mxu0 0.0
  %7540 = vmatpush1.msra.mxu0 %v7466
  %7541 = vmatprep.subr.mxu0 0.0
  %7542 = vmatpush1.msra.mxu0 %v7465
  %7543 = vmatprep.subr.mxu0 0.0
  %7544 = vmatpush1.msra.mxu0 %v7464
  %7545 = vmatprep.subr.mxu0 0.0
  %7546 = vmatpush1.msra.mxu0 %v7463
  %7547 = vmatprep.subr.mxu0 0.0
  %7548 = vmatpush1.msra.mxu0 %v7462
  %7549 = vmatprep.subr.mxu0 0.0
  %7550 = vmatpush1.msra.mxu0 %v7461
  %7551 = vmatprep.subr.mxu0 0.0
  %7552 = vmatpush1.msra.mxu0 %v7460
  %7553 = vmatprep.subr.mxu0 0.0
  %7554 = vmatpush1.msra.mxu0 %v7459
  %7555 = vmatprep.subr.mxu0 0.0
  %7556 = vmatpush2.msra.mxu0 %v7490
  %7557 = vmatprep.subr.mxu0 0.0
  %7558 = vmatpush2.msra.mxu0 %v7489
  %7559 = vmatprep.subr.mxu0 0.0
  %7560 = vmatpush2.msra.mxu0 %v7488
  %7561 = vmatprep.subr.mxu0 0.0
  %7562 = vmatpush2.msra.mxu0 %v7487
  %7563 = vmatprep.subr.mxu0 0.0
  %7564 = vmatpush2.msra.mxu0 %v7486
  %7565 = vmatprep.subr.mxu0 0.0
  %7566 = vmatpush2.msra.mxu0 %v7485
  %7567 = vmatprep.subr.mxu0 0.0
  %7568 = vmatpush2.msra.mxu0 %v7484
  %7569 = vmatprep.subr.mxu0 0.0
  %7570 = vmatpush2.msra.mxu0 %v7483
  %7571 = vmatprep.subr.mxu0 0.0
  %7572 = vmatpush2.msra.mxu0 %v7482
  %7573 = vmatprep.subr.mxu0 0.0
  %7574 = vmatpush2.msra.mxu0 %v7481
  %7575 = vmatprep.subr.mxu0 0.0
  %7576 = vmatpush2.msra.mxu0 %v7480
  %7577 = vmatprep.subr.mxu0 0.0
  %7578 = vmatpush2.msra.mxu0 %v7479
  %7579 = vmatprep.subr.mxu0 0.0
  %7580 = vmatpush2.msra.mxu0 %v7478
  %7581 = vmatprep.subr.mxu0 0.0
  %7582 = vmatpush2.msra.mxu0 %v7477
  %7583 = vmatprep.subr.mxu0 0.0
  %7584 = vmatpush2.msra.mxu0 %v7476
  %7585 = vmatprep.subr.mxu0 0.0
  %7586 = vmatpush2.msra.mxu0 %v7475
  %7587 = vmatprep.mubr.f32.mxu0 1.0
  %7588 = vmatmul.mubr.f32.gmra.mxu0 1.0
  %v7589 = vpop.f32.mrf.mxu0
  %v7590 = vadd.f32 0.0, %v7589
  %v7591 = vpop.f32.mrf.mxu0
  %7592 = vdwg.mxu0
  %7593 = vmatprep.subr.mxu0 0.0
  %7594 = vmatpush1.msra.mxu0 %v7506
  %7595 = vmatprep.subr.mxu0 0.0
  %7596 = vmatpush1.msra.mxu0 %v7505
  %7597 = vmatprep.subr.mxu0 0.0
  %7598 = vmatpush1.msra.mxu0 %v7504
  %7599 = vmatprep.subr.mxu0 0.0
  %7600 = vmatpush1.msra.mxu0 %v7503
  %7601 = vmatprep.subr.mxu0 0.0
  %7602 = vmatpush1.msra.mxu0 %v7502
  %7603 = vmatprep.subr.mxu0 0.0
  %7604 = vmatpush1.msra.mxu0 %v7501
  %7605 = vmatprep.subr.mxu0 0.0
  %7606 = vmatpush1.msra.mxu0 %v7500
  %7607 = vmatprep.subr.mxu0 0.0
  %7608 = vmatpush1.msra.mxu0 %v7499
  %7609 = vmatprep.subr.mxu0 0.0
  %7610 = vmatpush1.msra.mxu0 %v7498
  %7611 = vmatprep.subr.mxu0 0.0
  %7612 = vmatpush1.msra.mxu0 %v7497
  %7613 = vmatprep.subr.mxu0 0.0
  %7614 = vmatpush1.msra.mxu0 %v7496
  %7615 = vmatprep.subr.mxu0 0.0
  %7616 = vmatpush1.msra.mxu0 %v7495
  %7617 = vmatprep.subr.mxu0 0.0
  %7618 = vmatpush1.msra.mxu0 %v7494
  %7619 = vmatprep.subr.mxu0 0.0
  %7620 = vmatpush1.msra.mxu0 %v7493
  %7621 = vmatprep.subr.mxu0 0.0
  %7622 = vmatpush1.msra.mxu0 %v7492
  %7623 = vmatprep.subr.mxu0 0.0
  %7624 = vmatpush1.msra.mxu0 %v7491
  %7625 = vmatprep.subr.mxu0 0.0
  %7626 = vmatpush2.msra.mxu0 %v7522
  %7627 = vmatprep.subr.mxu0 0.0
  %7628 = vmatpush2.msra.mxu0 %v7521
  %7629 = vmatprep.subr.mxu0 0.0
  %7630 = vmatpush2.msra.mxu0 %v7520
  %7631 = vmatprep.subr.mxu0 0.0
  %7632 = vmatpush2.msra.mxu0 %v7519
  %7633 = vmatprep.subr.mxu0 0.0
  %7634 = vmatpush2.msra.mxu0 %v7518
  %7635 = vmatprep.subr.mxu0 0.0
  %7636 = vmatpush2.msra.mxu0 %v7517
  %7637 = vmatprep.subr.mxu0 0.0
  %7638 = vmatpush2.msra.mxu0 %v7516
  %7639 = vmatprep.subr.mxu0 0.0
  %7640 = vmatpush2.msra.mxu0 %v7515
  %7641 = vmatprep.subr.mxu0 0.0
  %7642 = vmatpush2.msra.mxu0 %v7514
  %7643 = vmatprep.subr.mxu0 0.0
  %7644 = vmatpush2.msra.mxu0 %v7513
  %7645 = vmatprep.subr.mxu0 0.0
  %7646 = vmatpush2.msra.mxu0 %v7512
  %7647 = vmatprep.subr.mxu0 0.0
  %7648 = vmatpush2.msra.mxu0 %v7511
  %7649 = vmatprep.subr.mxu0 0.0
  %7650 = vmatpush2.msra.mxu0 %v7510
  %7651 = vmatprep.subr.mxu0 0.0
  %7652 = vmatpush2.msra.mxu0 %v7509
  %7653 = vmatprep.subr.mxu0 0.0
  %7654 = vmatpush2.msra.mxu0 %v7508
  %7655 = vmatprep.subr.mxu0 0.0
  %7656 = vmatpush2.msra.mxu0 %v7507
  %7657 = vmatprep.mubr.f32.mxu0 1.0
  %7658 = vmatmul.mubr.f32.gmra.mxu0 1.0
  %v7659 = vpop.f32.mrf.mxu0
  %v7660 = vadd.f32 %v7590, %v7659
  %v7661 = vpop.f32.mrf.mxu0
  %7662 = vdwg.mxu0
  %v7663 = vmul.f32 %v7456, 0.001953125
  %v7664 = vmul.f32 %v7660, 0.001953125
  %v7665 = vmul.f32 %v7663, %v7663
  %v7666 = vsub.f32 %v7664, %v7665
  %v7667 = vadd.f32 %v7666, 1e-05
  %v7668 = vrsqrt.pop %v7667
  %v7669 = vmul.f32 %v4113, %v7668
  %v7670 = vmul.f32 %v7663, %v7669
  %v7671 = vsub.f32 %v4114, %v7670
  %v7673 = vlaneseq
  %v7674 = vshrl.u32 %v7673, 7
  %v7675 = vsub.s32 0, %v7674
  %v7676 = vrot.slane %v7669, %v7675
  %v7678 = vmul.f32 %v7001, %v7676
  %v7679 = vmul.f32 %v7006, %v7676
  %v7680 = vmul.f32 %v7011, %v7676
  %v7681 = vmul.f32 %v7016, %v7676
  %v7682 = vmul.f32 %v7021, %v7676
  %v7683 = vmul.f32 %v7026, %v7676
  %v7684 = vmul.f32 %v7031, %v7676
  %v7685 = vmul.f32 %v7036, %v7676
  %v7686 = vmul.f32 %v7041, %v7676
  %v7687 = vmul.f32 %v7046, %v7676
  %v7688 = vmul.f32 %v7051, %v7676
  %v7689 = vmul.f32 %v7056, %v7676
  %v7690 = vmul.f32 %v7061, %v7676
  %v7691 = vmul.f32 %v7066, %v7676
  %v7692 = vmul.f32 %v7071, %v7676
  %v7693 = vmul.f32 %v7076, %v7676
  %v7694 = vmul.f32 %v7081, %v7676
  %v7695 = vmul.f32 %v7086, %v7676
  %v7696 = vmul.f32 %v7091, %v7676
  %v7697 = vmul.f32 %v7096, %v7676
  %v7698 = vmul.f32 %v7101, %v7676
  %v7699 = vmul.f32 %v7106, %v7676
  %v7700 = vmul.f32 %v7111, %v7676
  %v7701 = vmul.f32 %v7116, %v7676
  %v7702 = vmul.f32 %v7121, %v7676
  %v7703 = vmul.f32 %v7126, %v7676
  %v7704 = vmul.f32 %v7131, %v7676
  %v7705 = vmul.f32 %v7136, %v7676
  %v7706 = vmul.f32 %v7141, %v7676
  %v7707 = vmul.f32 %v7146, %v7676
  %v7708 = vmul.f32 %v7151, %v7676
  %v7709 = vmul.f32 %v7156, %v7676
  %v7710 = vmul.f32 %v7161, %v7676
  %v7711 = vmul.f32 %v7166, %v7676
  %v7712 = vmul.f32 %v7171, %v7676
  %v7713 = vmul.f32 %v7176, %v7676
  %v7714 = vmul.f32 %v7181, %v7676
  %v7715 = vmul.f32 %v7186, %v7676
  %v7716 = vmul.f32 %v7191, %v7676
  %v7717 = vmul.f32 %v7196, %v7676
  %v7718 = vmul.f32 %v7201, %v7676
  %v7719 = vmul.f32 %v7206, %v7676
  %v7720 = vmul.f32 %v7211, %v7676
  %v7721 = vmul.f32 %v7216, %v7676
  %v7722 = vmul.f32 %v7221, %v7676
  %v7723 = vmul.f32 %v7226, %v7676
  %v7724 = vmul.f32 %v7231, %v7676
  %v7725 = vmul.f32 %v7236, %v7676
  %v7726 = vmul.f32 %v7241, %v7676
  %v7727 = vmul.f32 %v7246, %v7676
  %v7728 = vmul.f32 %v7251, %v7676
  %v7729 = vmul.f32 %v7256, %v7676
  %v7730 = vmul.f32 %v7261, %v7676
  %v7731 = vmul.f32 %v7266, %v7676
  %v7732 = vmul.f32 %v7271, %v7676
  %v7733 = vmul.f32 %v7276, %v7676
  %v7734 = vmul.f32 %v7281, %v7676
  %v7735 = vmul.f32 %v7286, %v7676
  %v7736 = vmul.f32 %v7291, %v7676
  %v7737 = vmul.f32 %v7296, %v7676
  %v7738 = vmul.f32 %v7301, %v7676
  %v7739 = vmul.f32 %v7306, %v7676
  %v7740 = vmul.f32 %v7311, %v7676
  %v7741 = vmul.f32 %v7316, %v7676
  %v7743 = vlaneseq
  %v7744 = vshrl.u32 %v7743, 7
  %v7745 = vsub.s32 0, %v7744
  %v7746 = vrot.slane %v7671, %v7745
  %v7748 = vadd.f32 %v7678, %v7746
  %v7749 = vadd.f32 %v7679, %v7746
  %v7750 = vadd.f32 %v7680, %v7746
  %v7751 = vadd.f32 %v7681, %v7746
  %v7752 = vadd.f32 %v7682, %v7746
  %v7753 = vadd.f32 %v7683, %v7746
  %v7754 = vadd.f32 %v7684, %v7746
  %v7755 = vadd.f32 %v7685, %v7746
  %v7756 = vadd.f32 %v7686, %v7746
  %v7757 = vadd.f32 %v7687, %v7746
  %v7758 = vadd.f32 %v7688, %v7746
  %v7759 = vadd.f32 %v7689, %v7746
  %v7760 = vadd.f32 %v7690, %v7746
  %v7761 = vadd.f32 %v7691, %v7746
  %v7762 = vadd.f32 %v7692, %v7746
  %v7763 = vadd.f32 %v7693, %v7746
  %v7764 = vadd.f32 %v7694, %v7746
  %v7765 = vadd.f32 %v7695, %v7746
  %v7766 = vadd.f32 %v7696, %v7746
  %v7767 = vadd.f32 %v7697, %v7746
  %v7768 = vadd.f32 %v7698, %v7746
  %v7769 = vadd.f32 %v7699, %v7746
  %v7770 = vadd.f32 %v7700, %v7746
  %v7771 = vadd.f32 %v7701, %v7746
  %v7772 = vadd.f32 %v7702, %v7746
  %v7773 = vadd.f32 %v7703, %v7746
  %v7774 = vadd.f32 %v7704, %v7746
  %v7775 = vadd.f32 %v7705, %v7746
  %v7776 = vadd.f32 %v7706, %v7746
  %v7777 = vadd.f32 %v7707, %v7746
  %v7778 = vadd.f32 %v7708, %v7746
  %v7779 = vadd.f32 %v7709, %v7746
  %v7780 = vadd.f32 %v7710, %v7746
  %v7781 = vadd.f32 %v7711, %v7746
  %v7782 = vadd.f32 %v7712, %v7746
  %v7783 = vadd.f32 %v7713, %v7746
  %v7784 = vadd.f32 %v7714, %v7746
  %v7785 = vadd.f32 %v7715, %v7746
  %v7786 = vadd.f32 %v7716, %v7746
  %v7787 = vadd.f32 %v7717, %v7746
  %v7788 = vadd.f32 %v7718, %v7746
  %v7789 = vadd.f32 %v7719, %v7746
  %v7790 = vadd.f32 %v7720, %v7746
  %v7791 = vadd.f32 %v7721, %v7746
  %v7792 = vadd.f32 %v7722, %v7746
  %v7793 = vadd.f32 %v7723, %v7746
  %v7794 = vadd.f32 %v7724, %v7746
  %v7795 = vadd.f32 %v7725, %v7746
  %v7796 = vadd.f32 %v7726, %v7746
  %v7797 = vadd.f32 %v7727, %v7746
  %v7798 = vadd.f32 %v7728, %v7746
  %v7799 = vadd.f32 %v7729, %v7746
  %v7800 = vadd.f32 %v7730, %v7746
  %v7801 = vadd.f32 %v7731, %v7746
  %v7802 = vadd.f32 %v7732, %v7746
  %v7803 = vadd.f32 %v7733, %v7746
  %v7804 = vadd.f32 %v7734, %v7746
  %v7805 = vadd.f32 %v7735, %v7746
  %v7806 = vadd.f32 %v7736, %v7746
  %v7807 = vadd.f32 %v7737, %v7746
  %v7808 = vadd.f32 %v7738, %v7746
  %v7809 = vadd.f32 %v7739, %v7746
  %v7810 = vadd.f32 %v7740, %v7746
  %v7811 = vadd.f32 %v7741, %v7746
  %v7812 = vadd.f32 %v7748, %v26
  %v7813 = vadd.f32 %v7749, %v27
  %v7814 = vadd.f32 %v7750, %v28
  %v7815 = vadd.f32 %v7751, %v29
  %v7816 = vadd.f32 %v7752, %v30
  %v7817 = vadd.f32 %v7753, %v31
  %v7818 = vadd.f32 %v7754, %v32
  %v7819 = vadd.f32 %v7755, %v33
  %v7820 = vadd.f32 %v7756, %v34
  %v7821 = vadd.f32 %v7757, %v35
  %v7822 = vadd.f32 %v7758, %v36
  %v7823 = vadd.f32 %v7759, %v37
  %v7824 = vadd.f32 %v7760, %v38
  %v7825 = vadd.f32 %v7761, %v39
  %v7826 = vadd.f32 %v7762, %v40
  %v7827 = vadd.f32 %v7763, %v41
  %v7828 = vadd.f32 %v7764, %v42
  %v7829 = vadd.f32 %v7765, %v43
  %v7830 = vadd.f32 %v7766, %v44
  %v7831 = vadd.f32 %v7767, %v45
  %v7832 = vadd.f32 %v7768, %v46
  %v7833 = vadd.f32 %v7769, %v47
  %v7834 = vadd.f32 %v7770, %v48
  %v7835 = vadd.f32 %v7771, %v49
  %v7836 = vadd.f32 %v7772, %v50
  %v7837 = vadd.f32 %v7773, %v51
  %v7838 = vadd.f32 %v7774, %v52
  %v7839 = vadd.f32 %v7775, %v53
  %v7840 = vadd.f32 %v7776, %v54
  %v7841 = vadd.f32 %v7777, %v55
  %v7842 = vadd.f32 %v7778, %v56
  %v7843 = vadd.f32 %v7779, %v57
  %v7844 = vadd.f32 %v7780, %v58
  %v7845 = vadd.f32 %v7781, %v59
  %v7846 = vadd.f32 %v7782, %v60
  %v7847 = vadd.f32 %v7783, %v61
  %v7848 = vadd.f32 %v7784, %v62
  %v7849 = vadd.f32 %v7785, %v63
  %v7850 = vadd.f32 %v7786, %v64
  %v7851 = vadd.f32 %v7787, %v65
  %v7852 = vadd.f32 %v7788, %v66
  %v7853 = vadd.f32 %v7789, %v67
  %v7854 = vadd.f32 %v7790, %v68
  %v7855 = vadd.f32 %v7791, %v69
  %v7856 = vadd.f32 %v7792, %v70
  %v7857 = vadd.f32 %v7793, %v71
  %v7858 = vadd.f32 %v7794, %v72
  %v7859 = vadd.f32 %v7795, %v73
  %v7860 = vadd.f32 %v7796, %v74
  %v7861 = vadd.f32 %v7797, %v75
  %v7862 = vadd.f32 %v7798, %v76
  %v7863 = vadd.f32 %v7799, %v77
  %v7864 = vadd.f32 %v7800, %v78
  %v7865 = vadd.f32 %v7801, %v79
  %v7866 = vadd.f32 %v7802, %v80
  %v7867 = vadd.f32 %v7803, %v81
  %v7868 = vadd.f32 %v7804, %v82
  %v7869 = vadd.f32 %v7805, %v83
  %v7870 = vadd.f32 %v7806, %v84
  %v7871 = vadd.f32 %v7807, %v85
  %v7872 = vadd.f32 %v7808, %v86
  %v7873 = vadd.f32 %v7809, %v87
  %v7874 = vadd.f32 %v7810, %v88
  %v7875 = vadd.f32 %v7811, %v89
  %v7876 = vmax.f32 %v7812, 0.0
  %v7877 = vmax.f32 %v7813, 0.0
  %v7878 = vmax.f32 %v7814, 0.0
  %v7879 = vmax.f32 %v7815, 0.0
  %v7880 = vmax.f32 %v7816, 0.0
  %v7881 = vmax.f32 %v7817, 0.0
  %v7882 = vmax.f32 %v7818, 0.0
  %v7883 = vmax.f32 %v7819, 0.0
  %v7884 = vmax.f32 %v7820, 0.0
  %v7885 = vmax.f32 %v7821, 0.0
  %v7886 = vmax.f32 %v7822, 0.0
  %v7887 = vmax.f32 %v7823, 0.0
  %v7888 = vmax.f32 %v7824, 0.0
  %v7889 = vmax.f32 %v7825, 0.0
  %v7890 = vmax.f32 %v7826, 0.0
  %v7891 = vmax.f32 %v7827, 0.0
  %v7892 = vmax.f32 %v7828, 0.0
  %v7893 = vmax.f32 %v7829, 0.0
  %v7894 = vmax.f32 %v7830, 0.0
  %v7895 = vmax.f32 %v7831, 0.0
  %v7896 = vmax.f32 %v7832, 0.0
  %v7897 = vmax.f32 %v7833, 0.0
  %v7898 = vmax.f32 %v7834, 0.0
  %v7899 = vmax.f32 %v7835, 0.0
  %v7900 = vmax.f32 %v7836, 0.0
  %v7901 = vmax.f32 %v7837, 0.0
  %v7902 = vmax.f32 %v7838, 0.0
  %v7903 = vmax.f32 %v7839, 0.0
  %v7904 = vmax.f32 %v7840, 0.0
  %v7905 = vmax.f32 %v7841, 0.0
  %v7906 = vmax.f32 %v7842, 0.0
  %v7907 = vmax.f32 %v7843, 0.0
  %v7908 = vmax.f32 %v7844, 0.0
  %v7909 = vmax.f32 %v7845, 0.0
  %v7910 = vmax.f32 %v7846, 0.0
  %v7911 = vmax.f32 %v7847, 0.0
  %v7912 = vmax.f32 %v7848, 0.0
  %v7913 = vmax.f32 %v7849, 0.0
  %v7914 = vmax.f32 %v7850, 0.0
  %v7915 = vmax.f32 %v7851, 0.0
  %v7916 = vmax.f32 %v7852, 0.0
  %v7917 = vmax.f32 %v7853, 0.0
  %v7918 = vmax.f32 %v7854, 0.0
  %v7919 = vmax.f32 %v7855, 0.0
  %v7920 = vmax.f32 %v7856, 0.0
  %v7921 = vmax.f32 %v7857, 0.0
  %v7922 = vmax.f32 %v7858, 0.0
  %v7923 = vmax.f32 %v7859, 0.0
  %v7924 = vmax.f32 %v7860, 0.0
  %v7925 = vmax.f32 %v7861, 0.0
  %v7926 = vmax.f32 %v7862, 0.0
  %v7927 = vmax.f32 %v7863, 0.0
  %v7928 = vmax.f32 %v7864, 0.0
  %v7929 = vmax.f32 %v7865, 0.0
  %v7930 = vmax.f32 %v7866, 0.0
  %v7931 = vmax.f32 %v7867, 0.0
  %v7932 = vmax.f32 %v7868, 0.0
  %v7933 = vmax.f32 %v7869, 0.0
  %v7934 = vmax.f32 %v7870, 0.0
  %v7935 = vmax.f32 %v7871, 0.0
  %v7936 = vmax.f32 %v7872, 0.0
  %v7937 = vmax.f32 %v7873, 0.0
  %v7938 = vmax.f32 %v7874, 0.0
  %v7939 = vmax.f32 %v7875, 0.0
  %7940 = vst.msk [vmem:[%s7] sm:$0xff] %vm90, %v7876
  %7941 = vst.msk [vmem:[%s7 + $0x8] sm:$0xff] %vm90, %v7877
  %7942 = vst.msk [vmem:[%s7 + $0x10] sm:$0xff] %vm90, %v7878
  %7943 = vst.msk [vmem:[%s7 + $0x18] sm:$0xff] %vm90, %v7879
  %7944 = vst.msk [vmem:[%s7 + $0x20] sm:$0xff] %vm90, %v7880
  %7945 = vst.msk [vmem:[%s7 + $0x28] sm:$0xff] %vm90, %v7881
  %7946 = vst.msk [vmem:[%s7 + $0x30] sm:$0xff] %vm90, %v7882
  %7947 = vst.msk [vmem:[%s7 + $0x38] sm:$0xff] %vm90, %v7883
  %7948 = vst.msk [vmem:[%s7 + $0x40] sm:$0xff] %vm90, %v7884
  %7949 = vst.msk [vmem:[%s7 + $0x48] sm:$0xff] %vm90, %v7885
  %7950 = vst.msk [vmem:[%s7 + $0x50] sm:$0xff] %vm90, %v7886
  %7951 = vst.msk [vmem:[%s7 + $0x58] sm:$0xff] %vm90, %v7887
  %7952 = vst.msk [vmem:[%s7 + $0x60] sm:$0xff] %vm90, %v7888
  %7953 = vst.msk [vmem:[%s7 + $0x68] sm:$0xff] %vm90, %v7889
  %7954 = vst.msk [vmem:[%s7 + $0x70] sm:$0xff] %vm90, %v7890
  %7955 = vst.msk [vmem:[%s7 + $0x78] sm:$0xff] %vm90, %v7891
  %7956 = vst.msk [vmem:[%s7 + $0x80] sm:$0xff] %vm90, %v7892
  %7957 = vst.msk [vmem:[%s7 + $0x88] sm:$0xff] %vm90, %v7893
  %7958 = vst.msk [vmem:[%s7 + $0x90] sm:$0xff] %vm90, %v7894
  %7959 = vst.msk [vmem:[%s7 + $0x98] sm:$0xff] %vm90, %v7895
  %7960 = vst.msk [vmem:[%s7 + $0xa0] sm:$0xff] %vm90, %v7896
  %7961 = vst.msk [vmem:[%s7 + $0xa8] sm:$0xff] %vm90, %v7897
  %7962 = vst.msk [vmem:[%s7 + $0xb0] sm:$0xff] %vm90, %v7898
  %7963 = vst.msk [vmem:[%s7 + $0xb8] sm:$0xff] %vm90, %v7899
  %7964 = vst.msk [vmem:[%s7 + $0xc0] sm:$0xff] %vm90, %v7900
  %7965 = vst.msk [vmem:[%s7 + $0xc8] sm:$0xff] %vm90, %v7901
  %7966 = vst.msk [vmem:[%s7 + $0xd0] sm:$0xff] %vm90, %v7902
  %7967 = vst.msk [vmem:[%s7 + $0xd8] sm:$0xff] %vm90, %v7903
  %7968 = vst.msk [vmem:[%s7 + $0xe0] sm:$0xff] %vm90, %v7904
  %7969 = vst.msk [vmem:[%s7 + $0xe8] sm:$0xff] %vm90, %v7905
  %7970 = vst.msk [vmem:[%s7 + $0xf0] sm:$0xff] %vm90, %v7906
  %7971 = vst.msk [vmem:[%s7 + $0xf8] sm:$0xff] %vm90, %v7907
  %7972 = vst.msk [vmem:[%s7 + $0x100] sm:$0xff] %vm90, %v7908
  %7973 = vst.msk [vmem:[%s7 + $0x108] sm:$0xff] %vm90, %v7909
  %7974 = vst.msk [vmem:[%s7 + $0x110] sm:$0xff] %vm90, %v7910
  %7975 = vst.msk [vmem:[%s7 + $0x118] sm:$0xff] %vm90, %v7911
  %7976 = vst.msk [vmem:[%s7 + $0x120] sm:$0xff] %vm90, %v7912
  %7977 = vst.msk [vmem:[%s7 + $0x128] sm:$0xff] %vm90, %v7913
  %7978 = vst.msk [vmem:[%s7 + $0x130] sm:$0xff] %vm90, %v7914
  %7979 = vst.msk [vmem:[%s7 + $0x138] sm:$0xff] %vm90, %v7915
  %7980 = vst.msk [vmem:[%s7 + $0x140] sm:$0xff] %vm90, %v7916
  %7981 = vst.msk [vmem:[%s7 + $0x148] sm:$0xff] %vm90, %v7917
  %7982 = vst.msk [vmem:[%s7 + $0x150] sm:$0xff] %vm90, %v7918
  %7983 = vst.msk [vmem:[%s7 + $0x158] sm:$0xff] %vm90, %v7919
  %7984 = vst.msk [vmem:[%s7 + $0x160] sm:$0xff] %vm90, %v7920
  %7985 = vst.msk [vmem:[%s7 + $0x168] sm:$0xff] %vm90, %v7921
  %7986 = vst.msk [vmem:[%s7 + $0x170] sm:$0xff] %vm90, %v7922
  %7987 = vst.msk [vmem:[%s7 + $0x178] sm:$0xff] %vm90, %v7923
  %7988 = vst.msk [vmem:[%s7 + $0x180] sm:$0xff] %vm90, %v7924
  %7989 = vst.msk [vmem:[%s7 + $0x188] sm:$0xff] %vm90, %v7925
  %7990 = vst.msk [vmem:[%s7 + $0x190] sm:$0xff] %vm90, %v7926
  %7991 = vst.msk [vmem:[%s7 + $0x198] sm:$0xff] %vm90, %v7927
  %7992 = vst.msk [vmem:[%s7 + $0x1a0] sm:$0xff] %vm90, %v7928
  %7993 = vst.msk [vmem:[%s7 + $0x1a8] sm:$0xff] %vm90, %v7929
  %7994 = vst.msk [vmem:[%s7 + $0x1b0] sm:$0xff] %vm90, %v7930
  %7995 = vst.msk [vmem:[%s7 + $0x1b8] sm:$0xff] %vm90, %v7931
  %7996 = vst.msk [vmem:[%s7 + $0x1c0] sm:$0xff] %vm90, %v7932
  %7997 = vst.msk [vmem:[%s7 + $0x1c8] sm:$0xff] %vm90, %v7933
  %7998 = vst.msk [vmem:[%s7 + $0x1d0] sm:$0xff] %vm90, %v7934
  %7999 = vst.msk [vmem:[%s7 + $0x1d8] sm:$0xff] %vm90, %v7935
  %8000 = vst.msk [vmem:[%s7 + $0x1e0] sm:$0xff] %vm90, %v7936
  %8001 = vst.msk [vmem:[%s7 + $0x1e8] sm:$0xff] %vm90, %v7937
  %8002 = vst.msk [vmem:[%s7 + $0x1f0] sm:$0xff] %vm90, %v7938
  %8003 = vst.msk [vmem:[%s7 + $0x1f8] sm:$0xff] %vm90, %v7939
  // Predicated region
  $region30: #{basic_block_forward.1} parent=0 // pred_check
    _
  $region31: #{basic_block_forward.1} parent=0 // pred_check_branch
    %8005 = sbr.rel (0) target = $region33
  $region32: #{basic_block_forward.1} parent=0 // pred_region
    _
  $region33: #{basic_block_forward.1} parent=0 // pred_fallthru
    _
  // Predicated region
  $region34: #{basic_block_forward.1} parent=0 // pred_check
    _
  $region35: #{basic_block_forward.1} parent=0 // pred_check_branch
    %8007 = sbr.rel (0) target = $region37
  $region36: #{basic_block_forward.1} parent=0 // pred_region
    _
  $region37: #{basic_block_forward.1} parent=0 // pred_fallthru
    _

</llo_original>
